<compile_context>
chip_gen: v5e
topology: v5e:2x2
jax: 0.10.0
libtpu: 0.0.40
codegen_flags: <defaults>
</compile_context>

<pallas_src>
import jax
import jax.numpy as jnp
from jax.experimental import pallas as pl
from jax.experimental.pallas import tpu as pltpu

S = 16                # "s" in the PyTorch module
LEAKY_SLOPE = 0.01    # nn.LeakyReLU default
BN_EPS = 1e-5         # nn.BatchNorm2d default

_VMEM_SPEC = pl.BlockSpec(memory_space=pltpu.MemorySpace.VMEM)


# --------------------------------------------------------------------------
# Pallas kernels
# --------------------------------------------------------------------------

def _conv_bn_pool_act_kernel(x_ref, w_ref, shift_ref, o_ref):
    """Fused Conv3x3(pad=1) + BatchNorm(eval) + MaxPool2d(3,3) + LeakyReLU, one batch element.

    x_ref:     (1, 9, Ho*Wo, 9*Cin)  plane p = ph*3+pw holds the 3x3 patches of the conv
                                     outputs located at offset (ph, pw) inside their pool window
    w_ref:     (9*Cin, Cout)         conv weights with the BN scale folded in
    shift_ref: (1, Cout)             folded BN shift (incl. conv bias)
    o_ref:     (1, Ho*Wo, Cout)      pooled + activated output

    Each dot computes 1/9th of the conv outputs (one pooling phase), so MaxPool2d(3,3)
    reduces to an elementwise max over the 9 phase results -- the conv intermediate never
    touches HBM.
    """
    w = w_ref[...]
    m = None
    for p in range(9):
        y = jnp.dot(x_ref[0, p], w, preferred_element_type=jnp.float32)
        m = y if m is None else jnp.maximum(m, y)
    m = m + shift_ref[...]                               # per-channel shift commutes with max
    o_ref[0] = jnp.where(m >= 0, m, LEAKY_SLOPE * m)     # LeakyReLU (applied post-pool, as in ref)


def _head_kernel(x_ref, w1_ref, b1_ref, w2_ref, b2_ref, w3_ref, b3_ref, o_ref):
    """Fused AdaptiveAvgPool2d((1,1)) + flatten + fc1 + LeakyReLU + fc2 + LeakyReLU + out."""
    x = x_ref[...]                                       # (N, Ho, Wo, C)
    s = jnp.sum(x, axis=2)                               # reduce W (sublane)
    s = jnp.sum(s, axis=1)                               # reduce H (leading)
    v = s * (1.0 / float(x_ref.shape[1] * x_ref.shape[2]))
    h = jnp.dot(v, w1_ref[...], preferred_element_type=jnp.float32) + b1_ref[...]
    h = jnp.where(h >= 0, h, LEAKY_SLOPE * h)            # self.relu is nn.LeakyReLU()
    h = jnp.dot(h, w2_ref[...], preferred_element_type=jnp.float32) + b2_ref[...]
    h = jnp.where(h >= 0, h, LEAKY_SLOPE * h)
    o_ref[...] = jnp.dot(h, w3_ref[...], preferred_element_type=jnp.float32) + b3_ref[...]


# --------------------------------------------------------------------------
# Wrappers (glue: BN folding, phase-plane gather -- all small, fused under jit)
# --------------------------------------------------------------------------

def conv_bn_pool_act(x_nhwc, w_oihw, conv_b, gamma, beta, mean, var):
    """One fused layer: conv3x3/s1/p1 + eval BatchNorm + MaxPool2d(3,3) + LeakyReLU (NHWC)."""
    n, h, w, cin = x_nhwc.shape
    cout = w_oihw.shape[0]
    ho, wo = h // 3, w // 3
    m_rows = ho * wo

    # Fold eval-mode BatchNorm (and conv bias) into a weight scale + per-channel shift.
    inv_std = gamma / jnp.sqrt(var + BN_EPS)
    shift = (beta + (conv_b - mean) * inv_std).reshape(1, cout)
    # (Cout, Cin, 3, 3) -> (3, 3, Cin, Cout) -> (9*Cin, Cout); row order (dh, dw, c).
    wmat = jnp.transpose(w_oihw * inv_std[:, None, None, None], (2, 3, 1, 0)).reshape(9 * cin, cout)

    # Phase-plane gather:
    #   xg[n, ph*3+pw, ho*Wo+wo, (dh*3+dw)*Cin+c] = x_pad[n, 3*ho+ph+dh, 3*wo+pw+dw, c]
    # built from a single 5x5-neighborhood gather of the padded input (the extra bottom /
    # right zero rows/cols are never selected; they only keep the strided-slice stops in range).
    xp = jnp.pad(x_nhwc, ((0, 0), (1, 3), (1, 3), (0, 0)))
    g = jnp.stack(
        [xp[:, f:f + 3 * ho:3, e:e + 3 * wo:3, :] for f in range(5) for e in range(5)],
        axis=3,
    ).reshape(n, ho, wo, 5, 5, cin)
    planes = [
        g[:, :, :, ph:ph + 3, pw:pw + 3, :].reshape(n, m_rows, 9 * cin)
        for ph in range(3) for pw in range(3)
    ]
    xg = jnp.stack(planes, axis=1)                       # (N, 9, Ho*Wo, 9*Cin)

    out = pl.pallas_call(
        _conv_bn_pool_act_kernel,
        out_shape=jax.ShapeDtypeStruct((n, m_rows, cout), jnp.float32),
        grid=(n,),
        in_specs=[
            pl.BlockSpec((1, 9, m_rows, 9 * cin), lambda i: (i, 0, 0, 0)),
            pl.BlockSpec((9 * cin, cout), lambda i: (0, 0)),
            pl.BlockSpec((1, cout), lambda i: (0, 0)),
        ],
        out_specs=pl.BlockSpec((1, m_rows, cout), lambda i: (i, 0, 0)),
        compiler_params=pltpu.CompilerParams(
            dimension_semantics=("parallel",),            # >=2 blocks -> both v7x TensorCores
            vmem_limit_bytes=32 * 1024 * 1024,
        ),
    )(xg, wmat, shift)
    return out.reshape(n, ho, wo, cout)


def head(x_nhwc, fc1, fc2, out_p):
    """Fused AdaptiveAvgPool2d((1,1)) + flatten + fc1/fc2/out in a single pallas_call."""
    n = x_nhwc.shape[0]
    (w1, b1), (w2, b2), (w3, b3) = fc1, fc2, out_p
    return pl.pallas_call(
        _head_kernel,
        out_shape=jax.ShapeDtypeStruct((n, w3.shape[0]), jnp.float32),
        in_specs=[_VMEM_SPEC] * 7,
        out_specs=_VMEM_SPEC,
    )(x_nhwc, w1.T, b1.reshape(1, -1), w2.T, b2.reshape(1, -1), w3.T, b3.reshape(1, -1))


# --------------------------------------------------------------------------
# Deterministic parameter initialization (shapes from the module's __init__)
# --------------------------------------------------------------------------

def init_params(key):
    def conv_p(k, cin, cout):
        k1, k2 = jax.random.split(k)
        w = jax.random.normal(k1, (cout, cin, 3, 3), jnp.float32) / jnp.sqrt(9.0 * cin)
        b = 0.05 * jax.random.normal(k2, (cout,), jnp.float32)
        return w, b

    def bn_p(k, c):
        k1, k2, k3, k4 = jax.random.split(k, 4)
        gamma = 1.0 + 0.1 * jax.random.normal(k1, (c,), jnp.float32)
        beta = 0.1 * jax.random.normal(k2, (c,), jnp.float32)
        mean = 0.1 * jax.random.normal(k3, (c,), jnp.float32)
        var = jax.random.uniform(k4, (c,), jnp.float32, minval=0.5, maxval=1.5)
        return gamma, beta, mean, var

    def lin_p(k, fin, fout):
        k1, k2 = jax.random.split(k)
        w = jax.random.normal(k1, (fout, fin), jnp.float32) / jnp.sqrt(1.0 * fin)
        b = 0.05 * jax.random.normal(k2, (fout,), jnp.float32)
        return w, b

    ks = jax.random.split(key, 11)
    return {
        "conv1": conv_p(ks[0], 2, S),         "bn1": bn_p(ks[1], S),
        "conv2": conv_p(ks[2], S, 2 * S),     "bn2": bn_p(ks[3], 2 * S),
        "conv3": conv_p(ks[4], 2 * S, 4 * S), "bn3": bn_p(ks[5], 4 * S),
        "conv4": conv_p(ks[6], 4 * S, 8 * S), "bn4": bn_p(ks[7], 8 * S),
        "fc1": lin_p(ks[8], 8 * S, 64),
        "fc2": lin_p(ks[9], 64, 16),
        "out": lin_p(ks[10], 16, 2),
    }


# --------------------------------------------------------------------------
# Forward pass (mirrors classifier.forward, eval mode)
# --------------------------------------------------------------------------

def classifier_forward(x_nchw, params):
    x = jnp.transpose(x_nchw, (0, 2, 3, 1)).astype(jnp.float32)   # NCHW -> NHWC

    for i in range(1, 5):
        w, b = params[f"conv{i}"]
        gamma, beta, mean, var = params[f"bn{i}"]
        # conv + BN + MaxPool2d(3,3) + LeakyReLU fused in one pallas_call per layer
        x = conv_bn_pool_act(x, w, b, gamma, beta, mean, var)

    # dropout1: eval-mode identity (inference semantics); dropout2/softmax/swish unused.
    # TODO(synk): self.conv5 is never assigned in the reference (`==` typo) and the forward
    #   line using it (plus re-applying batch4 to 2 channels) cannot run; it is skipped
    #   here, consistent with fc1 expecting 8*s input features.

    # AdaptiveAvgPool2d((1,1)) + flatten + fc1/fc2/out (+ LeakyReLU) fused in one pallas_call
    return head(x, params["fc1"], params["fc2"], params["out"])


if __name__ == "__main__":
    key = jax.random.PRNGKey(0)
    k_param, k_x = jax.random.split(key)
    params = init_params(k_param)

    # Smallest spatial size compatible with four MaxPool2d(3,3) stages: 81.
    x = jax.random.normal(k_x, (2, 2, 81, 81), jnp.float32)   # NCHW, like PyTorch

    fwd = jax.jit(classifier_forward)
    out = jax.block_until_ready(fwd(x, params))
    assert out.shape == (2, 2), out.shape
    print("KERNEL_OK")
</pallas_src>

<mosaic_0001>
module attributes {stable_mosaic.version = 11 : i64} {
  func.func @_conv_bn_pool_act_kernel(%arg0: i32, %arg1: memref<1x9x729x18xf32, #tpu.memory_space<vmem>>, %arg2: memref<18x16xf32, #tpu.memory_space<vmem>>, %arg3: memref<1x16xf32, #tpu.memory_space<vmem>>, %arg4: memref<1x729x16xf32, #tpu.memory_space<vmem>>) attributes {dimension_semantics = [#tpu.dimension_semantics<parallel>], iteration_bounds = array<i64: 2>, scalar_prefetch = 0 : i64, scratch_operands = 0 : i64, tpu.core_type = #tpu.core_type<tc>, window_params = [{transform_indices = @transform_0, window_bounds = array<i64: 1, 9, 729, 18>}, {pipeline_mode = #tpu.pipeline_mode<synchronous>, transform_indices = @transform_1, window_bounds = array<i64: 18, 16>}, {pipeline_mode = #tpu.pipeline_mode<synchronous>, transform_indices = @transform_2, window_bounds = array<i64: 1, 16>}, {transform_indices = @transform_3, window_bounds = array<i64: 1, 729, 16>}]} {
    %c0 = arith.constant 0 : index
    %c0_0 = arith.constant 0 : index
    %0 = vector.load %arg2[%c0, %c0_0] : memref<18x16xf32, #tpu.memory_space<vmem>>, vector<18x16xf32>
    %c0_1 = arith.constant 0 : index
    %c0_2 = arith.constant 0 : index
    %c0_3 = arith.constant 0 : index
    %c0_4 = arith.constant 0 : index
    %1 = vector.load %arg1[%c0_1, %c0_2, %c0_3, %c0_4] : memref<1x9x729x18xf32, #tpu.memory_space<vmem>>, vector<1x1x729x18xf32>
    %2 = vector.shape_cast %1 : vector<1x1x729x18xf32> to vector<729x18xf32>
    %cst = arith.constant dense<0.000000e+00> : vector<729x16xf32>
    %3 = tpu.matmul %2, %0, %cst {dimension_numbers = #tpu.dot_dimension_numbers<[1], [0], [0], [1], [0, 0, 1, 1], [], []>} : vector<729x18xf32>, vector<18x16xf32>, vector<729x16xf32> -> vector<729x16xf32>
    %c0_5 = arith.constant 0 : index
    %c1 = arith.constant 1 : index
    %c0_6 = arith.constant 0 : index
    %c0_7 = arith.constant 0 : index
    %4 = vector.load %arg1[%c0_5, %c1, %c0_6, %c0_7] : memref<1x9x729x18xf32, #tpu.memory_space<vmem>>, vector<1x1x729x18xf32>
    %5 = vector.shape_cast %4 : vector<1x1x729x18xf32> to vector<729x18xf32>
    %cst_8 = arith.constant dense<0.000000e+00> : vector<729x16xf32>
    %6 = tpu.matmul %5, %0, %cst_8 {dimension_numbers = #tpu.dot_dimension_numbers<[1], [0], [0], [1], [0, 0, 1, 1], [], []>} : vector<729x18xf32>, vector<18x16xf32>, vector<729x16xf32> -> vector<729x16xf32>
    %7 = arith.maximumf %3, %6 : vector<729x16xf32>
    %c0_9 = arith.constant 0 : index
    %c2 = arith.constant 2 : index
    %c0_10 = arith.constant 0 : index
    %c0_11 = arith.constant 0 : index
    %8 = vector.load %arg1[%c0_9, %c2, %c0_10, %c0_11] : memref<1x9x729x18xf32, #tpu.memory_space<vmem>>, vector<1x1x729x18xf32>
    %9 = vector.shape_cast %8 : vector<1x1x729x18xf32> to vector<729x18xf32>
    %cst_12 = arith.constant dense<0.000000e+00> : vector<729x16xf32>
    %10 = tpu.matmul %9, %0, %cst_12 {dimension_numbers = #tpu.dot_dimension_numbers<[1], [0], [0], [1], [0, 0, 1, 1], [], []>} : vector<729x18xf32>, vector<18x16xf32>, vector<729x16xf32> -> vector<729x16xf32>
    %11 = arith.maximumf %7, %10 : vector<729x16xf32>
    %c0_13 = arith.constant 0 : index
    %c3 = arith.constant 3 : index
    %c0_14 = arith.constant 0 : index
    %c0_15 = arith.constant 0 : index
    %12 = vector.load %arg1[%c0_13, %c3, %c0_14, %c0_15] : memref<1x9x729x18xf32, #tpu.memory_space<vmem>>, vector<1x1x729x18xf32>
    %13 = vector.shape_cast %12 : vector<1x1x729x18xf32> to vector<729x18xf32>
    %cst_16 = arith.constant dense<0.000000e+00> : vector<729x16xf32>
    %14 = tpu.matmul %13, %0, %cst_16 {dimension_numbers = #tpu.dot_dimension_numbers<[1], [0], [0], [1], [0, 0, 1, 1], [], []>} : vector<729x18xf32>, vector<18x16xf32>, vector<729x16xf32> -> vector<729x16xf32>
    %15 = arith.maximumf %11, %14 : vector<729x16xf32>
    %c0_17 = arith.constant 0 : index
    %c4 = arith.constant 4 : index
    %c0_18 = arith.constant 0 : index
    %c0_19 = arith.constant 0 : index
    %16 = vector.load %arg1[%c0_17, %c4, %c0_18, %c0_19] : memref<1x9x729x18xf32, #tpu.memory_space<vmem>>, vector<1x1x729x18xf32>
    %17 = vector.shape_cast %16 : vector<1x1x729x18xf32> to vector<729x18xf32>
    %cst_20 = arith.constant dense<0.000000e+00> : vector<729x16xf32>
    %18 = tpu.matmul %17, %0, %cst_20 {dimension_numbers = #tpu.dot_dimension_numbers<[1], [0], [0], [1], [0, 0, 1, 1], [], []>} : vector<729x18xf32>, vector<18x16xf32>, vector<729x16xf32> -> vector<729x16xf32>
    %19 = arith.maximumf %15, %18 : vector<729x16xf32>
    %c0_21 = arith.constant 0 : index
    %c5 = arith.constant 5 : index
    %c0_22 = arith.constant 0 : index
    %c0_23 = arith.constant 0 : index
    %20 = vector.load %arg1[%c0_21, %c5, %c0_22, %c0_23] : memref<1x9x729x18xf32, #tpu.memory_space<vmem>>, vector<1x1x729x18xf32>
    %21 = vector.shape_cast %20 : vector<1x1x729x18xf32> to vector<729x18xf32>
    %cst_24 = arith.constant dense<0.000000e+00> : vector<729x16xf32>
    %22 = tpu.matmul %21, %0, %cst_24 {dimension_numbers = #tpu.dot_dimension_numbers<[1], [0], [0], [1], [0, 0, 1, 1], [], []>} : vector<729x18xf32>, vector<18x16xf32>, vector<729x16xf32> -> vector<729x16xf32>
    %23 = arith.maximumf %19, %22 : vector<729x16xf32>
    %c0_25 = arith.constant 0 : index
    %c6 = arith.constant 6 : index
    %c0_26 = arith.constant 0 : index
    %c0_27 = arith.constant 0 : index
    %24 = vector.load %arg1[%c0_25, %c6, %c0_26, %c0_27] : memref<1x9x729x18xf32, #tpu.memory_space<vmem>>, vector<1x1x729x18xf32>
    %25 = vector.shape_cast %24 : vector<1x1x729x18xf32> to vector<729x18xf32>
    %cst_28 = arith.constant dense<0.000000e+00> : vector<729x16xf32>
    %26 = tpu.matmul %25, %0, %cst_28 {dimension_numbers = #tpu.dot_dimension_numbers<[1], [0], [0], [1], [0, 0, 1, 1], [], []>} : vector<729x18xf32>, vector<18x16xf32>, vector<729x16xf32> -> vector<729x16xf32>
    %27 = arith.maximumf %23, %26 : vector<729x16xf32>
    %c0_29 = arith.constant 0 : index
    %c7 = arith.constant 7 : index
    %c0_30 = arith.constant 0 : index
    %c0_31 = arith.constant 0 : index
    %28 = vector.load %arg1[%c0_29, %c7, %c0_30, %c0_31] : memref<1x9x729x18xf32, #tpu.memory_space<vmem>>, vector<1x1x729x18xf32>
    %29 = vector.shape_cast %28 : vector<1x1x729x18xf32> to vector<729x18xf32>
    %cst_32 = arith.constant dense<0.000000e+00> : vector<729x16xf32>
    %30 = tpu.matmul %29, %0, %cst_32 {dimension_numbers = #tpu.dot_dimension_numbers<[1], [0], [0], [1], [0, 0, 1, 1], [], []>} : vector<729x18xf32>, vector<18x16xf32>, vector<729x16xf32> -> vector<729x16xf32>
    %31 = arith.maximumf %27, %30 : vector<729x16xf32>
    %c0_33 = arith.constant 0 : index
    %c8 = arith.constant 8 : index
    %c0_34 = arith.constant 0 : index
    %c0_35 = arith.constant 0 : index
    %32 = vector.load %arg1[%c0_33, %c8, %c0_34, %c0_35] : memref<1x9x729x18xf32, #tpu.memory_space<vmem>>, vector<1x1x729x18xf32>
    %33 = vector.shape_cast %32 : vector<1x1x729x18xf32> to vector<729x18xf32>
    %cst_36 = arith.constant dense<0.000000e+00> : vector<729x16xf32>
    %34 = tpu.matmul %33, %0, %cst_36 {dimension_numbers = #tpu.dot_dimension_numbers<[1], [0], [0], [1], [0, 0, 1, 1], [], []>} : vector<729x18xf32>, vector<18x16xf32>, vector<729x16xf32> -> vector<729x16xf32>
    %35 = arith.maximumf %31, %34 : vector<729x16xf32>
    %c0_37 = arith.constant 0 : index
    %c0_38 = arith.constant 0 : index
    %36 = vector.load %arg3[%c0_37, %c0_38] : memref<1x16xf32, #tpu.memory_space<vmem>>, vector<1x16xf32>
    %37 = vector.broadcast %36 : vector<1x16xf32> to vector<729x16xf32>
    %38 = arith.addf %35, %37 : vector<729x16xf32>
    %cst_39 = arith.constant 0.000000e+00 : f32
    %39 = vector.broadcast %cst_39 : f32 to vector<729x16xf32>
    %40 = arith.cmpf oge, %38, %39 : vector<729x16xf32>
    %cst_40 = arith.constant 0.00999999977 : f32
    %41 = vector.broadcast %cst_40 : f32 to vector<729x16xf32>
    %42 = arith.mulf %41, %38 : vector<729x16xf32>
    %43 = arith.select %40, %38, %42 : vector<729x16xi1>, vector<729x16xf32>
    %c0_41 = arith.constant 0 : index
    %c0_42 = arith.constant 0 : index
    %c0_43 = arith.constant 0 : index
    %44 = vector.load %arg4[%c0_41, %c0_42, %c0_43] : memref<1x729x16xf32, #tpu.memory_space<vmem>>, vector<1x729x16xf32>
    %45 = vector.shape_cast %44 : vector<1x729x16xf32> to vector<729x16xf32>
    %46 = vector.shape_cast %43 : vector<729x16xf32> to vector<1x729x16xf32>
    tpu.vector_store %arg4[%c0_41, %c0_42, %c0_43], %46 {strides = array<i32>} : memref<1x729x16xf32, #tpu.memory_space<vmem>>, vector<1x729x16xf32>,
    return
  }
  func.func @transform_0(%arg0: i32) -> (i32, i32, i32, i32) {
    %c0_i32 = arith.constant 0 : i32
    %c0_i32_0 = arith.constant 0 : i32
    %c0_i32_1 = arith.constant 0 : i32
    %c0_i32_2 = arith.constant 0 : i32
    return %arg0, %c0_i32, %c0_i32_0, %c0_i32_1 : i32, i32, i32, i32
  }
  func.func @transform_1(%arg0: i32) -> (i32, i32) {
    %c0_i32 = arith.constant 0 : i32
    %c0_i32_0 = arith.constant 0 : i32
    %c0_i32_1 = arith.constant 0 : i32
    return %c0_i32, %c0_i32_0 : i32, i32
  }
  func.func @transform_2(%arg0: i32) -> (i32, i32) {
    %c0_i32 = arith.constant 0 : i32
    %c0_i32_0 = arith.constant 0 : i32
    %c0_i32_1 = arith.constant 0 : i32
    return %c0_i32, %c0_i32_0 : i32, i32
  }
  func.func @transform_3(%arg0: i32) -> (i32, i32, i32) {
    %c0_i32 = arith.constant 0 : i32
    %c0_i32_0 = arith.constant 0 : i32
    %c0_i32_1 = arith.constant 0 : i32
    return %arg0, %c0_i32, %c0_i32_0 : i32, i32, i32
  }
}

module attributes {stable_mosaic.version = 11 : i64} {
  func.func @_conv_bn_pool_act_kernel(%arg0: i32, %arg1: memref<1x9x81x144xf32, #tpu.memory_space<vmem>>, %arg2: memref<144x32xf32, #tpu.memory_space<vmem>>, %arg3: memref<1x32xf32, #tpu.memory_space<vmem>>, %arg4: memref<1x81x32xf32, #tpu.memory_space<vmem>>) attributes {dimension_semantics = [#tpu.dimension_semantics<parallel>], iteration_bounds = array<i64: 2>, scalar_prefetch = 0 : i64, scratch_operands = 0 : i64, tpu.core_type = #tpu.core_type<tc>, window_params = [{transform_indices = @transform_0, window_bounds = array<i64: 1, 9, 81, 144>}, {pipeline_mode = #tpu.pipeline_mode<synchronous>, transform_indices = @transform_1, window_bounds = array<i64: 144, 32>}, {pipeline_mode = #tpu.pipeline_mode<synchronous>, transform_indices = @transform_2, window_bounds = array<i64: 1, 32>}, {transform_indices = @transform_3, window_bounds = array<i64: 1, 81, 32>}]} {
    %c0 = arith.constant 0 : index
    %c0_0 = arith.constant 0 : index
    %0 = vector.load %arg2[%c0, %c0_0] : memref<144x32xf32, #tpu.memory_space<vmem>>, vector<144x32xf32>
    %c0_1 = arith.constant 0 : index
    %c0_2 = arith.constant 0 : index
    %c0_3 = arith.constant 0 : index
    %c0_4 = arith.constant 0 : index
    %1 = vector.load %arg1[%c0_1, %c0_2, %c0_3, %c0_4] : memref<1x9x81x144xf32, #tpu.memory_space<vmem>>, vector<1x1x81x144xf32>
    %2 = vector.shape_cast %1 : vector<1x1x81x144xf32> to vector<81x144xf32>
    %cst = arith.constant dense<0.000000e+00> : vector<81x32xf32>
    %3 = tpu.matmul %2, %0, %cst {dimension_numbers = #tpu.dot_dimension_numbers<[1], [0], [0], [1], [0, 0, 1, 1], [], []>} : vector<81x144xf32>, vector<144x32xf32>, vector<81x32xf32> -> vector<81x32xf32>
    %c0_5 = arith.constant 0 : index
    %c1 = arith.constant 1 : index
    %c0_6 = arith.constant 0 : index
    %c0_7 = arith.constant 0 : index
    %4 = vector.load %arg1[%c0_5, %c1, %c0_6, %c0_7] : memref<1x9x81x144xf32, #tpu.memory_space<vmem>>, vector<1x1x81x144xf32>
    %5 = vector.shape_cast %4 : vector<1x1x81x144xf32> to vector<81x144xf32>
    %cst_8 = arith.constant dense<0.000000e+00> : vector<81x32xf32>
    %6 = tpu.matmul %5, %0, %cst_8 {dimension_numbers = #tpu.dot_dimension_numbers<[1], [0], [0], [1], [0, 0, 1, 1], [], []>} : vector<81x144xf32>, vector<144x32xf32>, vector<81x32xf32> -> vector<81x32xf32>
    %7 = arith.maximumf %3, %6 : vector<81x32xf32>
    %c0_9 = arith.constant 0 : index
    %c2 = arith.constant 2 : index
    %c0_10 = arith.constant 0 : index
    %c0_11 = arith.constant 0 : index
    %8 = vector.load %arg1[%c0_9, %c2, %c0_10, %c0_11] : memref<1x9x81x144xf32, #tpu.memory_space<vmem>>, vector<1x1x81x144xf32>
    %9 = vector.shape_cast %8 : vector<1x1x81x144xf32> to vector<81x144xf32>
    %cst_12 = arith.constant dense<0.000000e+00> : vector<81x32xf32>
    %10 = tpu.matmul %9, %0, %cst_12 {dimension_numbers = #tpu.dot_dimension_numbers<[1], [0], [0], [1], [0, 0, 1, 1], [], []>} : vector<81x144xf32>, vector<144x32xf32>, vector<81x32xf32> -> vector<81x32xf32>
    %11 = arith.maximumf %7, %10 : vector<81x32xf32>
    %c0_13 = arith.constant 0 : index
    %c3 = arith.constant 3 : index
    %c0_14 = arith.constant 0 : index
    %c0_15 = arith.constant 0 : index
    %12 = vector.load %arg1[%c0_13, %c3, %c0_14, %c0_15] : memref<1x9x81x144xf32, #tpu.memory_space<vmem>>, vector<1x1x81x144xf32>
    %13 = vector.shape_cast %12 : vector<1x1x81x144xf32> to vector<81x144xf32>
    %cst_16 = arith.constant dense<0.000000e+00> : vector<81x32xf32>
    %14 = tpu.matmul %13, %0, %cst_16 {dimension_numbers = #tpu.dot_dimension_numbers<[1], [0], [0], [1], [0, 0, 1, 1], [], []>} : vector<81x144xf32>, vector<144x32xf32>, vector<81x32xf32> -> vector<81x32xf32>
    %15 = arith.maximumf %11, %14 : vector<81x32xf32>
    %c0_17 = arith.constant 0 : index
    %c4 = arith.constant 4 : index
    %c0_18 = arith.constant 0 : index
    %c0_19 = arith.constant 0 : index
    %16 = vector.load %arg1[%c0_17, %c4, %c0_18, %c0_19] : memref<1x9x81x144xf32, #tpu.memory_space<vmem>>, vector<1x1x81x144xf32>
    %17 = vector.shape_cast %16 : vector<1x1x81x144xf32> to vector<81x144xf32>
    %cst_20 = arith.constant dense<0.000000e+00> : vector<81x32xf32>
    %18 = tpu.matmul %17, %0, %cst_20 {dimension_numbers = #tpu.dot_dimension_numbers<[1], [0], [0], [1], [0, 0, 1, 1], [], []>} : vector<81x144xf32>, vector<144x32xf32>, vector<81x32xf32> -> vector<81x32xf32>
    %19 = arith.maximumf %15, %18 : vector<81x32xf32>
    %c0_21 = arith.constant 0 : index
    %c5 = arith.constant 5 : index
    %c0_22 = arith.constant 0 : index
    %c0_23 = arith.constant 0 : index
    %20 = vector.load %arg1[%c0_21, %c5, %c0_22, %c0_23] : memref<1x9x81x144xf32, #tpu.memory_space<vmem>>, vector<1x1x81x144xf32>
    %21 = vector.shape_cast %20 : vector<1x1x81x144xf32> to vector<81x144xf32>
    %cst_24 = arith.constant dense<0.000000e+00> : vector<81x32xf32>
    %22 = tpu.matmul %21, %0, %cst_24 {dimension_numbers = #tpu.dot_dimension_numbers<[1], [0], [0], [1], [0, 0, 1, 1], [], []>} : vector<81x144xf32>, vector<144x32xf32>, vector<81x32xf32> -> vector<81x32xf32>
    %23 = arith.maximumf %19, %22 : vector<81x32xf32>
    %c0_25 = arith.constant 0 : index
    %c6 = arith.constant 6 : index
    %c0_26 = arith.constant 0 : index
    %c0_27 = arith.constant 0 : index
    %24 = vector.load %arg1[%c0_25, %c6, %c0_26, %c0_27] : memref<1x9x81x144xf32, #tpu.memory_space<vmem>>, vector<1x1x81x144xf32>
    %25 = vector.shape_cast %24 : vector<1x1x81x144xf32> to vector<81x144xf32>
    %cst_28 = arith.constant dense<0.000000e+00> : vector<81x32xf32>
    %26 = tpu.matmul %25, %0, %cst_28 {dimension_numbers = #tpu.dot_dimension_numbers<[1], [0], [0], [1], [0, 0, 1, 1], [], []>} : vector<81x144xf32>, vector<144x32xf32>, vector<81x32xf32> -> vector<81x32xf32>
    %27 = arith.maximumf %23, %26 : vector<81x32xf32>
    %c0_29 = arith.constant 0 : index
    %c7 = arith.constant 7 : index
    %c0_30 = arith.constant 0 : index
    %c0_31 = arith.constant 0 : index
    %28 = vector.load %arg1[%c0_29, %c7, %c0_30, %c0_31] : memref<1x9x81x144xf32, #tpu.memory_space<vmem>>, vector<1x1x81x144xf32>
    %29 = vector.shape_cast %28 : vector<1x1x81x144xf32> to vector<81x144xf32>
    %cst_32 = arith.constant dense<0.000000e+00> : vector<81x32xf32>
    %30 = tpu.matmul %29, %0, %cst_32 {dimension_numbers = #tpu.dot_dimension_numbers<[1], [0], [0], [1], [0, 0, 1, 1], [], []>} : vector<81x144xf32>, vector<144x32xf32>, vector<81x32xf32> -> vector<81x32xf32>
    %31 = arith.maximumf %27, %30 : vector<81x32xf32>
    %c0_33 = arith.constant 0 : index
    %c8 = arith.constant 8 : index
    %c0_34 = arith.constant 0 : index
    %c0_35 = arith.constant 0 : index
    %32 = vector.load %arg1[%c0_33, %c8, %c0_34, %c0_35] : memref<1x9x81x144xf32, #tpu.memory_space<vmem>>, vector<1x1x81x144xf32>
    %33 = vector.shape_cast %32 : vector<1x1x81x144xf32> to vector<81x144xf32>
    %cst_36 = arith.constant dense<0.000000e+00> : vector<81x32xf32>
    %34 = tpu.matmul %33, %0, %cst_36 {dimension_numbers = #tpu.dot_dimension_numbers<[1], [0], [0], [1], [0, 0, 1, 1], [], []>} : vector<81x144xf32>, vector<144x32xf32>, vector<81x32xf32> -> vector<81x32xf32>
    %35 = arith.maximumf %31, %34 : vector<81x32xf32>
    %c0_37 = arith.constant 0 : index
    %c0_38 = arith.constant 0 : index
    %36 = vector.load %arg3[%c0_37, %c0_38] : memref<1x32xf32, #tpu.memory_space<vmem>>, vector<1x32xf32>
    %37 = vector.broadcast %36 : vector<1x32xf32> to vector<81x32xf32>
    %38 = arith.addf %35, %37 : vector<81x32xf32>
    %cst_39 = arith.constant 0.000000e+00 : f32
    %39 = vector.broadcast %cst_39 : f32 to vector<81x32xf32>
    %40 = arith.cmpf oge, %38, %39 : vector<81x32xf32>
    %cst_40 = arith.constant 0.00999999977 : f32
    %41 = vector.broadcast %cst_40 : f32 to vector<81x32xf32>
    %42 = arith.mulf %41, %38 : vector<81x32xf32>
    %43 = arith.select %40, %38, %42 : vector<81x32xi1>, vector<81x32xf32>
    %c0_41 = arith.constant 0 : index
    %c0_42 = arith.constant 0 : index
    %c0_43 = arith.constant 0 : index
    %44 = vector.load %arg4[%c0_41, %c0_42, %c0_43] : memref<1x81x32xf32, #tpu.memory_space<vmem>>, vector<1x81x32xf32>
    %45 = vector.shape_cast %44 : vector<1x81x32xf32> to vector<81x32xf32>
    %46 = vector.shape_cast %43 : vector<81x32xf32> to vector<1x81x32xf32>
    tpu.vector_store %arg4[%c0_41, %c0_42, %c0_43], %46 {strides = array<i32>} : memref<1x81x32xf32, #tpu.memory_space<vmem>>, vector<1x81x32xf32>,
    return
  }
  func.func @transform_0(%arg0: i32) -> (i32, i32, i32, i32) {
    %c0_i32 = arith.constant 0 : i32
    %c0_i32_0 = arith.constant 0 : i32
    %c0_i32_1 = arith.constant 0 : i32
    %c0_i32_2 = arith.constant 0 : i32
    return %arg0, %c0_i32, %c0_i32_0, %c0_i32_1 : i32, i32, i32, i32
  }
  func.func @transform_1(%arg0: i32) -> (i32, i32) {
    %c0_i32 = arith.constant 0 : i32
    %c0_i32_0 = arith.constant 0 : i32
    %c0_i32_1 = arith.constant 0 : i32
    return %c0_i32, %c0_i32_0 : i32, i32
  }
  func.func @transform_2(%arg0: i32) -> (i32, i32) {
    %c0_i32 = arith.constant 0 : i32
    %c0_i32_0 = arith.constant 0 : i32
    %c0_i32_1 = arith.constant 0 : i32
    return %c0_i32, %c0_i32_0 : i32, i32
  }
  func.func @transform_3(%arg0: i32) -> (i32, i32, i32) {
    %c0_i32 = arith.constant 0 : i32
    %c0_i32_0 = arith.constant 0 : i32
    %c0_i32_1 = arith.constant 0 : i32
    return %arg0, %c0_i32, %c0_i32_0 : i32, i32, i32
  }
}

module attributes {stable_mosaic.version = 11 : i64} {
  func.func @_conv_bn_pool_act_kernel(%arg0: i32, %arg1: memref<1x9x9x288xf32, #tpu.memory_space<vmem>>, %arg2: memref<288x64xf32, #tpu.memory_space<vmem>>, %arg3: memref<1x64xf32, #tpu.memory_space<vmem>>, %arg4: memref<1x9x64xf32, #tpu.memory_space<vmem>>) attributes {dimension_semantics = [#tpu.dimension_semantics<parallel>], iteration_bounds = array<i64: 2>, scalar_prefetch = 0 : i64, scratch_operands = 0 : i64, tpu.core_type = #tpu.core_type<tc>, window_params = [{transform_indices = @transform_0, window_bounds = array<i64: 1, 9, 9, 288>}, {pipeline_mode = #tpu.pipeline_mode<synchronous>, transform_indices = @transform_1, window_bounds = array<i64: 288, 64>}, {pipeline_mode = #tpu.pipeline_mode<synchronous>, transform_indices = @transform_2, window_bounds = array<i64: 1, 64>}, {transform_indices = @transform_3, window_bounds = array<i64: 1, 9, 64>}]} {
    %c0 = arith.constant 0 : index
    %c0_0 = arith.constant 0 : index
    %0 = vector.load %arg2[%c0, %c0_0] : memref<288x64xf32, #tpu.memory_space<vmem>>, vector<288x64xf32>
    %c0_1 = arith.constant 0 : index
    %c0_2 = arith.constant 0 : index
    %c0_3 = arith.constant 0 : index
    %c0_4 = arith.constant 0 : index
    %1 = vector.load %arg1[%c0_1, %c0_2, %c0_3, %c0_4] : memref<1x9x9x288xf32, #tpu.memory_space<vmem>>, vector<1x1x9x288xf32>
    %2 = vector.shape_cast %1 : vector<1x1x9x288xf32> to vector<9x288xf32>
    %cst = arith.constant dense<0.000000e+00> : vector<9x64xf32>
    %3 = tpu.matmul %2, %0, %cst {dimension_numbers = #tpu.dot_dimension_numbers<[1], [0], [0], [1], [0, 0, 1, 1], [], []>} : vector<9x288xf32>, vector<288x64xf32>, vector<9x64xf32> -> vector<9x64xf32>
    %c0_5 = arith.constant 0 : index
    %c1 = arith.constant 1 : index
    %c0_6 = arith.constant 0 : index
    %c0_7 = arith.constant 0 : index
    %4 = vector.load %arg1[%c0_5, %c1, %c0_6, %c0_7] : memref<1x9x9x288xf32, #tpu.memory_space<vmem>>, vector<1x1x9x288xf32>
    %5 = vector.shape_cast %4 : vector<1x1x9x288xf32> to vector<9x288xf32>
    %cst_8 = arith.constant dense<0.000000e+00> : vector<9x64xf32>
    %6 = tpu.matmul %5, %0, %cst_8 {dimension_numbers = #tpu.dot_dimension_numbers<[1], [0], [0], [1], [0, 0, 1, 1], [], []>} : vector<9x288xf32>, vector<288x64xf32>, vector<9x64xf32> -> vector<9x64xf32>
    %7 = arith.maximumf %3, %6 : vector<9x64xf32>
    %c0_9 = arith.constant 0 : index
    %c2 = arith.constant 2 : index
    %c0_10 = arith.constant 0 : index
    %c0_11 = arith.constant 0 : index
    %8 = vector.load %arg1[%c0_9, %c2, %c0_10, %c0_11] : memref<1x9x9x288xf32, #tpu.memory_space<vmem>>, vector<1x1x9x288xf32>
    %9 = vector.shape_cast %8 : vector<1x1x9x288xf32> to vector<9x288xf32>
    %cst_12 = arith.constant dense<0.000000e+00> : vector<9x64xf32>
    %10 = tpu.matmul %9, %0, %cst_12 {dimension_numbers = #tpu.dot_dimension_numbers<[1], [0], [0], [1], [0, 0, 1, 1], [], []>} : vector<9x288xf32>, vector<288x64xf32>, vector<9x64xf32> -> vector<9x64xf32>
    %11 = arith.maximumf %7, %10 : vector<9x64xf32>
    %c0_13 = arith.constant 0 : index
    %c3 = arith.constant 3 : index
    %c0_14 = arith.constant 0 : index
    %c0_15 = arith.constant 0 : index
    %12 = vector.load %arg1[%c0_13, %c3, %c0_14, %c0_15] : memref<1x9x9x288xf32, #tpu.memory_space<vmem>>, vector<1x1x9x288xf32>
    %13 = vector.shape_cast %12 : vector<1x1x9x288xf32> to vector<9x288xf32>
    %cst_16 = arith.constant dense<0.000000e+00> : vector<9x64xf32>
    %14 = tpu.matmul %13, %0, %cst_16 {dimension_numbers = #tpu.dot_dimension_numbers<[1], [0], [0], [1], [0, 0, 1, 1], [], []>} : vector<9x288xf32>, vector<288x64xf32>, vector<9x64xf32> -> vector<9x64xf32>
    %15 = arith.maximumf %11, %14 : vector<9x64xf32>
    %c0_17 = arith.constant 0 : index
    %c4 = arith.constant 4 : index
    %c0_18 = arith.constant 0 : index
    %c0_19 = arith.constant 0 : index
    %16 = vector.load %arg1[%c0_17, %c4, %c0_18, %c0_19] : memref<1x9x9x288xf32, #tpu.memory_space<vmem>>, vector<1x1x9x288xf32>
    %17 = vector.shape_cast %16 : vector<1x1x9x288xf32> to vector<9x288xf32>
    %cst_20 = arith.constant dense<0.000000e+00> : vector<9x64xf32>
    %18 = tpu.matmul %17, %0, %cst_20 {dimension_numbers = #tpu.dot_dimension_numbers<[1], [0], [0], [1], [0, 0, 1, 1], [], []>} : vector<9x288xf32>, vector<288x64xf32>, vector<9x64xf32> -> vector<9x64xf32>
    %19 = arith.maximumf %15, %18 : vector<9x64xf32>
    %c0_21 = arith.constant 0 : index
    %c5 = arith.constant 5 : index
    %c0_22 = arith.constant 0 : index
    %c0_23 = arith.constant 0 : index
    %20 = vector.load %arg1[%c0_21, %c5, %c0_22, %c0_23] : memref<1x9x9x288xf32, #tpu.memory_space<vmem>>, vector<1x1x9x288xf32>
    %21 = vector.shape_cast %20 : vector<1x1x9x288xf32> to vector<9x288xf32>
    %cst_24 = arith.constant dense<0.000000e+00> : vector<9x64xf32>
    %22 = tpu.matmul %21, %0, %cst_24 {dimension_numbers = #tpu.dot_dimension_numbers<[1], [0], [0], [1], [0, 0, 1, 1], [], []>} : vector<9x288xf32>, vector<288x64xf32>, vector<9x64xf32> -> vector<9x64xf32>
    %23 = arith.maximumf %19, %22 : vector<9x64xf32>
    %c0_25 = arith.constant 0 : index
    %c6 = arith.constant 6 : index
    %c0_26 = arith.constant 0 : index
    %c0_27 = arith.constant 0 : index
    %24 = vector.load %arg1[%c0_25, %c6, %c0_26, %c0_27] : memref<1x9x9x288xf32, #tpu.memory_space<vmem>>, vector<1x1x9x288xf32>
    %25 = vector.shape_cast %24 : vector<1x1x9x288xf32> to vector<9x288xf32>
    %cst_28 = arith.constant dense<0.000000e+00> : vector<9x64xf32>
    %26 = tpu.matmul %25, %0, %cst_28 {dimension_numbers = #tpu.dot_dimension_numbers<[1], [0], [0], [1], [0, 0, 1, 1], [], []>} : vector<9x288xf32>, vector<288x64xf32>, vector<9x64xf32> -> vector<9x64xf32>
    %27 = arith.maximumf %23, %26 : vector<9x64xf32>
    %c0_29 = arith.constant 0 : index
    %c7 = arith.constant 7 : index
    %c0_30 = arith.constant 0 : index
    %c0_31 = arith.constant 0 : index
    %28 = vector.load %arg1[%c0_29, %c7, %c0_30, %c0_31] : memref<1x9x9x288xf32, #tpu.memory_space<vmem>>, vector<1x1x9x288xf32>
    %29 = vector.shape_cast %28 : vector<1x1x9x288xf32> to vector<9x288xf32>
    %cst_32 = arith.constant dense<0.000000e+00> : vector<9x64xf32>
    %30 = tpu.matmul %29, %0, %cst_32 {dimension_numbers = #tpu.dot_dimension_numbers<[1], [0], [0], [1], [0, 0, 1, 1], [], []>} : vector<9x288xf32>, vector<288x64xf32>, vector<9x64xf32> -> vector<9x64xf32>
    %31 = arith.maximumf %27, %30 : vector<9x64xf32>
    %c0_33 = arith.constant 0 : index
    %c8 = arith.constant 8 : index
    %c0_34 = arith.constant 0 : index
    %c0_35 = arith.constant 0 : index
    %32 = vector.load %arg1[%c0_33, %c8, %c0_34, %c0_35] : memref<1x9x9x288xf32, #tpu.memory_space<vmem>>, vector<1x1x9x288xf32>
    %33 = vector.shape_cast %32 : vector<1x1x9x288xf32> to vector<9x288xf32>
    %cst_36 = arith.constant dense<0.000000e+00> : vector<9x64xf32>
    %34 = tpu.matmul %33, %0, %cst_36 {dimension_numbers = #tpu.dot_dimension_numbers<[1], [0], [0], [1], [0, 0, 1, 1], [], []>} : vector<9x288xf32>, vector<288x64xf32>, vector<9x64xf32> -> vector<9x64xf32>
    %35 = arith.maximumf %31, %34 : vector<9x64xf32>
    %c0_37 = arith.constant 0 : index
    %c0_38 = arith.constant 0 : index
    %36 = vector.load %arg3[%c0_37, %c0_38] : memref<1x64xf32, #tpu.memory_space<vmem>>, vector<1x64xf32>
    %37 = vector.broadcast %36 : vector<1x64xf32> to vector<9x64xf32>
    %38 = arith.addf %35, %37 : vector<9x64xf32>
    %cst_39 = arith.constant 0.000000e+00 : f32
    %39 = vector.broadcast %cst_39 : f32 to vector<9x64xf32>
    %40 = arith.cmpf oge, %38, %39 : vector<9x64xf32>
    %cst_40 = arith.constant 0.00999999977 : f32
    %41 = vector.broadcast %cst_40 : f32 to vector<9x64xf32>
    %42 = arith.mulf %41, %38 : vector<9x64xf32>
    %43 = arith.select %40, %38, %42 : vector<9x64xi1>, vector<9x64xf32>
    %c0_41 = arith.constant 0 : index
    %c0_42 = arith.constant 0 : index
    %c0_43 = arith.constant 0 : index
    %44 = vector.load %arg4[%c0_41, %c0_42, %c0_43] : memref<1x9x64xf32, #tpu.memory_space<vmem>>, vector<1x9x64xf32>
    %45 = vector.shape_cast %44 : vector<1x9x64xf32> to vector<9x64xf32>
    %46 = vector.shape_cast %43 : vector<9x64xf32> to vector<1x9x64xf32>
    tpu.vector_store %arg4[%c0_41, %c0_42, %c0_43], %46 {strides = array<i32>} : memref<1x9x64xf32, #tpu.memory_space<vmem>>, vector<1x9x64xf32>,
    return
  }
  func.func @transform_0(%arg0: i32) -> (i32, i32, i32, i32) {
    %c0_i32 = arith.constant 0 : i32
    %c0_i32_0 = arith.constant 0 : i32
    %c0_i32_1 = arith.constant 0 : i32
    %c0_i32_2 = arith.constant 0 : i32
    return %arg0, %c0_i32, %c0_i32_0, %c0_i32_1 : i32, i32, i32, i32
  }
  func.func @transform_1(%arg0: i32) -> (i32, i32) {
    %c0_i32 = arith.constant 0 : i32
    %c0_i32_0 = arith.constant 0 : i32
    %c0_i32_1 = arith.constant 0 : i32
    return %c0_i32, %c0_i32_0 : i32, i32
  }
  func.func @transform_2(%arg0: i32) -> (i32, i32) {
    %c0_i32 = arith.constant 0 : i32
    %c0_i32_0 = arith.constant 0 : i32
    %c0_i32_1 = arith.constant 0 : i32
    return %c0_i32, %c0_i32_0 : i32, i32
  }
  func.func @transform_3(%arg0: i32) -> (i32, i32, i32) {
    %c0_i32 = arith.constant 0 : i32
    %c0_i32_0 = arith.constant 0 : i32
    %c0_i32_1 = arith.constant 0 : i32
    return %arg0, %c0_i32, %c0_i32_0 : i32, i32, i32
  }
}

module attributes {stable_mosaic.version = 11 : i64} {
  func.func @_conv_bn_pool_act_kernel(%arg0: i32, %arg1: memref<1x9x1x576xf32, #tpu.memory_space<vmem>>, %arg2: memref<576x128xf32, #tpu.memory_space<vmem>>, %arg3: memref<1x128xf32, #tpu.memory_space<vmem>>, %arg4: memref<1x1x128xf32, #tpu.memory_space<vmem>>) attributes {dimension_semantics = [#tpu.dimension_semantics<parallel>], iteration_bounds = array<i64: 2>, scalar_prefetch = 0 : i64, scratch_operands = 0 : i64, tpu.core_type = #tpu.core_type<tc>, window_params = [{transform_indices = @transform_0, window_bounds = array<i64: 1, 9, 1, 576>}, {pipeline_mode = #tpu.pipeline_mode<synchronous>, transform_indices = @transform_1, window_bounds = array<i64: 576, 128>}, {pipeline_mode = #tpu.pipeline_mode<synchronous>, transform_indices = @transform_2, window_bounds = array<i64: 1, 128>}, {transform_indices = @transform_3, window_bounds = array<i64: 1, 1, 128>}]} {
    %c0 = arith.constant 0 : index
    %c0_0 = arith.constant 0 : index
    %0 = vector.load %arg2[%c0, %c0_0] : memref<576x128xf32, #tpu.memory_space<vmem>>, vector<576x128xf32>
    %c0_1 = arith.constant 0 : index
    %c0_2 = arith.constant 0 : index
    %c0_3 = arith.constant 0 : index
    %c0_4 = arith.constant 0 : index
    %1 = vector.load %arg1[%c0_1, %c0_2, %c0_3, %c0_4] : memref<1x9x1x576xf32, #tpu.memory_space<vmem>>, vector<1x1x1x576xf32>
    %2 = vector.shape_cast %1 : vector<1x1x1x576xf32> to vector<1x576xf32>
    %cst = arith.constant dense<0.000000e+00> : vector<1x128xf32>
    %3 = tpu.matmul %2, %0, %cst {dimension_numbers = #tpu.dot_dimension_numbers<[1], [0], [0], [1], [0, 0, 1, 1], [], []>} : vector<1x576xf32>, vector<576x128xf32>, vector<1x128xf32> -> vector<1x128xf32>
    %c0_5 = arith.constant 0 : index
    %c1 = arith.constant 1 : index
    %c0_6 = arith.constant 0 : index
    %c0_7 = arith.constant 0 : index
    %4 = vector.load %arg1[%c0_5, %c1, %c0_6, %c0_7] : memref<1x9x1x576xf32, #tpu.memory_space<vmem>>, vector<1x1x1x576xf32>
    %5 = vector.shape_cast %4 : vector<1x1x1x576xf32> to vector<1x576xf32>
    %cst_8 = arith.constant dense<0.000000e+00> : vector<1x128xf32>
    %6 = tpu.matmul %5, %0, %cst_8 {dimension_numbers = #tpu.dot_dimension_numbers<[1], [0], [0], [1], [0, 0, 1, 1], [], []>} : vector<1x576xf32>, vector<576x128xf32>, vector<1x128xf32> -> vector<1x128xf32>
    %7 = arith.maximumf %3, %6 : vector<1x128xf32>
    %c0_9 = arith.constant 0 : index
    %c2 = arith.constant 2 : index
    %c0_10 = arith.constant 0 : index
    %c0_11 = arith.constant 0 : index
    %8 = vector.load %arg1[%c0_9, %c2, %c0_10, %c0_11] : memref<1x9x1x576xf32, #tpu.memory_space<vmem>>, vector<1x1x1x576xf32>
    %9 = vector.shape_cast %8 : vector<1x1x1x576xf32> to vector<1x576xf32>
    %cst_12 = arith.constant dense<0.000000e+00> : vector<1x128xf32>
    %10 = tpu.matmul %9, %0, %cst_12 {dimension_numbers = #tpu.dot_dimension_numbers<[1], [0], [0], [1], [0, 0, 1, 1], [], []>} : vector<1x576xf32>, vector<576x128xf32>, vector<1x128xf32> -> vector<1x128xf32>
    %11 = arith.maximumf %7, %10 : vector<1x128xf32>
    %c0_13 = arith.constant 0 : index
    %c3 = arith.constant 3 : index
    %c0_14 = arith.constant 0 : index
    %c0_15 = arith.constant 0 : index
    %12 = vector.load %arg1[%c0_13, %c3, %c0_14, %c0_15] : memref<1x9x1x576xf32, #tpu.memory_space<vmem>>, vector<1x1x1x576xf32>
    %13 = vector.shape_cast %12 : vector<1x1x1x576xf32> to vector<1x576xf32>
    %cst_16 = arith.constant dense<0.000000e+00> : vector<1x128xf32>
    %14 = tpu.matmul %13, %0, %cst_16 {dimension_numbers = #tpu.dot_dimension_numbers<[1], [0], [0], [1], [0, 0, 1, 1], [], []>} : vector<1x576xf32>, vector<576x128xf32>, vector<1x128xf32> -> vector<1x128xf32>
    %15 = arith.maximumf %11, %14 : vector<1x128xf32>
    %c0_17 = arith.constant 0 : index
    %c4 = arith.constant 4 : index
    %c0_18 = arith.constant 0 : index
    %c0_19 = arith.constant 0 : index
    %16 = vector.load %arg1[%c0_17, %c4, %c0_18, %c0_19] : memref<1x9x1x576xf32, #tpu.memory_space<vmem>>, vector<1x1x1x576xf32>
    %17 = vector.shape_cast %16 : vector<1x1x1x576xf32> to vector<1x576xf32>
    %cst_20 = arith.constant dense<0.000000e+00> : vector<1x128xf32>
    %18 = tpu.matmul %17, %0, %cst_20 {dimension_numbers = #tpu.dot_dimension_numbers<[1], [0], [0], [1], [0, 0, 1, 1], [], []>} : vector<1x576xf32>, vector<576x128xf32>, vector<1x128xf32> -> vector<1x128xf32>
    %19 = arith.maximumf %15, %18 : vector<1x128xf32>
    %c0_21 = arith.constant 0 : index
    %c5 = arith.constant 5 : index
    %c0_22 = arith.constant 0 : index
    %c0_23 = arith.constant 0 : index
    %20 = vector.load %arg1[%c0_21, %c5, %c0_22, %c0_23] : memref<1x9x1x576xf32, #tpu.memory_space<vmem>>, vector<1x1x1x576xf32>
    %21 = vector.shape_cast %20 : vector<1x1x1x576xf32> to vector<1x576xf32>
    %cst_24 = arith.constant dense<0.000000e+00> : vector<1x128xf32>
    %22 = tpu.matmul %21, %0, %cst_24 {dimension_numbers = #tpu.dot_dimension_numbers<[1], [0], [0], [1], [0, 0, 1, 1], [], []>} : vector<1x576xf32>, vector<576x128xf32>, vector<1x128xf32> -> vector<1x128xf32>
    %23 = arith.maximumf %19, %22 : vector<1x128xf32>
    %c0_25 = arith.constant 0 : index
    %c6 = arith.constant 6 : index
    %c0_26 = arith.constant 0 : index
    %c0_27 = arith.constant 0 : index
    %24 = vector.load %arg1[%c0_25, %c6, %c0_26, %c0_27] : memref<1x9x1x576xf32, #tpu.memory_space<vmem>>, vector<1x1x1x576xf32>
    %25 = vector.shape_cast %24 : vector<1x1x1x576xf32> to vector<1x576xf32>
    %cst_28 = arith.constant dense<0.000000e+00> : vector<1x128xf32>
    %26 = tpu.matmul %25, %0, %cst_28 {dimension_numbers = #tpu.dot_dimension_numbers<[1], [0], [0], [1], [0, 0, 1, 1], [], []>} : vector<1x576xf32>, vector<576x128xf32>, vector<1x128xf32> -> vector<1x128xf32>
    %27 = arith.maximumf %23, %26 : vector<1x128xf32>
    %c0_29 = arith.constant 0 : index
    %c7 = arith.constant 7 : index
    %c0_30 = arith.constant 0 : index
    %c0_31 = arith.constant 0 : index
    %28 = vector.load %arg1[%c0_29, %c7, %c0_30, %c0_31] : memref<1x9x1x576xf32, #tpu.memory_space<vmem>>, vector<1x1x1x576xf32>
    %29 = vector.shape_cast %28 : vector<1x1x1x576xf32> to vector<1x576xf32>
    %cst_32 = arith.constant dense<0.000000e+00> : vector<1x128xf32>
    %30 = tpu.matmul %29, %0, %cst_32 {dimension_numbers = #tpu.dot_dimension_numbers<[1], [0], [0], [1], [0, 0, 1, 1], [], []>} : vector<1x576xf32>, vector<576x128xf32>, vector<1x128xf32> -> vector<1x128xf32>
    %31 = arith.maximumf %27, %30 : vector<1x128xf32>
    %c0_33 = arith.constant 0 : index
    %c8 = arith.constant 8 : index
    %c0_34 = arith.constant 0 : index
    %c0_35 = arith.constant 0 : index
    %32 = vector.load %arg1[%c0_33, %c8, %c0_34, %c0_35] : memref<1x9x1x576xf32, #tpu.memory_space<vmem>>, vector<1x1x1x576xf32>
    %33 = vector.shape_cast %32 : vector<1x1x1x576xf32> to vector<1x576xf32>
    %cst_36 = arith.constant dense<0.000000e+00> : vector<1x128xf32>
    %34 = tpu.matmul %33, %0, %cst_36 {dimension_numbers = #tpu.dot_dimension_numbers<[1], [0], [0], [1], [0, 0, 1, 1], [], []>} : vector<1x576xf32>, vector<576x128xf32>, vector<1x128xf32> -> vector<1x128xf32>
    %35 = arith.maximumf %31, %34 : vector<1x128xf32>
    %c0_37 = arith.constant 0 : index
    %c0_38 = arith.constant 0 : index
    %36 = vector.load %arg3[%c0_37, %c0_38] : memref<1x128xf32, #tpu.memory_space<vmem>>, vector<1x128xf32>
    %37 = arith.addf %35, %36 : vector<1x128xf32>
    %cst_39 = arith.constant 0.000000e+00 : f32
    %38 = vector.broadcast %cst_39 : f32 to vector<1x128xf32>
    %39 = arith.cmpf oge, %37, %38 : vector<1x128xf32>
    %cst_40 = arith.constant 0.00999999977 : f32
    %40 = vector.broadcast %cst_40 : f32 to vector<1x128xf32>
    %41 = arith.mulf %40, %37 : vector<1x128xf32>
    %42 = arith.select %39, %37, %41 : vector<1x128xi1>, vector<1x128xf32>
    %c0_41 = arith.constant 0 : index
    %c0_42 = arith.constant 0 : index
    %c0_43 = arith.constant 0 : index
    %43 = vector.load %arg4[%c0_41, %c0_42, %c0_43] : memref<1x1x128xf32, #tpu.memory_space<vmem>>, vector<1x1x128xf32>
    %44 = vector.shape_cast %43 : vector<1x1x128xf32> to vector<1x128xf32>
    %45 = vector.shape_cast %42 : vector<1x128xf32> to vector<1x1x128xf32>
    tpu.vector_store %arg4[%c0_41, %c0_42, %c0_43], %45 {strides = array<i32>} : memref<1x1x128xf32, #tpu.memory_space<vmem>>, vector<1x1x128xf32>,
    return
  }
  func.func @transform_0(%arg0: i32) -> (i32, i32, i32, i32) {
    %c0_i32 = arith.constant 0 : i32
    %c0_i32_0 = arith.constant 0 : i32
    %c0_i32_1 = arith.constant 0 : i32
    %c0_i32_2 = arith.constant 0 : i32
    return %arg0, %c0_i32, %c0_i32_0, %c0_i32_1 : i32, i32, i32, i32
  }
  func.func @transform_1(%arg0: i32) -> (i32, i32) {
    %c0_i32 = arith.constant 0 : i32
    %c0_i32_0 = arith.constant 0 : i32
    %c0_i32_1 = arith.constant 0 : i32
    return %c0_i32, %c0_i32_0 : i32, i32
  }
  func.func @transform_2(%arg0: i32) -> (i32, i32) {
    %c0_i32 = arith.constant 0 : i32
    %c0_i32_0 = arith.constant 0 : i32
    %c0_i32_1 = arith.constant 0 : i32
    return %c0_i32, %c0_i32_0 : i32, i32
  }
  func.func @transform_3(%arg0: i32) -> (i32, i32, i32) {
    %c0_i32 = arith.constant 0 : i32
    %c0_i32_0 = arith.constant 0 : i32
    %c0_i32_1 = arith.constant 0 : i32
    return %arg0, %c0_i32, %c0_i32_0 : i32, i32, i32
  }
}

module attributes {stable_mosaic.version = 11 : i64} {
  func.func @_head_kernel(%arg0: memref<2x1x1x128xf32, #tpu.memory_space<vmem>>, %arg1: memref<128x64xf32, #tpu.memory_space<vmem>>, %arg2: memref<1x64xf32, #tpu.memory_space<vmem>>, %arg3: memref<64x16xf32, #tpu.memory_space<vmem>>, %arg4: memref<1x16xf32, #tpu.memory_space<vmem>>, %arg5: memref<16x2xf32, #tpu.memory_space<vmem>>, %arg6: memref<1x2xf32, #tpu.memory_space<vmem>>, %arg7: memref<2x2xf32, #tpu.memory_space<vmem>>) attributes {dimension_semantics = [], scalar_prefetch = 0 : i64, scratch_operands = 0 : i64, tpu.core_type = #tpu.core_type<tc>} {
    %c0 = arith.constant 0 : index
    %c0_0 = arith.constant 0 : index
    %c0_1 = arith.constant 0 : index
    %c0_2 = arith.constant 0 : index
    %0 = vector.load %arg0[%c0, %c0_0, %c0_1, %c0_2] : memref<2x1x1x128xf32, #tpu.memory_space<vmem>>, vector<2x1x1x128xf32>
    %cst = arith.constant dense<0.000000e+00> : vector<2x1x128xf32>
    %1 = vector.multi_reduction <add>, %0, %cst [2] : vector<2x1x1x128xf32> to vector<2x1x128xf32>
    %cst_3 = arith.constant dense<0.000000e+00> : vector<2x128xf32>
    %2 = vector.multi_reduction <add>, %1, %cst_3 [1] : vector<2x1x128xf32> to vector<2x128xf32>
    %cst_4 = arith.constant 1.000000e+00 : f32
    %3 = vector.broadcast %cst_4 : f32 to vector<2x128xf32>
    %4 = arith.mulf %2, %3 : vector<2x128xf32>
    %c0_5 = arith.constant 0 : index
    %c0_6 = arith.constant 0 : index
    %5 = vector.load %arg1[%c0_5, %c0_6] : memref<128x64xf32, #tpu.memory_space<vmem>>, vector<128x64xf32>
    %cst_7 = arith.constant dense<0.000000e+00> : vector<2x64xf32>
    %6 = tpu.matmul %4, %5, %cst_7 {dimension_numbers = #tpu.dot_dimension_numbers<[1], [0], [0], [1], [0, 0, 1, 1], [], []>} : vector<2x128xf32>, vector<128x64xf32>, vector<2x64xf32> -> vector<2x64xf32>
    %c0_8 = arith.constant 0 : index
    %c0_9 = arith.constant 0 : index
    %7 = vector.load %arg2[%c0_8, %c0_9] : memref<1x64xf32, #tpu.memory_space<vmem>>, vector<1x64xf32>
    %8 = vector.broadcast %7 : vector<1x64xf32> to vector<2x64xf32>
    %9 = arith.addf %6, %8 : vector<2x64xf32>
    %cst_10 = arith.constant 0.000000e+00 : f32
    %10 = vector.broadcast %cst_10 : f32 to vector<2x64xf32>
    %11 = arith.cmpf oge, %9, %10 : vector<2x64xf32>
    %cst_11 = arith.constant 0.00999999977 : f32
    %12 = vector.broadcast %cst_11 : f32 to vector<2x64xf32>
    %13 = arith.mulf %12, %9 : vector<2x64xf32>
    %14 = arith.select %11, %9, %13 : vector<2x64xi1>, vector<2x64xf32>
    %c0_12 = arith.constant 0 : index
    %c0_13 = arith.constant 0 : index
    %15 = vector.load %arg3[%c0_12, %c0_13] : memref<64x16xf32, #tpu.memory_space<vmem>>, vector<64x16xf32>
    %cst_14 = arith.constant dense<0.000000e+00> : vector<2x16xf32>
    %16 = tpu.matmul %14, %15, %cst_14 {dimension_numbers = #tpu.dot_dimension_numbers<[1], [0], [0], [1], [0, 0, 1, 1], [], []>} : vector<2x64xf32>, vector<64x16xf32>, vector<2x16xf32> -> vector<2x16xf32>
    %c0_15 = arith.constant 0 : index
    %c0_16 = arith.constant 0 : index
    %17 = vector.load %arg4[%c0_15, %c0_16] : memref<1x16xf32, #tpu.memory_space<vmem>>, vector<1x16xf32>
    %18 = vector.broadcast %17 : vector<1x16xf32> to vector<2x16xf32>
    %19 = arith.addf %16, %18 : vector<2x16xf32>
    %cst_17 = arith.constant 0.000000e+00 : f32
    %20 = vector.broadcast %cst_17 : f32 to vector<2x16xf32>
    %21 = arith.cmpf oge, %19, %20 : vector<2x16xf32>
    %cst_18 = arith.constant 0.00999999977 : f32
    %22 = vector.broadcast %cst_18 : f32 to vector<2x16xf32>
    %23 = arith.mulf %22, %19 : vector<2x16xf32>
    %24 = arith.select %21, %19, %23 : vector<2x16xi1>, vector<2x16xf32>
    %c0_19 = arith.constant 0 : index
    %c0_20 = arith.constant 0 : index
    %25 = vector.load %arg5[%c0_19, %c0_20] : memref<16x2xf32, #tpu.memory_space<vmem>>, vector<16x2xf32>
    %cst_21 = arith.constant dense<0.000000e+00> : vector<2x2xf32>
    %26 = tpu.matmul %24, %25, %cst_21 {dimension_numbers = #tpu.dot_dimension_numbers<[1], [0], [0], [1], [0, 0, 1, 1], [], []>} : vector<2x16xf32>, vector<16x2xf32>, vector<2x2xf32> -> vector<2x2xf32>
    %c0_22 = arith.constant 0 : index
    %c0_23 = arith.constant 0 : index
    %27 = vector.load %arg6[%c0_22, %c0_23] : memref<1x2xf32, #tpu.memory_space<vmem>>, vector<1x2xf32>
    %28 = vector.broadcast %27 : vector<1x2xf32> to vector<2x2xf32>
    %29 = arith.addf %26, %28 : vector<2x2xf32>
    %c0_24 = arith.constant 0 : index
    %c0_25 = arith.constant 0 : index
    %30 = vector.load %arg7[%c0_24, %c0_25] : memref<2x2xf32, #tpu.memory_space<vmem>>, vector<2x2xf32>
    tpu.vector_store %arg7[%c0_24, %c0_25], %29 {strides = array<i32>} : memref<2x2xf32, #tpu.memory_space<vmem>>, vector<2x2xf32>,
    return
  }
}

</mosaic_0001>

<llo_original>
// kernel: classifier_forward.5
$region0: #{classifier_forward.5}
  #allocation0 [shape = 'u32[]', space=smem, size = 0x4, offset = 0x4, fixed_abs, tag = 'smem constant byte address 0x4 - core index']
  #allocation1 [shape = 'u32[72,128]{1,0:T(1,128)}', space=vmem, size = 0x9000, scoped, tag = 'internal scratch']
  %s0 = inlined_call_operand.vmem [shape: f32[2,9,729,18], index: 0, kind: input, shape index: {}]
  %s1 = inlined_call_operand.vmem [shape: f32[18,16], index: 1, kind: input, shape index: {}]
  %s2 = inlined_call_operand.vmem [shape: f32[1,16], index: 2, kind: input, shape index: {}]
  %s3 = inlined_call_operand.vmem [shape: f32[2,729,16], index: 3, kind: output, shape index: {}]
  %s4 = sld [smem:[#allocation0]]
  $region45: #{classifier_forward.5} parent=0
    _
  %s6 = ssub.s32 1, %s4
  %s7 = scalar_select 0, %s6, %s4
  loop: start=0, step=1, limit=4
  $region2: #{classifier_forward.5} parent=0 // loop_pre_header
    _
  $region3: #{classifier_forward.5} parent=0 // loop_header
    %s9 = sphi 0, %s13
    %p10 = scmp.ge.s32.totalorder %s9, 4
    %s19 = sphi 0, %s21
    %s22 = sphi 0, %s19
    %s23 = sphi 0, %s22
    %s39 = sphi 0, %s23
    %s43 = sphi 0, %s43
    %s45 = sphi 0, %s43
    %s46 = sphi 0, %s45
    %s60 = sphi 0, %s46
    %s64 = sphi 0, %s64
    %s66 = sphi 0, %s64
    %s67 = sphi 0, %s66
    %s81 = sphi 0, %s67
    %s87 = sphi 0, %s89
    %s90 = sphi 0, %s87
    %s91 = sphi 0, %s90
    %s107 = sphi 0, %s91
  $region4: #{classifier_forward.5} parent=0 // loop_header_branch
    %12 = sbr.rel (%p10) target = $region8
  $region5: #{classifier_forward.5} parent=0 // loop_body
    %s14 = ssub.s32 %s9, 1
    %s15 = ssub.s32 %s9, 2
    %s16 = sadd.s32 %s9, 1
    %s17 = ssub.s32 %s9, %s16
    %p18 = scmp.eq.s32.totalorder %s17, 0
    %s20 = sadd.s32 %s19, 1
    %s21 = scalar_select %p18, %s19, %s20
    %p24 = pneg %p18
    %p25 = scmp.eq.s32.totalorder %s9, 1
    %p26 = por %p24, %p25
    %p27 = scmp.ne.s32.totalorder %s19, %s22
    %p28 = scmp.eq.s32.totalorder %s9, 0
    %p29 = por %p27, %p28
    %p30 = scmp.ne.s32.totalorder %s19, %s22
    %p31 = scmp.eq.s32.totalorder %s14, 1
    %p32 = por %p30, %p31
    %p33 = scmp.ne.s32.totalorder %s22, %s23
    %p34 = scmp.eq.s32.totalorder %s14, 0
    %p35 = por %p33, %p34
    %p36 = scmp.ne.s32.totalorder %s22, %s23
    %p37 = scmp.eq.s32.totalorder %s15, 1
    %p38 = por %p36, %p37
    %p40 = scmp.ne.s32.totalorder %s23, %s39
    %p41 = scmp.eq.s32.totalorder %s15, 0
    %p42 = por %p40, %p41
    %s44 = sadd.s32 %s43, 1
    %p47 = scmp.eq.s32.totalorder %s9, 1
    %p48 = scmp.ne.s32.totalorder %s43, %s45
    %p49 = scmp.eq.s32.totalorder %s9, 0
    %p50 = por %p48, %p49
    %p51 = scmp.ne.s32.totalorder %s43, %s45
    %p52 = scmp.eq.s32.totalorder %s14, 1
    %p53 = por %p51, %p52
    %p54 = scmp.ne.s32.totalorder %s45, %s46
    %p55 = scmp.eq.s32.totalorder %s14, 0
    %p56 = por %p54, %p55
    %p57 = scmp.ne.s32.totalorder %s45, %s46
    %p58 = scmp.eq.s32.totalorder %s15, 1
    %p59 = por %p57, %p58
    %p61 = scmp.ne.s32.totalorder %s46, %s60
    %p62 = scmp.eq.s32.totalorder %s15, 0
    %p63 = por %p61, %p62
    %s65 = sadd.s32 %s64, 1
    %p68 = scmp.eq.s32.totalorder %s9, 1
    %p69 = scmp.ne.s32.totalorder %s64, %s66
    %p70 = scmp.eq.s32.totalorder %s9, 0
    %p71 = por %p69, %p70
    %p72 = scmp.ne.s32.totalorder %s64, %s66
    %p73 = scmp.eq.s32.totalorder %s14, 1
    %p74 = por %p72, %p73
    %p75 = scmp.ne.s32.totalorder %s66, %s67
    %p76 = scmp.eq.s32.totalorder %s14, 0
    %p77 = por %p75, %p76
    %p78 = scmp.ne.s32.totalorder %s66, %s67
    %p79 = scmp.eq.s32.totalorder %s15, 1
    %p80 = por %p78, %p79
    %p82 = scmp.ne.s32.totalorder %s67, %s81
    %p83 = scmp.eq.s32.totalorder %s15, 0
    %p84 = por %p82, %p83
    %s85 = ssub.s32 %s9, %s16
    %p86 = scmp.eq.s32.totalorder %s85, 0
    %s88 = sadd.s32 %s87, 1
    %s89 = scalar_select %p86, %s87, %s88
    %p92 = pneg %p86
    %p93 = scmp.eq.s32.totalorder %s9, 1
    %p94 = por %p92, %p93
    %p95 = scmp.ne.s32.totalorder %s87, %s90
    %p96 = scmp.eq.s32.totalorder %s9, 0
    %p97 = por %p95, %p96
    %p98 = scmp.ne.s32.totalorder %s87, %s90
    %p99 = scmp.eq.s32.totalorder %s14, 1
    %p100 = por %p98, %p99
    %p101 = scmp.ne.s32.totalorder %s90, %s91
    %p102 = scmp.eq.s32.totalorder %s14, 0
    %p103 = por %p101, %p102
    %p104 = scmp.ne.s32.totalorder %s90, %s91
    %p105 = scmp.eq.s32.totalorder %s15, 1
    %p106 = por %p104, %p105
    %p108 = scmp.ne.s32.totalorder %s91, %s107
    %p109 = scmp.eq.s32.totalorder %s15, 0
    %p110 = por %p108, %p109
    %p111 = scmp.le.s32.totalorder 1, %s9
    %p112 = scmp.lt.s32.totalorder %s9, 3
    %p113 = pnand %p111, %p112
    %p114 = pneg %p113
    // Predicated region
    $region9: #{classifier_forward.5} parent=5 // pred_check
      _
    $region10: #{classifier_forward.5} parent=5 // pred_check_branch
      %116 = sbr.rel (%p113) target = $region12
    $region11: #{classifier_forward.5} parent=5 // pred_region
      %s117 = ssub.s32 %s9, 1
      // Predicated region
      $region13: #{classifier_forward.5} parent=11 // pred_check
        %p118 = pneg %p56
      $region14: #{classifier_forward.5} parent=11 // pred_check_branch
        %120 = sbr.rel (%p118) target = $region16
      $region15: #{classifier_forward.5} parent=11 // pred_region
        _
      $region16: #{classifier_forward.5} parent=11 // pred_fallthru
        _
      // Predicated region
      $region17: #{classifier_forward.5} parent=11 // pred_check
        %p121 = pneg %p77
      $region18: #{classifier_forward.5} parent=11 // pred_check_branch
        %123 = sbr.rel (%p121) target = $region20
      $region19: #{classifier_forward.5} parent=11 // pred_region
        _
      $region20: #{classifier_forward.5} parent=11 // pred_fallthru
        _
    $region12: #{classifier_forward.5} parent=5 // pred_fallthru
      _
    %p124 = scmp.lt.s32.totalorder %s9, 2
    // Predicated region
    $region21: #{classifier_forward.5} parent=5 // pred_check
      %p125 = pneg %p124
    $region22: #{classifier_forward.5} parent=5 // pred_check_branch
      %127 = sbr.rel (%p125) target = $region24
    $region23: #{classifier_forward.5} parent=5 // pred_region
      // Predicated region
      $region25: #{classifier_forward.5} parent=23 // pred_check
        %p128 = pneg %p29
      $region26: #{classifier_forward.5} parent=23 // pred_check_branch
        %130 = sbr.rel (%p128) target = $region28
      $region27: #{classifier_forward.5} parent=23 // pred_region
        %p131 = scmp.lt.s32.totalorder %s9, 1
        %s132 = scalar_select %p131, %s9, 1
        %s133 = smul.addr %s132, 828
        %s134 = smul.addr %s133, 8
        %s135 = scalar_lea.vmem %s0, %s134
      $region28: #{classifier_forward.5} parent=23 // pred_fallthru
        _
    $region24: #{classifier_forward.5} parent=5 // pred_fallthru
      _
    %p136 = scmp.le.s32.totalorder 1, %s9
    %p137 = scmp.lt.s32.totalorder %s9, 3
    %p138 = pnand %p136, %p137
    %p139 = pneg %p138
    // Predicated region
    $region29: #{classifier_forward.5} parent=5 // pred_check
      _
    $region30: #{classifier_forward.5} parent=5 // pred_check_branch
      %141 = sbr.rel (%p138) target = $region32
    $region31: #{classifier_forward.5} parent=5 // pred_region
      %s142 = ssub.s32 %s9, 1
      %p143 = scmp.lt.s32.totalorder %s14, 1
      %s144 = scalar_select %p143, %s14, 1
      %s145 = smul.addr %s144, 828
      %s146 = smul.addr %s145, 8
      %s147 = scalar_lea.vmem %s0, %s146
      %p148 = pneg %p35
      %p149 = pneg %p32
      %p150 = pneg %p56
      %p151 = pneg %p53
      %p152 = pneg %p77
      %p153 = pneg %p74
      %p154 = pneg %p103
      %p155 = pneg %p100
      %p156 = scmp.lt.s32.totalorder %s14, 1
      %s157 = scalar_select %p156, %s14, 1
      %s158 = smul.addr %s157, 92
      %s159 = smul.addr %s158, 8
      %s160 = scalar_lea.vmem %s3, %s159
      %p161 = scmp.lt.s32.totalorder %s14, 1
      %s162 = scalar_select %p161, %s14, 1
      %s163 = smul.addr %s162, 828
      %s164 = smul.addr %s163, 8
      %s165 = scalar_lea.vmem %s0, %s164
      %p166 = scmp.lt.s32.totalorder %s14, 1
      %s167 = scalar_select %p166, %s14, 1
      %s168 = smul.addr %s167, 92
      %s169 = smul.addr %s168, 8
      %s170 = scalar_lea.vmem %s3, %s169
      %v171 = vld [vmem:[%s1] sm:$0xff]
      %v172 = vld [vmem:[%s1 + $0x8] sm:$0xff]
      %v173 = vld [vmem:[%s1 + $0x10] sm:$0x3]
      %v174 = vld [vmem:[%s165] sm:$0xff]
      %v175 = vld [vmem:[%s165 + $0x8] sm:$0xff]
      %v176 = vld [vmem:[%s165 + $0x10] sm:$0xff]
      %v177 = vld [vmem:[%s165 + $0x18] sm:$0xff]
      %v178 = vld [vmem:[%s165 + $0x20] sm:$0xff]
      %v179 = vld [vmem:[%s165 + $0x28] sm:$0xff]
      %v180 = vld [vmem:[%s165 + $0x30] sm:$0xff]
      %v181 = vld [vmem:[%s165 + $0x38] sm:$0xff]
      %v182 = vld [vmem:[%s165 + $0x40] sm:$0xff]
      %v183 = vld [vmem:[%s165 + $0x48] sm:$0xff]
      %v184 = vld [vmem:[%s165 + $0x50] sm:$0xff]
      %v185 = vld [vmem:[%s165 + $0x58] sm:$0xff]
      %v186 = vld [vmem:[%s165 + $0x60] sm:$0xff]
      %v187 = vld [vmem:[%s165 + $0x68] sm:$0xff]
      %v188 = vld [vmem:[%s165 + $0x70] sm:$0xff]
      %v189 = vld [vmem:[%s165 + $0x78] sm:$0xff]
      %v190 = vld [vmem:[%s165 + $0x80] sm:$0xff]
      %v191 = vld [vmem:[%s165 + $0x88] sm:$0xff]
      %v192 = vld [vmem:[%s165 + $0x90] sm:$0xff]
      %v193 = vld [vmem:[%s165 + $0x98] sm:$0xff]
      %v194 = vld [vmem:[%s165 + $0xa0] sm:$0xff]
      %v195 = vld [vmem:[%s165 + $0xa8] sm:$0xff]
      %v196 = vld [vmem:[%s165 + $0xb0] sm:$0xff]
      %v197 = vld [vmem:[%s165 + $0xb8] sm:$0xff]
      %v198 = vld [vmem:[%s165 + $0xc0] sm:$0xff]
      %v199 = vld [vmem:[%s165 + $0xc8] sm:$0xff]
      %v200 = vld [vmem:[%s165 + $0xd0] sm:$0xff]
      %v201 = vld [vmem:[%s165 + $0xd8] sm:$0xff]
      %v202 = vld [vmem:[%s165 + $0xe0] sm:$0xff]
      %v203 = vld [vmem:[%s165 + $0xe8] sm:$0xff]
      %v204 = vld [vmem:[%s165 + $0xf0] sm:$0xff]
      %v205 = vld [vmem:[%s165 + $0xf8] sm:$0xff]
      %v206 = vld [vmem:[%s165 + $0x100] sm:$0xff]
      %v207 = vld [vmem:[%s165 + $0x108] sm:$0xff]
      %v208 = vld [vmem:[%s165 + $0x110] sm:$0xff]
      %v209 = vld [vmem:[%s165 + $0x118] sm:$0xff]
      %v210 = vld [vmem:[%s165 + $0x120] sm:$0xff]
      %v211 = vld [vmem:[%s165 + $0x128] sm:$0xff]
      %v212 = vld [vmem:[%s165 + $0x130] sm:$0xff]
      %v213 = vld [vmem:[%s165 + $0x138] sm:$0xff]
      %v214 = vld [vmem:[%s165 + $0x140] sm:$0xff]
      %v215 = vld [vmem:[%s165 + $0x148] sm:$0xff]
      %v216 = vld [vmem:[%s165 + $0x150] sm:$0xff]
      %v217 = vld [vmem:[%s165 + $0x158] sm:$0xff]
      %v218 = vld [vmem:[%s165 + $0x160] sm:$0xff]
      %v219 = vld [vmem:[%s165 + $0x168] sm:$0xff]
      %v220 = vld [vmem:[%s165 + $0x170] sm:$0xff]
      %v221 = vld [vmem:[%s165 + $0x178] sm:$0xff]
      %v222 = vld [vmem:[%s165 + $0x180] sm:$0xff]
      %v223 = vld [vmem:[%s165 + $0x188] sm:$0xff]
      %v224 = vld [vmem:[%s165 + $0x190] sm:$0xff]
      %v225 = vld [vmem:[%s165 + $0x198] sm:$0xff]
      %v226 = vld [vmem:[%s165 + $0x1a0] sm:$0xff]
      %v227 = vld [vmem:[%s165 + $0x1a8] sm:$0xff]
      %v228 = vld [vmem:[%s165 + $0x1b0] sm:$0xff]
      %v229 = vld [vmem:[%s165 + $0x1b8] sm:$0xff]
      %v230 = vld [vmem:[%s165 + $0x1c0] sm:$0xff]
      %v231 = vld [vmem:[%s165 + $0x1c8] sm:$0xff]
      %v232 = vld [vmem:[%s165 + $0x1d0] sm:$0xff]
      %v233 = vld [vmem:[%s165 + $0x1d8] sm:$0xff]
      %v234 = vld [vmem:[%s165 + $0x1e0] sm:$0xff]
      %v235 = vld [vmem:[%s165 + $0x1e8] sm:$0xff]
      %v236 = vld [vmem:[%s165 + $0x1f0] sm:$0xff]
      %v237 = vld [vmem:[%s165 + $0x1f8] sm:$0xff]
      %v238 = vld [vmem:[%s165 + $0x200] sm:$0xff]
      %v239 = vld [vmem:[%s165 + $0x208] sm:$0xff]
      %v240 = vld [vmem:[%s165 + $0x210] sm:$0xff]
      %v241 = vld [vmem:[%s165 + $0x218] sm:$0xff]
      %v242 = vld [vmem:[%s165 + $0x220] sm:$0xff]
      %v243 = vld [vmem:[%s165 + $0x228] sm:$0xff]
      %v244 = vld [vmem:[%s165 + $0x230] sm:$0xff]
      %v245 = vld [vmem:[%s165 + $0x238] sm:$0xff]
      %v246 = vld [vmem:[%s165 + $0x240] sm:$0xff]
      %v247 = vld [vmem:[%s165 + $0x248] sm:$0xff]
      %v248 = vld [vmem:[%s165 + $0x250] sm:$0xff]
      %v249 = vld [vmem:[%s165 + $0x258] sm:$0xff]
      %v250 = vld [vmem:[%s165 + $0x260] sm:$0xff]
      %v251 = vld [vmem:[%s165 + $0x268] sm:$0xff]
      %v252 = vld [vmem:[%s165 + $0x270] sm:$0xff]
      %v253 = vld [vmem:[%s165 + $0x278] sm:$0xff]
      %v254 = vld [vmem:[%s165 + $0x280] sm:$0xff]
      %v255 = vld [vmem:[%s165 + $0x288] sm:$0xff]
      %v256 = vld [vmem:[%s165 + $0x290] sm:$0xff]
      %v257 = vld [vmem:[%s165 + $0x298] sm:$0xff]
      %v258 = vld [vmem:[%s165 + $0x2a0] sm:$0xff]
      %v259 = vld [vmem:[%s165 + $0x2a8] sm:$0xff]
      %v260 = vld [vmem:[%s165 + $0x2b0] sm:$0xff]
      %v261 = vld [vmem:[%s165 + $0x2b8] sm:$0xff]
      %v262 = vld [vmem:[%s165 + $0x2c0] sm:$0xff]
      %v263 = vld [vmem:[%s165 + $0x2c8] sm:$0xff]
      %v264 = vld [vmem:[%s165 + $0x2d0] sm:$0xff]
      %v265 = vld [vmem:[%s165 + $0x2d8] sm:$0x1]
      %vm266 = vcmask 146432
      %v268 = vsel %vm266, %v174, 0
      %v271 = vsel %vm266, %v175, 0
      %v274 = vsel %vm266, %v176, 0
      %v277 = vsel %vm266, %v177, 0
      %v280 = vsel %vm266, %v178, 0
      %v283 = vsel %vm266, %v179, 0
      %v286 = vsel %vm266, %v180, 0
      %v289 = vsel %vm266, %v181, 0
      %v292 = vsel %vm266, %v182, 0
      %v295 = vsel %vm266, %v183, 0
      %v298 = vsel %vm266, %v184, 0
      %v301 = vsel %vm266, %v185, 0
      %v304 = vsel %vm266, %v186, 0
      %v307 = vsel %vm266, %v187, 0
      %v310 = vsel %vm266, %v188, 0
      %v313 = vsel %vm266, %v189, 0
      %v316 = vsel %vm266, %v190, 0
      %v319 = vsel %vm266, %v191, 0
      %v322 = vsel %vm266, %v192, 0
      %v325 = vsel %vm266, %v193, 0
      %v328 = vsel %vm266, %v194, 0
      %v331 = vsel %vm266, %v195, 0
      %v334 = vsel %vm266, %v196, 0
      %v337 = vsel %vm266, %v197, 0
      %v340 = vsel %vm266, %v198, 0
      %v343 = vsel %vm266, %v199, 0
      %v346 = vsel %vm266, %v200, 0
      %v349 = vsel %vm266, %v201, 0
      %v352 = vsel %vm266, %v202, 0
      %v355 = vsel %vm266, %v203, 0
      %v358 = vsel %vm266, %v204, 0
      %v361 = vsel %vm266, %v205, 0
      %v364 = vsel %vm266, %v206, 0
      %v367 = vsel %vm266, %v207, 0
      %v370 = vsel %vm266, %v208, 0
      %v373 = vsel %vm266, %v209, 0
      %v376 = vsel %vm266, %v210, 0
      %v379 = vsel %vm266, %v211, 0
      %v382 = vsel %vm266, %v212, 0
      %v385 = vsel %vm266, %v213, 0
      %v388 = vsel %vm266, %v214, 0
      %v391 = vsel %vm266, %v215, 0
      %v394 = vsel %vm266, %v216, 0
      %v397 = vsel %vm266, %v217, 0
      %v400 = vsel %vm266, %v218, 0
      %v403 = vsel %vm266, %v219, 0
      %v406 = vsel %vm266, %v220, 0
      %v409 = vsel %vm266, %v221, 0
      %v412 = vsel %vm266, %v222, 0
      %v415 = vsel %vm266, %v223, 0
      %v418 = vsel %vm266, %v224, 0
      %v421 = vsel %vm266, %v225, 0
      %v424 = vsel %vm266, %v226, 0
      %v427 = vsel %vm266, %v227, 0
      %v430 = vsel %vm266, %v228, 0
      %v433 = vsel %vm266, %v229, 0
      %v436 = vsel %vm266, %v230, 0
      %v439 = vsel %vm266, %v231, 0
      %v442 = vsel %vm266, %v232, 0
      %v445 = vsel %vm266, %v233, 0
      %v448 = vsel %vm266, %v234, 0
      %v451 = vsel %vm266, %v235, 0
      %v454 = vsel %vm266, %v236, 0
      %v457 = vsel %vm266, %v237, 0
      %v460 = vsel %vm266, %v238, 0
      %v463 = vsel %vm266, %v239, 0
      %v466 = vsel %vm266, %v240, 0
      %v469 = vsel %vm266, %v241, 0
      %v472 = vsel %vm266, %v242, 0
      %v475 = vsel %vm266, %v243, 0
      %v478 = vsel %vm266, %v244, 0
      %v481 = vsel %vm266, %v245, 0
      %v484 = vsel %vm266, %v246, 0
      %v487 = vsel %vm266, %v247, 0
      %v490 = vsel %vm266, %v248, 0
      %v493 = vsel %vm266, %v249, 0
      %v496 = vsel %vm266, %v250, 0
      %v499 = vsel %vm266, %v251, 0
      %v502 = vsel %vm266, %v252, 0
      %v505 = vsel %vm266, %v253, 0
      %v508 = vsel %vm266, %v254, 0
      %v511 = vsel %vm266, %v255, 0
      %v514 = vsel %vm266, %v256, 0
      %v517 = vsel %vm266, %v257, 0
      %v520 = vsel %vm266, %v258, 0
      %v523 = vsel %vm266, %v259, 0
      %v526 = vsel %vm266, %v260, 0
      %v529 = vsel %vm266, %v261, 0
      %v532 = vsel %vm266, %v262, 0
      %v535 = vsel %vm266, %v263, 0
      %v538 = vsel %vm266, %v264, 0
      %v541 = vsel %vm266, %v265, 0
      %vm543 = vcmask 1041408
      %v545 = vsel %vm543, %v173, 0
      %547 = vmatpush.msra.mxu0 0.0
      %548 = vmatpush.msra.mxu0 0.0
      %549 = vmatpush.msra.mxu0 0.0
      %550 = vmatpush.msra.mxu0 0.0
      %551 = vmatpush.msra.mxu0 0.0
      %552 = vmatpush.msra.mxu0 0.0
      %553 = vmatpush.msra.mxu0 0.0
      %554 = vmatpush.msra.mxu0 0.0
      %555 = vmatpush.msra.mxu0 0.0
      %556 = vmatpush.msra.mxu0 0.0
      %557 = vmatpush.msra.mxu0 0.0
      %558 = vmatpush.msra.mxu0 0.0
      %559 = vmatpush.msra.mxu0 0.0
      %560 = vmatpush.msra.mxu0 %v545
      %561 = vmatpush.msra.mxu0 %v172
      %562 = vmatpush.msra.mxu0 %v171
      %563 = vmatmul.f32.gmra.mxu0 %v268
      %v564 = vpop.f32.mrf.mxu0
      %v565 = vadd.f32 0.0, %v564
      %566 = vmatmul.f32.gmra.mxu0 %v271
      %v567 = vpop.f32.mrf.mxu0
      %v568 = vadd.f32 0.0, %v567
      %569 = vmatmul.f32.gmra.mxu0 %v274
      %v570 = vpop.f32.mrf.mxu0
      %v571 = vadd.f32 0.0, %v570
      %572 = vmatmul.f32.gmra.mxu0 %v277
      %v573 = vpop.f32.mrf.mxu0
      %v574 = vadd.f32 0.0, %v573
      %575 = vmatmul.f32.gmra.mxu0 %v280
      %v576 = vpop.f32.mrf.mxu0
      %v577 = vadd.f32 0.0, %v576
      %578 = vmatmul.f32.gmra.mxu0 %v283
      %v579 = vpop.f32.mrf.mxu0
      %v580 = vadd.f32 0.0, %v579
      %581 = vmatmul.f32.gmra.mxu0 %v286
      %v582 = vpop.f32.mrf.mxu0
      %v583 = vadd.f32 0.0, %v582
      %584 = vmatmul.f32.gmra.mxu0 %v289
      %v585 = vpop.f32.mrf.mxu0
      %v586 = vadd.f32 0.0, %v585
      %587 = vmatmul.f32.gmra.mxu0 %v292
      %v588 = vpop.f32.mrf.mxu0
      %v589 = vadd.f32 0.0, %v588
      %590 = vmatmul.f32.gmra.mxu0 %v295
      %v591 = vpop.f32.mrf.mxu0
      %v592 = vadd.f32 0.0, %v591
      %593 = vmatmul.f32.gmra.mxu0 %v298
      %v594 = vpop.f32.mrf.mxu0
      %v595 = vadd.f32 0.0, %v594
      %596 = vmatmul.f32.gmra.mxu0 %v301
      %v597 = vpop.f32.mrf.mxu0
      %v598 = vadd.f32 0.0, %v597
      %599 = vmatmul.f32.gmra.mxu0 %v304
      %v600 = vpop.f32.mrf.mxu0
      %v601 = vadd.f32 0.0, %v600
      %602 = vmatmul.f32.gmra.mxu0 %v307
      %v603 = vpop.f32.mrf.mxu0
      %v604 = vadd.f32 0.0, %v603
      %605 = vmatmul.f32.gmra.mxu0 %v310
      %v606 = vpop.f32.mrf.mxu0
      %v607 = vadd.f32 0.0, %v606
      %608 = vmatmul.f32.gmra.mxu0 %v313
      %v609 = vpop.f32.mrf.mxu0
      %v610 = vadd.f32 0.0, %v609
      %611 = vmatmul.f32.gmra.mxu0 %v316
      %v612 = vpop.f32.mrf.mxu0
      %v613 = vadd.f32 0.0, %v612
      %614 = vmatmul.f32.gmra.mxu0 %v319
      %v615 = vpop.f32.mrf.mxu0
      %v616 = vadd.f32 0.0, %v615
      %617 = vmatmul.f32.gmra.mxu0 %v322
      %v618 = vpop.f32.mrf.mxu0
      %v619 = vadd.f32 0.0, %v618
      %620 = vmatmul.f32.gmra.mxu0 %v325
      %v621 = vpop.f32.mrf.mxu0
      %v622 = vadd.f32 0.0, %v621
      %623 = vmatmul.f32.gmra.mxu0 %v328
      %v624 = vpop.f32.mrf.mxu0
      %v625 = vadd.f32 0.0, %v624
      %626 = vmatmul.f32.gmra.mxu0 %v331
      %v627 = vpop.f32.mrf.mxu0
      %v628 = vadd.f32 0.0, %v627
      %629 = vmatmul.f32.gmra.mxu0 %v334
      %v630 = vpop.f32.mrf.mxu0
      %v631 = vadd.f32 0.0, %v630
      %632 = vmatmul.f32.gmra.mxu0 %v337
      %v633 = vpop.f32.mrf.mxu0
      %v634 = vadd.f32 0.0, %v633
      %635 = vmatmul.f32.gmra.mxu0 %v340
      %v636 = vpop.f32.mrf.mxu0
      %v637 = vadd.f32 0.0, %v636
      %638 = vmatmul.f32.gmra.mxu0 %v343
      %v639 = vpop.f32.mrf.mxu0
      %v640 = vadd.f32 0.0, %v639
      %641 = vmatmul.f32.gmra.mxu0 %v346
      %v642 = vpop.f32.mrf.mxu0
      %v643 = vadd.f32 0.0, %v642
      %644 = vmatmul.f32.gmra.mxu0 %v349
      %v645 = vpop.f32.mrf.mxu0
      %v646 = vadd.f32 0.0, %v645
      %647 = vmatmul.f32.gmra.mxu0 %v352
      %v648 = vpop.f32.mrf.mxu0
      %v649 = vadd.f32 0.0, %v648
      %650 = vmatmul.f32.gmra.mxu0 %v355
      %v651 = vpop.f32.mrf.mxu0
      %v652 = vadd.f32 0.0, %v651
      %653 = vmatmul.f32.gmra.mxu0 %v358
      %v654 = vpop.f32.mrf.mxu0
      %v655 = vadd.f32 0.0, %v654
      %656 = vmatmul.f32.gmra.mxu0 %v361
      %v657 = vpop.f32.mrf.mxu0
      %v658 = vadd.f32 0.0, %v657
      %659 = vmatmul.f32.gmra.mxu0 %v364
      %v660 = vpop.f32.mrf.mxu0
      %v661 = vadd.f32 0.0, %v660
      %662 = vmatmul.f32.gmra.mxu0 %v367
      %v663 = vpop.f32.mrf.mxu0
      %v664 = vadd.f32 0.0, %v663
      %665 = vmatmul.f32.gmra.mxu0 %v370
      %v666 = vpop.f32.mrf.mxu0
      %v667 = vadd.f32 0.0, %v666
      %668 = vmatmul.f32.gmra.mxu0 %v373
      %v669 = vpop.f32.mrf.mxu0
      %v670 = vadd.f32 0.0, %v669
      %671 = vmatmul.f32.gmra.mxu0 %v376
      %v672 = vpop.f32.mrf.mxu0
      %v673 = vadd.f32 0.0, %v672
      %674 = vmatmul.f32.gmra.mxu0 %v379
      %v675 = vpop.f32.mrf.mxu0
      %v676 = vadd.f32 0.0, %v675
      %677 = vmatmul.f32.gmra.mxu0 %v382
      %v678 = vpop.f32.mrf.mxu0
      %v679 = vadd.f32 0.0, %v678
      %680 = vmatmul.f32.gmra.mxu0 %v385
      %v681 = vpop.f32.mrf.mxu0
      %v682 = vadd.f32 0.0, %v681
      %683 = vmatmul.f32.gmra.mxu0 %v388
      %v684 = vpop.f32.mrf.mxu0
      %v685 = vadd.f32 0.0, %v684
      %686 = vmatmul.f32.gmra.mxu0 %v391
      %v687 = vpop.f32.mrf.mxu0
      %v688 = vadd.f32 0.0, %v687
      %689 = vmatmul.f32.gmra.mxu0 %v394
      %v690 = vpop.f32.mrf.mxu0
      %v691 = vadd.f32 0.0, %v690
      %692 = vmatmul.f32.gmra.mxu0 %v397
      %v693 = vpop.f32.mrf.mxu0
      %v694 = vadd.f32 0.0, %v693
      %695 = vmatmul.f32.gmra.mxu0 %v400
      %v696 = vpop.f32.mrf.mxu0
      %v697 = vadd.f32 0.0, %v696
      %698 = vmatmul.f32.gmra.mxu0 %v403
      %v699 = vpop.f32.mrf.mxu0
      %v700 = vadd.f32 0.0, %v699
      %701 = vmatmul.f32.gmra.mxu0 %v406
      %v702 = vpop.f32.mrf.mxu0
      %v703 = vadd.f32 0.0, %v702
      %704 = vmatmul.f32.gmra.mxu0 %v409
      %v705 = vpop.f32.mrf.mxu0
      %v706 = vadd.f32 0.0, %v705
      %707 = vmatmul.f32.gmra.mxu0 %v412
      %v708 = vpop.f32.mrf.mxu0
      %v709 = vadd.f32 0.0, %v708
      %710 = vmatmul.f32.gmra.mxu0 %v415
      %v711 = vpop.f32.mrf.mxu0
      %v712 = vadd.f32 0.0, %v711
      %713 = vmatmul.f32.gmra.mxu0 %v418
      %v714 = vpop.f32.mrf.mxu0
      %v715 = vadd.f32 0.0, %v714
      %716 = vmatmul.f32.gmra.mxu0 %v421
      %v717 = vpop.f32.mrf.mxu0
      %v718 = vadd.f32 0.0, %v717
      %719 = vmatmul.f32.gmra.mxu0 %v424
      %v720 = vpop.f32.mrf.mxu0
      %v721 = vadd.f32 0.0, %v720
      %722 = vmatmul.f32.gmra.mxu0 %v427
      %v723 = vpop.f32.mrf.mxu0
      %v724 = vadd.f32 0.0, %v723
      %725 = vmatmul.f32.gmra.mxu0 %v430
      %v726 = vpop.f32.mrf.mxu0
      %v727 = vadd.f32 0.0, %v726
      %728 = vmatmul.f32.gmra.mxu0 %v433
      %v729 = vpop.f32.mrf.mxu0
      %v730 = vadd.f32 0.0, %v729
      %731 = vmatmul.f32.gmra.mxu0 %v436
      %v732 = vpop.f32.mrf.mxu0
      %v733 = vadd.f32 0.0, %v732
      %734 = vmatmul.f32.gmra.mxu0 %v439
      %v735 = vpop.f32.mrf.mxu0
      %v736 = vadd.f32 0.0, %v735
      %737 = vmatmul.f32.gmra.mxu0 %v442
      %v738 = vpop.f32.mrf.mxu0
      %v739 = vadd.f32 0.0, %v738
      %740 = vmatmul.f32.gmra.mxu0 %v445
      %v741 = vpop.f32.mrf.mxu0
      %v742 = vadd.f32 0.0, %v741
      %743 = vmatmul.f32.gmra.mxu0 %v448
      %v744 = vpop.f32.mrf.mxu0
      %v745 = vadd.f32 0.0, %v744
      %746 = vmatmul.f32.gmra.mxu0 %v451
      %v747 = vpop.f32.mrf.mxu0
      %v748 = vadd.f32 0.0, %v747
      %749 = vmatmul.f32.gmra.mxu0 %v454
      %v750 = vpop.f32.mrf.mxu0
      %v751 = vadd.f32 0.0, %v750
      %752 = vmatmul.f32.gmra.mxu0 %v457
      %v753 = vpop.f32.mrf.mxu0
      %v754 = vadd.f32 0.0, %v753
      %755 = vmatmul.f32.gmra.mxu0 %v460
      %v756 = vpop.f32.mrf.mxu0
      %v757 = vadd.f32 0.0, %v756
      %758 = vmatmul.f32.gmra.mxu0 %v463
      %v759 = vpop.f32.mrf.mxu0
      %v760 = vadd.f32 0.0, %v759
      %761 = vmatmul.f32.gmra.mxu0 %v466
      %v762 = vpop.f32.mrf.mxu0
      %v763 = vadd.f32 0.0, %v762
      %764 = vmatmul.f32.gmra.mxu0 %v469
      %v765 = vpop.f32.mrf.mxu0
      %v766 = vadd.f32 0.0, %v765
      %767 = vmatmul.f32.gmra.mxu0 %v472
      %v768 = vpop.f32.mrf.mxu0
      %v769 = vadd.f32 0.0, %v768
      %770 = vmatmul.f32.gmra.mxu0 %v475
      %v771 = vpop.f32.mrf.mxu0
      %v772 = vadd.f32 0.0, %v771
      %773 = vmatmul.f32.gmra.mxu0 %v478
      %v774 = vpop.f32.mrf.mxu0
      %v775 = vadd.f32 0.0, %v774
      %776 = vmatmul.f32.gmra.mxu0 %v481
      %v777 = vpop.f32.mrf.mxu0
      %v778 = vadd.f32 0.0, %v777
      %779 = vmatmul.f32.gmra.mxu0 %v484
      %v780 = vpop.f32.mrf.mxu0
      %v781 = vadd.f32 0.0, %v780
      %782 = vmatmul.f32.gmra.mxu0 %v487
      %v783 = vpop.f32.mrf.mxu0
      %v784 = vadd.f32 0.0, %v783
      %785 = vmatmul.f32.gmra.mxu0 %v490
      %v786 = vpop.f32.mrf.mxu0
      %v787 = vadd.f32 0.0, %v786
      %788 = vmatmul.f32.gmra.mxu0 %v493
      %v789 = vpop.f32.mrf.mxu0
      %v790 = vadd.f32 0.0, %v789
      %791 = vmatmul.f32.gmra.mxu0 %v496
      %v792 = vpop.f32.mrf.mxu0
      %v793 = vadd.f32 0.0, %v792
      %794 = vmatmul.f32.gmra.mxu0 %v499
      %v795 = vpop.f32.mrf.mxu0
      %v796 = vadd.f32 0.0, %v795
      %797 = vmatmul.f32.gmra.mxu0 %v502
      %v798 = vpop.f32.mrf.mxu0
      %v799 = vadd.f32 0.0, %v798
      %800 = vmatmul.f32.gmra.mxu0 %v505
      %v801 = vpop.f32.mrf.mxu0
      %v802 = vadd.f32 0.0, %v801
      %803 = vmatmul.f32.gmra.mxu0 %v508
      %v804 = vpop.f32.mrf.mxu0
      %v805 = vadd.f32 0.0, %v804
      %806 = vmatmul.f32.gmra.mxu0 %v511
      %v807 = vpop.f32.mrf.mxu0
      %v808 = vadd.f32 0.0, %v807
      %809 = vmatmul.f32.gmra.mxu0 %v514
      %v810 = vpop.f32.mrf.mxu0
      %v811 = vadd.f32 0.0, %v810
      %812 = vmatmul.f32.gmra.mxu0 %v517
      %v813 = vpop.f32.mrf.mxu0
      %v814 = vadd.f32 0.0, %v813
      %815 = vmatmul.f32.gmra.mxu0 %v520
      %v816 = vpop.f32.mrf.mxu0
      %v817 = vadd.f32 0.0, %v816
      %818 = vmatmul.f32.gmra.mxu0 %v523
      %v819 = vpop.f32.mrf.mxu0
      %v820 = vadd.f32 0.0, %v819
      %821 = vmatmul.f32.gmra.mxu0 %v526
      %v822 = vpop.f32.mrf.mxu0
      %v823 = vadd.f32 0.0, %v822
      %824 = vmatmul.f32.gmra.mxu0 %v529
      %v825 = vpop.f32.mrf.mxu0
      %v826 = vadd.f32 0.0, %v825
      %827 = vmatmul.f32.gmra.mxu0 %v532
      %v828 = vpop.f32.mrf.mxu0
      %v829 = vadd.f32 0.0, %v828
      %830 = vmatmul.f32.gmra.mxu0 %v535
      %v831 = vpop.f32.mrf.mxu0
      %v832 = vadd.f32 0.0, %v831
      %833 = vmatmul.f32.gmra.mxu0 %v538
      %v834 = vpop.f32.mrf.mxu0
      %v835 = vadd.f32 0.0, %v834
      %836 = vmatmul.f32.gmra.mxu0 %v541
      %v837 = vpop.f32.mrf.mxu0
      %v838 = vadd.f32 0.0, %v837
      %839 = vdwg.mxu0
      %s840 = scalar_lea.vmem %s165, 736
      %v841 = vld [vmem:[%s840] sm:$0xff]
      %v842 = vld [vmem:[%s840 + $0x8] sm:$0xff]
      %v843 = vld [vmem:[%s840 + $0x10] sm:$0xff]
      %v844 = vld [vmem:[%s840 + $0x18] sm:$0xff]
      %v845 = vld [vmem:[%s840 + $0x20] sm:$0xff]
      %v846 = vld [vmem:[%s840 + $0x28] sm:$0xff]
      %v847 = vld [vmem:[%s840 + $0x30] sm:$0xff]
      %v848 = vld [vmem:[%s840 + $0x38] sm:$0xff]
      %v849 = vld [vmem:[%s840 + $0x40] sm:$0xff]
      %v850 = vld [vmem:[%s840 + $0x48] sm:$0xff]
      %v851 = vld [vmem:[%s840 + $0x50] sm:$0xff]
      %v852 = vld [vmem:[%s840 + $0x58] sm:$0xff]
      %v853 = vld [vmem:[%s840 + $0x60] sm:$0xff]
      %v854 = vld [vmem:[%s840 + $0x68] sm:$0xff]
      %v855 = vld [vmem:[%s840 + $0x70] sm:$0xff]
      %v856 = vld [vmem:[%s840 + $0x78] sm:$0xff]
      %v857 = vld [vmem:[%s840 + $0x80] sm:$0xff]
      %v858 = vld [vmem:[%s840 + $0x88] sm:$0xff]
      %v859 = vld [vmem:[%s840 + $0x90] sm:$0xff]
      %v860 = vld [vmem:[%s840 + $0x98] sm:$0xff]
      %v861 = vld [vmem:[%s840 + $0xa0] sm:$0xff]
      %v862 = vld [vmem:[%s840 + $0xa8] sm:$0xff]
      %v863 = vld [vmem:[%s840 + $0xb0] sm:$0xff]
      %v864 = vld [vmem:[%s840 + $0xb8] sm:$0xff]
      %v865 = vld [vmem:[%s840 + $0xc0] sm:$0xff]
      %v866 = vld [vmem:[%s840 + $0xc8] sm:$0xff]
      %v867 = vld [vmem:[%s840 + $0xd0] sm:$0xff]
      %v868 = vld [vmem:[%s840 + $0xd8] sm:$0xff]
      %v869 = vld [vmem:[%s840 + $0xe0] sm:$0xff]
      %v870 = vld [vmem:[%s840 + $0xe8] sm:$0xff]
      %v871 = vld [vmem:[%s840 + $0xf0] sm:$0xff]
      %v872 = vld [vmem:[%s840 + $0xf8] sm:$0xff]
      %v873 = vld [vmem:[%s840 + $0x100] sm:$0xff]
      %v874 = vld [vmem:[%s840 + $0x108] sm:$0xff]
      %v875 = vld [vmem:[%s840 + $0x110] sm:$0xff]
      %v876 = vld [vmem:[%s840 + $0x118] sm:$0xff]
      %v877 = vld [vmem:[%s840 + $0x120] sm:$0xff]
      %v878 = vld [vmem:[%s840 + $0x128] sm:$0xff]
      %v879 = vld [vmem:[%s840 + $0x130] sm:$0xff]
      %v880 = vld [vmem:[%s840 + $0x138] sm:$0xff]
      %v881 = vld [vmem:[%s840 + $0x140] sm:$0xff]
      %v882 = vld [vmem:[%s840 + $0x148] sm:$0xff]
      %v883 = vld [vmem:[%s840 + $0x150] sm:$0xff]
      %v884 = vld [vmem:[%s840 + $0x158] sm:$0xff]
      %v885 = vld [vmem:[%s840 + $0x160] sm:$0xff]
      %v886 = vld [vmem:[%s840 + $0x168] sm:$0xff]
      %v887 = vld [vmem:[%s840 + $0x170] sm:$0xff]
      %v888 = vld [vmem:[%s840 + $0x178] sm:$0xff]
      %v889 = vld [vmem:[%s840 + $0x180] sm:$0xff]
      %v890 = vld [vmem:[%s840 + $0x188] sm:$0xff]
      %v891 = vld [vmem:[%s840 + $0x190] sm:$0xff]
      %v892 = vld [vmem:[%s840 + $0x198] sm:$0xff]
      %v893 = vld [vmem:[%s840 + $0x1a0] sm:$0xff]
      %v894 = vld [vmem:[%s840 + $0x1a8] sm:$0xff]
      %v895 = vld [vmem:[%s840 + $0x1b0] sm:$0xff]
      %v896 = vld [vmem:[%s840 + $0x1b8] sm:$0xff]
      %v897 = vld [vmem:[%s840 + $0x1c0] sm:$0xff]
      %v898 = vld [vmem:[%s840 + $0x1c8] sm:$0xff]
      %v899 = vld [vmem:[%s840 + $0x1d0] sm:$0xff]
      %v900 = vld [vmem:[%s840 + $0x1d8] sm:$0xff]
      %v901 = vld [vmem:[%s840 + $0x1e0] sm:$0xff]
      %v902 = vld [vmem:[%s840 + $0x1e8] sm:$0xff]
      %v903 = vld [vmem:[%s840 + $0x1f0] sm:$0xff]
      %v904 = vld [vmem:[%s840 + $0x1f8] sm:$0xff]
      %v905 = vld [vmem:[%s840 + $0x200] sm:$0xff]
      %v906 = vld [vmem:[%s840 + $0x208] sm:$0xff]
      %v907 = vld [vmem:[%s840 + $0x210] sm:$0xff]
      %v908 = vld [vmem:[%s840 + $0x218] sm:$0xff]
      %v909 = vld [vmem:[%s840 + $0x220] sm:$0xff]
      %v910 = vld [vmem:[%s840 + $0x228] sm:$0xff]
      %v911 = vld [vmem:[%s840 + $0x230] sm:$0xff]
      %v912 = vld [vmem:[%s840 + $0x238] sm:$0xff]
      %v913 = vld [vmem:[%s840 + $0x240] sm:$0xff]
      %v914 = vld [vmem:[%s840 + $0x248] sm:$0xff]
      %v915 = vld [vmem:[%s840 + $0x250] sm:$0xff]
      %v916 = vld [vmem:[%s840 + $0x258] sm:$0xff]
      %v917 = vld [vmem:[%s840 + $0x260] sm:$0xff]
      %v918 = vld [vmem:[%s840 + $0x268] sm:$0xff]
      %v919 = vld [vmem:[%s840 + $0x270] sm:$0xff]
      %v920 = vld [vmem:[%s840 + $0x278] sm:$0xff]
      %v921 = vld [vmem:[%s840 + $0x280] sm:$0xff]
      %v922 = vld [vmem:[%s840 + $0x288] sm:$0xff]
      %v923 = vld [vmem:[%s840 + $0x290] sm:$0xff]
      %v924 = vld [vmem:[%s840 + $0x298] sm:$0xff]
      %v925 = vld [vmem:[%s840 + $0x2a0] sm:$0xff]
      %v926 = vld [vmem:[%s840 + $0x2a8] sm:$0xff]
      %v927 = vld [vmem:[%s840 + $0x2b0] sm:$0xff]
      %v928 = vld [vmem:[%s840 + $0x2b8] sm:$0xff]
      %v929 = vld [vmem:[%s840 + $0x2c0] sm:$0xff]
      %v930 = vld [vmem:[%s840 + $0x2c8] sm:$0xff]
      %v931 = vld [vmem:[%s840 + $0x2d0] sm:$0xff]
      %v932 = vld [vmem:[%s840 + $0x2d8] sm:$0x1]
      %v934 = vsel %vm266, %v841, 0
      %v937 = vsel %vm266, %v842, 0
      %v940 = vsel %vm266, %v843, 0
      %v943 = vsel %vm266, %v844, 0
      %v946 = vsel %vm266, %v845, 0
      %v949 = vsel %vm266, %v846, 0
      %v952 = vsel %vm266, %v847, 0
      %v955 = vsel %vm266, %v848, 0
      %v958 = vsel %vm266, %v849, 0
      %v961 = vsel %vm266, %v850, 0
      %v964 = vsel %vm266, %v851, 0
      %v967 = vsel %vm266, %v852, 0
      %v970 = vsel %vm266, %v853, 0
      %v973 = vsel %vm266, %v854, 0
      %v976 = vsel %vm266, %v855, 0
      %v979 = vsel %vm266, %v856, 0
      %v982 = vsel %vm266, %v857, 0
      %v985 = vsel %vm266, %v858, 0
      %v988 = vsel %vm266, %v859, 0
      %v991 = vsel %vm266, %v860, 0
      %v994 = vsel %vm266, %v861, 0
      %v997 = vsel %vm266, %v862, 0
      %v1000 = vsel %vm266, %v863, 0
      %v1003 = vsel %vm266, %v864, 0
      %v1006 = vsel %vm266, %v865, 0
      %v1009 = vsel %vm266, %v866, 0
      %v1012 = vsel %vm266, %v867, 0
      %v1015 = vsel %vm266, %v868, 0
      %v1018 = vsel %vm266, %v869, 0
      %v1021 = vsel %vm266, %v870, 0
      %v1024 = vsel %vm266, %v871, 0
      %v1027 = vsel %vm266, %v872, 0
      %v1030 = vsel %vm266, %v873, 0
      %v1033 = vsel %vm266, %v874, 0
      %v1036 = vsel %vm266, %v875, 0
      %v1039 = vsel %vm266, %v876, 0
      %v1042 = vsel %vm266, %v877, 0
      %v1045 = vsel %vm266, %v878, 0
      %v1048 = vsel %vm266, %v879, 0
      %v1051 = vsel %vm266, %v880, 0
      %v1054 = vsel %vm266, %v881, 0
      %v1057 = vsel %vm266, %v882, 0
      %v1060 = vsel %vm266, %v883, 0
      %v1063 = vsel %vm266, %v884, 0
      %v1066 = vsel %vm266, %v885, 0
      %v1069 = vsel %vm266, %v886, 0
      %v1072 = vsel %vm266, %v887, 0
      %v1075 = vsel %vm266, %v888, 0
      %v1078 = vsel %vm266, %v889, 0
      %v1081 = vsel %vm266, %v890, 0
      %v1084 = vsel %vm266, %v891, 0
      %v1087 = vsel %vm266, %v892, 0
      %v1090 = vsel %vm266, %v893, 0
      %v1093 = vsel %vm266, %v894, 0
      %v1096 = vsel %vm266, %v895, 0
      %v1099 = vsel %vm266, %v896, 0
      %v1102 = vsel %vm266, %v897, 0
      %v1105 = vsel %vm266, %v898, 0
      %v1108 = vsel %vm266, %v899, 0
      %v1111 = vsel %vm266, %v900, 0
      %v1114 = vsel %vm266, %v901, 0
      %v1117 = vsel %vm266, %v902, 0
      %v1120 = vsel %vm266, %v903, 0
      %v1123 = vsel %vm266, %v904, 0
      %v1126 = vsel %vm266, %v905, 0
      %v1129 = vsel %vm266, %v906, 0
      %v1132 = vsel %vm266, %v907, 0
      %v1135 = vsel %vm266, %v908, 0
      %v1138 = vsel %vm266, %v909, 0
      %v1141 = vsel %vm266, %v910, 0
      %v1144 = vsel %vm266, %v911, 0
      %v1147 = vsel %vm266, %v912, 0
      %v1150 = vsel %vm266, %v913, 0
      %v1153 = vsel %vm266, %v914, 0
      %v1156 = vsel %vm266, %v915, 0
      %v1159 = vsel %vm266, %v916, 0
      %v1162 = vsel %vm266, %v917, 0
      %v1165 = vsel %vm266, %v918, 0
      %v1168 = vsel %vm266, %v919, 0
      %v1171 = vsel %vm266, %v920, 0
      %v1174 = vsel %vm266, %v921, 0
      %v1177 = vsel %vm266, %v922, 0
      %v1180 = vsel %vm266, %v923, 0
      %v1183 = vsel %vm266, %v924, 0
      %v1186 = vsel %vm266, %v925, 0
      %v1189 = vsel %vm266, %v926, 0
      %v1192 = vsel %vm266, %v927, 0
      %v1195 = vsel %vm266, %v928, 0
      %v1198 = vsel %vm266, %v929, 0
      %v1201 = vsel %vm266, %v930, 0
      %v1204 = vsel %vm266, %v931, 0
      %v1207 = vsel %vm266, %v932, 0
      %1209 = vmatpush.msra.mxu0 0.0
      %1210 = vmatpush.msra.mxu0 0.0
      %1211 = vmatpush.msra.mxu0 0.0
      %1212 = vmatpush.msra.mxu0 0.0
      %1213 = vmatpush.msra.mxu0 0.0
      %1214 = vmatpush.msra.mxu0 0.0
      %1215 = vmatpush.msra.mxu0 0.0
      %1216 = vmatpush.msra.mxu0 0.0
      %1217 = vmatpush.msra.mxu0 0.0
      %1218 = vmatpush.msra.mxu0 0.0
      %1219 = vmatpush.msra.mxu0 0.0
      %1220 = vmatpush.msra.mxu0 0.0
      %1221 = vmatpush.msra.mxu0 0.0
      %1222 = vmatpush.msra.mxu0 %v545
      %1223 = vmatpush.msra.mxu0 %v172
      %1224 = vmatpush.msra.mxu0 %v171
      %1225 = vmatmul.f32.gmra.mxu0 %v934
      %v1226 = vpop.f32.mrf.mxu0
      %v1227 = vadd.f32 0.0, %v1226
      %1228 = vmatmul.f32.gmra.mxu0 %v937
      %v1229 = vpop.f32.mrf.mxu0
      %v1230 = vadd.f32 0.0, %v1229
      %1231 = vmatmul.f32.gmra.mxu0 %v940
      %v1232 = vpop.f32.mrf.mxu0
      %v1233 = vadd.f32 0.0, %v1232
      %1234 = vmatmul.f32.gmra.mxu0 %v943
      %v1235 = vpop.f32.mrf.mxu0
      %v1236 = vadd.f32 0.0, %v1235
      %1237 = vmatmul.f32.gmra.mxu0 %v946
      %v1238 = vpop.f32.mrf.mxu0
      %v1239 = vadd.f32 0.0, %v1238
      %1240 = vmatmul.f32.gmra.mxu0 %v949
      %v1241 = vpop.f32.mrf.mxu0
      %v1242 = vadd.f32 0.0, %v1241
      %1243 = vmatmul.f32.gmra.mxu0 %v952
      %v1244 = vpop.f32.mrf.mxu0
      %v1245 = vadd.f32 0.0, %v1244
      %1246 = vmatmul.f32.gmra.mxu0 %v955
      %v1247 = vpop.f32.mrf.mxu0
      %v1248 = vadd.f32 0.0, %v1247
      %1249 = vmatmul.f32.gmra.mxu0 %v958
      %v1250 = vpop.f32.mrf.mxu0
      %v1251 = vadd.f32 0.0, %v1250
      %1252 = vmatmul.f32.gmra.mxu0 %v961
      %v1253 = vpop.f32.mrf.mxu0
      %v1254 = vadd.f32 0.0, %v1253
      %1255 = vmatmul.f32.gmra.mxu0 %v964
      %v1256 = vpop.f32.mrf.mxu0
      %v1257 = vadd.f32 0.0, %v1256
      %1258 = vmatmul.f32.gmra.mxu0 %v967
      %v1259 = vpop.f32.mrf.mxu0
      %v1260 = vadd.f32 0.0, %v1259
      %1261 = vmatmul.f32.gmra.mxu0 %v970
      %v1262 = vpop.f32.mrf.mxu0
      %v1263 = vadd.f32 0.0, %v1262
      %1264 = vmatmul.f32.gmra.mxu0 %v973
      %v1265 = vpop.f32.mrf.mxu0
      %v1266 = vadd.f32 0.0, %v1265
      %1267 = vmatmul.f32.gmra.mxu0 %v976
      %v1268 = vpop.f32.mrf.mxu0
      %v1269 = vadd.f32 0.0, %v1268
      %1270 = vmatmul.f32.gmra.mxu0 %v979
      %v1271 = vpop.f32.mrf.mxu0
      %v1272 = vadd.f32 0.0, %v1271
      %1273 = vmatmul.f32.gmra.mxu0 %v982
      %v1274 = vpop.f32.mrf.mxu0
      %v1275 = vadd.f32 0.0, %v1274
      %1276 = vmatmul.f32.gmra.mxu0 %v985
      %v1277 = vpop.f32.mrf.mxu0
      %v1278 = vadd.f32 0.0, %v1277
      %1279 = vmatmul.f32.gmra.mxu0 %v988
      %v1280 = vpop.f32.mrf.mxu0
      %v1281 = vadd.f32 0.0, %v1280
      %1282 = vmatmul.f32.gmra.mxu0 %v991
      %v1283 = vpop.f32.mrf.mxu0
      %v1284 = vadd.f32 0.0, %v1283
      %1285 = vmatmul.f32.gmra.mxu0 %v994
      %v1286 = vpop.f32.mrf.mxu0
      %v1287 = vadd.f32 0.0, %v1286
      %1288 = vmatmul.f32.gmra.mxu0 %v997
      %v1289 = vpop.f32.mrf.mxu0
      %v1290 = vadd.f32 0.0, %v1289
      %1291 = vmatmul.f32.gmra.mxu0 %v1000
      %v1292 = vpop.f32.mrf.mxu0
      %v1293 = vadd.f32 0.0, %v1292
      %1294 = vmatmul.f32.gmra.mxu0 %v1003
      %v1295 = vpop.f32.mrf.mxu0
      %v1296 = vadd.f32 0.0, %v1295
      %1297 = vmatmul.f32.gmra.mxu0 %v1006
      %v1298 = vpop.f32.mrf.mxu0
      %v1299 = vadd.f32 0.0, %v1298
      %1300 = vmatmul.f32.gmra.mxu0 %v1009
      %v1301 = vpop.f32.mrf.mxu0
      %v1302 = vadd.f32 0.0, %v1301
      %1303 = vmatmul.f32.gmra.mxu0 %v1012
      %v1304 = vpop.f32.mrf.mxu0
      %v1305 = vadd.f32 0.0, %v1304
      %1306 = vmatmul.f32.gmra.mxu0 %v1015
      %v1307 = vpop.f32.mrf.mxu0
      %v1308 = vadd.f32 0.0, %v1307
      %1309 = vmatmul.f32.gmra.mxu0 %v1018
      %v1310 = vpop.f32.mrf.mxu0
      %v1311 = vadd.f32 0.0, %v1310
      %1312 = vmatmul.f32.gmra.mxu0 %v1021
      %v1313 = vpop.f32.mrf.mxu0
      %v1314 = vadd.f32 0.0, %v1313
      %1315 = vmatmul.f32.gmra.mxu0 %v1024
      %v1316 = vpop.f32.mrf.mxu0
      %v1317 = vadd.f32 0.0, %v1316
      %1318 = vmatmul.f32.gmra.mxu0 %v1027
      %v1319 = vpop.f32.mrf.mxu0
      %v1320 = vadd.f32 0.0, %v1319
      %1321 = vmatmul.f32.gmra.mxu0 %v1030
      %v1322 = vpop.f32.mrf.mxu0
      %v1323 = vadd.f32 0.0, %v1322
      %1324 = vmatmul.f32.gmra.mxu0 %v1033
      %v1325 = vpop.f32.mrf.mxu0
      %v1326 = vadd.f32 0.0, %v1325
      %1327 = vmatmul.f32.gmra.mxu0 %v1036
      %v1328 = vpop.f32.mrf.mxu0
      %v1329 = vadd.f32 0.0, %v1328
      %1330 = vmatmul.f32.gmra.mxu0 %v1039
      %v1331 = vpop.f32.mrf.mxu0
      %v1332 = vadd.f32 0.0, %v1331
      %1333 = vmatmul.f32.gmra.mxu0 %v1042
      %v1334 = vpop.f32.mrf.mxu0
      %v1335 = vadd.f32 0.0, %v1334
      %1336 = vmatmul.f32.gmra.mxu0 %v1045
      %v1337 = vpop.f32.mrf.mxu0
      %v1338 = vadd.f32 0.0, %v1337
      %1339 = vmatmul.f32.gmra.mxu0 %v1048
      %v1340 = vpop.f32.mrf.mxu0
      %v1341 = vadd.f32 0.0, %v1340
      %1342 = vmatmul.f32.gmra.mxu0 %v1051
      %v1343 = vpop.f32.mrf.mxu0
      %v1344 = vadd.f32 0.0, %v1343
      %1345 = vmatmul.f32.gmra.mxu0 %v1054
      %v1346 = vpop.f32.mrf.mxu0
      %v1347 = vadd.f32 0.0, %v1346
      %1348 = vmatmul.f32.gmra.mxu0 %v1057
      %v1349 = vpop.f32.mrf.mxu0
      %v1350 = vadd.f32 0.0, %v1349
      %1351 = vmatmul.f32.gmra.mxu0 %v1060
      %v1352 = vpop.f32.mrf.mxu0
      %v1353 = vadd.f32 0.0, %v1352
      %1354 = vmatmul.f32.gmra.mxu0 %v1063
      %v1355 = vpop.f32.mrf.mxu0
      %v1356 = vadd.f32 0.0, %v1355
      %1357 = vmatmul.f32.gmra.mxu0 %v1066
      %v1358 = vpop.f32.mrf.mxu0
      %v1359 = vadd.f32 0.0, %v1358
      %1360 = vmatmul.f32.gmra.mxu0 %v1069
      %v1361 = vpop.f32.mrf.mxu0
      %v1362 = vadd.f32 0.0, %v1361
      %1363 = vmatmul.f32.gmra.mxu0 %v1072
      %v1364 = vpop.f32.mrf.mxu0
      %v1365 = vadd.f32 0.0, %v1364
      %1366 = vmatmul.f32.gmra.mxu0 %v1075
      %v1367 = vpop.f32.mrf.mxu0
      %v1368 = vadd.f32 0.0, %v1367
      %1369 = vmatmul.f32.gmra.mxu0 %v1078
      %v1370 = vpop.f32.mrf.mxu0
      %v1371 = vadd.f32 0.0, %v1370
      %1372 = vmatmul.f32.gmra.mxu0 %v1081
      %v1373 = vpop.f32.mrf.mxu0
      %v1374 = vadd.f32 0.0, %v1373
      %1375 = vmatmul.f32.gmra.mxu0 %v1084
      %v1376 = vpop.f32.mrf.mxu0
      %v1377 = vadd.f32 0.0, %v1376
      %1378 = vmatmul.f32.gmra.mxu0 %v1087
      %v1379 = vpop.f32.mrf.mxu0
      %v1380 = vadd.f32 0.0, %v1379
      %1381 = vmatmul.f32.gmra.mxu0 %v1090
      %v1382 = vpop.f32.mrf.mxu0
      %v1383 = vadd.f32 0.0, %v1382
      %1384 = vmatmul.f32.gmra.mxu0 %v1093
      %v1385 = vpop.f32.mrf.mxu0
      %v1386 = vadd.f32 0.0, %v1385
      %1387 = vmatmul.f32.gmra.mxu0 %v1096
      %v1388 = vpop.f32.mrf.mxu0
      %v1389 = vadd.f32 0.0, %v1388
      %1390 = vmatmul.f32.gmra.mxu0 %v1099
      %v1391 = vpop.f32.mrf.mxu0
      %v1392 = vadd.f32 0.0, %v1391
      %1393 = vmatmul.f32.gmra.mxu0 %v1102
      %v1394 = vpop.f32.mrf.mxu0
      %v1395 = vadd.f32 0.0, %v1394
      %1396 = vmatmul.f32.gmra.mxu0 %v1105
      %v1397 = vpop.f32.mrf.mxu0
      %v1398 = vadd.f32 0.0, %v1397
      %1399 = vmatmul.f32.gmra.mxu0 %v1108
      %v1400 = vpop.f32.mrf.mxu0
      %v1401 = vadd.f32 0.0, %v1400
      %1402 = vmatmul.f32.gmra.mxu0 %v1111
      %v1403 = vpop.f32.mrf.mxu0
      %v1404 = vadd.f32 0.0, %v1403
      %1405 = vmatmul.f32.gmra.mxu0 %v1114
      %v1406 = vpop.f32.mrf.mxu0
      %v1407 = vadd.f32 0.0, %v1406
      %1408 = vmatmul.f32.gmra.mxu0 %v1117
      %v1409 = vpop.f32.mrf.mxu0
      %v1410 = vadd.f32 0.0, %v1409
      %1411 = vmatmul.f32.gmra.mxu0 %v1120
      %v1412 = vpop.f32.mrf.mxu0
      %v1413 = vadd.f32 0.0, %v1412
      %1414 = vmatmul.f32.gmra.mxu0 %v1123
      %v1415 = vpop.f32.mrf.mxu0
      %v1416 = vadd.f32 0.0, %v1415
      %1417 = vmatmul.f32.gmra.mxu0 %v1126
      %v1418 = vpop.f32.mrf.mxu0
      %v1419 = vadd.f32 0.0, %v1418
      %1420 = vmatmul.f32.gmra.mxu0 %v1129
      %v1421 = vpop.f32.mrf.mxu0
      %v1422 = vadd.f32 0.0, %v1421
      %1423 = vmatmul.f32.gmra.mxu0 %v1132
      %v1424 = vpop.f32.mrf.mxu0
      %v1425 = vadd.f32 0.0, %v1424
      %1426 = vmatmul.f32.gmra.mxu0 %v1135
      %v1427 = vpop.f32.mrf.mxu0
      %v1428 = vadd.f32 0.0, %v1427
      %1429 = vmatmul.f32.gmra.mxu0 %v1138
      %v1430 = vpop.f32.mrf.mxu0
      %v1431 = vadd.f32 0.0, %v1430
      %1432 = vmatmul.f32.gmra.mxu0 %v1141
      %v1433 = vpop.f32.mrf.mxu0
      %v1434 = vadd.f32 0.0, %v1433
      %1435 = vmatmul.f32.gmra.mxu0 %v1144
      %v1436 = vpop.f32.mrf.mxu0
      %v1437 = vadd.f32 0.0, %v1436
      %1438 = vmatmul.f32.gmra.mxu0 %v1147
      %v1439 = vpop.f32.mrf.mxu0
      %v1440 = vadd.f32 0.0, %v1439
      %1441 = vmatmul.f32.gmra.mxu0 %v1150
      %v1442 = vpop.f32.mrf.mxu0
      %v1443 = vadd.f32 0.0, %v1442
      %1444 = vmatmul.f32.gmra.mxu0 %v1153
      %v1445 = vpop.f32.mrf.mxu0
      %v1446 = vadd.f32 0.0, %v1445
      %1447 = vmatmul.f32.gmra.mxu0 %v1156
      %v1448 = vpop.f32.mrf.mxu0
      %v1449 = vadd.f32 0.0, %v1448
      %1450 = vmatmul.f32.gmra.mxu0 %v1159
      %v1451 = vpop.f32.mrf.mxu0
      %v1452 = vadd.f32 0.0, %v1451
      %1453 = vmatmul.f32.gmra.mxu0 %v1162
      %v1454 = vpop.f32.mrf.mxu0
      %v1455 = vadd.f32 0.0, %v1454
      %1456 = vmatmul.f32.gmra.mxu0 %v1165
      %v1457 = vpop.f32.mrf.mxu0
      %v1458 = vadd.f32 0.0, %v1457
      %1459 = vmatmul.f32.gmra.mxu0 %v1168
      %v1460 = vpop.f32.mrf.mxu0
      %v1461 = vadd.f32 0.0, %v1460
      %1462 = vmatmul.f32.gmra.mxu0 %v1171
      %v1463 = vpop.f32.mrf.mxu0
      %v1464 = vadd.f32 0.0, %v1463
      %1465 = vmatmul.f32.gmra.mxu0 %v1174
      %v1466 = vpop.f32.mrf.mxu0
      %v1467 = vadd.f32 0.0, %v1466
      %1468 = vmatmul.f32.gmra.mxu0 %v1177
      %v1469 = vpop.f32.mrf.mxu0
      %v1470 = vadd.f32 0.0, %v1469
      %1471 = vmatmul.f32.gmra.mxu0 %v1180
      %v1472 = vpop.f32.mrf.mxu0
      %v1473 = vadd.f32 0.0, %v1472
      %1474 = vmatmul.f32.gmra.mxu0 %v1183
      %v1475 = vpop.f32.mrf.mxu0
      %v1476 = vadd.f32 0.0, %v1475
      %1477 = vmatmul.f32.gmra.mxu0 %v1186
      %v1478 = vpop.f32.mrf.mxu0
      %v1479 = vadd.f32 0.0, %v1478
      %1480 = vmatmul.f32.gmra.mxu0 %v1189
      %v1481 = vpop.f32.mrf.mxu0
      %v1482 = vadd.f32 0.0, %v1481
      %1483 = vmatmul.f32.gmra.mxu0 %v1192
      %v1484 = vpop.f32.mrf.mxu0
      %v1485 = vadd.f32 0.0, %v1484
      %1486 = vmatmul.f32.gmra.mxu0 %v1195
      %v1487 = vpop.f32.mrf.mxu0
      %v1488 = vadd.f32 0.0, %v1487
      %1489 = vmatmul.f32.gmra.mxu0 %v1198
      %v1490 = vpop.f32.mrf.mxu0
      %v1491 = vadd.f32 0.0, %v1490
      %1492 = vmatmul.f32.gmra.mxu0 %v1201
      %v1493 = vpop.f32.mrf.mxu0
      %v1494 = vadd.f32 0.0, %v1493
      %1495 = vmatmul.f32.gmra.mxu0 %v1204
      %v1496 = vpop.f32.mrf.mxu0
      %v1497 = vadd.f32 0.0, %v1496
      %1498 = vmatmul.f32.gmra.mxu0 %v1207
      %v1499 = vpop.f32.mrf.mxu0
      %v1500 = vadd.f32 0.0, %v1499
      %1501 = vdwg.mxu0
      %v1502 = vmax.f32 %v565, %v1227
      %v1503 = vmax.f32 %v568, %v1230
      %v1504 = vmax.f32 %v571, %v1233
      %v1505 = vmax.f32 %v574, %v1236
      %v1506 = vmax.f32 %v577, %v1239
      %v1507 = vmax.f32 %v580, %v1242
      %v1508 = vmax.f32 %v583, %v1245
      %v1509 = vmax.f32 %v586, %v1248
      %v1510 = vmax.f32 %v589, %v1251
      %v1511 = vmax.f32 %v592, %v1254
      %v1512 = vmax.f32 %v595, %v1257
      %v1513 = vmax.f32 %v598, %v1260
      %v1514 = vmax.f32 %v601, %v1263
      %v1515 = vmax.f32 %v604, %v1266
      %v1516 = vmax.f32 %v607, %v1269
      %v1517 = vmax.f32 %v610, %v1272
      %v1518 = vmax.f32 %v613, %v1275
      %v1519 = vmax.f32 %v616, %v1278
      %v1520 = vmax.f32 %v619, %v1281
      %v1521 = vmax.f32 %v622, %v1284
      %v1522 = vmax.f32 %v625, %v1287
      %v1523 = vmax.f32 %v628, %v1290
      %v1524 = vmax.f32 %v631, %v1293
      %v1525 = vmax.f32 %v634, %v1296
      %v1526 = vmax.f32 %v637, %v1299
      %v1527 = vmax.f32 %v640, %v1302
      %v1528 = vmax.f32 %v643, %v1305
      %v1529 = vmax.f32 %v646, %v1308
      %v1530 = vmax.f32 %v649, %v1311
      %v1531 = vmax.f32 %v652, %v1314
      %v1532 = vmax.f32 %v655, %v1317
      %v1533 = vmax.f32 %v658, %v1320
      %v1534 = vmax.f32 %v661, %v1323
      %v1535 = vmax.f32 %v664, %v1326
      %v1536 = vmax.f32 %v667, %v1329
      %v1537 = vmax.f32 %v670, %v1332
      %v1538 = vmax.f32 %v673, %v1335
      %v1539 = vmax.f32 %v676, %v1338
      %v1540 = vmax.f32 %v679, %v1341
      %v1541 = vmax.f32 %v682, %v1344
      %v1542 = vmax.f32 %v685, %v1347
      %v1543 = vmax.f32 %v688, %v1350
      %v1544 = vmax.f32 %v691, %v1353
      %v1545 = vmax.f32 %v694, %v1356
      %v1546 = vmax.f32 %v697, %v1359
      %v1547 = vmax.f32 %v700, %v1362
      %v1548 = vmax.f32 %v703, %v1365
      %v1549 = vmax.f32 %v706, %v1368
      %v1550 = vmax.f32 %v709, %v1371
      %v1551 = vmax.f32 %v712, %v1374
      %v1552 = vmax.f32 %v715, %v1377
      %v1553 = vmax.f32 %v718, %v1380
      %v1554 = vmax.f32 %v721, %v1383
      %v1555 = vmax.f32 %v724, %v1386
      %v1556 = vmax.f32 %v727, %v1389
      %v1557 = vmax.f32 %v730, %v1392
      %v1558 = vmax.f32 %v733, %v1395
      %v1559 = vmax.f32 %v736, %v1398
      %v1560 = vmax.f32 %v739, %v1401
      %v1561 = vmax.f32 %v742, %v1404
      %v1562 = vmax.f32 %v745, %v1407
      %v1563 = vmax.f32 %v748, %v1410
      %v1564 = vmax.f32 %v751, %v1413
      %v1565 = vmax.f32 %v754, %v1416
      %v1566 = vmax.f32 %v757, %v1419
      %v1567 = vmax.f32 %v760, %v1422
      %v1568 = vmax.f32 %v763, %v1425
      %v1569 = vmax.f32 %v766, %v1428
      %v1570 = vmax.f32 %v769, %v1431
      %v1571 = vmax.f32 %v772, %v1434
      %v1572 = vmax.f32 %v775, %v1437
      %v1573 = vmax.f32 %v778, %v1440
      %v1574 = vmax.f32 %v781, %v1443
      %v1575 = vmax.f32 %v784, %v1446
      %v1576 = vmax.f32 %v787, %v1449
      %v1577 = vmax.f32 %v790, %v1452
      %v1578 = vmax.f32 %v793, %v1455
      %v1579 = vmax.f32 %v796, %v1458
      %v1580 = vmax.f32 %v799, %v1461
      %v1581 = vmax.f32 %v802, %v1464
      %v1582 = vmax.f32 %v805, %v1467
      %v1583 = vmax.f32 %v808, %v1470
      %v1584 = vmax.f32 %v811, %v1473
      %v1585 = vmax.f32 %v814, %v1476
      %v1586 = vmax.f32 %v817, %v1479
      %v1587 = vmax.f32 %v820, %v1482
      %v1588 = vmax.f32 %v823, %v1485
      %v1589 = vmax.f32 %v826, %v1488
      %v1590 = vmax.f32 %v829, %v1491
      %v1591 = vmax.f32 %v832, %v1494
      %v1592 = vmax.f32 %v835, %v1497
      %v1593 = vmax.f32 %v838, %v1500
      %s1594 = scalar_lea.vmem %s165, 1472
      %v1595 = vld [vmem:[%s1594] sm:$0xff]
      %v1596 = vld [vmem:[%s1594 + $0x8] sm:$0xff]
      %v1597 = vld [vmem:[%s1594 + $0x10] sm:$0xff]
      %v1598 = vld [vmem:[%s1594 + $0x18] sm:$0xff]
      %v1599 = vld [vmem:[%s1594 + $0x20] sm:$0xff]
      %v1600 = vld [vmem:[%s1594 + $0x28] sm:$0xff]
      %v1601 = vld [vmem:[%s1594 + $0x30] sm:$0xff]
      %v1602 = vld [vmem:[%s1594 + $0x38] sm:$0xff]
      %v1603 = vld [vmem:[%s1594 + $0x40] sm:$0xff]
      %v1604 = vld [vmem:[%s1594 + $0x48] sm:$0xff]
      %v1605 = vld [vmem:[%s1594 + $0x50] sm:$0xff]
      %v1606 = vld [vmem:[%s1594 + $0x58] sm:$0xff]
      %v1607 = vld [vmem:[%s1594 + $0x60] sm:$0xff]
      %v1608 = vld [vmem:[%s1594 + $0x68] sm:$0xff]
      %v1609 = vld [vmem:[%s1594 + $0x70] sm:$0xff]
      %v1610 = vld [vmem:[%s1594 + $0x78] sm:$0xff]
      %v1611 = vld [vmem:[%s1594 + $0x80] sm:$0xff]
      %v1612 = vld [vmem:[%s1594 + $0x88] sm:$0xff]
      %v1613 = vld [vmem:[%s1594 + $0x90] sm:$0xff]
      %v1614 = vld [vmem:[%s1594 + $0x98] sm:$0xff]
      %v1615 = vld [vmem:[%s1594 + $0xa0] sm:$0xff]
      %v1616 = vld [vmem:[%s1594 + $0xa8] sm:$0xff]
      %v1617 = vld [vmem:[%s1594 + $0xb0] sm:$0xff]
      %v1618 = vld [vmem:[%s1594 + $0xb8] sm:$0xff]
      %v1619 = vld [vmem:[%s1594 + $0xc0] sm:$0xff]
      %v1620 = vld [vmem:[%s1594 + $0xc8] sm:$0xff]
      %v1621 = vld [vmem:[%s1594 + $0xd0] sm:$0xff]
      %v1622 = vld [vmem:[%s1594 + $0xd8] sm:$0xff]
      %v1623 = vld [vmem:[%s1594 + $0xe0] sm:$0xff]
      %v1624 = vld [vmem:[%s1594 + $0xe8] sm:$0xff]
      %v1625 = vld [vmem:[%s1594 + $0xf0] sm:$0xff]
      %v1626 = vld [vmem:[%s1594 + $0xf8] sm:$0xff]
      %v1627 = vld [vmem:[%s1594 + $0x100] sm:$0xff]
      %v1628 = vld [vmem:[%s1594 + $0x108] sm:$0xff]
      %v1629 = vld [vmem:[%s1594 + $0x110] sm:$0xff]
      %v1630 = vld [vmem:[%s1594 + $0x118] sm:$0xff]
      %v1631 = vld [vmem:[%s1594 + $0x120] sm:$0xff]
      %v1632 = vld [vmem:[%s1594 + $0x128] sm:$0xff]
      %v1633 = vld [vmem:[%s1594 + $0x130] sm:$0xff]
      %v1634 = vld [vmem:[%s1594 + $0x138] sm:$0xff]
      %v1635 = vld [vmem:[%s1594 + $0x140] sm:$0xff]
      %v1636 = vld [vmem:[%s1594 + $0x148] sm:$0xff]
      %v1637 = vld [vmem:[%s1594 + $0x150] sm:$0xff]
      %v1638 = vld [vmem:[%s1594 + $0x158] sm:$0xff]
      %v1639 = vld [vmem:[%s1594 + $0x160] sm:$0xff]
      %v1640 = vld [vmem:[%s1594 + $0x168] sm:$0xff]
      %v1641 = vld [vmem:[%s1594 + $0x170] sm:$0xff]
      %v1642 = vld [vmem:[%s1594 + $0x178] sm:$0xff]
      %v1643 = vld [vmem:[%s1594 + $0x180] sm:$0xff]
      %v1644 = vld [vmem:[%s1594 + $0x188] sm:$0xff]
      %v1645 = vld [vmem:[%s1594 + $0x190] sm:$0xff]
      %v1646 = vld [vmem:[%s1594 + $0x198] sm:$0xff]
      %v1647 = vld [vmem:[%s1594 + $0x1a0] sm:$0xff]
      %v1648 = vld [vmem:[%s1594 + $0x1a8] sm:$0xff]
      %v1649 = vld [vmem:[%s1594 + $0x1b0] sm:$0xff]
      %v1650 = vld [vmem:[%s1594 + $0x1b8] sm:$0xff]
      %v1651 = vld [vmem:[%s1594 + $0x1c0] sm:$0xff]
      %v1652 = vld [vmem:[%s1594 + $0x1c8] sm:$0xff]
      %v1653 = vld [vmem:[%s1594 + $0x1d0] sm:$0xff]
      %v1654 = vld [vmem:[%s1594 + $0x1d8] sm:$0xff]
      %v1655 = vld [vmem:[%s1594 + $0x1e0] sm:$0xff]
      %v1656 = vld [vmem:[%s1594 + $0x1e8] sm:$0xff]
      %v1657 = vld [vmem:[%s1594 + $0x1f0] sm:$0xff]
      %v1658 = vld [vmem:[%s1594 + $0x1f8] sm:$0xff]
      %v1659 = vld [vmem:[%s1594 + $0x200] sm:$0xff]
      %v1660 = vld [vmem:[%s1594 + $0x208] sm:$0xff]
      %v1661 = vld [vmem:[%s1594 + $0x210] sm:$0xff]
      %v1662 = vld [vmem:[%s1594 + $0x218] sm:$0xff]
      %v1663 = vld [vmem:[%s1594 + $0x220] sm:$0xff]
      %v1664 = vld [vmem:[%s1594 + $0x228] sm:$0xff]
      %v1665 = vld [vmem:[%s1594 + $0x230] sm:$0xff]
      %v1666 = vld [vmem:[%s1594 + $0x238] sm:$0xff]
      %v1667 = vld [vmem:[%s1594 + $0x240] sm:$0xff]
      %v1668 = vld [vmem:[%s1594 + $0x248] sm:$0xff]
      %v1669 = vld [vmem:[%s1594 + $0x250] sm:$0xff]
      %v1670 = vld [vmem:[%s1594 + $0x258] sm:$0xff]
      %v1671 = vld [vmem:[%s1594 + $0x260] sm:$0xff]
      %v1672 = vld [vmem:[%s1594 + $0x268] sm:$0xff]
      %v1673 = vld [vmem:[%s1594 + $0x270] sm:$0xff]
      %v1674 = vld [vmem:[%s1594 + $0x278] sm:$0xff]
      %v1675 = vld [vmem:[%s1594 + $0x280] sm:$0xff]
      %v1676 = vld [vmem:[%s1594 + $0x288] sm:$0xff]
      %v1677 = vld [vmem:[%s1594 + $0x290] sm:$0xff]
      %v1678 = vld [vmem:[%s1594 + $0x298] sm:$0xff]
      %v1679 = vld [vmem:[%s1594 + $0x2a0] sm:$0xff]
      %v1680 = vld [vmem:[%s1594 + $0x2a8] sm:$0xff]
      %v1681 = vld [vmem:[%s1594 + $0x2b0] sm:$0xff]
      %v1682 = vld [vmem:[%s1594 + $0x2b8] sm:$0xff]
      %v1683 = vld [vmem:[%s1594 + $0x2c0] sm:$0xff]
      %v1684 = vld [vmem:[%s1594 + $0x2c8] sm:$0xff]
      %v1685 = vld [vmem:[%s1594 + $0x2d0] sm:$0xff]
      %v1686 = vld [vmem:[%s1594 + $0x2d8] sm:$0x1]
      %v1688 = vsel %vm266, %v1595, 0
      %v1691 = vsel %vm266, %v1596, 0
      %v1694 = vsel %vm266, %v1597, 0
      %v1697 = vsel %vm266, %v1598, 0
      %v1700 = vsel %vm266, %v1599, 0
      %v1703 = vsel %vm266, %v1600, 0
      %v1706 = vsel %vm266, %v1601, 0
      %v1709 = vsel %vm266, %v1602, 0
      %v1712 = vsel %vm266, %v1603, 0
      %v1715 = vsel %vm266, %v1604, 0
      %v1718 = vsel %vm266, %v1605, 0
      %v1721 = vsel %vm266, %v1606, 0
      %v1724 = vsel %vm266, %v1607, 0
      %v1727 = vsel %vm266, %v1608, 0
      %v1730 = vsel %vm266, %v1609, 0
      %v1733 = vsel %vm266, %v1610, 0
      %v1736 = vsel %vm266, %v1611, 0
      %v1739 = vsel %vm266, %v1612, 0
      %v1742 = vsel %vm266, %v1613, 0
      %v1745 = vsel %vm266, %v1614, 0
      %v1748 = vsel %vm266, %v1615, 0
      %v1751 = vsel %vm266, %v1616, 0
      %v1754 = vsel %vm266, %v1617, 0
      %v1757 = vsel %vm266, %v1618, 0
      %v1760 = vsel %vm266, %v1619, 0
      %v1763 = vsel %vm266, %v1620, 0
      %v1766 = vsel %vm266, %v1621, 0
      %v1769 = vsel %vm266, %v1622, 0
      %v1772 = vsel %vm266, %v1623, 0
      %v1775 = vsel %vm266, %v1624, 0
      %v1778 = vsel %vm266, %v1625, 0
      %v1781 = vsel %vm266, %v1626, 0
      %v1784 = vsel %vm266, %v1627, 0
      %v1787 = vsel %vm266, %v1628, 0
      %v1790 = vsel %vm266, %v1629, 0
      %v1793 = vsel %vm266, %v1630, 0
      %v1796 = vsel %vm266, %v1631, 0
      %v1799 = vsel %vm266, %v1632, 0
      %v1802 = vsel %vm266, %v1633, 0
      %v1805 = vsel %vm266, %v1634, 0
      %v1808 = vsel %vm266, %v1635, 0
      %v1811 = vsel %vm266, %v1636, 0
      %v1814 = vsel %vm266, %v1637, 0
      %v1817 = vsel %vm266, %v1638, 0
      %v1820 = vsel %vm266, %v1639, 0
      %v1823 = vsel %vm266, %v1640, 0
      %v1826 = vsel %vm266, %v1641, 0
      %v1829 = vsel %vm266, %v1642, 0
      %v1832 = vsel %vm266, %v1643, 0
      %v1835 = vsel %vm266, %v1644, 0
      %v1838 = vsel %vm266, %v1645, 0
      %v1841 = vsel %vm266, %v1646, 0
      %v1844 = vsel %vm266, %v1647, 0
      %v1847 = vsel %vm266, %v1648, 0
      %v1850 = vsel %vm266, %v1649, 0
      %v1853 = vsel %vm266, %v1650, 0
      %v1856 = vsel %vm266, %v1651, 0
      %v1859 = vsel %vm266, %v1652, 0
      %v1862 = vsel %vm266, %v1653, 0
      %v1865 = vsel %vm266, %v1654, 0
      %v1868 = vsel %vm266, %v1655, 0
      %v1871 = vsel %vm266, %v1656, 0
      %v1874 = vsel %vm266, %v1657, 0
      %v1877 = vsel %vm266, %v1658, 0
      %v1880 = vsel %vm266, %v1659, 0
      %v1883 = vsel %vm266, %v1660, 0
      %v1886 = vsel %vm266, %v1661, 0
      %v1889 = vsel %vm266, %v1662, 0
      %v1892 = vsel %vm266, %v1663, 0
      %v1895 = vsel %vm266, %v1664, 0
      %v1898 = vsel %vm266, %v1665, 0
      %v1901 = vsel %vm266, %v1666, 0
      %v1904 = vsel %vm266, %v1667, 0
      %v1907 = vsel %vm266, %v1668, 0
      %v1910 = vsel %vm266, %v1669, 0
      %v1913 = vsel %vm266, %v1670, 0
      %v1916 = vsel %vm266, %v1671, 0
      %v1919 = vsel %vm266, %v1672, 0
      %v1922 = vsel %vm266, %v1673, 0
      %v1925 = vsel %vm266, %v1674, 0
      %v1928 = vsel %vm266, %v1675, 0
      %v1931 = vsel %vm266, %v1676, 0
      %v1934 = vsel %vm266, %v1677, 0
      %v1937 = vsel %vm266, %v1678, 0
      %v1940 = vsel %vm266, %v1679, 0
      %v1943 = vsel %vm266, %v1680, 0
      %v1946 = vsel %vm266, %v1681, 0
      %v1949 = vsel %vm266, %v1682, 0
      %v1952 = vsel %vm266, %v1683, 0
      %v1955 = vsel %vm266, %v1684, 0
      %v1958 = vsel %vm266, %v1685, 0
      %v1961 = vsel %vm266, %v1686, 0
      %1963 = vmatpush.msra.mxu0 0.0
      %1964 = vmatpush.msra.mxu0 0.0
      %1965 = vmatpush.msra.mxu0 0.0
      %1966 = vmatpush.msra.mxu0 0.0
      %1967 = vmatpush.msra.mxu0 0.0
      %1968 = vmatpush.msra.mxu0 0.0
      %1969 = vmatpush.msra.mxu0 0.0
      %1970 = vmatpush.msra.mxu0 0.0
      %1971 = vmatpush.msra.mxu0 0.0
      %1972 = vmatpush.msra.mxu0 0.0
      %1973 = vmatpush.msra.mxu0 0.0
      %1974 = vmatpush.msra.mxu0 0.0
      %1975 = vmatpush.msra.mxu0 0.0
      %1976 = vmatpush.msra.mxu0 %v545
      %1977 = vmatpush.msra.mxu0 %v172
      %1978 = vmatpush.msra.mxu0 %v171
      %1979 = vmatmul.f32.gmra.mxu0 %v1688
      %v1980 = vpop.f32.mrf.mxu0
      %v1981 = vadd.f32 0.0, %v1980
      %1982 = vmatmul.f32.gmra.mxu0 %v1691
      %v1983 = vpop.f32.mrf.mxu0
      %v1984 = vadd.f32 0.0, %v1983
      %1985 = vmatmul.f32.gmra.mxu0 %v1694
      %v1986 = vpop.f32.mrf.mxu0
      %v1987 = vadd.f32 0.0, %v1986
      %1988 = vmatmul.f32.gmra.mxu0 %v1697
      %v1989 = vpop.f32.mrf.mxu0
      %v1990 = vadd.f32 0.0, %v1989
      %1991 = vmatmul.f32.gmra.mxu0 %v1700
      %v1992 = vpop.f32.mrf.mxu0
      %v1993 = vadd.f32 0.0, %v1992
      %1994 = vmatmul.f32.gmra.mxu0 %v1703
      %v1995 = vpop.f32.mrf.mxu0
      %v1996 = vadd.f32 0.0, %v1995
      %1997 = vmatmul.f32.gmra.mxu0 %v1706
      %v1998 = vpop.f32.mrf.mxu0
      %v1999 = vadd.f32 0.0, %v1998
      %2000 = vmatmul.f32.gmra.mxu0 %v1709
      %v2001 = vpop.f32.mrf.mxu0
      %v2002 = vadd.f32 0.0, %v2001
      %2003 = vmatmul.f32.gmra.mxu0 %v1712
      %v2004 = vpop.f32.mrf.mxu0
      %v2005 = vadd.f32 0.0, %v2004
      %2006 = vmatmul.f32.gmra.mxu0 %v1715
      %v2007 = vpop.f32.mrf.mxu0
      %v2008 = vadd.f32 0.0, %v2007
      %2009 = vmatmul.f32.gmra.mxu0 %v1718
      %v2010 = vpop.f32.mrf.mxu0
      %v2011 = vadd.f32 0.0, %v2010
      %2012 = vmatmul.f32.gmra.mxu0 %v1721
      %v2013 = vpop.f32.mrf.mxu0
      %v2014 = vadd.f32 0.0, %v2013
      %2015 = vmatmul.f32.gmra.mxu0 %v1724
      %v2016 = vpop.f32.mrf.mxu0
      %v2017 = vadd.f32 0.0, %v2016
      %2018 = vmatmul.f32.gmra.mxu0 %v1727
      %v2019 = vpop.f32.mrf.mxu0
      %v2020 = vadd.f32 0.0, %v2019
      %2021 = vmatmul.f32.gmra.mxu0 %v1730
      %v2022 = vpop.f32.mrf.mxu0
      %v2023 = vadd.f32 0.0, %v2022
      %2024 = vmatmul.f32.gmra.mxu0 %v1733
      %v2025 = vpop.f32.mrf.mxu0
      %v2026 = vadd.f32 0.0, %v2025
      %2027 = vmatmul.f32.gmra.mxu0 %v1736
      %v2028 = vpop.f32.mrf.mxu0
      %v2029 = vadd.f32 0.0, %v2028
      %2030 = vmatmul.f32.gmra.mxu0 %v1739
      %v2031 = vpop.f32.mrf.mxu0
      %v2032 = vadd.f32 0.0, %v2031
      %2033 = vmatmul.f32.gmra.mxu0 %v1742
      %v2034 = vpop.f32.mrf.mxu0
      %v2035 = vadd.f32 0.0, %v2034
      %2036 = vmatmul.f32.gmra.mxu0 %v1745
      %v2037 = vpop.f32.mrf.mxu0
      %v2038 = vadd.f32 0.0, %v2037
      %2039 = vmatmul.f32.gmra.mxu0 %v1748
      %v2040 = vpop.f32.mrf.mxu0
      %v2041 = vadd.f32 0.0, %v2040
      %2042 = vmatmul.f32.gmra.mxu0 %v1751
      %v2043 = vpop.f32.mrf.mxu0
      %v2044 = vadd.f32 0.0, %v2043
      %2045 = vmatmul.f32.gmra.mxu0 %v1754
      %v2046 = vpop.f32.mrf.mxu0
      %v2047 = vadd.f32 0.0, %v2046
      %2048 = vmatmul.f32.gmra.mxu0 %v1757
      %v2049 = vpop.f32.mrf.mxu0
      %v2050 = vadd.f32 0.0, %v2049
      %2051 = vmatmul.f32.gmra.mxu0 %v1760
      %v2052 = vpop.f32.mrf.mxu0
      %v2053 = vadd.f32 0.0, %v2052
      %2054 = vmatmul.f32.gmra.mxu0 %v1763
      %v2055 = vpop.f32.mrf.mxu0
      %v2056 = vadd.f32 0.0, %v2055
      %2057 = vmatmul.f32.gmra.mxu0 %v1766
      %v2058 = vpop.f32.mrf.mxu0
      %v2059 = vadd.f32 0.0, %v2058
      %2060 = vmatmul.f32.gmra.mxu0 %v1769
      %v2061 = vpop.f32.mrf.mxu0
      %v2062 = vadd.f32 0.0, %v2061
      %2063 = vmatmul.f32.gmra.mxu0 %v1772
      %v2064 = vpop.f32.mrf.mxu0
      %v2065 = vadd.f32 0.0, %v2064
      %2066 = vmatmul.f32.gmra.mxu0 %v1775
      %v2067 = vpop.f32.mrf.mxu0
      %v2068 = vadd.f32 0.0, %v2067
      %2069 = vmatmul.f32.gmra.mxu0 %v1778
      %v2070 = vpop.f32.mrf.mxu0
      %v2071 = vadd.f32 0.0, %v2070
      %2072 = vmatmul.f32.gmra.mxu0 %v1781
      %v2073 = vpop.f32.mrf.mxu0
      %v2074 = vadd.f32 0.0, %v2073
      %2075 = vmatmul.f32.gmra.mxu0 %v1784
      %v2076 = vpop.f32.mrf.mxu0
      %v2077 = vadd.f32 0.0, %v2076
      %2078 = vmatmul.f32.gmra.mxu0 %v1787
      %v2079 = vpop.f32.mrf.mxu0
      %v2080 = vadd.f32 0.0, %v2079
      %2081 = vmatmul.f32.gmra.mxu0 %v1790
      %v2082 = vpop.f32.mrf.mxu0
      %v2083 = vadd.f32 0.0, %v2082
      %2084 = vmatmul.f32.gmra.mxu0 %v1793
      %v2085 = vpop.f32.mrf.mxu0
      %v2086 = vadd.f32 0.0, %v2085
      %2087 = vmatmul.f32.gmra.mxu0 %v1796
      %v2088 = vpop.f32.mrf.mxu0
      %v2089 = vadd.f32 0.0, %v2088
      %2090 = vmatmul.f32.gmra.mxu0 %v1799
      %v2091 = vpop.f32.mrf.mxu0
      %v2092 = vadd.f32 0.0, %v2091
      %2093 = vmatmul.f32.gmra.mxu0 %v1802
      %v2094 = vpop.f32.mrf.mxu0
      %v2095 = vadd.f32 0.0, %v2094
      %2096 = vmatmul.f32.gmra.mxu0 %v1805
      %v2097 = vpop.f32.mrf.mxu0
      %v2098 = vadd.f32 0.0, %v2097
      %2099 = vmatmul.f32.gmra.mxu0 %v1808
      %v2100 = vpop.f32.mrf.mxu0
      %v2101 = vadd.f32 0.0, %v2100
      %2102 = vmatmul.f32.gmra.mxu0 %v1811
      %v2103 = vpop.f32.mrf.mxu0
      %v2104 = vadd.f32 0.0, %v2103
      %2105 = vmatmul.f32.gmra.mxu0 %v1814
      %v2106 = vpop.f32.mrf.mxu0
      %v2107 = vadd.f32 0.0, %v2106
      %2108 = vmatmul.f32.gmra.mxu0 %v1817
      %v2109 = vpop.f32.mrf.mxu0
      %v2110 = vadd.f32 0.0, %v2109
      %2111 = vmatmul.f32.gmra.mxu0 %v1820
      %v2112 = vpop.f32.mrf.mxu0
      %v2113 = vadd.f32 0.0, %v2112
      %2114 = vmatmul.f32.gmra.mxu0 %v1823
      %v2115 = vpop.f32.mrf.mxu0
      %v2116 = vadd.f32 0.0, %v2115
      %2117 = vmatmul.f32.gmra.mxu0 %v1826
      %v2118 = vpop.f32.mrf.mxu0
      %v2119 = vadd.f32 0.0, %v2118
      %2120 = vmatmul.f32.gmra.mxu0 %v1829
      %v2121 = vpop.f32.mrf.mxu0
      %v2122 = vadd.f32 0.0, %v2121
      %2123 = vmatmul.f32.gmra.mxu0 %v1832
      %v2124 = vpop.f32.mrf.mxu0
      %v2125 = vadd.f32 0.0, %v2124
      %2126 = vmatmul.f32.gmra.mxu0 %v1835
      %v2127 = vpop.f32.mrf.mxu0
      %v2128 = vadd.f32 0.0, %v2127
      %2129 = vmatmul.f32.gmra.mxu0 %v1838
      %v2130 = vpop.f32.mrf.mxu0
      %v2131 = vadd.f32 0.0, %v2130
      %2132 = vmatmul.f32.gmra.mxu0 %v1841
      %v2133 = vpop.f32.mrf.mxu0
      %v2134 = vadd.f32 0.0, %v2133
      %2135 = vmatmul.f32.gmra.mxu0 %v1844
      %v2136 = vpop.f32.mrf.mxu0
      %v2137 = vadd.f32 0.0, %v2136
      %2138 = vmatmul.f32.gmra.mxu0 %v1847
      %v2139 = vpop.f32.mrf.mxu0
      %v2140 = vadd.f32 0.0, %v2139
      %2141 = vmatmul.f32.gmra.mxu0 %v1850
      %v2142 = vpop.f32.mrf.mxu0
      %v2143 = vadd.f32 0.0, %v2142
      %2144 = vmatmul.f32.gmra.mxu0 %v1853
      %v2145 = vpop.f32.mrf.mxu0
      %v2146 = vadd.f32 0.0, %v2145
      %2147 = vmatmul.f32.gmra.mxu0 %v1856
      %v2148 = vpop.f32.mrf.mxu0
      %v2149 = vadd.f32 0.0, %v2148
      %2150 = vmatmul.f32.gmra.mxu0 %v1859
      %v2151 = vpop.f32.mrf.mxu0
      %v2152 = vadd.f32 0.0, %v2151
      %2153 = vmatmul.f32.gmra.mxu0 %v1862
      %v2154 = vpop.f32.mrf.mxu0
      %v2155 = vadd.f32 0.0, %v2154
      %2156 = vmatmul.f32.gmra.mxu0 %v1865
      %v2157 = vpop.f32.mrf.mxu0
      %v2158 = vadd.f32 0.0, %v2157
      %2159 = vmatmul.f32.gmra.mxu0 %v1868
      %v2160 = vpop.f32.mrf.mxu0
      %v2161 = vadd.f32 0.0, %v2160
      %2162 = vmatmul.f32.gmra.mxu0 %v1871
      %v2163 = vpop.f32.mrf.mxu0
      %v2164 = vadd.f32 0.0, %v2163
      %2165 = vmatmul.f32.gmra.mxu0 %v1874
      %v2166 = vpop.f32.mrf.mxu0
      %v2167 = vadd.f32 0.0, %v2166
      %2168 = vmatmul.f32.gmra.mxu0 %v1877
      %v2169 = vpop.f32.mrf.mxu0
      %v2170 = vadd.f32 0.0, %v2169
      %2171 = vmatmul.f32.gmra.mxu0 %v1880
      %v2172 = vpop.f32.mrf.mxu0
      %v2173 = vadd.f32 0.0, %v2172
      %2174 = vmatmul.f32.gmra.mxu0 %v1883
      %v2175 = vpop.f32.mrf.mxu0
      %v2176 = vadd.f32 0.0, %v2175
      %2177 = vmatmul.f32.gmra.mxu0 %v1886
      %v2178 = vpop.f32.mrf.mxu0
      %v2179 = vadd.f32 0.0, %v2178
      %2180 = vmatmul.f32.gmra.mxu0 %v1889
      %v2181 = vpop.f32.mrf.mxu0
      %v2182 = vadd.f32 0.0, %v2181
      %2183 = vmatmul.f32.gmra.mxu0 %v1892
      %v2184 = vpop.f32.mrf.mxu0
      %v2185 = vadd.f32 0.0, %v2184
      %2186 = vmatmul.f32.gmra.mxu0 %v1895
      %v2187 = vpop.f32.mrf.mxu0
      %v2188 = vadd.f32 0.0, %v2187
      %2189 = vmatmul.f32.gmra.mxu0 %v1898
      %v2190 = vpop.f32.mrf.mxu0
      %v2191 = vadd.f32 0.0, %v2190
      %2192 = vmatmul.f32.gmra.mxu0 %v1901
      %v2193 = vpop.f32.mrf.mxu0
      %v2194 = vadd.f32 0.0, %v2193
      %2195 = vmatmul.f32.gmra.mxu0 %v1904
      %v2196 = vpop.f32.mrf.mxu0
      %v2197 = vadd.f32 0.0, %v2196
      %2198 = vmatmul.f32.gmra.mxu0 %v1907
      %v2199 = vpop.f32.mrf.mxu0
      %v2200 = vadd.f32 0.0, %v2199
      %2201 = vmatmul.f32.gmra.mxu0 %v1910
      %v2202 = vpop.f32.mrf.mxu0
      %v2203 = vadd.f32 0.0, %v2202
      %2204 = vmatmul.f32.gmra.mxu0 %v1913
      %v2205 = vpop.f32.mrf.mxu0
      %v2206 = vadd.f32 0.0, %v2205
      %2207 = vmatmul.f32.gmra.mxu0 %v1916
      %v2208 = vpop.f32.mrf.mxu0
      %v2209 = vadd.f32 0.0, %v2208
      %2210 = vmatmul.f32.gmra.mxu0 %v1919
      %v2211 = vpop.f32.mrf.mxu0
      %v2212 = vadd.f32 0.0, %v2211
      %2213 = vmatmul.f32.gmra.mxu0 %v1922
      %v2214 = vpop.f32.mrf.mxu0
      %v2215 = vadd.f32 0.0, %v2214
      %2216 = vmatmul.f32.gmra.mxu0 %v1925
      %v2217 = vpop.f32.mrf.mxu0
      %v2218 = vadd.f32 0.0, %v2217
      %2219 = vmatmul.f32.gmra.mxu0 %v1928
      %v2220 = vpop.f32.mrf.mxu0
      %v2221 = vadd.f32 0.0, %v2220
      %2222 = vmatmul.f32.gmra.mxu0 %v1931
      %v2223 = vpop.f32.mrf.mxu0
      %v2224 = vadd.f32 0.0, %v2223
      %2225 = vmatmul.f32.gmra.mxu0 %v1934
      %v2226 = vpop.f32.mrf.mxu0
      %v2227 = vadd.f32 0.0, %v2226
      %2228 = vmatmul.f32.gmra.mxu0 %v1937
      %v2229 = vpop.f32.mrf.mxu0
      %v2230 = vadd.f32 0.0, %v2229
      %2231 = vmatmul.f32.gmra.mxu0 %v1940
      %v2232 = vpop.f32.mrf.mxu0
      %v2233 = vadd.f32 0.0, %v2232
      %2234 = vmatmul.f32.gmra.mxu0 %v1943
      %v2235 = vpop.f32.mrf.mxu0
      %v2236 = vadd.f32 0.0, %v2235
      %2237 = vmatmul.f32.gmra.mxu0 %v1946
      %v2238 = vpop.f32.mrf.mxu0
      %v2239 = vadd.f32 0.0, %v2238
      %2240 = vmatmul.f32.gmra.mxu0 %v1949
      %v2241 = vpop.f32.mrf.mxu0
      %v2242 = vadd.f32 0.0, %v2241
      %2243 = vmatmul.f32.gmra.mxu0 %v1952
      %v2244 = vpop.f32.mrf.mxu0
      %v2245 = vadd.f32 0.0, %v2244
      %2246 = vmatmul.f32.gmra.mxu0 %v1955
      %v2247 = vpop.f32.mrf.mxu0
      %v2248 = vadd.f32 0.0, %v2247
      %2249 = vmatmul.f32.gmra.mxu0 %v1958
      %v2250 = vpop.f32.mrf.mxu0
      %v2251 = vadd.f32 0.0, %v2250
      %2252 = vmatmul.f32.gmra.mxu0 %v1961
      %v2253 = vpop.f32.mrf.mxu0
      %v2254 = vadd.f32 0.0, %v2253
      %2255 = vdwg.mxu0
      %v2256 = vmax.f32 %v1502, %v1981
      %v2257 = vmax.f32 %v1503, %v1984
      %v2258 = vmax.f32 %v1504, %v1987
      %v2259 = vmax.f32 %v1505, %v1990
      %v2260 = vmax.f32 %v1506, %v1993
      %v2261 = vmax.f32 %v1507, %v1996
      %v2262 = vmax.f32 %v1508, %v1999
      %v2263 = vmax.f32 %v1509, %v2002
      %v2264 = vmax.f32 %v1510, %v2005
      %v2265 = vmax.f32 %v1511, %v2008
      %v2266 = vmax.f32 %v1512, %v2011
      %v2267 = vmax.f32 %v1513, %v2014
      %v2268 = vmax.f32 %v1514, %v2017
      %v2269 = vmax.f32 %v1515, %v2020
      %v2270 = vmax.f32 %v1516, %v2023
      %v2271 = vmax.f32 %v1517, %v2026
      %v2272 = vmax.f32 %v1518, %v2029
      %v2273 = vmax.f32 %v1519, %v2032
      %v2274 = vmax.f32 %v1520, %v2035
      %v2275 = vmax.f32 %v1521, %v2038
      %v2276 = vmax.f32 %v1522, %v2041
      %v2277 = vmax.f32 %v1523, %v2044
      %v2278 = vmax.f32 %v1524, %v2047
      %v2279 = vmax.f32 %v1525, %v2050
      %v2280 = vmax.f32 %v1526, %v2053
      %v2281 = vmax.f32 %v1527, %v2056
      %v2282 = vmax.f32 %v1528, %v2059
      %v2283 = vmax.f32 %v1529, %v2062
      %v2284 = vmax.f32 %v1530, %v2065
      %v2285 = vmax.f32 %v1531, %v2068
      %v2286 = vmax.f32 %v1532, %v2071
      %v2287 = vmax.f32 %v1533, %v2074
      %v2288 = vmax.f32 %v1534, %v2077
      %v2289 = vmax.f32 %v1535, %v2080
      %v2290 = vmax.f32 %v1536, %v2083
      %v2291 = vmax.f32 %v1537, %v2086
      %v2292 = vmax.f32 %v1538, %v2089
      %v2293 = vmax.f32 %v1539, %v2092
      %v2294 = vmax.f32 %v1540, %v2095
      %v2295 = vmax.f32 %v1541, %v2098
      %v2296 = vmax.f32 %v1542, %v2101
      %v2297 = vmax.f32 %v1543, %v2104
      %v2298 = vmax.f32 %v1544, %v2107
      %v2299 = vmax.f32 %v1545, %v2110
      %v2300 = vmax.f32 %v1546, %v2113
      %v2301 = vmax.f32 %v1547, %v2116
      %v2302 = vmax.f32 %v1548, %v2119
      %v2303 = vmax.f32 %v1549, %v2122
      %v2304 = vmax.f32 %v1550, %v2125
      %v2305 = vmax.f32 %v1551, %v2128
      %v2306 = vmax.f32 %v1552, %v2131
      %v2307 = vmax.f32 %v1553, %v2134
      %v2308 = vmax.f32 %v1554, %v2137
      %v2309 = vmax.f32 %v1555, %v2140
      %v2310 = vmax.f32 %v1556, %v2143
      %v2311 = vmax.f32 %v1557, %v2146
      %v2312 = vmax.f32 %v1558, %v2149
      %v2313 = vmax.f32 %v1559, %v2152
      %v2314 = vmax.f32 %v1560, %v2155
      %v2315 = vmax.f32 %v1561, %v2158
      %v2316 = vmax.f32 %v1562, %v2161
      %v2317 = vmax.f32 %v1563, %v2164
      %v2318 = vmax.f32 %v1564, %v2167
      %v2319 = vmax.f32 %v1565, %v2170
      %v2320 = vmax.f32 %v1566, %v2173
      %v2321 = vmax.f32 %v1567, %v2176
      %v2322 = vmax.f32 %v1568, %v2179
      %v2323 = vmax.f32 %v1569, %v2182
      %v2324 = vmax.f32 %v1570, %v2185
      %v2325 = vmax.f32 %v1571, %v2188
      %v2326 = vmax.f32 %v1572, %v2191
      %v2327 = vmax.f32 %v1573, %v2194
      %v2328 = vmax.f32 %v1574, %v2197
      %v2329 = vmax.f32 %v1575, %v2200
      %v2330 = vmax.f32 %v1576, %v2203
      %v2331 = vmax.f32 %v1577, %v2206
      %v2332 = vmax.f32 %v1578, %v2209
      %v2333 = vmax.f32 %v1579, %v2212
      %v2334 = vmax.f32 %v1580, %v2215
      %v2335 = vmax.f32 %v1581, %v2218
      %v2336 = vmax.f32 %v1582, %v2221
      %v2337 = vmax.f32 %v1583, %v2224
      %v2338 = vmax.f32 %v1584, %v2227
      %v2339 = vmax.f32 %v1585, %v2230
      %v2340 = vmax.f32 %v1586, %v2233
      %v2341 = vmax.f32 %v1587, %v2236
      %v2342 = vmax.f32 %v1588, %v2239
      %v2343 = vmax.f32 %v1589, %v2242
      %v2344 = vmax.f32 %v1590, %v2245
      %v2345 = vmax.f32 %v1591, %v2248
      %v2346 = vmax.f32 %v1592, %v2251
      %v2347 = vmax.f32 %v1593, %v2254
      %s2348 = scalar_lea.vmem %s165, 2208
      %v2349 = vld [vmem:[%s2348] sm:$0xff]
      %v2350 = vld [vmem:[%s2348 + $0x8] sm:$0xff]
      %v2351 = vld [vmem:[%s2348 + $0x10] sm:$0xff]
      %v2352 = vld [vmem:[%s2348 + $0x18] sm:$0xff]
      %v2353 = vld [vmem:[%s2348 + $0x20] sm:$0xff]
      %v2354 = vld [vmem:[%s2348 + $0x28] sm:$0xff]
      %v2355 = vld [vmem:[%s2348 + $0x30] sm:$0xff]
      %v2356 = vld [vmem:[%s2348 + $0x38] sm:$0xff]
      %v2357 = vld [vmem:[%s2348 + $0x40] sm:$0xff]
      %v2358 = vld [vmem:[%s2348 + $0x48] sm:$0xff]
      %v2359 = vld [vmem:[%s2348 + $0x50] sm:$0xff]
      %v2360 = vld [vmem:[%s2348 + $0x58] sm:$0xff]
      %v2361 = vld [vmem:[%s2348 + $0x60] sm:$0xff]
      %v2362 = vld [vmem:[%s2348 + $0x68] sm:$0xff]
      %v2363 = vld [vmem:[%s2348 + $0x70] sm:$0xff]
      %v2364 = vld [vmem:[%s2348 + $0x78] sm:$0xff]
      %v2365 = vld [vmem:[%s2348 + $0x80] sm:$0xff]
      %v2366 = vld [vmem:[%s2348 + $0x88] sm:$0xff]
      %v2367 = vld [vmem:[%s2348 + $0x90] sm:$0xff]
      %v2368 = vld [vmem:[%s2348 + $0x98] sm:$0xff]
      %v2369 = vld [vmem:[%s2348 + $0xa0] sm:$0xff]
      %v2370 = vld [vmem:[%s2348 + $0xa8] sm:$0xff]
      %v2371 = vld [vmem:[%s2348 + $0xb0] sm:$0xff]
      %v2372 = vld [vmem:[%s2348 + $0xb8] sm:$0xff]
      %v2373 = vld [vmem:[%s2348 + $0xc0] sm:$0xff]
      %v2374 = vld [vmem:[%s2348 + $0xc8] sm:$0xff]
      %v2375 = vld [vmem:[%s2348 + $0xd0] sm:$0xff]
      %v2376 = vld [vmem:[%s2348 + $0xd8] sm:$0xff]
      %v2377 = vld [vmem:[%s2348 + $0xe0] sm:$0xff]
      %v2378 = vld [vmem:[%s2348 + $0xe8] sm:$0xff]
      %v2379 = vld [vmem:[%s2348 + $0xf0] sm:$0xff]
      %v2380 = vld [vmem:[%s2348 + $0xf8] sm:$0xff]
      %v2381 = vld [vmem:[%s2348 + $0x100] sm:$0xff]
      %v2382 = vld [vmem:[%s2348 + $0x108] sm:$0xff]
      %v2383 = vld [vmem:[%s2348 + $0x110] sm:$0xff]
      %v2384 = vld [vmem:[%s2348 + $0x118] sm:$0xff]
      %v2385 = vld [vmem:[%s2348 + $0x120] sm:$0xff]
      %v2386 = vld [vmem:[%s2348 + $0x128] sm:$0xff]
      %v2387 = vld [vmem:[%s2348 + $0x130] sm:$0xff]
      %v2388 = vld [vmem:[%s2348 + $0x138] sm:$0xff]
      %v2389 = vld [vmem:[%s2348 + $0x140] sm:$0xff]
      %v2390 = vld [vmem:[%s2348 + $0x148] sm:$0xff]
      %v2391 = vld [vmem:[%s2348 + $0x150] sm:$0xff]
      %v2392 = vld [vmem:[%s2348 + $0x158] sm:$0xff]
      %v2393 = vld [vmem:[%s2348 + $0x160] sm:$0xff]
      %v2394 = vld [vmem:[%s2348 + $0x168] sm:$0xff]
      %v2395 = vld [vmem:[%s2348 + $0x170] sm:$0xff]
      %v2396 = vld [vmem:[%s2348 + $0x178] sm:$0xff]
      %v2397 = vld [vmem:[%s2348 + $0x180] sm:$0xff]
      %v2398 = vld [vmem:[%s2348 + $0x188] sm:$0xff]
      %v2399 = vld [vmem:[%s2348 + $0x190] sm:$0xff]
      %v2400 = vld [vmem:[%s2348 + $0x198] sm:$0xff]
      %v2401 = vld [vmem:[%s2348 + $0x1a0] sm:$0xff]
      %v2402 = vld [vmem:[%s2348 + $0x1a8] sm:$0xff]
      %v2403 = vld [vmem:[%s2348 + $0x1b0] sm:$0xff]
      %v2404 = vld [vmem:[%s2348 + $0x1b8] sm:$0xff]
      %v2405 = vld [vmem:[%s2348 + $0x1c0] sm:$0xff]
      %v2406 = vld [vmem:[%s2348 + $0x1c8] sm:$0xff]
      %v2407 = vld [vmem:[%s2348 + $0x1d0] sm:$0xff]
      %v2408 = vld [vmem:[%s2348 + $0x1d8] sm:$0xff]
      %v2409 = vld [vmem:[%s2348 + $0x1e0] sm:$0xff]
      %v2410 = vld [vmem:[%s2348 + $0x1e8] sm:$0xff]
      %v2411 = vld [vmem:[%s2348 + $0x1f0] sm:$0xff]
      %v2412 = vld [vmem:[%s2348 + $0x1f8] sm:$0xff]
      %v2413 = vld [vmem:[%s2348 + $0x200] sm:$0xff]
      %v2414 = vld [vmem:[%s2348 + $0x208] sm:$0xff]
      %v2415 = vld [vmem:[%s2348 + $0x210] sm:$0xff]
      %v2416 = vld [vmem:[%s2348 + $0x218] sm:$0xff]
      %v2417 = vld [vmem:[%s2348 + $0x220] sm:$0xff]
      %v2418 = vld [vmem:[%s2348 + $0x228] sm:$0xff]
      %v2419 = vld [vmem:[%s2348 + $0x230] sm:$0xff]
      %v2420 = vld [vmem:[%s2348 + $0x238] sm:$0xff]
      %v2421 = vld [vmem:[%s2348 + $0x240] sm:$0xff]
      %v2422 = vld [vmem:[%s2348 + $0x248] sm:$0xff]
      %v2423 = vld [vmem:[%s2348 + $0x250] sm:$0xff]
      %v2424 = vld [vmem:[%s2348 + $0x258] sm:$0xff]
      %v2425 = vld [vmem:[%s2348 + $0x260] sm:$0xff]
      %v2426 = vld [vmem:[%s2348 + $0x268] sm:$0xff]
      %v2427 = vld [vmem:[%s2348 + $0x270] sm:$0xff]
      %v2428 = vld [vmem:[%s2348 + $0x278] sm:$0xff]
      %v2429 = vld [vmem:[%s2348 + $0x280] sm:$0xff]
      %v2430 = vld [vmem:[%s2348 + $0x288] sm:$0xff]
      %v2431 = vld [vmem:[%s2348 + $0x290] sm:$0xff]
      %v2432 = vld [vmem:[%s2348 + $0x298] sm:$0xff]
      %v2433 = vld [vmem:[%s2348 + $0x2a0] sm:$0xff]
      %v2434 = vld [vmem:[%s2348 + $0x2a8] sm:$0xff]
      %v2435 = vld [vmem:[%s2348 + $0x2b0] sm:$0xff]
      %v2436 = vld [vmem:[%s2348 + $0x2b8] sm:$0xff]
      %v2437 = vld [vmem:[%s2348 + $0x2c0] sm:$0xff]
      %v2438 = vld [vmem:[%s2348 + $0x2c8] sm:$0xff]
      %v2439 = vld [vmem:[%s2348 + $0x2d0] sm:$0xff]
      %v2440 = vld [vmem:[%s2348 + $0x2d8] sm:$0x1]
      %v2442 = vsel %vm266, %v2349, 0
      %v2445 = vsel %vm266, %v2350, 0
      %v2448 = vsel %vm266, %v2351, 0
      %v2451 = vsel %vm266, %v2352, 0
      %v2454 = vsel %vm266, %v2353, 0
      %v2457 = vsel %vm266, %v2354, 0
      %v2460 = vsel %vm266, %v2355, 0
      %v2463 = vsel %vm266, %v2356, 0
      %v2466 = vsel %vm266, %v2357, 0
      %v2469 = vsel %vm266, %v2358, 0
      %v2472 = vsel %vm266, %v2359, 0
      %v2475 = vsel %vm266, %v2360, 0
      %v2478 = vsel %vm266, %v2361, 0
      %v2481 = vsel %vm266, %v2362, 0
      %v2484 = vsel %vm266, %v2363, 0
      %v2487 = vsel %vm266, %v2364, 0
      %v2490 = vsel %vm266, %v2365, 0
      %v2493 = vsel %vm266, %v2366, 0
      %v2496 = vsel %vm266, %v2367, 0
      %v2499 = vsel %vm266, %v2368, 0
      %v2502 = vsel %vm266, %v2369, 0
      %v2505 = vsel %vm266, %v2370, 0
      %v2508 = vsel %vm266, %v2371, 0
      %v2511 = vsel %vm266, %v2372, 0
      %v2514 = vsel %vm266, %v2373, 0
      %v2517 = vsel %vm266, %v2374, 0
      %v2520 = vsel %vm266, %v2375, 0
      %v2523 = vsel %vm266, %v2376, 0
      %v2526 = vsel %vm266, %v2377, 0
      %v2529 = vsel %vm266, %v2378, 0
      %v2532 = vsel %vm266, %v2379, 0
      %v2535 = vsel %vm266, %v2380, 0
      %v2538 = vsel %vm266, %v2381, 0
      %v2541 = vsel %vm266, %v2382, 0
      %v2544 = vsel %vm266, %v2383, 0
      %v2547 = vsel %vm266, %v2384, 0
      %v2550 = vsel %vm266, %v2385, 0
      %v2553 = vsel %vm266, %v2386, 0
      %v2556 = vsel %vm266, %v2387, 0
      %v2559 = vsel %vm266, %v2388, 0
      %v2562 = vsel %vm266, %v2389, 0
      %v2565 = vsel %vm266, %v2390, 0
      %v2568 = vsel %vm266, %v2391, 0
      %v2571 = vsel %vm266, %v2392, 0
      %v2574 = vsel %vm266, %v2393, 0
      %v2577 = vsel %vm266, %v2394, 0
      %v2580 = vsel %vm266, %v2395, 0
      %v2583 = vsel %vm266, %v2396, 0
      %v2586 = vsel %vm266, %v2397, 0
      %v2589 = vsel %vm266, %v2398, 0
      %v2592 = vsel %vm266, %v2399, 0
      %v2595 = vsel %vm266, %v2400, 0
      %v2598 = vsel %vm266, %v2401, 0
      %v2601 = vsel %vm266, %v2402, 0
      %v2604 = vsel %vm266, %v2403, 0
      %v2607 = vsel %vm266, %v2404, 0
      %v2610 = vsel %vm266, %v2405, 0
      %v2613 = vsel %vm266, %v2406, 0
      %v2616 = vsel %vm266, %v2407, 0
      %v2619 = vsel %vm266, %v2408, 0
      %v2622 = vsel %vm266, %v2409, 0
      %v2625 = vsel %vm266, %v2410, 0
      %v2628 = vsel %vm266, %v2411, 0
      %v2631 = vsel %vm266, %v2412, 0
      %v2634 = vsel %vm266, %v2413, 0
      %v2637 = vsel %vm266, %v2414, 0
      %v2640 = vsel %vm266, %v2415, 0
      %v2643 = vsel %vm266, %v2416, 0
      %v2646 = vsel %vm266, %v2417, 0
      %v2649 = vsel %vm266, %v2418, 0
      %v2652 = vsel %vm266, %v2419, 0
      %v2655 = vsel %vm266, %v2420, 0
      %v2658 = vsel %vm266, %v2421, 0
      %v2661 = vsel %vm266, %v2422, 0
      %v2664 = vsel %vm266, %v2423, 0
      %v2667 = vsel %vm266, %v2424, 0
      %v2670 = vsel %vm266, %v2425, 0
      %v2673 = vsel %vm266, %v2426, 0
      %v2676 = vsel %vm266, %v2427, 0
      %v2679 = vsel %vm266, %v2428, 0
      %v2682 = vsel %vm266, %v2429, 0
      %v2685 = vsel %vm266, %v2430, 0
      %v2688 = vsel %vm266, %v2431, 0
      %v2691 = vsel %vm266, %v2432, 0
      %v2694 = vsel %vm266, %v2433, 0
      %v2697 = vsel %vm266, %v2434, 0
      %v2700 = vsel %vm266, %v2435, 0
      %v2703 = vsel %vm266, %v2436, 0
      %v2706 = vsel %vm266, %v2437, 0
      %v2709 = vsel %vm266, %v2438, 0
      %v2712 = vsel %vm266, %v2439, 0
      %v2715 = vsel %vm266, %v2440, 0
      %2717 = vmatpush.msra.mxu0 0.0
      %2718 = vmatpush.msra.mxu0 0.0
      %2719 = vmatpush.msra.mxu0 0.0
      %2720 = vmatpush.msra.mxu0 0.0
      %2721 = vmatpush.msra.mxu0 0.0
      %2722 = vmatpush.msra.mxu0 0.0
      %2723 = vmatpush.msra.mxu0 0.0
      %2724 = vmatpush.msra.mxu0 0.0
      %2725 = vmatpush.msra.mxu0 0.0
      %2726 = vmatpush.msra.mxu0 0.0
      %2727 = vmatpush.msra.mxu0 0.0
      %2728 = vmatpush.msra.mxu0 0.0
      %2729 = vmatpush.msra.mxu0 0.0
      %2730 = vmatpush.msra.mxu0 %v545
      %2731 = vmatpush.msra.mxu0 %v172
      %2732 = vmatpush.msra.mxu0 %v171
      %2733 = vmatmul.f32.gmra.mxu0 %v2442
      %v2734 = vpop.f32.mrf.mxu0
      %v2735 = vadd.f32 0.0, %v2734
      %2736 = vmatmul.f32.gmra.mxu0 %v2445
      %v2737 = vpop.f32.mrf.mxu0
      %v2738 = vadd.f32 0.0, %v2737
      %2739 = vmatmul.f32.gmra.mxu0 %v2448
      %v2740 = vpop.f32.mrf.mxu0
      %v2741 = vadd.f32 0.0, %v2740
      %2742 = vmatmul.f32.gmra.mxu0 %v2451
      %v2743 = vpop.f32.mrf.mxu0
      %v2744 = vadd.f32 0.0, %v2743
      %2745 = vmatmul.f32.gmra.mxu0 %v2454
      %v2746 = vpop.f32.mrf.mxu0
      %v2747 = vadd.f32 0.0, %v2746
      %2748 = vmatmul.f32.gmra.mxu0 %v2457
      %v2749 = vpop.f32.mrf.mxu0
      %v2750 = vadd.f32 0.0, %v2749
      %2751 = vmatmul.f32.gmra.mxu0 %v2460
      %v2752 = vpop.f32.mrf.mxu0
      %v2753 = vadd.f32 0.0, %v2752
      %2754 = vmatmul.f32.gmra.mxu0 %v2463
      %v2755 = vpop.f32.mrf.mxu0
      %v2756 = vadd.f32 0.0, %v2755
      %2757 = vmatmul.f32.gmra.mxu0 %v2466
      %v2758 = vpop.f32.mrf.mxu0
      %v2759 = vadd.f32 0.0, %v2758
      %2760 = vmatmul.f32.gmra.mxu0 %v2469
      %v2761 = vpop.f32.mrf.mxu0
      %v2762 = vadd.f32 0.0, %v2761
      %2763 = vmatmul.f32.gmra.mxu0 %v2472
      %v2764 = vpop.f32.mrf.mxu0
      %v2765 = vadd.f32 0.0, %v2764
      %2766 = vmatmul.f32.gmra.mxu0 %v2475
      %v2767 = vpop.f32.mrf.mxu0
      %v2768 = vadd.f32 0.0, %v2767
      %2769 = vmatmul.f32.gmra.mxu0 %v2478
      %v2770 = vpop.f32.mrf.mxu0
      %v2771 = vadd.f32 0.0, %v2770
      %2772 = vmatmul.f32.gmra.mxu0 %v2481
      %v2773 = vpop.f32.mrf.mxu0
      %v2774 = vadd.f32 0.0, %v2773
      %2775 = vmatmul.f32.gmra.mxu0 %v2484
      %v2776 = vpop.f32.mrf.mxu0
      %v2777 = vadd.f32 0.0, %v2776
      %2778 = vmatmul.f32.gmra.mxu0 %v2487
      %v2779 = vpop.f32.mrf.mxu0
      %v2780 = vadd.f32 0.0, %v2779
      %2781 = vmatmul.f32.gmra.mxu0 %v2490
      %v2782 = vpop.f32.mrf.mxu0
      %v2783 = vadd.f32 0.0, %v2782
      %2784 = vmatmul.f32.gmra.mxu0 %v2493
      %v2785 = vpop.f32.mrf.mxu0
      %v2786 = vadd.f32 0.0, %v2785
      %2787 = vmatmul.f32.gmra.mxu0 %v2496
      %v2788 = vpop.f32.mrf.mxu0
      %v2789 = vadd.f32 0.0, %v2788
      %2790 = vmatmul.f32.gmra.mxu0 %v2499
      %v2791 = vpop.f32.mrf.mxu0
      %v2792 = vadd.f32 0.0, %v2791
      %2793 = vmatmul.f32.gmra.mxu0 %v2502
      %v2794 = vpop.f32.mrf.mxu0
      %v2795 = vadd.f32 0.0, %v2794
      %2796 = vmatmul.f32.gmra.mxu0 %v2505
      %v2797 = vpop.f32.mrf.mxu0
      %v2798 = vadd.f32 0.0, %v2797
      %2799 = vmatmul.f32.gmra.mxu0 %v2508
      %v2800 = vpop.f32.mrf.mxu0
      %v2801 = vadd.f32 0.0, %v2800
      %2802 = vmatmul.f32.gmra.mxu0 %v2511
      %v2803 = vpop.f32.mrf.mxu0
      %v2804 = vadd.f32 0.0, %v2803
      %2805 = vmatmul.f32.gmra.mxu0 %v2514
      %v2806 = vpop.f32.mrf.mxu0
      %v2807 = vadd.f32 0.0, %v2806
      %2808 = vmatmul.f32.gmra.mxu0 %v2517
      %v2809 = vpop.f32.mrf.mxu0
      %v2810 = vadd.f32 0.0, %v2809
      %2811 = vmatmul.f32.gmra.mxu0 %v2520
      %v2812 = vpop.f32.mrf.mxu0
      %v2813 = vadd.f32 0.0, %v2812
      %2814 = vmatmul.f32.gmra.mxu0 %v2523
      %v2815 = vpop.f32.mrf.mxu0
      %v2816 = vadd.f32 0.0, %v2815
      %2817 = vmatmul.f32.gmra.mxu0 %v2526
      %v2818 = vpop.f32.mrf.mxu0
      %v2819 = vadd.f32 0.0, %v2818
      %2820 = vmatmul.f32.gmra.mxu0 %v2529
      %v2821 = vpop.f32.mrf.mxu0
      %v2822 = vadd.f32 0.0, %v2821
      %2823 = vmatmul.f32.gmra.mxu0 %v2532
      %v2824 = vpop.f32.mrf.mxu0
      %v2825 = vadd.f32 0.0, %v2824
      %2826 = vmatmul.f32.gmra.mxu0 %v2535
      %v2827 = vpop.f32.mrf.mxu0
      %v2828 = vadd.f32 0.0, %v2827
      %2829 = vmatmul.f32.gmra.mxu0 %v2538
      %v2830 = vpop.f32.mrf.mxu0
      %v2831 = vadd.f32 0.0, %v2830
      %2832 = vmatmul.f32.gmra.mxu0 %v2541
      %v2833 = vpop.f32.mrf.mxu0
      %v2834 = vadd.f32 0.0, %v2833
      %2835 = vmatmul.f32.gmra.mxu0 %v2544
      %v2836 = vpop.f32.mrf.mxu0
      %v2837 = vadd.f32 0.0, %v2836
      %2838 = vmatmul.f32.gmra.mxu0 %v2547
      %v2839 = vpop.f32.mrf.mxu0
      %v2840 = vadd.f32 0.0, %v2839
      %2841 = vmatmul.f32.gmra.mxu0 %v2550
      %v2842 = vpop.f32.mrf.mxu0
      %v2843 = vadd.f32 0.0, %v2842
      %2844 = vmatmul.f32.gmra.mxu0 %v2553
      %v2845 = vpop.f32.mrf.mxu0
      %v2846 = vadd.f32 0.0, %v2845
      %2847 = vmatmul.f32.gmra.mxu0 %v2556
      %v2848 = vpop.f32.mrf.mxu0
      %v2849 = vadd.f32 0.0, %v2848
      %2850 = vmatmul.f32.gmra.mxu0 %v2559
      %v2851 = vpop.f32.mrf.mxu0
      %v2852 = vadd.f32 0.0, %v2851
      %2853 = vmatmul.f32.gmra.mxu0 %v2562
      %v2854 = vpop.f32.mrf.mxu0
      %v2855 = vadd.f32 0.0, %v2854
      %2856 = vmatmul.f32.gmra.mxu0 %v2565
      %v2857 = vpop.f32.mrf.mxu0
      %v2858 = vadd.f32 0.0, %v2857
      %2859 = vmatmul.f32.gmra.mxu0 %v2568
      %v2860 = vpop.f32.mrf.mxu0
      %v2861 = vadd.f32 0.0, %v2860
      %2862 = vmatmul.f32.gmra.mxu0 %v2571
      %v2863 = vpop.f32.mrf.mxu0
      %v2864 = vadd.f32 0.0, %v2863
      %2865 = vmatmul.f32.gmra.mxu0 %v2574
      %v2866 = vpop.f32.mrf.mxu0
      %v2867 = vadd.f32 0.0, %v2866
      %2868 = vmatmul.f32.gmra.mxu0 %v2577
      %v2869 = vpop.f32.mrf.mxu0
      %v2870 = vadd.f32 0.0, %v2869
      %2871 = vmatmul.f32.gmra.mxu0 %v2580
      %v2872 = vpop.f32.mrf.mxu0
      %v2873 = vadd.f32 0.0, %v2872
      %2874 = vmatmul.f32.gmra.mxu0 %v2583
      %v2875 = vpop.f32.mrf.mxu0
      %v2876 = vadd.f32 0.0, %v2875
      %2877 = vmatmul.f32.gmra.mxu0 %v2586
      %v2878 = vpop.f32.mrf.mxu0
      %v2879 = vadd.f32 0.0, %v2878
      %2880 = vmatmul.f32.gmra.mxu0 %v2589
      %v2881 = vpop.f32.mrf.mxu0
      %v2882 = vadd.f32 0.0, %v2881
      %2883 = vmatmul.f32.gmra.mxu0 %v2592
      %v2884 = vpop.f32.mrf.mxu0
      %v2885 = vadd.f32 0.0, %v2884
      %2886 = vmatmul.f32.gmra.mxu0 %v2595
      %v2887 = vpop.f32.mrf.mxu0
      %v2888 = vadd.f32 0.0, %v2887
      %2889 = vmatmul.f32.gmra.mxu0 %v2598
      %v2890 = vpop.f32.mrf.mxu0
      %v2891 = vadd.f32 0.0, %v2890
      %2892 = vmatmul.f32.gmra.mxu0 %v2601
      %v2893 = vpop.f32.mrf.mxu0
      %v2894 = vadd.f32 0.0, %v2893
      %2895 = vmatmul.f32.gmra.mxu0 %v2604
      %v2896 = vpop.f32.mrf.mxu0
      %v2897 = vadd.f32 0.0, %v2896
      %2898 = vmatmul.f32.gmra.mxu0 %v2607
      %v2899 = vpop.f32.mrf.mxu0
      %v2900 = vadd.f32 0.0, %v2899
      %2901 = vmatmul.f32.gmra.mxu0 %v2610
      %v2902 = vpop.f32.mrf.mxu0
      %v2903 = vadd.f32 0.0, %v2902
      %2904 = vmatmul.f32.gmra.mxu0 %v2613
      %v2905 = vpop.f32.mrf.mxu0
      %v2906 = vadd.f32 0.0, %v2905
      %2907 = vmatmul.f32.gmra.mxu0 %v2616
      %v2908 = vpop.f32.mrf.mxu0
      %v2909 = vadd.f32 0.0, %v2908
      %2910 = vmatmul.f32.gmra.mxu0 %v2619
      %v2911 = vpop.f32.mrf.mxu0
      %v2912 = vadd.f32 0.0, %v2911
      %2913 = vmatmul.f32.gmra.mxu0 %v2622
      %v2914 = vpop.f32.mrf.mxu0
      %v2915 = vadd.f32 0.0, %v2914
      %2916 = vmatmul.f32.gmra.mxu0 %v2625
      %v2917 = vpop.f32.mrf.mxu0
      %v2918 = vadd.f32 0.0, %v2917
      %2919 = vmatmul.f32.gmra.mxu0 %v2628
      %v2920 = vpop.f32.mrf.mxu0
      %v2921 = vadd.f32 0.0, %v2920
      %2922 = vmatmul.f32.gmra.mxu0 %v2631
      %v2923 = vpop.f32.mrf.mxu0
      %v2924 = vadd.f32 0.0, %v2923
      %2925 = vmatmul.f32.gmra.mxu0 %v2634
      %v2926 = vpop.f32.mrf.mxu0
      %v2927 = vadd.f32 0.0, %v2926
      %2928 = vmatmul.f32.gmra.mxu0 %v2637
      %v2929 = vpop.f32.mrf.mxu0
      %v2930 = vadd.f32 0.0, %v2929
      %2931 = vmatmul.f32.gmra.mxu0 %v2640
      %v2932 = vpop.f32.mrf.mxu0
      %v2933 = vadd.f32 0.0, %v2932
      %2934 = vmatmul.f32.gmra.mxu0 %v2643
      %v2935 = vpop.f32.mrf.mxu0
      %v2936 = vadd.f32 0.0, %v2935
      %2937 = vmatmul.f32.gmra.mxu0 %v2646
      %v2938 = vpop.f32.mrf.mxu0
      %v2939 = vadd.f32 0.0, %v2938
      %2940 = vmatmul.f32.gmra.mxu0 %v2649
      %v2941 = vpop.f32.mrf.mxu0
      %v2942 = vadd.f32 0.0, %v2941
      %2943 = vmatmul.f32.gmra.mxu0 %v2652
      %v2944 = vpop.f32.mrf.mxu0
      %v2945 = vadd.f32 0.0, %v2944
      %2946 = vmatmul.f32.gmra.mxu0 %v2655
      %v2947 = vpop.f32.mrf.mxu0
      %v2948 = vadd.f32 0.0, %v2947
      %2949 = vmatmul.f32.gmra.mxu0 %v2658
      %v2950 = vpop.f32.mrf.mxu0
      %v2951 = vadd.f32 0.0, %v2950
      %2952 = vmatmul.f32.gmra.mxu0 %v2661
      %v2953 = vpop.f32.mrf.mxu0
      %v2954 = vadd.f32 0.0, %v2953
      %2955 = vmatmul.f32.gmra.mxu0 %v2664
      %v2956 = vpop.f32.mrf.mxu0
      %v2957 = vadd.f32 0.0, %v2956
      %2958 = vmatmul.f32.gmra.mxu0 %v2667
      %v2959 = vpop.f32.mrf.mxu0
      %v2960 = vadd.f32 0.0, %v2959
      %2961 = vmatmul.f32.gmra.mxu0 %v2670
      %v2962 = vpop.f32.mrf.mxu0
      %v2963 = vadd.f32 0.0, %v2962
      %2964 = vmatmul.f32.gmra.mxu0 %v2673
      %v2965 = vpop.f32.mrf.mxu0
      %v2966 = vadd.f32 0.0, %v2965
      %2967 = vmatmul.f32.gmra.mxu0 %v2676
      %v2968 = vpop.f32.mrf.mxu0
      %v2969 = vadd.f32 0.0, %v2968
      %2970 = vmatmul.f32.gmra.mxu0 %v2679
      %v2971 = vpop.f32.mrf.mxu0
      %v2972 = vadd.f32 0.0, %v2971
      %2973 = vmatmul.f32.gmra.mxu0 %v2682
      %v2974 = vpop.f32.mrf.mxu0
      %v2975 = vadd.f32 0.0, %v2974
      %2976 = vmatmul.f32.gmra.mxu0 %v2685
      %v2977 = vpop.f32.mrf.mxu0
      %v2978 = vadd.f32 0.0, %v2977
      %2979 = vmatmul.f32.gmra.mxu0 %v2688
      %v2980 = vpop.f32.mrf.mxu0
      %v2981 = vadd.f32 0.0, %v2980
      %2982 = vmatmul.f32.gmra.mxu0 %v2691
      %v2983 = vpop.f32.mrf.mxu0
      %v2984 = vadd.f32 0.0, %v2983
      %2985 = vmatmul.f32.gmra.mxu0 %v2694
      %v2986 = vpop.f32.mrf.mxu0
      %v2987 = vadd.f32 0.0, %v2986
      %2988 = vmatmul.f32.gmra.mxu0 %v2697
      %v2989 = vpop.f32.mrf.mxu0
      %v2990 = vadd.f32 0.0, %v2989
      %2991 = vmatmul.f32.gmra.mxu0 %v2700
      %v2992 = vpop.f32.mrf.mxu0
      %v2993 = vadd.f32 0.0, %v2992
      %2994 = vmatmul.f32.gmra.mxu0 %v2703
      %v2995 = vpop.f32.mrf.mxu0
      %v2996 = vadd.f32 0.0, %v2995
      %2997 = vmatmul.f32.gmra.mxu0 %v2706
      %v2998 = vpop.f32.mrf.mxu0
      %v2999 = vadd.f32 0.0, %v2998
      %3000 = vmatmul.f32.gmra.mxu0 %v2709
      %v3001 = vpop.f32.mrf.mxu0
      %v3002 = vadd.f32 0.0, %v3001
      %3003 = vmatmul.f32.gmra.mxu0 %v2712
      %v3004 = vpop.f32.mrf.mxu0
      %v3005 = vadd.f32 0.0, %v3004
      %3006 = vmatmul.f32.gmra.mxu0 %v2715
      %v3007 = vpop.f32.mrf.mxu0
      %v3008 = vadd.f32 0.0, %v3007
      %3009 = vdwg.mxu0
      %v3010 = vmax.f32 %v2256, %v2735
      %v3011 = vmax.f32 %v2257, %v2738
      %v3012 = vmax.f32 %v2258, %v2741
      %v3013 = vmax.f32 %v2259, %v2744
      %v3014 = vmax.f32 %v2260, %v2747
      %v3015 = vmax.f32 %v2261, %v2750
      %v3016 = vmax.f32 %v2262, %v2753
      %v3017 = vmax.f32 %v2263, %v2756
      %v3018 = vmax.f32 %v2264, %v2759
      %v3019 = vmax.f32 %v2265, %v2762
      %v3020 = vmax.f32 %v2266, %v2765
      %v3021 = vmax.f32 %v2267, %v2768
      %v3022 = vmax.f32 %v2268, %v2771
      %v3023 = vmax.f32 %v2269, %v2774
      %v3024 = vmax.f32 %v2270, %v2777
      %v3025 = vmax.f32 %v2271, %v2780
      %v3026 = vmax.f32 %v2272, %v2783
      %v3027 = vmax.f32 %v2273, %v2786
      %v3028 = vmax.f32 %v2274, %v2789
      %v3029 = vmax.f32 %v2275, %v2792
      %v3030 = vmax.f32 %v2276, %v2795
      %v3031 = vmax.f32 %v2277, %v2798
      %v3032 = vmax.f32 %v2278, %v2801
      %v3033 = vmax.f32 %v2279, %v2804
      %v3034 = vmax.f32 %v2280, %v2807
      %v3035 = vmax.f32 %v2281, %v2810
      %v3036 = vmax.f32 %v2282, %v2813
      %v3037 = vmax.f32 %v2283, %v2816
      %v3038 = vmax.f32 %v2284, %v2819
      %v3039 = vmax.f32 %v2285, %v2822
      %v3040 = vmax.f32 %v2286, %v2825
      %v3041 = vmax.f32 %v2287, %v2828
      %v3042 = vmax.f32 %v2288, %v2831
      %v3043 = vmax.f32 %v2289, %v2834
      %v3044 = vmax.f32 %v2290, %v2837
      %v3045 = vmax.f32 %v2291, %v2840
      %v3046 = vmax.f32 %v2292, %v2843
      %v3047 = vmax.f32 %v2293, %v2846
      %v3048 = vmax.f32 %v2294, %v2849
      %v3049 = vmax.f32 %v2295, %v2852
      %v3050 = vmax.f32 %v2296, %v2855
      %v3051 = vmax.f32 %v2297, %v2858
      %v3052 = vmax.f32 %v2298, %v2861
      %v3053 = vmax.f32 %v2299, %v2864
      %v3054 = vmax.f32 %v2300, %v2867
      %v3055 = vmax.f32 %v2301, %v2870
      %v3056 = vmax.f32 %v2302, %v2873
      %v3057 = vmax.f32 %v2303, %v2876
      %v3058 = vmax.f32 %v2304, %v2879
      %v3059 = vmax.f32 %v2305, %v2882
      %v3060 = vmax.f32 %v2306, %v2885
      %v3061 = vmax.f32 %v2307, %v2888
      %v3062 = vmax.f32 %v2308, %v2891
      %v3063 = vmax.f32 %v2309, %v2894
      %v3064 = vmax.f32 %v2310, %v2897
      %v3065 = vmax.f32 %v2311, %v2900
      %v3066 = vmax.f32 %v2312, %v2903
      %v3067 = vmax.f32 %v2313, %v2906
      %v3068 = vmax.f32 %v2314, %v2909
      %v3069 = vmax.f32 %v2315, %v2912
      %v3070 = vmax.f32 %v2316, %v2915
      %v3071 = vmax.f32 %v2317, %v2918
      %v3072 = vmax.f32 %v2318, %v2921
      %v3073 = vmax.f32 %v2319, %v2924
      %v3074 = vmax.f32 %v2320, %v2927
      %v3075 = vmax.f32 %v2321, %v2930
      %v3076 = vmax.f32 %v2322, %v2933
      %v3077 = vmax.f32 %v2323, %v2936
      %v3078 = vmax.f32 %v2324, %v2939
      %v3079 = vmax.f32 %v2325, %v2942
      %v3080 = vmax.f32 %v2326, %v2945
      %v3081 = vmax.f32 %v2327, %v2948
      %v3082 = vmax.f32 %v2328, %v2951
      %v3083 = vmax.f32 %v2329, %v2954
      %v3084 = vmax.f32 %v2330, %v2957
      %v3085 = vmax.f32 %v2331, %v2960
      %v3086 = vmax.f32 %v2332, %v2963
      %v3087 = vmax.f32 %v2333, %v2966
      %v3088 = vmax.f32 %v2334, %v2969
      %v3089 = vmax.f32 %v2335, %v2972
      %v3090 = vmax.f32 %v2336, %v2975
      %v3091 = vmax.f32 %v2337, %v2978
      %v3092 = vmax.f32 %v2338, %v2981
      %v3093 = vmax.f32 %v2339, %v2984
      %v3094 = vmax.f32 %v2340, %v2987
      %v3095 = vmax.f32 %v2341, %v2990
      %v3096 = vmax.f32 %v2342, %v2993
      %v3097 = vmax.f32 %v2343, %v2996
      %v3098 = vmax.f32 %v2344, %v2999
      %v3099 = vmax.f32 %v2345, %v3002
      %v3100 = vmax.f32 %v2346, %v3005
      %v3101 = vmax.f32 %v2347, %v3008
      %s3102 = scalar_lea.vmem %s165, 2944
      %v3103 = vld [vmem:[%s3102] sm:$0xff]
      %v3104 = vld [vmem:[%s3102 + $0x8] sm:$0xff]
      %v3105 = vld [vmem:[%s3102 + $0x10] sm:$0xff]
      %v3106 = vld [vmem:[%s3102 + $0x18] sm:$0xff]
      %v3107 = vld [vmem:[%s3102 + $0x20] sm:$0xff]
      %v3108 = vld [vmem:[%s3102 + $0x28] sm:$0xff]
      %v3109 = vld [vmem:[%s3102 + $0x30] sm:$0xff]
      %v3110 = vld [vmem:[%s3102 + $0x38] sm:$0xff]
      %v3111 = vld [vmem:[%s3102 + $0x40] sm:$0xff]
      %v3112 = vld [vmem:[%s3102 + $0x48] sm:$0xff]
      %v3113 = vld [vmem:[%s3102 + $0x50] sm:$0xff]
      %v3114 = vld [vmem:[%s3102 + $0x58] sm:$0xff]
      %v3115 = vld [vmem:[%s3102 + $0x60] sm:$0xff]
      %v3116 = vld [vmem:[%s3102 + $0x68] sm:$0xff]
      %v3117 = vld [vmem:[%s3102 + $0x70] sm:$0xff]
      %v3118 = vld [vmem:[%s3102 + $0x78] sm:$0xff]
      %v3119 = vld [vmem:[%s3102 + $0x80] sm:$0xff]
      %v3120 = vld [vmem:[%s3102 + $0x88] sm:$0xff]
      %v3121 = vld [vmem:[%s3102 + $0x90] sm:$0xff]
      %v3122 = vld [vmem:[%s3102 + $0x98] sm:$0xff]
      %v3123 = vld [vmem:[%s3102 + $0xa0] sm:$0xff]
      %v3124 = vld [vmem:[%s3102 + $0xa8] sm:$0xff]
      %v3125 = vld [vmem:[%s3102 + $0xb0] sm:$0xff]
      %v3126 = vld [vmem:[%s3102 + $0xb8] sm:$0xff]
      %v3127 = vld [vmem:[%s3102 + $0xc0] sm:$0xff]
      %v3128 = vld [vmem:[%s3102 + $0xc8] sm:$0xff]
      %v3129 = vld [vmem:[%s3102 + $0xd0] sm:$0xff]
      %v3130 = vld [vmem:[%s3102 + $0xd8] sm:$0xff]
      %v3131 = vld [vmem:[%s3102 + $0xe0] sm:$0xff]
      %v3132 = vld [vmem:[%s3102 + $0xe8] sm:$0xff]
      %v3133 = vld [vmem:[%s3102 + $0xf0] sm:$0xff]
      %v3134 = vld [vmem:[%s3102 + $0xf8] sm:$0xff]
      %v3135 = vld [vmem:[%s3102 + $0x100] sm:$0xff]
      %v3136 = vld [vmem:[%s3102 + $0x108] sm:$0xff]
      %v3137 = vld [vmem:[%s3102 + $0x110] sm:$0xff]
      %v3138 = vld [vmem:[%s3102 + $0x118] sm:$0xff]
      %v3139 = vld [vmem:[%s3102 + $0x120] sm:$0xff]
      %v3140 = vld [vmem:[%s3102 + $0x128] sm:$0xff]
      %v3141 = vld [vmem:[%s3102 + $0x130] sm:$0xff]
      %v3142 = vld [vmem:[%s3102 + $0x138] sm:$0xff]
      %v3143 = vld [vmem:[%s3102 + $0x140] sm:$0xff]
      %v3144 = vld [vmem:[%s3102 + $0x148] sm:$0xff]
      %v3145 = vld [vmem:[%s3102 + $0x150] sm:$0xff]
      %v3146 = vld [vmem:[%s3102 + $0x158] sm:$0xff]
      %v3147 = vld [vmem:[%s3102 + $0x160] sm:$0xff]
      %v3148 = vld [vmem:[%s3102 + $0x168] sm:$0xff]
      %v3149 = vld [vmem:[%s3102 + $0x170] sm:$0xff]
      %v3150 = vld [vmem:[%s3102 + $0x178] sm:$0xff]
      %v3151 = vld [vmem:[%s3102 + $0x180] sm:$0xff]
      %v3152 = vld [vmem:[%s3102 + $0x188] sm:$0xff]
      %v3153 = vld [vmem:[%s3102 + $0x190] sm:$0xff]
      %v3154 = vld [vmem:[%s3102 + $0x198] sm:$0xff]
      %v3155 = vld [vmem:[%s3102 + $0x1a0] sm:$0xff]
      %v3156 = vld [vmem:[%s3102 + $0x1a8] sm:$0xff]
      %v3157 = vld [vmem:[%s3102 + $0x1b0] sm:$0xff]
      %v3158 = vld [vmem:[%s3102 + $0x1b8] sm:$0xff]
      %v3159 = vld [vmem:[%s3102 + $0x1c0] sm:$0xff]
      %v3160 = vld [vmem:[%s3102 + $0x1c8] sm:$0xff]
      %v3161 = vld [vmem:[%s3102 + $0x1d0] sm:$0xff]
      %v3162 = vld [vmem:[%s3102 + $0x1d8] sm:$0xff]
      %v3163 = vld [vmem:[%s3102 + $0x1e0] sm:$0xff]
      %v3164 = vld [vmem:[%s3102 + $0x1e8] sm:$0xff]
      %v3165 = vld [vmem:[%s3102 + $0x1f0] sm:$0xff]
      %v3166 = vld [vmem:[%s3102 + $0x1f8] sm:$0xff]
      %v3167 = vld [vmem:[%s3102 + $0x200] sm:$0xff]
      %v3168 = vld [vmem:[%s3102 + $0x208] sm:$0xff]
      %v3169 = vld [vmem:[%s3102 + $0x210] sm:$0xff]
      %v3170 = vld [vmem:[%s3102 + $0x218] sm:$0xff]
      %v3171 = vld [vmem:[%s3102 + $0x220] sm:$0xff]
      %v3172 = vld [vmem:[%s3102 + $0x228] sm:$0xff]
      %v3173 = vld [vmem:[%s3102 + $0x230] sm:$0xff]
      %v3174 = vld [vmem:[%s3102 + $0x238] sm:$0xff]
      %v3175 = vld [vmem:[%s3102 + $0x240] sm:$0xff]
      %v3176 = vld [vmem:[%s3102 + $0x248] sm:$0xff]
      %v3177 = vld [vmem:[%s3102 + $0x250] sm:$0xff]
      %v3178 = vld [vmem:[%s3102 + $0x258] sm:$0xff]
      %v3179 = vld [vmem:[%s3102 + $0x260] sm:$0xff]
      %v3180 = vld [vmem:[%s3102 + $0x268] sm:$0xff]
      %v3181 = vld [vmem:[%s3102 + $0x270] sm:$0xff]
      %v3182 = vld [vmem:[%s3102 + $0x278] sm:$0xff]
      %v3183 = vld [vmem:[%s3102 + $0x280] sm:$0xff]
      %v3184 = vld [vmem:[%s3102 + $0x288] sm:$0xff]
      %v3185 = vld [vmem:[%s3102 + $0x290] sm:$0xff]
      %v3186 = vld [vmem:[%s3102 + $0x298] sm:$0xff]
      %v3187 = vld [vmem:[%s3102 + $0x2a0] sm:$0xff]
      %v3188 = vld [vmem:[%s3102 + $0x2a8] sm:$0xff]
      %v3189 = vld [vmem:[%s3102 + $0x2b0] sm:$0xff]
      %v3190 = vld [vmem:[%s3102 + $0x2b8] sm:$0xff]
      %v3191 = vld [vmem:[%s3102 + $0x2c0] sm:$0xff]
      %v3192 = vld [vmem:[%s3102 + $0x2c8] sm:$0xff]
      %v3193 = vld [vmem:[%s3102 + $0x2d0] sm:$0xff]
      %v3194 = vld [vmem:[%s3102 + $0x2d8] sm:$0x1]
      %v3196 = vsel %vm266, %v3103, 0
      %v3199 = vsel %vm266, %v3104, 0
      %v3202 = vsel %vm266, %v3105, 0
      %v3205 = vsel %vm266, %v3106, 0
      %v3208 = vsel %vm266, %v3107, 0
      %v3211 = vsel %vm266, %v3108, 0
      %v3214 = vsel %vm266, %v3109, 0
      %v3217 = vsel %vm266, %v3110, 0
      %v3220 = vsel %vm266, %v3111, 0
      %v3223 = vsel %vm266, %v3112, 0
      %v3226 = vsel %vm266, %v3113, 0
      %v3229 = vsel %vm266, %v3114, 0
      %v3232 = vsel %vm266, %v3115, 0
      %v3235 = vsel %vm266, %v3116, 0
      %v3238 = vsel %vm266, %v3117, 0
      %v3241 = vsel %vm266, %v3118, 0
      %v3244 = vsel %vm266, %v3119, 0
      %v3247 = vsel %vm266, %v3120, 0
      %v3250 = vsel %vm266, %v3121, 0
      %v3253 = vsel %vm266, %v3122, 0
      %v3256 = vsel %vm266, %v3123, 0
      %v3259 = vsel %vm266, %v3124, 0
      %v3262 = vsel %vm266, %v3125, 0
      %v3265 = vsel %vm266, %v3126, 0
      %v3268 = vsel %vm266, %v3127, 0
      %v3271 = vsel %vm266, %v3128, 0
      %v3274 = vsel %vm266, %v3129, 0
      %v3277 = vsel %vm266, %v3130, 0
      %v3280 = vsel %vm266, %v3131, 0
      %v3283 = vsel %vm266, %v3132, 0
      %v3286 = vsel %vm266, %v3133, 0
      %v3289 = vsel %vm266, %v3134, 0
      %v3292 = vsel %vm266, %v3135, 0
      %v3295 = vsel %vm266, %v3136, 0
      %v3298 = vsel %vm266, %v3137, 0
      %v3301 = vsel %vm266, %v3138, 0
      %v3304 = vsel %vm266, %v3139, 0
      %v3307 = vsel %vm266, %v3140, 0
      %v3310 = vsel %vm266, %v3141, 0
      %v3313 = vsel %vm266, %v3142, 0
      %v3316 = vsel %vm266, %v3143, 0
      %v3319 = vsel %vm266, %v3144, 0
      %v3322 = vsel %vm266, %v3145, 0
      %v3325 = vsel %vm266, %v3146, 0
      %v3328 = vsel %vm266, %v3147, 0
      %v3331 = vsel %vm266, %v3148, 0
      %v3334 = vsel %vm266, %v3149, 0
      %v3337 = vsel %vm266, %v3150, 0
      %v3340 = vsel %vm266, %v3151, 0
      %v3343 = vsel %vm266, %v3152, 0
      %v3346 = vsel %vm266, %v3153, 0
      %v3349 = vsel %vm266, %v3154, 0
      %v3352 = vsel %vm266, %v3155, 0
      %v3355 = vsel %vm266, %v3156, 0
      %v3358 = vsel %vm266, %v3157, 0
      %v3361 = vsel %vm266, %v3158, 0
      %v3364 = vsel %vm266, %v3159, 0
      %v3367 = vsel %vm266, %v3160, 0
      %v3370 = vsel %vm266, %v3161, 0
      %v3373 = vsel %vm266, %v3162, 0
      %v3376 = vsel %vm266, %v3163, 0
      %v3379 = vsel %vm266, %v3164, 0
      %v3382 = vsel %vm266, %v3165, 0
      %v3385 = vsel %vm266, %v3166, 0
      %v3388 = vsel %vm266, %v3167, 0
      %v3391 = vsel %vm266, %v3168, 0
      %v3394 = vsel %vm266, %v3169, 0
      %v3397 = vsel %vm266, %v3170, 0
      %v3400 = vsel %vm266, %v3171, 0
      %v3403 = vsel %vm266, %v3172, 0
      %v3406 = vsel %vm266, %v3173, 0
      %v3409 = vsel %vm266, %v3174, 0
      %v3412 = vsel %vm266, %v3175, 0
      %v3415 = vsel %vm266, %v3176, 0
      %v3418 = vsel %vm266, %v3177, 0
      %v3421 = vsel %vm266, %v3178, 0
      %v3424 = vsel %vm266, %v3179, 0
      %v3427 = vsel %vm266, %v3180, 0
      %v3430 = vsel %vm266, %v3181, 0
      %v3433 = vsel %vm266, %v3182, 0
      %v3436 = vsel %vm266, %v3183, 0
      %v3439 = vsel %vm266, %v3184, 0
      %v3442 = vsel %vm266, %v3185, 0
      %v3445 = vsel %vm266, %v3186, 0
      %v3448 = vsel %vm266, %v3187, 0
      %v3451 = vsel %vm266, %v3188, 0
      %v3454 = vsel %vm266, %v3189, 0
      %v3457 = vsel %vm266, %v3190, 0
      %v3460 = vsel %vm266, %v3191, 0
      %v3463 = vsel %vm266, %v3192, 0
      %v3466 = vsel %vm266, %v3193, 0
      %v3469 = vsel %vm266, %v3194, 0
      %3471 = vmatpush.msra.mxu0 0.0
      %3472 = vmatpush.msra.mxu0 0.0
      %3473 = vmatpush.msra.mxu0 0.0
      %3474 = vmatpush.msra.mxu0 0.0
      %3475 = vmatpush.msra.mxu0 0.0
      %3476 = vmatpush.msra.mxu0 0.0
      %3477 = vmatpush.msra.mxu0 0.0
      %3478 = vmatpush.msra.mxu0 0.0
      %3479 = vmatpush.msra.mxu0 0.0
      %3480 = vmatpush.msra.mxu0 0.0
      %3481 = vmatpush.msra.mxu0 0.0
      %3482 = vmatpush.msra.mxu0 0.0
      %3483 = vmatpush.msra.mxu0 0.0
      %3484 = vmatpush.msra.mxu0 %v545
      %3485 = vmatpush.msra.mxu0 %v172
      %3486 = vmatpush.msra.mxu0 %v171
      %3487 = vmatmul.f32.gmra.mxu0 %v3196
      %v3488 = vpop.f32.mrf.mxu0
      %v3489 = vadd.f32 0.0, %v3488
      %3490 = vmatmul.f32.gmra.mxu0 %v3199
      %v3491 = vpop.f32.mrf.mxu0
      %v3492 = vadd.f32 0.0, %v3491
      %3493 = vmatmul.f32.gmra.mxu0 %v3202
      %v3494 = vpop.f32.mrf.mxu0
      %v3495 = vadd.f32 0.0, %v3494
      %3496 = vmatmul.f32.gmra.mxu0 %v3205
      %v3497 = vpop.f32.mrf.mxu0
      %v3498 = vadd.f32 0.0, %v3497
      %3499 = vmatmul.f32.gmra.mxu0 %v3208
      %v3500 = vpop.f32.mrf.mxu0
      %v3501 = vadd.f32 0.0, %v3500
      %3502 = vmatmul.f32.gmra.mxu0 %v3211
      %v3503 = vpop.f32.mrf.mxu0
      %v3504 = vadd.f32 0.0, %v3503
      %3505 = vmatmul.f32.gmra.mxu0 %v3214
      %v3506 = vpop.f32.mrf.mxu0
      %v3507 = vadd.f32 0.0, %v3506
      %3508 = vmatmul.f32.gmra.mxu0 %v3217
      %v3509 = vpop.f32.mrf.mxu0
      %v3510 = vadd.f32 0.0, %v3509
      %3511 = vmatmul.f32.gmra.mxu0 %v3220
      %v3512 = vpop.f32.mrf.mxu0
      %v3513 = vadd.f32 0.0, %v3512
      %3514 = vmatmul.f32.gmra.mxu0 %v3223
      %v3515 = vpop.f32.mrf.mxu0
      %v3516 = vadd.f32 0.0, %v3515
      %3517 = vmatmul.f32.gmra.mxu0 %v3226
      %v3518 = vpop.f32.mrf.mxu0
      %v3519 = vadd.f32 0.0, %v3518
      %3520 = vmatmul.f32.gmra.mxu0 %v3229
      %v3521 = vpop.f32.mrf.mxu0
      %v3522 = vadd.f32 0.0, %v3521
      %3523 = vmatmul.f32.gmra.mxu0 %v3232
      %v3524 = vpop.f32.mrf.mxu0
      %v3525 = vadd.f32 0.0, %v3524
      %3526 = vmatmul.f32.gmra.mxu0 %v3235
      %v3527 = vpop.f32.mrf.mxu0
      %v3528 = vadd.f32 0.0, %v3527
      %3529 = vmatmul.f32.gmra.mxu0 %v3238
      %v3530 = vpop.f32.mrf.mxu0
      %v3531 = vadd.f32 0.0, %v3530
      %3532 = vmatmul.f32.gmra.mxu0 %v3241
      %v3533 = vpop.f32.mrf.mxu0
      %v3534 = vadd.f32 0.0, %v3533
      %3535 = vmatmul.f32.gmra.mxu0 %v3244
      %v3536 = vpop.f32.mrf.mxu0
      %v3537 = vadd.f32 0.0, %v3536
      %3538 = vmatmul.f32.gmra.mxu0 %v3247
      %v3539 = vpop.f32.mrf.mxu0
      %v3540 = vadd.f32 0.0, %v3539
      %3541 = vmatmul.f32.gmra.mxu0 %v3250
      %v3542 = vpop.f32.mrf.mxu0
      %v3543 = vadd.f32 0.0, %v3542
      %3544 = vmatmul.f32.gmra.mxu0 %v3253
      %v3545 = vpop.f32.mrf.mxu0
      %v3546 = vadd.f32 0.0, %v3545
      %3547 = vmatmul.f32.gmra.mxu0 %v3256
      %v3548 = vpop.f32.mrf.mxu0
      %v3549 = vadd.f32 0.0, %v3548
      %3550 = vmatmul.f32.gmra.mxu0 %v3259
      %v3551 = vpop.f32.mrf.mxu0
      %v3552 = vadd.f32 0.0, %v3551
      %3553 = vmatmul.f32.gmra.mxu0 %v3262
      %v3554 = vpop.f32.mrf.mxu0
      %v3555 = vadd.f32 0.0, %v3554
      %3556 = vmatmul.f32.gmra.mxu0 %v3265
      %v3557 = vpop.f32.mrf.mxu0
      %v3558 = vadd.f32 0.0, %v3557
      %3559 = vmatmul.f32.gmra.mxu0 %v3268
      %v3560 = vpop.f32.mrf.mxu0
      %v3561 = vadd.f32 0.0, %v3560
      %3562 = vmatmul.f32.gmra.mxu0 %v3271
      %v3563 = vpop.f32.mrf.mxu0
      %v3564 = vadd.f32 0.0, %v3563
      %3565 = vmatmul.f32.gmra.mxu0 %v3274
      %v3566 = vpop.f32.mrf.mxu0
      %v3567 = vadd.f32 0.0, %v3566
      %3568 = vmatmul.f32.gmra.mxu0 %v3277
      %v3569 = vpop.f32.mrf.mxu0
      %v3570 = vadd.f32 0.0, %v3569
      %3571 = vmatmul.f32.gmra.mxu0 %v3280
      %v3572 = vpop.f32.mrf.mxu0
      %v3573 = vadd.f32 0.0, %v3572
      %3574 = vmatmul.f32.gmra.mxu0 %v3283
      %v3575 = vpop.f32.mrf.mxu0
      %v3576 = vadd.f32 0.0, %v3575
      %3577 = vmatmul.f32.gmra.mxu0 %v3286
      %v3578 = vpop.f32.mrf.mxu0
      %v3579 = vadd.f32 0.0, %v3578
      %3580 = vmatmul.f32.gmra.mxu0 %v3289
      %v3581 = vpop.f32.mrf.mxu0
      %v3582 = vadd.f32 0.0, %v3581
      %3583 = vmatmul.f32.gmra.mxu0 %v3292
      %v3584 = vpop.f32.mrf.mxu0
      %v3585 = vadd.f32 0.0, %v3584
      %3586 = vmatmul.f32.gmra.mxu0 %v3295
      %v3587 = vpop.f32.mrf.mxu0
      %v3588 = vadd.f32 0.0, %v3587
      %3589 = vmatmul.f32.gmra.mxu0 %v3298
      %v3590 = vpop.f32.mrf.mxu0
      %v3591 = vadd.f32 0.0, %v3590
      %3592 = vmatmul.f32.gmra.mxu0 %v3301
      %v3593 = vpop.f32.mrf.mxu0
      %v3594 = vadd.f32 0.0, %v3593
      %3595 = vmatmul.f32.gmra.mxu0 %v3304
      %v3596 = vpop.f32.mrf.mxu0
      %v3597 = vadd.f32 0.0, %v3596
      %3598 = vmatmul.f32.gmra.mxu0 %v3307
      %v3599 = vpop.f32.mrf.mxu0
      %v3600 = vadd.f32 0.0, %v3599
      %3601 = vmatmul.f32.gmra.mxu0 %v3310
      %v3602 = vpop.f32.mrf.mxu0
      %v3603 = vadd.f32 0.0, %v3602
      %3604 = vmatmul.f32.gmra.mxu0 %v3313
      %v3605 = vpop.f32.mrf.mxu0
      %v3606 = vadd.f32 0.0, %v3605
      %3607 = vmatmul.f32.gmra.mxu0 %v3316
      %v3608 = vpop.f32.mrf.mxu0
      %v3609 = vadd.f32 0.0, %v3608
      %3610 = vmatmul.f32.gmra.mxu0 %v3319
      %v3611 = vpop.f32.mrf.mxu0
      %v3612 = vadd.f32 0.0, %v3611
      %3613 = vmatmul.f32.gmra.mxu0 %v3322
      %v3614 = vpop.f32.mrf.mxu0
      %v3615 = vadd.f32 0.0, %v3614
      %3616 = vmatmul.f32.gmra.mxu0 %v3325
      %v3617 = vpop.f32.mrf.mxu0
      %v3618 = vadd.f32 0.0, %v3617
      %3619 = vmatmul.f32.gmra.mxu0 %v3328
      %v3620 = vpop.f32.mrf.mxu0
      %v3621 = vadd.f32 0.0, %v3620
      %3622 = vmatmul.f32.gmra.mxu0 %v3331
      %v3623 = vpop.f32.mrf.mxu0
      %v3624 = vadd.f32 0.0, %v3623
      %3625 = vmatmul.f32.gmra.mxu0 %v3334
      %v3626 = vpop.f32.mrf.mxu0
      %v3627 = vadd.f32 0.0, %v3626
      %3628 = vmatmul.f32.gmra.mxu0 %v3337
      %v3629 = vpop.f32.mrf.mxu0
      %v3630 = vadd.f32 0.0, %v3629
      %3631 = vmatmul.f32.gmra.mxu0 %v3340
      %v3632 = vpop.f32.mrf.mxu0
      %v3633 = vadd.f32 0.0, %v3632
      %3634 = vmatmul.f32.gmra.mxu0 %v3343
      %v3635 = vpop.f32.mrf.mxu0
      %v3636 = vadd.f32 0.0, %v3635
      %3637 = vmatmul.f32.gmra.mxu0 %v3346
      %v3638 = vpop.f32.mrf.mxu0
      %v3639 = vadd.f32 0.0, %v3638
      %3640 = vmatmul.f32.gmra.mxu0 %v3349
      %v3641 = vpop.f32.mrf.mxu0
      %v3642 = vadd.f32 0.0, %v3641
      %3643 = vmatmul.f32.gmra.mxu0 %v3352
      %v3644 = vpop.f32.mrf.mxu0
      %v3645 = vadd.f32 0.0, %v3644
      %3646 = vmatmul.f32.gmra.mxu0 %v3355
      %v3647 = vpop.f32.mrf.mxu0
      %v3648 = vadd.f32 0.0, %v3647
      %3649 = vmatmul.f32.gmra.mxu0 %v3358
      %v3650 = vpop.f32.mrf.mxu0
      %v3651 = vadd.f32 0.0, %v3650
      %3652 = vmatmul.f32.gmra.mxu0 %v3361
      %v3653 = vpop.f32.mrf.mxu0
      %v3654 = vadd.f32 0.0, %v3653
      %3655 = vmatmul.f32.gmra.mxu0 %v3364
      %v3656 = vpop.f32.mrf.mxu0
      %v3657 = vadd.f32 0.0, %v3656
      %3658 = vmatmul.f32.gmra.mxu0 %v3367
      %v3659 = vpop.f32.mrf.mxu0
      %v3660 = vadd.f32 0.0, %v3659
      %3661 = vmatmul.f32.gmra.mxu0 %v3370
      %v3662 = vpop.f32.mrf.mxu0
      %v3663 = vadd.f32 0.0, %v3662
      %3664 = vmatmul.f32.gmra.mxu0 %v3373
      %v3665 = vpop.f32.mrf.mxu0
      %v3666 = vadd.f32 0.0, %v3665
      %3667 = vmatmul.f32.gmra.mxu0 %v3376
      %v3668 = vpop.f32.mrf.mxu0
      %v3669 = vadd.f32 0.0, %v3668
      %3670 = vmatmul.f32.gmra.mxu0 %v3379
      %v3671 = vpop.f32.mrf.mxu0
      %v3672 = vadd.f32 0.0, %v3671
      %3673 = vmatmul.f32.gmra.mxu0 %v3382
      %v3674 = vpop.f32.mrf.mxu0
      %v3675 = vadd.f32 0.0, %v3674
      %3676 = vmatmul.f32.gmra.mxu0 %v3385
      %v3677 = vpop.f32.mrf.mxu0
      %v3678 = vadd.f32 0.0, %v3677
      %3679 = vmatmul.f32.gmra.mxu0 %v3388
      %v3680 = vpop.f32.mrf.mxu0
      %v3681 = vadd.f32 0.0, %v3680
      %3682 = vmatmul.f32.gmra.mxu0 %v3391
      %v3683 = vpop.f32.mrf.mxu0
      %v3684 = vadd.f32 0.0, %v3683
      %3685 = vmatmul.f32.gmra.mxu0 %v3394
      %v3686 = vpop.f32.mrf.mxu0
      %v3687 = vadd.f32 0.0, %v3686
      %3688 = vmatmul.f32.gmra.mxu0 %v3397
      %v3689 = vpop.f32.mrf.mxu0
      %v3690 = vadd.f32 0.0, %v3689
      %3691 = vmatmul.f32.gmra.mxu0 %v3400
      %v3692 = vpop.f32.mrf.mxu0
      %v3693 = vadd.f32 0.0, %v3692
      %3694 = vmatmul.f32.gmra.mxu0 %v3403
      %v3695 = vpop.f32.mrf.mxu0
      %v3696 = vadd.f32 0.0, %v3695
      %3697 = vmatmul.f32.gmra.mxu0 %v3406
      %v3698 = vpop.f32.mrf.mxu0
      %v3699 = vadd.f32 0.0, %v3698
      %3700 = vmatmul.f32.gmra.mxu0 %v3409
      %v3701 = vpop.f32.mrf.mxu0
      %v3702 = vadd.f32 0.0, %v3701
      %3703 = vmatmul.f32.gmra.mxu0 %v3412
      %v3704 = vpop.f32.mrf.mxu0
      %v3705 = vadd.f32 0.0, %v3704
      %3706 = vmatmul.f32.gmra.mxu0 %v3415
      %v3707 = vpop.f32.mrf.mxu0
      %v3708 = vadd.f32 0.0, %v3707
      %3709 = vmatmul.f32.gmra.mxu0 %v3418
      %v3710 = vpop.f32.mrf.mxu0
      %v3711 = vadd.f32 0.0, %v3710
      %3712 = vmatmul.f32.gmra.mxu0 %v3421
      %v3713 = vpop.f32.mrf.mxu0
      %v3714 = vadd.f32 0.0, %v3713
      %3715 = vmatmul.f32.gmra.mxu0 %v3424
      %v3716 = vpop.f32.mrf.mxu0
      %v3717 = vadd.f32 0.0, %v3716
      %3718 = vmatmul.f32.gmra.mxu0 %v3427
      %v3719 = vpop.f32.mrf.mxu0
      %v3720 = vadd.f32 0.0, %v3719
      %3721 = vmatmul.f32.gmra.mxu0 %v3430
      %v3722 = vpop.f32.mrf.mxu0
      %v3723 = vadd.f32 0.0, %v3722
      %3724 = vmatmul.f32.gmra.mxu0 %v3433
      %v3725 = vpop.f32.mrf.mxu0
      %v3726 = vadd.f32 0.0, %v3725
      %3727 = vmatmul.f32.gmra.mxu0 %v3436
      %v3728 = vpop.f32.mrf.mxu0
      %v3729 = vadd.f32 0.0, %v3728
      %3730 = vmatmul.f32.gmra.mxu0 %v3439
      %v3731 = vpop.f32.mrf.mxu0
      %v3732 = vadd.f32 0.0, %v3731
      %3733 = vmatmul.f32.gmra.mxu0 %v3442
      %v3734 = vpop.f32.mrf.mxu0
      %v3735 = vadd.f32 0.0, %v3734
      %3736 = vmatmul.f32.gmra.mxu0 %v3445
      %v3737 = vpop.f32.mrf.mxu0
      %v3738 = vadd.f32 0.0, %v3737
      %3739 = vmatmul.f32.gmra.mxu0 %v3448
      %v3740 = vpop.f32.mrf.mxu0
      %v3741 = vadd.f32 0.0, %v3740
      %3742 = vmatmul.f32.gmra.mxu0 %v3451
      %v3743 = vpop.f32.mrf.mxu0
      %v3744 = vadd.f32 0.0, %v3743
      %3745 = vmatmul.f32.gmra.mxu0 %v3454
      %v3746 = vpop.f32.mrf.mxu0
      %v3747 = vadd.f32 0.0, %v3746
      %3748 = vmatmul.f32.gmra.mxu0 %v3457
      %v3749 = vpop.f32.mrf.mxu0
      %v3750 = vadd.f32 0.0, %v3749
      %3751 = vmatmul.f32.gmra.mxu0 %v3460
      %v3752 = vpop.f32.mrf.mxu0
      %v3753 = vadd.f32 0.0, %v3752
      %3754 = vmatmul.f32.gmra.mxu0 %v3463
      %v3755 = vpop.f32.mrf.mxu0
      %v3756 = vadd.f32 0.0, %v3755
      %3757 = vmatmul.f32.gmra.mxu0 %v3466
      %v3758 = vpop.f32.mrf.mxu0
      %v3759 = vadd.f32 0.0, %v3758
      %3760 = vmatmul.f32.gmra.mxu0 %v3469
      %v3761 = vpop.f32.mrf.mxu0
      %v3762 = vadd.f32 0.0, %v3761
      %3763 = vdwg.mxu0
      %v3764 = vmax.f32 %v3010, %v3489
      %v3765 = vmax.f32 %v3011, %v3492
      %v3766 = vmax.f32 %v3012, %v3495
      %v3767 = vmax.f32 %v3013, %v3498
      %v3768 = vmax.f32 %v3014, %v3501
      %v3769 = vmax.f32 %v3015, %v3504
      %v3770 = vmax.f32 %v3016, %v3507
      %v3771 = vmax.f32 %v3017, %v3510
      %v3772 = vmax.f32 %v3018, %v3513
      %v3773 = vmax.f32 %v3019, %v3516
      %v3774 = vmax.f32 %v3020, %v3519
      %v3775 = vmax.f32 %v3021, %v3522
      %v3776 = vmax.f32 %v3022, %v3525
      %v3777 = vmax.f32 %v3023, %v3528
      %v3778 = vmax.f32 %v3024, %v3531
      %v3779 = vmax.f32 %v3025, %v3534
      %v3780 = vmax.f32 %v3026, %v3537
      %v3781 = vmax.f32 %v3027, %v3540
      %v3782 = vmax.f32 %v3028, %v3543
      %v3783 = vmax.f32 %v3029, %v3546
      %v3784 = vmax.f32 %v3030, %v3549
      %v3785 = vmax.f32 %v3031, %v3552
      %v3786 = vmax.f32 %v3032, %v3555
      %v3787 = vmax.f32 %v3033, %v3558
      %v3788 = vmax.f32 %v3034, %v3561
      %v3789 = vmax.f32 %v3035, %v3564
      %v3790 = vmax.f32 %v3036, %v3567
      %v3791 = vmax.f32 %v3037, %v3570
      %v3792 = vmax.f32 %v3038, %v3573
      %v3793 = vmax.f32 %v3039, %v3576
      %v3794 = vmax.f32 %v3040, %v3579
      %v3795 = vmax.f32 %v3041, %v3582
      %v3796 = vmax.f32 %v3042, %v3585
      %v3797 = vmax.f32 %v3043, %v3588
      %v3798 = vmax.f32 %v3044, %v3591
      %v3799 = vmax.f32 %v3045, %v3594
      %v3800 = vmax.f32 %v3046, %v3597
      %v3801 = vmax.f32 %v3047, %v3600
      %v3802 = vmax.f32 %v3048, %v3603
      %v3803 = vmax.f32 %v3049, %v3606
      %v3804 = vmax.f32 %v3050, %v3609
      %v3805 = vmax.f32 %v3051, %v3612
      %v3806 = vmax.f32 %v3052, %v3615
      %v3807 = vmax.f32 %v3053, %v3618
      %v3808 = vmax.f32 %v3054, %v3621
      %v3809 = vmax.f32 %v3055, %v3624
      %v3810 = vmax.f32 %v3056, %v3627
      %v3811 = vmax.f32 %v3057, %v3630
      %v3812 = vmax.f32 %v3058, %v3633
      %v3813 = vmax.f32 %v3059, %v3636
      %v3814 = vmax.f32 %v3060, %v3639
      %v3815 = vmax.f32 %v3061, %v3642
      %v3816 = vmax.f32 %v3062, %v3645
      %v3817 = vmax.f32 %v3063, %v3648
      %v3818 = vmax.f32 %v3064, %v3651
      %v3819 = vmax.f32 %v3065, %v3654
      %v3820 = vmax.f32 %v3066, %v3657
      %v3821 = vmax.f32 %v3067, %v3660
      %v3822 = vmax.f32 %v3068, %v3663
      %v3823 = vmax.f32 %v3069, %v3666
      %v3824 = vmax.f32 %v3070, %v3669
      %v3825 = vmax.f32 %v3071, %v3672
      %v3826 = vmax.f32 %v3072, %v3675
      %v3827 = vmax.f32 %v3073, %v3678
      %v3828 = vmax.f32 %v3074, %v3681
      %v3829 = vmax.f32 %v3075, %v3684
      %v3830 = vmax.f32 %v3076, %v3687
      %v3831 = vmax.f32 %v3077, %v3690
      %v3832 = vmax.f32 %v3078, %v3693
      %v3833 = vmax.f32 %v3079, %v3696
      %v3834 = vmax.f32 %v3080, %v3699
      %v3835 = vmax.f32 %v3081, %v3702
      %v3836 = vmax.f32 %v3082, %v3705
      %v3837 = vmax.f32 %v3083, %v3708
      %v3838 = vmax.f32 %v3084, %v3711
      %v3839 = vmax.f32 %v3085, %v3714
      %v3840 = vmax.f32 %v3086, %v3717
      %v3841 = vmax.f32 %v3087, %v3720
      %v3842 = vmax.f32 %v3088, %v3723
      %v3843 = vmax.f32 %v3089, %v3726
      %v3844 = vmax.f32 %v3090, %v3729
      %v3845 = vmax.f32 %v3091, %v3732
      %v3846 = vmax.f32 %v3092, %v3735
      %v3847 = vmax.f32 %v3093, %v3738
      %v3848 = vmax.f32 %v3094, %v3741
      %v3849 = vmax.f32 %v3095, %v3744
      %v3850 = vmax.f32 %v3096, %v3747
      %v3851 = vmax.f32 %v3097, %v3750
      %v3852 = vmax.f32 %v3098, %v3753
      %v3853 = vmax.f32 %v3099, %v3756
      %v3854 = vmax.f32 %v3100, %v3759
      %v3855 = vmax.f32 %v3101, %v3762
      %s3856 = scalar_lea.vmem %s165, 3680
      %v3857 = vld [vmem:[%s3856] sm:$0xff]
      %v3858 = vld [vmem:[%s3856 + $0x8] sm:$0xff]
      %v3859 = vld [vmem:[%s3856 + $0x10] sm:$0xff]
      %v3860 = vld [vmem:[%s3856 + $0x18] sm:$0xff]
      %v3861 = vld [vmem:[%s3856 + $0x20] sm:$0xff]
      %v3862 = vld [vmem:[%s3856 + $0x28] sm:$0xff]
      %v3863 = vld [vmem:[%s3856 + $0x30] sm:$0xff]
      %v3864 = vld [vmem:[%s3856 + $0x38] sm:$0xff]
      %v3865 = vld [vmem:[%s3856 + $0x40] sm:$0xff]
      %v3866 = vld [vmem:[%s3856 + $0x48] sm:$0xff]
      %v3867 = vld [vmem:[%s3856 + $0x50] sm:$0xff]
      %v3868 = vld [vmem:[%s3856 + $0x58] sm:$0xff]
      %v3869 = vld [vmem:[%s3856 + $0x60] sm:$0xff]
      %v3870 = vld [vmem:[%s3856 + $0x68] sm:$0xff]
      %v3871 = vld [vmem:[%s3856 + $0x70] sm:$0xff]
      %v3872 = vld [vmem:[%s3856 + $0x78] sm:$0xff]
      %v3873 = vld [vmem:[%s3856 + $0x80] sm:$0xff]
      %v3874 = vld [vmem:[%s3856 + $0x88] sm:$0xff]
      %v3875 = vld [vmem:[%s3856 + $0x90] sm:$0xff]
      %v3876 = vld [vmem:[%s3856 + $0x98] sm:$0xff]
      %v3877 = vld [vmem:[%s3856 + $0xa0] sm:$0xff]
      %v3878 = vld [vmem:[%s3856 + $0xa8] sm:$0xff]
      %v3879 = vld [vmem:[%s3856 + $0xb0] sm:$0xff]
      %v3880 = vld [vmem:[%s3856 + $0xb8] sm:$0xff]
      %v3881 = vld [vmem:[%s3856 + $0xc0] sm:$0xff]
      %v3882 = vld [vmem:[%s3856 + $0xc8] sm:$0xff]
      %v3883 = vld [vmem:[%s3856 + $0xd0] sm:$0xff]
      %v3884 = vld [vmem:[%s3856 + $0xd8] sm:$0xff]
      %v3885 = vld [vmem:[%s3856 + $0xe0] sm:$0xff]
      %v3886 = vld [vmem:[%s3856 + $0xe8] sm:$0xff]
      %v3887 = vld [vmem:[%s3856 + $0xf0] sm:$0xff]
      %v3888 = vld [vmem:[%s3856 + $0xf8] sm:$0xff]
      %v3889 = vld [vmem:[%s3856 + $0x100] sm:$0xff]
      %v3890 = vld [vmem:[%s3856 + $0x108] sm:$0xff]
      %v3891 = vld [vmem:[%s3856 + $0x110] sm:$0xff]
      %v3892 = vld [vmem:[%s3856 + $0x118] sm:$0xff]
      %v3893 = vld [vmem:[%s3856 + $0x120] sm:$0xff]
      %v3894 = vld [vmem:[%s3856 + $0x128] sm:$0xff]
      %v3895 = vld [vmem:[%s3856 + $0x130] sm:$0xff]
      %v3896 = vld [vmem:[%s3856 + $0x138] sm:$0xff]
      %v3897 = vld [vmem:[%s3856 + $0x140] sm:$0xff]
      %v3898 = vld [vmem:[%s3856 + $0x148] sm:$0xff]
      %v3899 = vld [vmem:[%s3856 + $0x150] sm:$0xff]
      %v3900 = vld [vmem:[%s3856 + $0x158] sm:$0xff]
      %v3901 = vld [vmem:[%s3856 + $0x160] sm:$0xff]
      %v3902 = vld [vmem:[%s3856 + $0x168] sm:$0xff]
      %v3903 = vld [vmem:[%s3856 + $0x170] sm:$0xff]
      %v3904 = vld [vmem:[%s3856 + $0x178] sm:$0xff]
      %v3905 = vld [vmem:[%s3856 + $0x180] sm:$0xff]
      %v3906 = vld [vmem:[%s3856 + $0x188] sm:$0xff]
      %v3907 = vld [vmem:[%s3856 + $0x190] sm:$0xff]
      %v3908 = vld [vmem:[%s3856 + $0x198] sm:$0xff]
      %v3909 = vld [vmem:[%s3856 + $0x1a0] sm:$0xff]
      %v3910 = vld [vmem:[%s3856 + $0x1a8] sm:$0xff]
      %v3911 = vld [vmem:[%s3856 + $0x1b0] sm:$0xff]
      %v3912 = vld [vmem:[%s3856 + $0x1b8] sm:$0xff]
      %v3913 = vld [vmem:[%s3856 + $0x1c0] sm:$0xff]
      %v3914 = vld [vmem:[%s3856 + $0x1c8] sm:$0xff]
      %v3915 = vld [vmem:[%s3856 + $0x1d0] sm:$0xff]
      %v3916 = vld [vmem:[%s3856 + $0x1d8] sm:$0xff]
      %v3917 = vld [vmem:[%s3856 + $0x1e0] sm:$0xff]
      %v3918 = vld [vmem:[%s3856 + $0x1e8] sm:$0xff]
      %v3919 = vld [vmem:[%s3856 + $0x1f0] sm:$0xff]
      %v3920 = vld [vmem:[%s3856 + $0x1f8] sm:$0xff]
      %v3921 = vld [vmem:[%s3856 + $0x200] sm:$0xff]
      %v3922 = vld [vmem:[%s3856 + $0x208] sm:$0xff]
      %v3923 = vld [vmem:[%s3856 + $0x210] sm:$0xff]
      %v3924 = vld [vmem:[%s3856 + $0x218] sm:$0xff]
      %v3925 = vld [vmem:[%s3856 + $0x220] sm:$0xff]
      %v3926 = vld [vmem:[%s3856 + $0x228] sm:$0xff]
      %v3927 = vld [vmem:[%s3856 + $0x230] sm:$0xff]
      %v3928 = vld [vmem:[%s3856 + $0x238] sm:$0xff]
      %v3929 = vld [vmem:[%s3856 + $0x240] sm:$0xff]
      %v3930 = vld [vmem:[%s3856 + $0x248] sm:$0xff]
      %v3931 = vld [vmem:[%s3856 + $0x250] sm:$0xff]
      %v3932 = vld [vmem:[%s3856 + $0x258] sm:$0xff]
      %v3933 = vld [vmem:[%s3856 + $0x260] sm:$0xff]
      %v3934 = vld [vmem:[%s3856 + $0x268] sm:$0xff]
      %v3935 = vld [vmem:[%s3856 + $0x270] sm:$0xff]
      %v3936 = vld [vmem:[%s3856 + $0x278] sm:$0xff]
      %v3937 = vld [vmem:[%s3856 + $0x280] sm:$0xff]
      %v3938 = vld [vmem:[%s3856 + $0x288] sm:$0xff]
      %v3939 = vld [vmem:[%s3856 + $0x290] sm:$0xff]
      %v3940 = vld [vmem:[%s3856 + $0x298] sm:$0xff]
      %v3941 = vld [vmem:[%s3856 + $0x2a0] sm:$0xff]
      %v3942 = vld [vmem:[%s3856 + $0x2a8] sm:$0xff]
      %v3943 = vld [vmem:[%s3856 + $0x2b0] sm:$0xff]
      %v3944 = vld [vmem:[%s3856 + $0x2b8] sm:$0xff]
      %v3945 = vld [vmem:[%s3856 + $0x2c0] sm:$0xff]
      %v3946 = vld [vmem:[%s3856 + $0x2c8] sm:$0xff]
      %v3947 = vld [vmem:[%s3856 + $0x2d0] sm:$0xff]
      %v3948 = vld [vmem:[%s3856 + $0x2d8] sm:$0x1]
      %v3950 = vsel %vm266, %v3857, 0
      %v3953 = vsel %vm266, %v3858, 0
      %v3956 = vsel %vm266, %v3859, 0
      %v3959 = vsel %vm266, %v3860, 0
      %v3962 = vsel %vm266, %v3861, 0
      %v3965 = vsel %vm266, %v3862, 0
      %v3968 = vsel %vm266, %v3863, 0
      %v3971 = vsel %vm266, %v3864, 0
      %v3974 = vsel %vm266, %v3865, 0
      %v3977 = vsel %vm266, %v3866, 0
      %v3980 = vsel %vm266, %v3867, 0
      %v3983 = vsel %vm266, %v3868, 0
      %v3986 = vsel %vm266, %v3869, 0
      %v3989 = vsel %vm266, %v3870, 0
      %v3992 = vsel %vm266, %v3871, 0
      %v3995 = vsel %vm266, %v3872, 0
      %v3998 = vsel %vm266, %v3873, 0
      %v4001 = vsel %vm266, %v3874, 0
      %v4004 = vsel %vm266, %v3875, 0
      %v4007 = vsel %vm266, %v3876, 0
      %v4010 = vsel %vm266, %v3877, 0
      %v4013 = vsel %vm266, %v3878, 0
      %v4016 = vsel %vm266, %v3879, 0
      %v4019 = vsel %vm266, %v3880, 0
      %v4022 = vsel %vm266, %v3881, 0
      %v4025 = vsel %vm266, %v3882, 0
      %v4028 = vsel %vm266, %v3883, 0
      %v4031 = vsel %vm266, %v3884, 0
      %v4034 = vsel %vm266, %v3885, 0
      %v4037 = vsel %vm266, %v3886, 0
      %v4040 = vsel %vm266, %v3887, 0
      %v4043 = vsel %vm266, %v3888, 0
      %v4046 = vsel %vm266, %v3889, 0
      %v4049 = vsel %vm266, %v3890, 0
      %v4052 = vsel %vm266, %v3891, 0
      %v4055 = vsel %vm266, %v3892, 0
      %v4058 = vsel %vm266, %v3893, 0
      %v4061 = vsel %vm266, %v3894, 0
      %v4064 = vsel %vm266, %v3895, 0
      %v4067 = vsel %vm266, %v3896, 0
      %v4070 = vsel %vm266, %v3897, 0
      %v4073 = vsel %vm266, %v3898, 0
      %v4076 = vsel %vm266, %v3899, 0
      %v4079 = vsel %vm266, %v3900, 0
      %v4082 = vsel %vm266, %v3901, 0
      %v4085 = vsel %vm266, %v3902, 0
      %v4088 = vsel %vm266, %v3903, 0
      %v4091 = vsel %vm266, %v3904, 0
      %v4094 = vsel %vm266, %v3905, 0
      %v4097 = vsel %vm266, %v3906, 0
      %v4100 = vsel %vm266, %v3907, 0
      %v4103 = vsel %vm266, %v3908, 0
      %v4106 = vsel %vm266, %v3909, 0
      %v4109 = vsel %vm266, %v3910, 0
      %v4112 = vsel %vm266, %v3911, 0
      %v4115 = vsel %vm266, %v3912, 0
      %v4118 = vsel %vm266, %v3913, 0
      %v4121 = vsel %vm266, %v3914, 0
      %v4124 = vsel %vm266, %v3915, 0
      %v4127 = vsel %vm266, %v3916, 0
      %v4130 = vsel %vm266, %v3917, 0
      %v4133 = vsel %vm266, %v3918, 0
      %v4136 = vsel %vm266, %v3919, 0
      %v4139 = vsel %vm266, %v3920, 0
      %v4142 = vsel %vm266, %v3921, 0
      %v4145 = vsel %vm266, %v3922, 0
      %v4148 = vsel %vm266, %v3923, 0
      %v4151 = vsel %vm266, %v3924, 0
      %v4154 = vsel %vm266, %v3925, 0
      %v4157 = vsel %vm266, %v3926, 0
      %v4160 = vsel %vm266, %v3927, 0
      %v4163 = vsel %vm266, %v3928, 0
      %v4166 = vsel %vm266, %v3929, 0
      %v4169 = vsel %vm266, %v3930, 0
      %v4172 = vsel %vm266, %v3931, 0
      %v4175 = vsel %vm266, %v3932, 0
      %v4178 = vsel %vm266, %v3933, 0
      %v4181 = vsel %vm266, %v3934, 0
      %v4184 = vsel %vm266, %v3935, 0
      %v4187 = vsel %vm266, %v3936, 0
      %v4190 = vsel %vm266, %v3937, 0
      %v4193 = vsel %vm266, %v3938, 0
      %v4196 = vsel %vm266, %v3939, 0
      %v4199 = vsel %vm266, %v3940, 0
      %v4202 = vsel %vm266, %v3941, 0
      %v4205 = vsel %vm266, %v3942, 0
      %v4208 = vsel %vm266, %v3943, 0
      %v4211 = vsel %vm266, %v3944, 0
      %v4214 = vsel %vm266, %v3945, 0
      %v4217 = vsel %vm266, %v3946, 0
      %v4220 = vsel %vm266, %v3947, 0
      %v4223 = vsel %vm266, %v3948, 0
      %4225 = vmatpush.msra.mxu0 0.0
      %4226 = vmatpush.msra.mxu0 0.0
      %4227 = vmatpush.msra.mxu0 0.0
      %4228 = vmatpush.msra.mxu0 0.0
      %4229 = vmatpush.msra.mxu0 0.0
      %4230 = vmatpush.msra.mxu0 0.0
      %4231 = vmatpush.msra.mxu0 0.0
      %4232 = vmatpush.msra.mxu0 0.0
      %4233 = vmatpush.msra.mxu0 0.0
      %4234 = vmatpush.msra.mxu0 0.0
      %4235 = vmatpush.msra.mxu0 0.0
      %4236 = vmatpush.msra.mxu0 0.0
      %4237 = vmatpush.msra.mxu0 0.0
      %4238 = vmatpush.msra.mxu0 %v545
      %4239 = vmatpush.msra.mxu0 %v172
      %4240 = vmatpush.msra.mxu0 %v171
      %4241 = vmatmul.f32.gmra.mxu0 %v3950
      %v4242 = vpop.f32.mrf.mxu0
      %v4243 = vadd.f32 0.0, %v4242
      %4244 = vmatmul.f32.gmra.mxu0 %v3953
      %v4245 = vpop.f32.mrf.mxu0
      %v4246 = vadd.f32 0.0, %v4245
      %4247 = vmatmul.f32.gmra.mxu0 %v3956
      %v4248 = vpop.f32.mrf.mxu0
      %v4249 = vadd.f32 0.0, %v4248
      %4250 = vmatmul.f32.gmra.mxu0 %v3959
      %v4251 = vpop.f32.mrf.mxu0
      %v4252 = vadd.f32 0.0, %v4251
      %4253 = vmatmul.f32.gmra.mxu0 %v3962
      %v4254 = vpop.f32.mrf.mxu0
      %v4255 = vadd.f32 0.0, %v4254
      %4256 = vmatmul.f32.gmra.mxu0 %v3965
      %v4257 = vpop.f32.mrf.mxu0
      %v4258 = vadd.f32 0.0, %v4257
      %4259 = vmatmul.f32.gmra.mxu0 %v3968
      %v4260 = vpop.f32.mrf.mxu0
      %v4261 = vadd.f32 0.0, %v4260
      %4262 = vmatmul.f32.gmra.mxu0 %v3971
      %v4263 = vpop.f32.mrf.mxu0
      %v4264 = vadd.f32 0.0, %v4263
      %4265 = vmatmul.f32.gmra.mxu0 %v3974
      %v4266 = vpop.f32.mrf.mxu0
      %v4267 = vadd.f32 0.0, %v4266
      %4268 = vmatmul.f32.gmra.mxu0 %v3977
      %v4269 = vpop.f32.mrf.mxu0
      %v4270 = vadd.f32 0.0, %v4269
      %4271 = vmatmul.f32.gmra.mxu0 %v3980
      %v4272 = vpop.f32.mrf.mxu0
      %v4273 = vadd.f32 0.0, %v4272
      %4274 = vmatmul.f32.gmra.mxu0 %v3983
      %v4275 = vpop.f32.mrf.mxu0
      %v4276 = vadd.f32 0.0, %v4275
      %4277 = vmatmul.f32.gmra.mxu0 %v3986
      %v4278 = vpop.f32.mrf.mxu0
      %v4279 = vadd.f32 0.0, %v4278
      %4280 = vmatmul.f32.gmra.mxu0 %v3989
      %v4281 = vpop.f32.mrf.mxu0
      %v4282 = vadd.f32 0.0, %v4281
      %4283 = vmatmul.f32.gmra.mxu0 %v3992
      %v4284 = vpop.f32.mrf.mxu0
      %v4285 = vadd.f32 0.0, %v4284
      %4286 = vmatmul.f32.gmra.mxu0 %v3995
      %v4287 = vpop.f32.mrf.mxu0
      %v4288 = vadd.f32 0.0, %v4287
      %4289 = vmatmul.f32.gmra.mxu0 %v3998
      %v4290 = vpop.f32.mrf.mxu0
      %v4291 = vadd.f32 0.0, %v4290
      %4292 = vmatmul.f32.gmra.mxu0 %v4001
      %v4293 = vpop.f32.mrf.mxu0
      %v4294 = vadd.f32 0.0, %v4293
      %4295 = vmatmul.f32.gmra.mxu0 %v4004
      %v4296 = vpop.f32.mrf.mxu0
      %v4297 = vadd.f32 0.0, %v4296
      %4298 = vmatmul.f32.gmra.mxu0 %v4007
      %v4299 = vpop.f32.mrf.mxu0
      %v4300 = vadd.f32 0.0, %v4299
      %4301 = vmatmul.f32.gmra.mxu0 %v4010
      %v4302 = vpop.f32.mrf.mxu0
      %v4303 = vadd.f32 0.0, %v4302
      %4304 = vmatmul.f32.gmra.mxu0 %v4013
      %v4305 = vpop.f32.mrf.mxu0
      %v4306 = vadd.f32 0.0, %v4305
      %4307 = vmatmul.f32.gmra.mxu0 %v4016
      %v4308 = vpop.f32.mrf.mxu0
      %v4309 = vadd.f32 0.0, %v4308
      %4310 = vmatmul.f32.gmra.mxu0 %v4019
      %v4311 = vpop.f32.mrf.mxu0
      %v4312 = vadd.f32 0.0, %v4311
      %4313 = vmatmul.f32.gmra.mxu0 %v4022
      %v4314 = vpop.f32.mrf.mxu0
      %v4315 = vadd.f32 0.0, %v4314
      %4316 = vmatmul.f32.gmra.mxu0 %v4025
      %v4317 = vpop.f32.mrf.mxu0
      %v4318 = vadd.f32 0.0, %v4317
      %4319 = vmatmul.f32.gmra.mxu0 %v4028
      %v4320 = vpop.f32.mrf.mxu0
      %v4321 = vadd.f32 0.0, %v4320
      %4322 = vmatmul.f32.gmra.mxu0 %v4031
      %v4323 = vpop.f32.mrf.mxu0
      %v4324 = vadd.f32 0.0, %v4323
      %4325 = vmatmul.f32.gmra.mxu0 %v4034
      %v4326 = vpop.f32.mrf.mxu0
      %v4327 = vadd.f32 0.0, %v4326
      %4328 = vmatmul.f32.gmra.mxu0 %v4037
      %v4329 = vpop.f32.mrf.mxu0
      %v4330 = vadd.f32 0.0, %v4329
      %4331 = vmatmul.f32.gmra.mxu0 %v4040
      %v4332 = vpop.f32.mrf.mxu0
      %v4333 = vadd.f32 0.0, %v4332
      %4334 = vmatmul.f32.gmra.mxu0 %v4043
      %v4335 = vpop.f32.mrf.mxu0
      %v4336 = vadd.f32 0.0, %v4335
      %4337 = vmatmul.f32.gmra.mxu0 %v4046
      %v4338 = vpop.f32.mrf.mxu0
      %v4339 = vadd.f32 0.0, %v4338
      %4340 = vmatmul.f32.gmra.mxu0 %v4049
      %v4341 = vpop.f32.mrf.mxu0
      %v4342 = vadd.f32 0.0, %v4341
      %4343 = vmatmul.f32.gmra.mxu0 %v4052
      %v4344 = vpop.f32.mrf.mxu0
      %v4345 = vadd.f32 0.0, %v4344
      %4346 = vmatmul.f32.gmra.mxu0 %v4055
      %v4347 = vpop.f32.mrf.mxu0
      %v4348 = vadd.f32 0.0, %v4347
      %4349 = vmatmul.f32.gmra.mxu0 %v4058
      %v4350 = vpop.f32.mrf.mxu0
      %v4351 = vadd.f32 0.0, %v4350
      %4352 = vmatmul.f32.gmra.mxu0 %v4061
      %v4353 = vpop.f32.mrf.mxu0
      %v4354 = vadd.f32 0.0, %v4353
      %4355 = vmatmul.f32.gmra.mxu0 %v4064
      %v4356 = vpop.f32.mrf.mxu0
      %v4357 = vadd.f32 0.0, %v4356
      %4358 = vmatmul.f32.gmra.mxu0 %v4067
      %v4359 = vpop.f32.mrf.mxu0
      %v4360 = vadd.f32 0.0, %v4359
      %4361 = vmatmul.f32.gmra.mxu0 %v4070
      %v4362 = vpop.f32.mrf.mxu0
      %v4363 = vadd.f32 0.0, %v4362
      %4364 = vmatmul.f32.gmra.mxu0 %v4073
      %v4365 = vpop.f32.mrf.mxu0
      %v4366 = vadd.f32 0.0, %v4365
      %4367 = vmatmul.f32.gmra.mxu0 %v4076
      %v4368 = vpop.f32.mrf.mxu0
      %v4369 = vadd.f32 0.0, %v4368
      %4370 = vmatmul.f32.gmra.mxu0 %v4079
      %v4371 = vpop.f32.mrf.mxu0
      %v4372 = vadd.f32 0.0, %v4371
      %4373 = vmatmul.f32.gmra.mxu0 %v4082
      %v4374 = vpop.f32.mrf.mxu0
      %v4375 = vadd.f32 0.0, %v4374
      %4376 = vmatmul.f32.gmra.mxu0 %v4085
      %v4377 = vpop.f32.mrf.mxu0
      %v4378 = vadd.f32 0.0, %v4377
      %4379 = vmatmul.f32.gmra.mxu0 %v4088
      %v4380 = vpop.f32.mrf.mxu0
      %v4381 = vadd.f32 0.0, %v4380
      %4382 = vmatmul.f32.gmra.mxu0 %v4091
      %v4383 = vpop.f32.mrf.mxu0
      %v4384 = vadd.f32 0.0, %v4383
      %4385 = vmatmul.f32.gmra.mxu0 %v4094
      %v4386 = vpop.f32.mrf.mxu0
      %v4387 = vadd.f32 0.0, %v4386
      %4388 = vmatmul.f32.gmra.mxu0 %v4097
      %v4389 = vpop.f32.mrf.mxu0
      %v4390 = vadd.f32 0.0, %v4389
      %4391 = vmatmul.f32.gmra.mxu0 %v4100
      %v4392 = vpop.f32.mrf.mxu0
      %v4393 = vadd.f32 0.0, %v4392
      %4394 = vmatmul.f32.gmra.mxu0 %v4103
      %v4395 = vpop.f32.mrf.mxu0
      %v4396 = vadd.f32 0.0, %v4395
      %4397 = vmatmul.f32.gmra.mxu0 %v4106
      %v4398 = vpop.f32.mrf.mxu0
      %v4399 = vadd.f32 0.0, %v4398
      %4400 = vmatmul.f32.gmra.mxu0 %v4109
      %v4401 = vpop.f32.mrf.mxu0
      %v4402 = vadd.f32 0.0, %v4401
      %4403 = vmatmul.f32.gmra.mxu0 %v4112
      %v4404 = vpop.f32.mrf.mxu0
      %v4405 = vadd.f32 0.0, %v4404
      %4406 = vmatmul.f32.gmra.mxu0 %v4115
      %v4407 = vpop.f32.mrf.mxu0
      %v4408 = vadd.f32 0.0, %v4407
      %4409 = vmatmul.f32.gmra.mxu0 %v4118
      %v4410 = vpop.f32.mrf.mxu0
      %v4411 = vadd.f32 0.0, %v4410
      %4412 = vmatmul.f32.gmra.mxu0 %v4121
      %v4413 = vpop.f32.mrf.mxu0
      %v4414 = vadd.f32 0.0, %v4413
      %4415 = vmatmul.f32.gmra.mxu0 %v4124
      %v4416 = vpop.f32.mrf.mxu0
      %v4417 = vadd.f32 0.0, %v4416
      %4418 = vmatmul.f32.gmra.mxu0 %v4127
      %v4419 = vpop.f32.mrf.mxu0
      %v4420 = vadd.f32 0.0, %v4419
      %4421 = vmatmul.f32.gmra.mxu0 %v4130
      %v4422 = vpop.f32.mrf.mxu0
      %v4423 = vadd.f32 0.0, %v4422
      %4424 = vmatmul.f32.gmra.mxu0 %v4133
      %v4425 = vpop.f32.mrf.mxu0
      %v4426 = vadd.f32 0.0, %v4425
      %4427 = vmatmul.f32.gmra.mxu0 %v4136
      %v4428 = vpop.f32.mrf.mxu0
      %v4429 = vadd.f32 0.0, %v4428
      %4430 = vmatmul.f32.gmra.mxu0 %v4139
      %v4431 = vpop.f32.mrf.mxu0
      %v4432 = vadd.f32 0.0, %v4431
      %4433 = vmatmul.f32.gmra.mxu0 %v4142
      %v4434 = vpop.f32.mrf.mxu0
      %v4435 = vadd.f32 0.0, %v4434
      %4436 = vmatmul.f32.gmra.mxu0 %v4145
      %v4437 = vpop.f32.mrf.mxu0
      %v4438 = vadd.f32 0.0, %v4437
      %4439 = vmatmul.f32.gmra.mxu0 %v4148
      %v4440 = vpop.f32.mrf.mxu0
      %v4441 = vadd.f32 0.0, %v4440
      %4442 = vmatmul.f32.gmra.mxu0 %v4151
      %v4443 = vpop.f32.mrf.mxu0
      %v4444 = vadd.f32 0.0, %v4443
      %4445 = vmatmul.f32.gmra.mxu0 %v4154
      %v4446 = vpop.f32.mrf.mxu0
      %v4447 = vadd.f32 0.0, %v4446
      %4448 = vmatmul.f32.gmra.mxu0 %v4157
      %v4449 = vpop.f32.mrf.mxu0
      %v4450 = vadd.f32 0.0, %v4449
      %4451 = vmatmul.f32.gmra.mxu0 %v4160
      %v4452 = vpop.f32.mrf.mxu0
      %v4453 = vadd.f32 0.0, %v4452
      %4454 = vmatmul.f32.gmra.mxu0 %v4163
      %v4455 = vpop.f32.mrf.mxu0
      %v4456 = vadd.f32 0.0, %v4455
      %4457 = vmatmul.f32.gmra.mxu0 %v4166
      %v4458 = vpop.f32.mrf.mxu0
      %v4459 = vadd.f32 0.0, %v4458
      %4460 = vmatmul.f32.gmra.mxu0 %v4169
      %v4461 = vpop.f32.mrf.mxu0
      %v4462 = vadd.f32 0.0, %v4461
      %4463 = vmatmul.f32.gmra.mxu0 %v4172
      %v4464 = vpop.f32.mrf.mxu0
      %v4465 = vadd.f32 0.0, %v4464
      %4466 = vmatmul.f32.gmra.mxu0 %v4175
      %v4467 = vpop.f32.mrf.mxu0
      %v4468 = vadd.f32 0.0, %v4467
      %4469 = vmatmul.f32.gmra.mxu0 %v4178
      %v4470 = vpop.f32.mrf.mxu0
      %v4471 = vadd.f32 0.0, %v4470
      %4472 = vmatmul.f32.gmra.mxu0 %v4181
      %v4473 = vpop.f32.mrf.mxu0
      %v4474 = vadd.f32 0.0, %v4473
      %4475 = vmatmul.f32.gmra.mxu0 %v4184
      %v4476 = vpop.f32.mrf.mxu0
      %v4477 = vadd.f32 0.0, %v4476
      %4478 = vmatmul.f32.gmra.mxu0 %v4187
      %v4479 = vpop.f32.mrf.mxu0
      %v4480 = vadd.f32 0.0, %v4479
      %4481 = vmatmul.f32.gmra.mxu0 %v4190
      %v4482 = vpop.f32.mrf.mxu0
      %v4483 = vadd.f32 0.0, %v4482
      %4484 = vmatmul.f32.gmra.mxu0 %v4193
      %v4485 = vpop.f32.mrf.mxu0
      %v4486 = vadd.f32 0.0, %v4485
      %4487 = vmatmul.f32.gmra.mxu0 %v4196
      %v4488 = vpop.f32.mrf.mxu0
      %v4489 = vadd.f32 0.0, %v4488
      %4490 = vmatmul.f32.gmra.mxu0 %v4199
      %v4491 = vpop.f32.mrf.mxu0
      %v4492 = vadd.f32 0.0, %v4491
      %4493 = vmatmul.f32.gmra.mxu0 %v4202
      %v4494 = vpop.f32.mrf.mxu0
      %v4495 = vadd.f32 0.0, %v4494
      %4496 = vmatmul.f32.gmra.mxu0 %v4205
      %v4497 = vpop.f32.mrf.mxu0
      %v4498 = vadd.f32 0.0, %v4497
      %4499 = vmatmul.f32.gmra.mxu0 %v4208
      %v4500 = vpop.f32.mrf.mxu0
      %v4501 = vadd.f32 0.0, %v4500
      %4502 = vmatmul.f32.gmra.mxu0 %v4211
      %v4503 = vpop.f32.mrf.mxu0
      %v4504 = vadd.f32 0.0, %v4503
      %4505 = vmatmul.f32.gmra.mxu0 %v4214
      %v4506 = vpop.f32.mrf.mxu0
      %v4507 = vadd.f32 0.0, %v4506
      %4508 = vmatmul.f32.gmra.mxu0 %v4217
      %v4509 = vpop.f32.mrf.mxu0
      %v4510 = vadd.f32 0.0, %v4509
      %4511 = vmatmul.f32.gmra.mxu0 %v4220
      %v4512 = vpop.f32.mrf.mxu0
      %v4513 = vadd.f32 0.0, %v4512
      %4514 = vmatmul.f32.gmra.mxu0 %v4223
      %v4515 = vpop.f32.mrf.mxu0
      %v4516 = vadd.f32 0.0, %v4515
      %4517 = vdwg.mxu0
      %v4518 = vmax.f32 %v3764, %v4243
      %v4519 = vmax.f32 %v3765, %v4246
      %v4520 = vmax.f32 %v3766, %v4249
      %v4521 = vmax.f32 %v3767, %v4252
      %v4522 = vmax.f32 %v3768, %v4255
      %v4523 = vmax.f32 %v3769, %v4258
      %v4524 = vmax.f32 %v3770, %v4261
      %v4525 = vmax.f32 %v3771, %v4264
      %v4526 = vmax.f32 %v3772, %v4267
      %v4527 = vmax.f32 %v3773, %v4270
      %v4528 = vmax.f32 %v3774, %v4273
      %v4529 = vmax.f32 %v3775, %v4276
      %v4530 = vmax.f32 %v3776, %v4279
      %v4531 = vmax.f32 %v3777, %v4282
      %v4532 = vmax.f32 %v3778, %v4285
      %v4533 = vmax.f32 %v3779, %v4288
      %v4534 = vmax.f32 %v3780, %v4291
      %v4535 = vmax.f32 %v3781, %v4294
      %v4536 = vmax.f32 %v3782, %v4297
      %v4537 = vmax.f32 %v3783, %v4300
      %v4538 = vmax.f32 %v3784, %v4303
      %v4539 = vmax.f32 %v3785, %v4306
      %v4540 = vmax.f32 %v3786, %v4309
      %v4541 = vmax.f32 %v3787, %v4312
      %v4542 = vmax.f32 %v3788, %v4315
      %v4543 = vmax.f32 %v3789, %v4318
      %v4544 = vmax.f32 %v3790, %v4321
      %v4545 = vmax.f32 %v3791, %v4324
      %v4546 = vmax.f32 %v3792, %v4327
      %v4547 = vmax.f32 %v3793, %v4330
      %v4548 = vmax.f32 %v3794, %v4333
      %v4549 = vmax.f32 %v3795, %v4336
      %v4550 = vmax.f32 %v3796, %v4339
      %v4551 = vmax.f32 %v3797, %v4342
      %v4552 = vmax.f32 %v3798, %v4345
      %v4553 = vmax.f32 %v3799, %v4348
      %v4554 = vmax.f32 %v3800, %v4351
      %v4555 = vmax.f32 %v3801, %v4354
      %v4556 = vmax.f32 %v3802, %v4357
      %v4557 = vmax.f32 %v3803, %v4360
      %v4558 = vmax.f32 %v3804, %v4363
      %v4559 = vmax.f32 %v3805, %v4366
      %v4560 = vmax.f32 %v3806, %v4369
      %v4561 = vmax.f32 %v3807, %v4372
      %v4562 = vmax.f32 %v3808, %v4375
      %v4563 = vmax.f32 %v3809, %v4378
      %v4564 = vmax.f32 %v3810, %v4381
      %v4565 = vmax.f32 %v3811, %v4384
      %v4566 = vmax.f32 %v3812, %v4387
      %v4567 = vmax.f32 %v3813, %v4390
      %v4568 = vmax.f32 %v3814, %v4393
      %v4569 = vmax.f32 %v3815, %v4396
      %v4570 = vmax.f32 %v3816, %v4399
      %v4571 = vmax.f32 %v3817, %v4402
      %v4572 = vmax.f32 %v3818, %v4405
      %v4573 = vmax.f32 %v3819, %v4408
      %v4574 = vmax.f32 %v3820, %v4411
      %v4575 = vmax.f32 %v3821, %v4414
      %v4576 = vmax.f32 %v3822, %v4417
      %v4577 = vmax.f32 %v3823, %v4420
      %v4578 = vmax.f32 %v3824, %v4423
      %v4579 = vmax.f32 %v3825, %v4426
      %v4580 = vmax.f32 %v3826, %v4429
      %v4581 = vmax.f32 %v3827, %v4432
      %v4582 = vmax.f32 %v3828, %v4435
      %v4583 = vmax.f32 %v3829, %v4438
      %v4584 = vmax.f32 %v3830, %v4441
      %v4585 = vmax.f32 %v3831, %v4444
      %v4586 = vmax.f32 %v3832, %v4447
      %v4587 = vmax.f32 %v3833, %v4450
      %v4588 = vmax.f32 %v3834, %v4453
      %v4589 = vmax.f32 %v3835, %v4456
      %v4590 = vmax.f32 %v3836, %v4459
      %v4591 = vmax.f32 %v3837, %v4462
      %v4592 = vmax.f32 %v3838, %v4465
      %v4593 = vmax.f32 %v3839, %v4468
      %v4594 = vmax.f32 %v3840, %v4471
      %v4595 = vmax.f32 %v3841, %v4474
      %v4596 = vmax.f32 %v3842, %v4477
      %v4597 = vmax.f32 %v3843, %v4480
      %v4598 = vmax.f32 %v3844, %v4483
      %v4599 = vmax.f32 %v3845, %v4486
      %v4600 = vmax.f32 %v3846, %v4489
      %v4601 = vmax.f32 %v3847, %v4492
      %v4602 = vmax.f32 %v3848, %v4495
      %v4603 = vmax.f32 %v3849, %v4498
      %v4604 = vmax.f32 %v3850, %v4501
      %v4605 = vmax.f32 %v3851, %v4504
      %v4606 = vmax.f32 %v3852, %v4507
      %v4607 = vmax.f32 %v3853, %v4510
      %v4608 = vmax.f32 %v3854, %v4513
      %v4609 = vmax.f32 %v3855, %v4516
      %s4610 = scalar_lea.vmem %s165, 4416
      %v4611 = vld [vmem:[%s4610] sm:$0xff]
      %v4612 = vld [vmem:[%s4610 + $0x8] sm:$0xff]
      %v4613 = vld [vmem:[%s4610 + $0x10] sm:$0xff]
      %v4614 = vld [vmem:[%s4610 + $0x18] sm:$0xff]
      %v4615 = vld [vmem:[%s4610 + $0x20] sm:$0xff]
      %v4616 = vld [vmem:[%s4610 + $0x28] sm:$0xff]
      %v4617 = vld [vmem:[%s4610 + $0x30] sm:$0xff]
      %v4618 = vld [vmem:[%s4610 + $0x38] sm:$0xff]
      %v4619 = vld [vmem:[%s4610 + $0x40] sm:$0xff]
      %v4620 = vld [vmem:[%s4610 + $0x48] sm:$0xff]
      %v4621 = vld [vmem:[%s4610 + $0x50] sm:$0xff]
      %v4622 = vld [vmem:[%s4610 + $0x58] sm:$0xff]
      %v4623 = vld [vmem:[%s4610 + $0x60] sm:$0xff]
      %v4624 = vld [vmem:[%s4610 + $0x68] sm:$0xff]
      %v4625 = vld [vmem:[%s4610 + $0x70] sm:$0xff]
      %v4626 = vld [vmem:[%s4610 + $0x78] sm:$0xff]
      %v4627 = vld [vmem:[%s4610 + $0x80] sm:$0xff]
      %v4628 = vld [vmem:[%s4610 + $0x88] sm:$0xff]
      %v4629 = vld [vmem:[%s4610 + $0x90] sm:$0xff]
      %v4630 = vld [vmem:[%s4610 + $0x98] sm:$0xff]
      %v4631 = vld [vmem:[%s4610 + $0xa0] sm:$0xff]
      %v4632 = vld [vmem:[%s4610 + $0xa8] sm:$0xff]
      %v4633 = vld [vmem:[%s4610 + $0xb0] sm:$0xff]
      %v4634 = vld [vmem:[%s4610 + $0xb8] sm:$0xff]
      %v4635 = vld [vmem:[%s4610 + $0xc0] sm:$0xff]
      %v4636 = vld [vmem:[%s4610 + $0xc8] sm:$0xff]
      %v4637 = vld [vmem:[%s4610 + $0xd0] sm:$0xff]
      %v4638 = vld [vmem:[%s4610 + $0xd8] sm:$0xff]
      %v4639 = vld [vmem:[%s4610 + $0xe0] sm:$0xff]
      %v4640 = vld [vmem:[%s4610 + $0xe8] sm:$0xff]
      %v4641 = vld [vmem:[%s4610 + $0xf0] sm:$0xff]
      %v4642 = vld [vmem:[%s4610 + $0xf8] sm:$0xff]
      %v4643 = vld [vmem:[%s4610 + $0x100] sm:$0xff]
      %v4644 = vld [vmem:[%s4610 + $0x108] sm:$0xff]
      %v4645 = vld [vmem:[%s4610 + $0x110] sm:$0xff]
      %v4646 = vld [vmem:[%s4610 + $0x118] sm:$0xff]
      %v4647 = vld [vmem:[%s4610 + $0x120] sm:$0xff]
      %v4648 = vld [vmem:[%s4610 + $0x128] sm:$0xff]
      %v4649 = vld [vmem:[%s4610 + $0x130] sm:$0xff]
      %v4650 = vld [vmem:[%s4610 + $0x138] sm:$0xff]
      %v4651 = vld [vmem:[%s4610 + $0x140] sm:$0xff]
      %v4652 = vld [vmem:[%s4610 + $0x148] sm:$0xff]
      %v4653 = vld [vmem:[%s4610 + $0x150] sm:$0xff]
      %v4654 = vld [vmem:[%s4610 + $0x158] sm:$0xff]
      %v4655 = vld [vmem:[%s4610 + $0x160] sm:$0xff]
      %v4656 = vld [vmem:[%s4610 + $0x168] sm:$0xff]
      %v4657 = vld [vmem:[%s4610 + $0x170] sm:$0xff]
      %v4658 = vld [vmem:[%s4610 + $0x178] sm:$0xff]
      %v4659 = vld [vmem:[%s4610 + $0x180] sm:$0xff]
      %v4660 = vld [vmem:[%s4610 + $0x188] sm:$0xff]
      %v4661 = vld [vmem:[%s4610 + $0x190] sm:$0xff]
      %v4662 = vld [vmem:[%s4610 + $0x198] sm:$0xff]
      %v4663 = vld [vmem:[%s4610 + $0x1a0] sm:$0xff]
      %v4664 = vld [vmem:[%s4610 + $0x1a8] sm:$0xff]
      %v4665 = vld [vmem:[%s4610 + $0x1b0] sm:$0xff]
      %v4666 = vld [vmem:[%s4610 + $0x1b8] sm:$0xff]
      %v4667 = vld [vmem:[%s4610 + $0x1c0] sm:$0xff]
      %v4668 = vld [vmem:[%s4610 + $0x1c8] sm:$0xff]
      %v4669 = vld [vmem:[%s4610 + $0x1d0] sm:$0xff]
      %v4670 = vld [vmem:[%s4610 + $0x1d8] sm:$0xff]
      %v4671 = vld [vmem:[%s4610 + $0x1e0] sm:$0xff]
      %v4672 = vld [vmem:[%s4610 + $0x1e8] sm:$0xff]
      %v4673 = vld [vmem:[%s4610 + $0x1f0] sm:$0xff]
      %v4674 = vld [vmem:[%s4610 + $0x1f8] sm:$0xff]
      %v4675 = vld [vmem:[%s4610 + $0x200] sm:$0xff]
      %v4676 = vld [vmem:[%s4610 + $0x208] sm:$0xff]
      %v4677 = vld [vmem:[%s4610 + $0x210] sm:$0xff]
      %v4678 = vld [vmem:[%s4610 + $0x218] sm:$0xff]
      %v4679 = vld [vmem:[%s4610 + $0x220] sm:$0xff]
      %v4680 = vld [vmem:[%s4610 + $0x228] sm:$0xff]
      %v4681 = vld [vmem:[%s4610 + $0x230] sm:$0xff]
      %v4682 = vld [vmem:[%s4610 + $0x238] sm:$0xff]
      %v4683 = vld [vmem:[%s4610 + $0x240] sm:$0xff]
      %v4684 = vld [vmem:[%s4610 + $0x248] sm:$0xff]
      %v4685 = vld [vmem:[%s4610 + $0x250] sm:$0xff]
      %v4686 = vld [vmem:[%s4610 + $0x258] sm:$0xff]
      %v4687 = vld [vmem:[%s4610 + $0x260] sm:$0xff]
      %v4688 = vld [vmem:[%s4610 + $0x268] sm:$0xff]
      %v4689 = vld [vmem:[%s4610 + $0x270] sm:$0xff]
      %v4690 = vld [vmem:[%s4610 + $0x278] sm:$0xff]
      %v4691 = vld [vmem:[%s4610 + $0x280] sm:$0xff]
      %v4692 = vld [vmem:[%s4610 + $0x288] sm:$0xff]
      %v4693 = vld [vmem:[%s4610 + $0x290] sm:$0xff]
      %v4694 = vld [vmem:[%s4610 + $0x298] sm:$0xff]
      %v4695 = vld [vmem:[%s4610 + $0x2a0] sm:$0xff]
      %v4696 = vld [vmem:[%s4610 + $0x2a8] sm:$0xff]
      %v4697 = vld [vmem:[%s4610 + $0x2b0] sm:$0xff]
      %v4698 = vld [vmem:[%s4610 + $0x2b8] sm:$0xff]
      %v4699 = vld [vmem:[%s4610 + $0x2c0] sm:$0xff]
      %v4700 = vld [vmem:[%s4610 + $0x2c8] sm:$0xff]
      %v4701 = vld [vmem:[%s4610 + $0x2d0] sm:$0xff]
      %v4702 = vld [vmem:[%s4610 + $0x2d8] sm:$0x1]
      %v4704 = vsel %vm266, %v4611, 0
      %v4707 = vsel %vm266, %v4612, 0
      %v4710 = vsel %vm266, %v4613, 0
      %v4713 = vsel %vm266, %v4614, 0
      %v4716 = vsel %vm266, %v4615, 0
      %v4719 = vsel %vm266, %v4616, 0
      %v4722 = vsel %vm266, %v4617, 0
      %v4725 = vsel %vm266, %v4618, 0
      %v4728 = vsel %vm266, %v4619, 0
      %v4731 = vsel %vm266, %v4620, 0
      %v4734 = vsel %vm266, %v4621, 0
      %v4737 = vsel %vm266, %v4622, 0
      %v4740 = vsel %vm266, %v4623, 0
      %v4743 = vsel %vm266, %v4624, 0
      %v4746 = vsel %vm266, %v4625, 0
      %v4749 = vsel %vm266, %v4626, 0
      %v4752 = vsel %vm266, %v4627, 0
      %v4755 = vsel %vm266, %v4628, 0
      %v4758 = vsel %vm266, %v4629, 0
      %v4761 = vsel %vm266, %v4630, 0
      %v4764 = vsel %vm266, %v4631, 0
      %v4767 = vsel %vm266, %v4632, 0
      %v4770 = vsel %vm266, %v4633, 0
      %v4773 = vsel %vm266, %v4634, 0
      %v4776 = vsel %vm266, %v4635, 0
      %v4779 = vsel %vm266, %v4636, 0
      %v4782 = vsel %vm266, %v4637, 0
      %v4785 = vsel %vm266, %v4638, 0
      %v4788 = vsel %vm266, %v4639, 0
      %v4791 = vsel %vm266, %v4640, 0
      %v4794 = vsel %vm266, %v4641, 0
      %v4797 = vsel %vm266, %v4642, 0
      %v4800 = vsel %vm266, %v4643, 0
      %v4803 = vsel %vm266, %v4644, 0
      %v4806 = vsel %vm266, %v4645, 0
      %v4809 = vsel %vm266, %v4646, 0
      %v4812 = vsel %vm266, %v4647, 0
      %v4815 = vsel %vm266, %v4648, 0
      %v4818 = vsel %vm266, %v4649, 0
      %v4821 = vsel %vm266, %v4650, 0
      %v4824 = vsel %vm266, %v4651, 0
      %v4827 = vsel %vm266, %v4652, 0
      %v4830 = vsel %vm266, %v4653, 0
      %v4833 = vsel %vm266, %v4654, 0
      %v4836 = vsel %vm266, %v4655, 0
      %v4839 = vsel %vm266, %v4656, 0
      %v4842 = vsel %vm266, %v4657, 0
      %v4845 = vsel %vm266, %v4658, 0
      %v4848 = vsel %vm266, %v4659, 0
      %v4851 = vsel %vm266, %v4660, 0
      %v4854 = vsel %vm266, %v4661, 0
      %v4857 = vsel %vm266, %v4662, 0
      %v4860 = vsel %vm266, %v4663, 0
      %v4863 = vsel %vm266, %v4664, 0
      %v4866 = vsel %vm266, %v4665, 0
      %v4869 = vsel %vm266, %v4666, 0
      %v4872 = vsel %vm266, %v4667, 0
      %v4875 = vsel %vm266, %v4668, 0
      %v4878 = vsel %vm266, %v4669, 0
      %v4881 = vsel %vm266, %v4670, 0
      %v4884 = vsel %vm266, %v4671, 0
      %v4887 = vsel %vm266, %v4672, 0
      %v4890 = vsel %vm266, %v4673, 0
      %v4893 = vsel %vm266, %v4674, 0
      %v4896 = vsel %vm266, %v4675, 0
      %v4899 = vsel %vm266, %v4676, 0
      %v4902 = vsel %vm266, %v4677, 0
      %v4905 = vsel %vm266, %v4678, 0
      %v4908 = vsel %vm266, %v4679, 0
      %v4911 = vsel %vm266, %v4680, 0
      %v4914 = vsel %vm266, %v4681, 0
      %v4917 = vsel %vm266, %v4682, 0
      %v4920 = vsel %vm266, %v4683, 0
      %v4923 = vsel %vm266, %v4684, 0
      %v4926 = vsel %vm266, %v4685, 0
      %v4929 = vsel %vm266, %v4686, 0
      %v4932 = vsel %vm266, %v4687, 0
      %v4935 = vsel %vm266, %v4688, 0
      %v4938 = vsel %vm266, %v4689, 0
      %v4941 = vsel %vm266, %v4690, 0
      %v4944 = vsel %vm266, %v4691, 0
      %v4947 = vsel %vm266, %v4692, 0
      %v4950 = vsel %vm266, %v4693, 0
      %v4953 = vsel %vm266, %v4694, 0
      %v4956 = vsel %vm266, %v4695, 0
      %v4959 = vsel %vm266, %v4696, 0
      %v4962 = vsel %vm266, %v4697, 0
      %v4965 = vsel %vm266, %v4698, 0
      %v4968 = vsel %vm266, %v4699, 0
      %v4971 = vsel %vm266, %v4700, 0
      %v4974 = vsel %vm266, %v4701, 0
      %v4977 = vsel %vm266, %v4702, 0
      %4979 = vmatpush.msra.mxu0 0.0
      %4980 = vmatpush.msra.mxu0 0.0
      %4981 = vmatpush.msra.mxu0 0.0
      %4982 = vmatpush.msra.mxu0 0.0
      %4983 = vmatpush.msra.mxu0 0.0
      %4984 = vmatpush.msra.mxu0 0.0
      %4985 = vmatpush.msra.mxu0 0.0
      %4986 = vmatpush.msra.mxu0 0.0
      %4987 = vmatpush.msra.mxu0 0.0
      %4988 = vmatpush.msra.mxu0 0.0
      %4989 = vmatpush.msra.mxu0 0.0
      %4990 = vmatpush.msra.mxu0 0.0
      %4991 = vmatpush.msra.mxu0 0.0
      %4992 = vmatpush.msra.mxu0 %v545
      %4993 = vmatpush.msra.mxu0 %v172
      %4994 = vmatpush.msra.mxu0 %v171
      %4995 = vmatmul.f32.gmra.mxu0 %v4704
      %v4996 = vpop.f32.mrf.mxu0
      %v4997 = vadd.f32 0.0, %v4996
      %4998 = vmatmul.f32.gmra.mxu0 %v4707
      %v4999 = vpop.f32.mrf.mxu0
      %v5000 = vadd.f32 0.0, %v4999
      %5001 = vmatmul.f32.gmra.mxu0 %v4710
      %v5002 = vpop.f32.mrf.mxu0
      %v5003 = vadd.f32 0.0, %v5002
      %5004 = vmatmul.f32.gmra.mxu0 %v4713
      %v5005 = vpop.f32.mrf.mxu0
      %v5006 = vadd.f32 0.0, %v5005
      %5007 = vmatmul.f32.gmra.mxu0 %v4716
      %v5008 = vpop.f32.mrf.mxu0
      %v5009 = vadd.f32 0.0, %v5008
      %5010 = vmatmul.f32.gmra.mxu0 %v4719
      %v5011 = vpop.f32.mrf.mxu0
      %v5012 = vadd.f32 0.0, %v5011
      %5013 = vmatmul.f32.gmra.mxu0 %v4722
      %v5014 = vpop.f32.mrf.mxu0
      %v5015 = vadd.f32 0.0, %v5014
      %5016 = vmatmul.f32.gmra.mxu0 %v4725
      %v5017 = vpop.f32.mrf.mxu0
      %v5018 = vadd.f32 0.0, %v5017
      %5019 = vmatmul.f32.gmra.mxu0 %v4728
      %v5020 = vpop.f32.mrf.mxu0
      %v5021 = vadd.f32 0.0, %v5020
      %5022 = vmatmul.f32.gmra.mxu0 %v4731
      %v5023 = vpop.f32.mrf.mxu0
      %v5024 = vadd.f32 0.0, %v5023
      %5025 = vmatmul.f32.gmra.mxu0 %v4734
      %v5026 = vpop.f32.mrf.mxu0
      %v5027 = vadd.f32 0.0, %v5026
      %5028 = vmatmul.f32.gmra.mxu0 %v4737
      %v5029 = vpop.f32.mrf.mxu0
      %v5030 = vadd.f32 0.0, %v5029
      %5031 = vmatmul.f32.gmra.mxu0 %v4740
      %v5032 = vpop.f32.mrf.mxu0
      %v5033 = vadd.f32 0.0, %v5032
      %5034 = vmatmul.f32.gmra.mxu0 %v4743
      %v5035 = vpop.f32.mrf.mxu0
      %v5036 = vadd.f32 0.0, %v5035
      %5037 = vmatmul.f32.gmra.mxu0 %v4746
      %v5038 = vpop.f32.mrf.mxu0
      %v5039 = vadd.f32 0.0, %v5038
      %5040 = vmatmul.f32.gmra.mxu0 %v4749
      %v5041 = vpop.f32.mrf.mxu0
      %v5042 = vadd.f32 0.0, %v5041
      %5043 = vmatmul.f32.gmra.mxu0 %v4752
      %v5044 = vpop.f32.mrf.mxu0
      %v5045 = vadd.f32 0.0, %v5044
      %5046 = vmatmul.f32.gmra.mxu0 %v4755
      %v5047 = vpop.f32.mrf.mxu0
      %v5048 = vadd.f32 0.0, %v5047
      %5049 = vmatmul.f32.gmra.mxu0 %v4758
      %v5050 = vpop.f32.mrf.mxu0
      %v5051 = vadd.f32 0.0, %v5050
      %5052 = vmatmul.f32.gmra.mxu0 %v4761
      %v5053 = vpop.f32.mrf.mxu0
      %v5054 = vadd.f32 0.0, %v5053
      %5055 = vmatmul.f32.gmra.mxu0 %v4764
      %v5056 = vpop.f32.mrf.mxu0
      %v5057 = vadd.f32 0.0, %v5056
      %5058 = vmatmul.f32.gmra.mxu0 %v4767
      %v5059 = vpop.f32.mrf.mxu0
      %v5060 = vadd.f32 0.0, %v5059
      %5061 = vmatmul.f32.gmra.mxu0 %v4770
      %v5062 = vpop.f32.mrf.mxu0
      %v5063 = vadd.f32 0.0, %v5062
      %5064 = vmatmul.f32.gmra.mxu0 %v4773
      %v5065 = vpop.f32.mrf.mxu0
      %v5066 = vadd.f32 0.0, %v5065
      %5067 = vmatmul.f32.gmra.mxu0 %v4776
      %v5068 = vpop.f32.mrf.mxu0
      %v5069 = vadd.f32 0.0, %v5068
      %5070 = vmatmul.f32.gmra.mxu0 %v4779
      %v5071 = vpop.f32.mrf.mxu0
      %v5072 = vadd.f32 0.0, %v5071
      %5073 = vmatmul.f32.gmra.mxu0 %v4782
      %v5074 = vpop.f32.mrf.mxu0
      %v5075 = vadd.f32 0.0, %v5074
      %5076 = vmatmul.f32.gmra.mxu0 %v4785
      %v5077 = vpop.f32.mrf.mxu0
      %v5078 = vadd.f32 0.0, %v5077
      %5079 = vmatmul.f32.gmra.mxu0 %v4788
      %v5080 = vpop.f32.mrf.mxu0
      %v5081 = vadd.f32 0.0, %v5080
      %5082 = vmatmul.f32.gmra.mxu0 %v4791
      %v5083 = vpop.f32.mrf.mxu0
      %v5084 = vadd.f32 0.0, %v5083
      %5085 = vmatmul.f32.gmra.mxu0 %v4794
      %v5086 = vpop.f32.mrf.mxu0
      %v5087 = vadd.f32 0.0, %v5086
      %5088 = vmatmul.f32.gmra.mxu0 %v4797
      %v5089 = vpop.f32.mrf.mxu0
      %v5090 = vadd.f32 0.0, %v5089
      %5091 = vmatmul.f32.gmra.mxu0 %v4800
      %v5092 = vpop.f32.mrf.mxu0
      %v5093 = vadd.f32 0.0, %v5092
      %5094 = vmatmul.f32.gmra.mxu0 %v4803
      %v5095 = vpop.f32.mrf.mxu0
      %v5096 = vadd.f32 0.0, %v5095
      %5097 = vmatmul.f32.gmra.mxu0 %v4806
      %v5098 = vpop.f32.mrf.mxu0
      %v5099 = vadd.f32 0.0, %v5098
      %5100 = vmatmul.f32.gmra.mxu0 %v4809
      %v5101 = vpop.f32.mrf.mxu0
      %v5102 = vadd.f32 0.0, %v5101
      %5103 = vmatmul.f32.gmra.mxu0 %v4812
      %v5104 = vpop.f32.mrf.mxu0
      %v5105 = vadd.f32 0.0, %v5104
      %5106 = vmatmul.f32.gmra.mxu0 %v4815
      %v5107 = vpop.f32.mrf.mxu0
      %v5108 = vadd.f32 0.0, %v5107
      %5109 = vmatmul.f32.gmra.mxu0 %v4818
      %v5110 = vpop.f32.mrf.mxu0
      %v5111 = vadd.f32 0.0, %v5110
      %5112 = vmatmul.f32.gmra.mxu0 %v4821
      %v5113 = vpop.f32.mrf.mxu0
      %v5114 = vadd.f32 0.0, %v5113
      %5115 = vmatmul.f32.gmra.mxu0 %v4824
      %v5116 = vpop.f32.mrf.mxu0
      %v5117 = vadd.f32 0.0, %v5116
      %5118 = vmatmul.f32.gmra.mxu0 %v4827
      %v5119 = vpop.f32.mrf.mxu0
      %v5120 = vadd.f32 0.0, %v5119
      %5121 = vmatmul.f32.gmra.mxu0 %v4830
      %v5122 = vpop.f32.mrf.mxu0
      %v5123 = vadd.f32 0.0, %v5122
      %5124 = vmatmul.f32.gmra.mxu0 %v4833
      %v5125 = vpop.f32.mrf.mxu0
      %v5126 = vadd.f32 0.0, %v5125
      %5127 = vmatmul.f32.gmra.mxu0 %v4836
      %v5128 = vpop.f32.mrf.mxu0
      %v5129 = vadd.f32 0.0, %v5128
      %5130 = vmatmul.f32.gmra.mxu0 %v4839
      %v5131 = vpop.f32.mrf.mxu0
      %v5132 = vadd.f32 0.0, %v5131
      %5133 = vmatmul.f32.gmra.mxu0 %v4842
      %v5134 = vpop.f32.mrf.mxu0
      %v5135 = vadd.f32 0.0, %v5134
      %5136 = vmatmul.f32.gmra.mxu0 %v4845
      %v5137 = vpop.f32.mrf.mxu0
      %v5138 = vadd.f32 0.0, %v5137
      %5139 = vmatmul.f32.gmra.mxu0 %v4848
      %v5140 = vpop.f32.mrf.mxu0
      %v5141 = vadd.f32 0.0, %v5140
      %5142 = vmatmul.f32.gmra.mxu0 %v4851
      %v5143 = vpop.f32.mrf.mxu0
      %v5144 = vadd.f32 0.0, %v5143
      %5145 = vmatmul.f32.gmra.mxu0 %v4854
      %v5146 = vpop.f32.mrf.mxu0
      %v5147 = vadd.f32 0.0, %v5146
      %5148 = vmatmul.f32.gmra.mxu0 %v4857
      %v5149 = vpop.f32.mrf.mxu0
      %v5150 = vadd.f32 0.0, %v5149
      %5151 = vmatmul.f32.gmra.mxu0 %v4860
      %v5152 = vpop.f32.mrf.mxu0
      %v5153 = vadd.f32 0.0, %v5152
      %5154 = vmatmul.f32.gmra.mxu0 %v4863
      %v5155 = vpop.f32.mrf.mxu0
      %v5156 = vadd.f32 0.0, %v5155
      %5157 = vmatmul.f32.gmra.mxu0 %v4866
      %v5158 = vpop.f32.mrf.mxu0
      %v5159 = vadd.f32 0.0, %v5158
      %5160 = vmatmul.f32.gmra.mxu0 %v4869
      %v5161 = vpop.f32.mrf.mxu0
      %v5162 = vadd.f32 0.0, %v5161
      %5163 = vmatmul.f32.gmra.mxu0 %v4872
      %v5164 = vpop.f32.mrf.mxu0
      %v5165 = vadd.f32 0.0, %v5164
      %5166 = vmatmul.f32.gmra.mxu0 %v4875
      %v5167 = vpop.f32.mrf.mxu0
      %v5168 = vadd.f32 0.0, %v5167
      %5169 = vmatmul.f32.gmra.mxu0 %v4878
      %v5170 = vpop.f32.mrf.mxu0
      %v5171 = vadd.f32 0.0, %v5170
      %5172 = vmatmul.f32.gmra.mxu0 %v4881
      %v5173 = vpop.f32.mrf.mxu0
      %v5174 = vadd.f32 0.0, %v5173
      %5175 = vmatmul.f32.gmra.mxu0 %v4884
      %v5176 = vpop.f32.mrf.mxu0
      %v5177 = vadd.f32 0.0, %v5176
      %5178 = vmatmul.f32.gmra.mxu0 %v4887
      %v5179 = vpop.f32.mrf.mxu0
      %v5180 = vadd.f32 0.0, %v5179
      %5181 = vmatmul.f32.gmra.mxu0 %v4890
      %v5182 = vpop.f32.mrf.mxu0
      %v5183 = vadd.f32 0.0, %v5182
      %5184 = vmatmul.f32.gmra.mxu0 %v4893
      %v5185 = vpop.f32.mrf.mxu0
      %v5186 = vadd.f32 0.0, %v5185
      %5187 = vmatmul.f32.gmra.mxu0 %v4896
      %v5188 = vpop.f32.mrf.mxu0
      %v5189 = vadd.f32 0.0, %v5188
      %5190 = vmatmul.f32.gmra.mxu0 %v4899
      %v5191 = vpop.f32.mrf.mxu0
      %v5192 = vadd.f32 0.0, %v5191
      %5193 = vmatmul.f32.gmra.mxu0 %v4902
      %v5194 = vpop.f32.mrf.mxu0
      %v5195 = vadd.f32 0.0, %v5194
      %5196 = vmatmul.f32.gmra.mxu0 %v4905
      %v5197 = vpop.f32.mrf.mxu0
      %v5198 = vadd.f32 0.0, %v5197
      %5199 = vmatmul.f32.gmra.mxu0 %v4908
      %v5200 = vpop.f32.mrf.mxu0
      %v5201 = vadd.f32 0.0, %v5200
      %5202 = vmatmul.f32.gmra.mxu0 %v4911
      %v5203 = vpop.f32.mrf.mxu0
      %v5204 = vadd.f32 0.0, %v5203
      %5205 = vmatmul.f32.gmra.mxu0 %v4914
      %v5206 = vpop.f32.mrf.mxu0
      %v5207 = vadd.f32 0.0, %v5206
      %5208 = vmatmul.f32.gmra.mxu0 %v4917
      %v5209 = vpop.f32.mrf.mxu0
      %v5210 = vadd.f32 0.0, %v5209
      %5211 = vmatmul.f32.gmra.mxu0 %v4920
      %v5212 = vpop.f32.mrf.mxu0
      %v5213 = vadd.f32 0.0, %v5212
      %5214 = vmatmul.f32.gmra.mxu0 %v4923
      %v5215 = vpop.f32.mrf.mxu0
      %v5216 = vadd.f32 0.0, %v5215
      %5217 = vmatmul.f32.gmra.mxu0 %v4926
      %v5218 = vpop.f32.mrf.mxu0
      %v5219 = vadd.f32 0.0, %v5218
      %5220 = vmatmul.f32.gmra.mxu0 %v4929
      %v5221 = vpop.f32.mrf.mxu0
      %v5222 = vadd.f32 0.0, %v5221
      %5223 = vmatmul.f32.gmra.mxu0 %v4932
      %v5224 = vpop.f32.mrf.mxu0
      %v5225 = vadd.f32 0.0, %v5224
      %5226 = vmatmul.f32.gmra.mxu0 %v4935
      %v5227 = vpop.f32.mrf.mxu0
      %v5228 = vadd.f32 0.0, %v5227
      %5229 = vmatmul.f32.gmra.mxu0 %v4938
      %v5230 = vpop.f32.mrf.mxu0
      %v5231 = vadd.f32 0.0, %v5230
      %5232 = vmatmul.f32.gmra.mxu0 %v4941
      %v5233 = vpop.f32.mrf.mxu0
      %v5234 = vadd.f32 0.0, %v5233
      %5235 = vmatmul.f32.gmra.mxu0 %v4944
      %v5236 = vpop.f32.mrf.mxu0
      %v5237 = vadd.f32 0.0, %v5236
      %5238 = vmatmul.f32.gmra.mxu0 %v4947
      %v5239 = vpop.f32.mrf.mxu0
      %v5240 = vadd.f32 0.0, %v5239
      %5241 = vmatmul.f32.gmra.mxu0 %v4950
      %v5242 = vpop.f32.mrf.mxu0
      %v5243 = vadd.f32 0.0, %v5242
      %5244 = vmatmul.f32.gmra.mxu0 %v4953
      %v5245 = vpop.f32.mrf.mxu0
      %v5246 = vadd.f32 0.0, %v5245
      %5247 = vmatmul.f32.gmra.mxu0 %v4956
      %v5248 = vpop.f32.mrf.mxu0
      %v5249 = vadd.f32 0.0, %v5248
      %5250 = vmatmul.f32.gmra.mxu0 %v4959
      %v5251 = vpop.f32.mrf.mxu0
      %v5252 = vadd.f32 0.0, %v5251
      %5253 = vmatmul.f32.gmra.mxu0 %v4962
      %v5254 = vpop.f32.mrf.mxu0
      %v5255 = vadd.f32 0.0, %v5254
      %5256 = vmatmul.f32.gmra.mxu0 %v4965
      %v5257 = vpop.f32.mrf.mxu0
      %v5258 = vadd.f32 0.0, %v5257
      %5259 = vmatmul.f32.gmra.mxu0 %v4968
      %v5260 = vpop.f32.mrf.mxu0
      %v5261 = vadd.f32 0.0, %v5260
      %5262 = vmatmul.f32.gmra.mxu0 %v4971
      %v5263 = vpop.f32.mrf.mxu0
      %v5264 = vadd.f32 0.0, %v5263
      %5265 = vmatmul.f32.gmra.mxu0 %v4974
      %v5266 = vpop.f32.mrf.mxu0
      %v5267 = vadd.f32 0.0, %v5266
      %5268 = vmatmul.f32.gmra.mxu0 %v4977
      %v5269 = vpop.f32.mrf.mxu0
      %v5270 = vadd.f32 0.0, %v5269
      %5271 = vdwg.mxu0
      %v5272 = vmax.f32 %v4518, %v4997
      %v5273 = vmax.f32 %v4519, %v5000
      %v5274 = vmax.f32 %v4520, %v5003
      %v5275 = vmax.f32 %v4521, %v5006
      %v5276 = vmax.f32 %v4522, %v5009
      %v5277 = vmax.f32 %v4523, %v5012
      %v5278 = vmax.f32 %v4524, %v5015
      %v5279 = vmax.f32 %v4525, %v5018
      %v5280 = vmax.f32 %v4526, %v5021
      %v5281 = vmax.f32 %v4527, %v5024
      %v5282 = vmax.f32 %v4528, %v5027
      %v5283 = vmax.f32 %v4529, %v5030
      %v5284 = vmax.f32 %v4530, %v5033
      %v5285 = vmax.f32 %v4531, %v5036
      %v5286 = vmax.f32 %v4532, %v5039
      %v5287 = vmax.f32 %v4533, %v5042
      %v5288 = vmax.f32 %v4534, %v5045
      %v5289 = vmax.f32 %v4535, %v5048
      %v5290 = vmax.f32 %v4536, %v5051
      %v5291 = vmax.f32 %v4537, %v5054
      %v5292 = vmax.f32 %v4538, %v5057
      %v5293 = vmax.f32 %v4539, %v5060
      %v5294 = vmax.f32 %v4540, %v5063
      %v5295 = vmax.f32 %v4541, %v5066
      %v5296 = vmax.f32 %v4542, %v5069
      %v5297 = vmax.f32 %v4543, %v5072
      %v5298 = vmax.f32 %v4544, %v5075
      %v5299 = vmax.f32 %v4545, %v5078
      %v5300 = vmax.f32 %v4546, %v5081
      %v5301 = vmax.f32 %v4547, %v5084
      %v5302 = vmax.f32 %v4548, %v5087
      %v5303 = vmax.f32 %v4549, %v5090
      %v5304 = vmax.f32 %v4550, %v5093
      %v5305 = vmax.f32 %v4551, %v5096
      %v5306 = vmax.f32 %v4552, %v5099
      %v5307 = vmax.f32 %v4553, %v5102
      %v5308 = vmax.f32 %v4554, %v5105
      %v5309 = vmax.f32 %v4555, %v5108
      %v5310 = vmax.f32 %v4556, %v5111
      %v5311 = vmax.f32 %v4557, %v5114
      %v5312 = vmax.f32 %v4558, %v5117
      %v5313 = vmax.f32 %v4559, %v5120
      %v5314 = vmax.f32 %v4560, %v5123
      %v5315 = vmax.f32 %v4561, %v5126
      %v5316 = vmax.f32 %v4562, %v5129
      %v5317 = vmax.f32 %v4563, %v5132
      %v5318 = vmax.f32 %v4564, %v5135
      %v5319 = vmax.f32 %v4565, %v5138
      %v5320 = vmax.f32 %v4566, %v5141
      %v5321 = vmax.f32 %v4567, %v5144
      %v5322 = vmax.f32 %v4568, %v5147
      %v5323 = vmax.f32 %v4569, %v5150
      %v5324 = vmax.f32 %v4570, %v5153
      %v5325 = vmax.f32 %v4571, %v5156
      %v5326 = vmax.f32 %v4572, %v5159
      %v5327 = vmax.f32 %v4573, %v5162
      %v5328 = vmax.f32 %v4574, %v5165
      %v5329 = vmax.f32 %v4575, %v5168
      %v5330 = vmax.f32 %v4576, %v5171
      %v5331 = vmax.f32 %v4577, %v5174
      %v5332 = vmax.f32 %v4578, %v5177
      %v5333 = vmax.f32 %v4579, %v5180
      %v5334 = vmax.f32 %v4580, %v5183
      %v5335 = vmax.f32 %v4581, %v5186
      %v5336 = vmax.f32 %v4582, %v5189
      %v5337 = vmax.f32 %v4583, %v5192
      %v5338 = vmax.f32 %v4584, %v5195
      %v5339 = vmax.f32 %v4585, %v5198
      %v5340 = vmax.f32 %v4586, %v5201
      %v5341 = vmax.f32 %v4587, %v5204
      %v5342 = vmax.f32 %v4588, %v5207
      %v5343 = vmax.f32 %v4589, %v5210
      %v5344 = vmax.f32 %v4590, %v5213
      %v5345 = vmax.f32 %v4591, %v5216
      %v5346 = vmax.f32 %v4592, %v5219
      %v5347 = vmax.f32 %v4593, %v5222
      %v5348 = vmax.f32 %v4594, %v5225
      %v5349 = vmax.f32 %v4595, %v5228
      %v5350 = vmax.f32 %v4596, %v5231
      %v5351 = vmax.f32 %v4597, %v5234
      %v5352 = vmax.f32 %v4598, %v5237
      %v5353 = vmax.f32 %v4599, %v5240
      %v5354 = vmax.f32 %v4600, %v5243
      %v5355 = vmax.f32 %v4601, %v5246
      %v5356 = vmax.f32 %v4602, %v5249
      %v5357 = vmax.f32 %v4603, %v5252
      %v5358 = vmax.f32 %v4604, %v5255
      %v5359 = vmax.f32 %v4605, %v5258
      %v5360 = vmax.f32 %v4606, %v5261
      %v5361 = vmax.f32 %v4607, %v5264
      %v5362 = vmax.f32 %v4608, %v5267
      %v5363 = vmax.f32 %v4609, %v5270
      %s5364 = scalar_lea.vmem %s165, 5152
      %v5365 = vld [vmem:[%s5364] sm:$0xff]
      %v5366 = vld [vmem:[%s5364 + $0x8] sm:$0xff]
      %v5367 = vld [vmem:[%s5364 + $0x10] sm:$0xff]
      %v5368 = vld [vmem:[%s5364 + $0x18] sm:$0xff]
      %v5369 = vld [vmem:[%s5364 + $0x20] sm:$0xff]
      %v5370 = vld [vmem:[%s5364 + $0x28] sm:$0xff]
      %v5371 = vld [vmem:[%s5364 + $0x30] sm:$0xff]
      %v5372 = vld [vmem:[%s5364 + $0x38] sm:$0xff]
      %v5373 = vld [vmem:[%s5364 + $0x40] sm:$0xff]
      %v5374 = vld [vmem:[%s5364 + $0x48] sm:$0xff]
      %v5375 = vld [vmem:[%s5364 + $0x50] sm:$0xff]
      %v5376 = vld [vmem:[%s5364 + $0x58] sm:$0xff]
      %v5377 = vld [vmem:[%s5364 + $0x60] sm:$0xff]
      %v5378 = vld [vmem:[%s5364 + $0x68] sm:$0xff]
      %v5379 = vld [vmem:[%s5364 + $0x70] sm:$0xff]
      %v5380 = vld [vmem:[%s5364 + $0x78] sm:$0xff]
      %v5381 = vld [vmem:[%s5364 + $0x80] sm:$0xff]
      %v5382 = vld [vmem:[%s5364 + $0x88] sm:$0xff]
      %v5383 = vld [vmem:[%s5364 + $0x90] sm:$0xff]
      %v5384 = vld [vmem:[%s5364 + $0x98] sm:$0xff]
      %v5385 = vld [vmem:[%s5364 + $0xa0] sm:$0xff]
      %v5386 = vld [vmem:[%s5364 + $0xa8] sm:$0xff]
      %v5387 = vld [vmem:[%s5364 + $0xb0] sm:$0xff]
      %v5388 = vld [vmem:[%s5364 + $0xb8] sm:$0xff]
      %v5389 = vld [vmem:[%s5364 + $0xc0] sm:$0xff]
      %v5390 = vld [vmem:[%s5364 + $0xc8] sm:$0xff]
      %v5391 = vld [vmem:[%s5364 + $0xd0] sm:$0xff]
      %v5392 = vld [vmem:[%s5364 + $0xd8] sm:$0xff]
      %v5393 = vld [vmem:[%s5364 + $0xe0] sm:$0xff]
      %v5394 = vld [vmem:[%s5364 + $0xe8] sm:$0xff]
      %v5395 = vld [vmem:[%s5364 + $0xf0] sm:$0xff]
      %v5396 = vld [vmem:[%s5364 + $0xf8] sm:$0xff]
      %v5397 = vld [vmem:[%s5364 + $0x100] sm:$0xff]
      %v5398 = vld [vmem:[%s5364 + $0x108] sm:$0xff]
      %v5399 = vld [vmem:[%s5364 + $0x110] sm:$0xff]
      %v5400 = vld [vmem:[%s5364 + $0x118] sm:$0xff]
      %v5401 = vld [vmem:[%s5364 + $0x120] sm:$0xff]
      %v5402 = vld [vmem:[%s5364 + $0x128] sm:$0xff]
      %v5403 = vld [vmem:[%s5364 + $0x130] sm:$0xff]
      %v5404 = vld [vmem:[%s5364 + $0x138] sm:$0xff]
      %v5405 = vld [vmem:[%s5364 + $0x140] sm:$0xff]
      %v5406 = vld [vmem:[%s5364 + $0x148] sm:$0xff]
      %v5407 = vld [vmem:[%s5364 + $0x150] sm:$0xff]
      %v5408 = vld [vmem:[%s5364 + $0x158] sm:$0xff]
      %v5409 = vld [vmem:[%s5364 + $0x160] sm:$0xff]
      %v5410 = vld [vmem:[%s5364 + $0x168] sm:$0xff]
      %v5411 = vld [vmem:[%s5364 + $0x170] sm:$0xff]
      %v5412 = vld [vmem:[%s5364 + $0x178] sm:$0xff]
      %v5413 = vld [vmem:[%s5364 + $0x180] sm:$0xff]
      %v5414 = vld [vmem:[%s5364 + $0x188] sm:$0xff]
      %v5415 = vld [vmem:[%s5364 + $0x190] sm:$0xff]
      %v5416 = vld [vmem:[%s5364 + $0x198] sm:$0xff]
      %v5417 = vld [vmem:[%s5364 + $0x1a0] sm:$0xff]
      %v5418 = vld [vmem:[%s5364 + $0x1a8] sm:$0xff]
      %v5419 = vld [vmem:[%s5364 + $0x1b0] sm:$0xff]
      %v5420 = vld [vmem:[%s5364 + $0x1b8] sm:$0xff]
      %v5421 = vld [vmem:[%s5364 + $0x1c0] sm:$0xff]
      %v5422 = vld [vmem:[%s5364 + $0x1c8] sm:$0xff]
      %v5423 = vld [vmem:[%s5364 + $0x1d0] sm:$0xff]
      %v5424 = vld [vmem:[%s5364 + $0x1d8] sm:$0xff]
      %v5425 = vld [vmem:[%s5364 + $0x1e0] sm:$0xff]
      %v5426 = vld [vmem:[%s5364 + $0x1e8] sm:$0xff]
      %v5427 = vld [vmem:[%s5364 + $0x1f0] sm:$0xff]
      %v5428 = vld [vmem:[%s5364 + $0x1f8] sm:$0xff]
      %v5429 = vld [vmem:[%s5364 + $0x200] sm:$0xff]
      %v5430 = vld [vmem:[%s5364 + $0x208] sm:$0xff]
      %v5431 = vld [vmem:[%s5364 + $0x210] sm:$0xff]
      %v5432 = vld [vmem:[%s5364 + $0x218] sm:$0xff]
      %v5433 = vld [vmem:[%s5364 + $0x220] sm:$0xff]
      %v5434 = vld [vmem:[%s5364 + $0x228] sm:$0xff]
      %v5435 = vld [vmem:[%s5364 + $0x230] sm:$0xff]
      %v5436 = vld [vmem:[%s5364 + $0x238] sm:$0xff]
      %v5437 = vld [vmem:[%s5364 + $0x240] sm:$0xff]
      %v5438 = vld [vmem:[%s5364 + $0x248] sm:$0xff]
      %v5439 = vld [vmem:[%s5364 + $0x250] sm:$0xff]
      %v5440 = vld [vmem:[%s5364 + $0x258] sm:$0xff]
      %v5441 = vld [vmem:[%s5364 + $0x260] sm:$0xff]
      %v5442 = vld [vmem:[%s5364 + $0x268] sm:$0xff]
      %v5443 = vld [vmem:[%s5364 + $0x270] sm:$0xff]
      %v5444 = vld [vmem:[%s5364 + $0x278] sm:$0xff]
      %v5445 = vld [vmem:[%s5364 + $0x280] sm:$0xff]
      %v5446 = vld [vmem:[%s5364 + $0x288] sm:$0xff]
      %v5447 = vld [vmem:[%s5364 + $0x290] sm:$0xff]
      %v5448 = vld [vmem:[%s5364 + $0x298] sm:$0xff]
      %v5449 = vld [vmem:[%s5364 + $0x2a0] sm:$0xff]
      %v5450 = vld [vmem:[%s5364 + $0x2a8] sm:$0xff]
      %v5451 = vld [vmem:[%s5364 + $0x2b0] sm:$0xff]
      %v5452 = vld [vmem:[%s5364 + $0x2b8] sm:$0xff]
      %v5453 = vld [vmem:[%s5364 + $0x2c0] sm:$0xff]
      %v5454 = vld [vmem:[%s5364 + $0x2c8] sm:$0xff]
      %v5455 = vld [vmem:[%s5364 + $0x2d0] sm:$0xff]
      %v5456 = vld [vmem:[%s5364 + $0x2d8] sm:$0x1]
      %v5458 = vsel %vm266, %v5365, 0
      %v5461 = vsel %vm266, %v5366, 0
      %v5464 = vsel %vm266, %v5367, 0
      %v5467 = vsel %vm266, %v5368, 0
      %v5470 = vsel %vm266, %v5369, 0
      %v5473 = vsel %vm266, %v5370, 0
      %v5476 = vsel %vm266, %v5371, 0
      %v5479 = vsel %vm266, %v5372, 0
      %v5482 = vsel %vm266, %v5373, 0
      %v5485 = vsel %vm266, %v5374, 0
      %v5488 = vsel %vm266, %v5375, 0
      %v5491 = vsel %vm266, %v5376, 0
      %v5494 = vsel %vm266, %v5377, 0
      %v5497 = vsel %vm266, %v5378, 0
      %v5500 = vsel %vm266, %v5379, 0
      %v5503 = vsel %vm266, %v5380, 0
      %v5506 = vsel %vm266, %v5381, 0
      %v5509 = vsel %vm266, %v5382, 0
      %v5512 = vsel %vm266, %v5383, 0
      %v5515 = vsel %vm266, %v5384, 0
      %v5518 = vsel %vm266, %v5385, 0
      %v5521 = vsel %vm266, %v5386, 0
      %v5524 = vsel %vm266, %v5387, 0
      %v5527 = vsel %vm266, %v5388, 0
      %v5530 = vsel %vm266, %v5389, 0
      %v5533 = vsel %vm266, %v5390, 0
      %v5536 = vsel %vm266, %v5391, 0
      %v5539 = vsel %vm266, %v5392, 0
      %v5542 = vsel %vm266, %v5393, 0
      %v5545 = vsel %vm266, %v5394, 0
      %v5548 = vsel %vm266, %v5395, 0
      %v5551 = vsel %vm266, %v5396, 0
      %v5554 = vsel %vm266, %v5397, 0
      %v5557 = vsel %vm266, %v5398, 0
      %v5560 = vsel %vm266, %v5399, 0
      %v5563 = vsel %vm266, %v5400, 0
      %v5566 = vsel %vm266, %v5401, 0
      %v5569 = vsel %vm266, %v5402, 0
      %v5572 = vsel %vm266, %v5403, 0
      %v5575 = vsel %vm266, %v5404, 0
      %v5578 = vsel %vm266, %v5405, 0
      %v5581 = vsel %vm266, %v5406, 0
      %v5584 = vsel %vm266, %v5407, 0
      %v5587 = vsel %vm266, %v5408, 0
      %v5590 = vsel %vm266, %v5409, 0
      %v5593 = vsel %vm266, %v5410, 0
      %v5596 = vsel %vm266, %v5411, 0
      %v5599 = vsel %vm266, %v5412, 0
      %v5602 = vsel %vm266, %v5413, 0
      %v5605 = vsel %vm266, %v5414, 0
      %v5608 = vsel %vm266, %v5415, 0
      %v5611 = vsel %vm266, %v5416, 0
      %v5614 = vsel %vm266, %v5417, 0
      %v5617 = vsel %vm266, %v5418, 0
      %v5620 = vsel %vm266, %v5419, 0
      %v5623 = vsel %vm266, %v5420, 0
      %v5626 = vsel %vm266, %v5421, 0
      %v5629 = vsel %vm266, %v5422, 0
      %v5632 = vsel %vm266, %v5423, 0
      %v5635 = vsel %vm266, %v5424, 0
      %v5638 = vsel %vm266, %v5425, 0
      %v5641 = vsel %vm266, %v5426, 0
      %v5644 = vsel %vm266, %v5427, 0
      %v5647 = vsel %vm266, %v5428, 0
      %v5650 = vsel %vm266, %v5429, 0
      %v5653 = vsel %vm266, %v5430, 0
      %v5656 = vsel %vm266, %v5431, 0
      %v5659 = vsel %vm266, %v5432, 0
      %v5662 = vsel %vm266, %v5433, 0
      %v5665 = vsel %vm266, %v5434, 0
      %v5668 = vsel %vm266, %v5435, 0
      %v5671 = vsel %vm266, %v5436, 0
      %v5674 = vsel %vm266, %v5437, 0
      %v5677 = vsel %vm266, %v5438, 0
      %v5680 = vsel %vm266, %v5439, 0
      %v5683 = vsel %vm266, %v5440, 0
      %v5686 = vsel %vm266, %v5441, 0
      %v5689 = vsel %vm266, %v5442, 0
      %v5692 = vsel %vm266, %v5443, 0
      %v5695 = vsel %vm266, %v5444, 0
      %v5698 = vsel %vm266, %v5445, 0
      %v5701 = vsel %vm266, %v5446, 0
      %v5704 = vsel %vm266, %v5447, 0
      %v5707 = vsel %vm266, %v5448, 0
      %v5710 = vsel %vm266, %v5449, 0
      %v5713 = vsel %vm266, %v5450, 0
      %v5716 = vsel %vm266, %v5451, 0
      %v5719 = vsel %vm266, %v5452, 0
      %v5722 = vsel %vm266, %v5453, 0
      %v5725 = vsel %vm266, %v5454, 0
      %v5728 = vsel %vm266, %v5455, 0
      %v5731 = vsel %vm266, %v5456, 0
      %5733 = vmatpush.msra.mxu0 0.0
      %5734 = vmatpush.msra.mxu0 0.0
      %5735 = vmatpush.msra.mxu0 0.0
      %5736 = vmatpush.msra.mxu0 0.0
      %5737 = vmatpush.msra.mxu0 0.0
      %5738 = vmatpush.msra.mxu0 0.0
      %5739 = vmatpush.msra.mxu0 0.0
      %5740 = vmatpush.msra.mxu0 0.0
      %5741 = vmatpush.msra.mxu0 0.0
      %5742 = vmatpush.msra.mxu0 0.0
      %5743 = vmatpush.msra.mxu0 0.0
      %5744 = vmatpush.msra.mxu0 0.0
      %5745 = vmatpush.msra.mxu0 0.0
      %5746 = vmatpush.msra.mxu0 %v545
      %5747 = vmatpush.msra.mxu0 %v172
      %5748 = vmatpush.msra.mxu0 %v171
      %5749 = vmatmul.f32.gmra.mxu0 %v5458
      %v5750 = vpop.f32.mrf.mxu0
      %v5751 = vadd.f32 0.0, %v5750
      %5752 = vmatmul.f32.gmra.mxu0 %v5461
      %v5753 = vpop.f32.mrf.mxu0
      %v5754 = vadd.f32 0.0, %v5753
      %5755 = vmatmul.f32.gmra.mxu0 %v5464
      %v5756 = vpop.f32.mrf.mxu0
      %v5757 = vadd.f32 0.0, %v5756
      %5758 = vmatmul.f32.gmra.mxu0 %v5467
      %v5759 = vpop.f32.mrf.mxu0
      %v5760 = vadd.f32 0.0, %v5759
      %5761 = vmatmul.f32.gmra.mxu0 %v5470
      %v5762 = vpop.f32.mrf.mxu0
      %v5763 = vadd.f32 0.0, %v5762
      %5764 = vmatmul.f32.gmra.mxu0 %v5473
      %v5765 = vpop.f32.mrf.mxu0
      %v5766 = vadd.f32 0.0, %v5765
      %5767 = vmatmul.f32.gmra.mxu0 %v5476
      %v5768 = vpop.f32.mrf.mxu0
      %v5769 = vadd.f32 0.0, %v5768
      %5770 = vmatmul.f32.gmra.mxu0 %v5479
      %v5771 = vpop.f32.mrf.mxu0
      %v5772 = vadd.f32 0.0, %v5771
      %5773 = vmatmul.f32.gmra.mxu0 %v5482
      %v5774 = vpop.f32.mrf.mxu0
      %v5775 = vadd.f32 0.0, %v5774
      %5776 = vmatmul.f32.gmra.mxu0 %v5485
      %v5777 = vpop.f32.mrf.mxu0
      %v5778 = vadd.f32 0.0, %v5777
      %5779 = vmatmul.f32.gmra.mxu0 %v5488
      %v5780 = vpop.f32.mrf.mxu0
      %v5781 = vadd.f32 0.0, %v5780
      %5782 = vmatmul.f32.gmra.mxu0 %v5491
      %v5783 = vpop.f32.mrf.mxu0
      %v5784 = vadd.f32 0.0, %v5783
      %5785 = vmatmul.f32.gmra.mxu0 %v5494
      %v5786 = vpop.f32.mrf.mxu0
      %v5787 = vadd.f32 0.0, %v5786
      %5788 = vmatmul.f32.gmra.mxu0 %v5497
      %v5789 = vpop.f32.mrf.mxu0
      %v5790 = vadd.f32 0.0, %v5789
      %5791 = vmatmul.f32.gmra.mxu0 %v5500
      %v5792 = vpop.f32.mrf.mxu0
      %v5793 = vadd.f32 0.0, %v5792
      %5794 = vmatmul.f32.gmra.mxu0 %v5503
      %v5795 = vpop.f32.mrf.mxu0
      %v5796 = vadd.f32 0.0, %v5795
      %5797 = vmatmul.f32.gmra.mxu0 %v5506
      %v5798 = vpop.f32.mrf.mxu0
      %v5799 = vadd.f32 0.0, %v5798
      %5800 = vmatmul.f32.gmra.mxu0 %v5509
      %v5801 = vpop.f32.mrf.mxu0
      %v5802 = vadd.f32 0.0, %v5801
      %5803 = vmatmul.f32.gmra.mxu0 %v5512
      %v5804 = vpop.f32.mrf.mxu0
      %v5805 = vadd.f32 0.0, %v5804
      %5806 = vmatmul.f32.gmra.mxu0 %v5515
      %v5807 = vpop.f32.mrf.mxu0
      %v5808 = vadd.f32 0.0, %v5807
      %5809 = vmatmul.f32.gmra.mxu0 %v5518
      %v5810 = vpop.f32.mrf.mxu0
      %v5811 = vadd.f32 0.0, %v5810
      %5812 = vmatmul.f32.gmra.mxu0 %v5521
      %v5813 = vpop.f32.mrf.mxu0
      %v5814 = vadd.f32 0.0, %v5813
      %5815 = vmatmul.f32.gmra.mxu0 %v5524
      %v5816 = vpop.f32.mrf.mxu0
      %v5817 = vadd.f32 0.0, %v5816
      %5818 = vmatmul.f32.gmra.mxu0 %v5527
      %v5819 = vpop.f32.mrf.mxu0
      %v5820 = vadd.f32 0.0, %v5819
      %5821 = vmatmul.f32.gmra.mxu0 %v5530
      %v5822 = vpop.f32.mrf.mxu0
      %v5823 = vadd.f32 0.0, %v5822
      %5824 = vmatmul.f32.gmra.mxu0 %v5533
      %v5825 = vpop.f32.mrf.mxu0
      %v5826 = vadd.f32 0.0, %v5825
      %5827 = vmatmul.f32.gmra.mxu0 %v5536
      %v5828 = vpop.f32.mrf.mxu0
      %v5829 = vadd.f32 0.0, %v5828
      %5830 = vmatmul.f32.gmra.mxu0 %v5539
      %v5831 = vpop.f32.mrf.mxu0
      %v5832 = vadd.f32 0.0, %v5831
      %5833 = vmatmul.f32.gmra.mxu0 %v5542
      %v5834 = vpop.f32.mrf.mxu0
      %v5835 = vadd.f32 0.0, %v5834
      %5836 = vmatmul.f32.gmra.mxu0 %v5545
      %v5837 = vpop.f32.mrf.mxu0
      %v5838 = vadd.f32 0.0, %v5837
      %5839 = vmatmul.f32.gmra.mxu0 %v5548
      %v5840 = vpop.f32.mrf.mxu0
      %v5841 = vadd.f32 0.0, %v5840
      %5842 = vmatmul.f32.gmra.mxu0 %v5551
      %v5843 = vpop.f32.mrf.mxu0
      %v5844 = vadd.f32 0.0, %v5843
      %5845 = vmatmul.f32.gmra.mxu0 %v5554
      %v5846 = vpop.f32.mrf.mxu0
      %v5847 = vadd.f32 0.0, %v5846
      %5848 = vmatmul.f32.gmra.mxu0 %v5557
      %v5849 = vpop.f32.mrf.mxu0
      %v5850 = vadd.f32 0.0, %v5849
      %5851 = vmatmul.f32.gmra.mxu0 %v5560
      %v5852 = vpop.f32.mrf.mxu0
      %v5853 = vadd.f32 0.0, %v5852
      %5854 = vmatmul.f32.gmra.mxu0 %v5563
      %v5855 = vpop.f32.mrf.mxu0
      %v5856 = vadd.f32 0.0, %v5855
      %5857 = vmatmul.f32.gmra.mxu0 %v5566
      %v5858 = vpop.f32.mrf.mxu0
      %v5859 = vadd.f32 0.0, %v5858
      %5860 = vmatmul.f32.gmra.mxu0 %v5569
      %v5861 = vpop.f32.mrf.mxu0
      %v5862 = vadd.f32 0.0, %v5861
      %5863 = vmatmul.f32.gmra.mxu0 %v5572
      %v5864 = vpop.f32.mrf.mxu0
      %v5865 = vadd.f32 0.0, %v5864
      %5866 = vmatmul.f32.gmra.mxu0 %v5575
      %v5867 = vpop.f32.mrf.mxu0
      %v5868 = vadd.f32 0.0, %v5867
      %5869 = vmatmul.f32.gmra.mxu0 %v5578
      %v5870 = vpop.f32.mrf.mxu0
      %v5871 = vadd.f32 0.0, %v5870
      %5872 = vmatmul.f32.gmra.mxu0 %v5581
      %v5873 = vpop.f32.mrf.mxu0
      %v5874 = vadd.f32 0.0, %v5873
      %5875 = vmatmul.f32.gmra.mxu0 %v5584
      %v5876 = vpop.f32.mrf.mxu0
      %v5877 = vadd.f32 0.0, %v5876
      %5878 = vmatmul.f32.gmra.mxu0 %v5587
      %v5879 = vpop.f32.mrf.mxu0
      %v5880 = vadd.f32 0.0, %v5879
      %5881 = vmatmul.f32.gmra.mxu0 %v5590
      %v5882 = vpop.f32.mrf.mxu0
      %v5883 = vadd.f32 0.0, %v5882
      %5884 = vmatmul.f32.gmra.mxu0 %v5593
      %v5885 = vpop.f32.mrf.mxu0
      %v5886 = vadd.f32 0.0, %v5885
      %5887 = vmatmul.f32.gmra.mxu0 %v5596
      %v5888 = vpop.f32.mrf.mxu0
      %v5889 = vadd.f32 0.0, %v5888
      %5890 = vmatmul.f32.gmra.mxu0 %v5599
      %v5891 = vpop.f32.mrf.mxu0
      %v5892 = vadd.f32 0.0, %v5891
      %5893 = vmatmul.f32.gmra.mxu0 %v5602
      %v5894 = vpop.f32.mrf.mxu0
      %v5895 = vadd.f32 0.0, %v5894
      %5896 = vmatmul.f32.gmra.mxu0 %v5605
      %v5897 = vpop.f32.mrf.mxu0
      %v5898 = vadd.f32 0.0, %v5897
      %5899 = vmatmul.f32.gmra.mxu0 %v5608
      %v5900 = vpop.f32.mrf.mxu0
      %v5901 = vadd.f32 0.0, %v5900
      %5902 = vmatmul.f32.gmra.mxu0 %v5611
      %v5903 = vpop.f32.mrf.mxu0
      %v5904 = vadd.f32 0.0, %v5903
      %5905 = vmatmul.f32.gmra.mxu0 %v5614
      %v5906 = vpop.f32.mrf.mxu0
      %v5907 = vadd.f32 0.0, %v5906
      %5908 = vmatmul.f32.gmra.mxu0 %v5617
      %v5909 = vpop.f32.mrf.mxu0
      %v5910 = vadd.f32 0.0, %v5909
      %5911 = vmatmul.f32.gmra.mxu0 %v5620
      %v5912 = vpop.f32.mrf.mxu0
      %v5913 = vadd.f32 0.0, %v5912
      %5914 = vmatmul.f32.gmra.mxu0 %v5623
      %v5915 = vpop.f32.mrf.mxu0
      %v5916 = vadd.f32 0.0, %v5915
      %5917 = vmatmul.f32.gmra.mxu0 %v5626
      %v5918 = vpop.f32.mrf.mxu0
      %v5919 = vadd.f32 0.0, %v5918
      %5920 = vmatmul.f32.gmra.mxu0 %v5629
      %v5921 = vpop.f32.mrf.mxu0
      %v5922 = vadd.f32 0.0, %v5921
      %5923 = vmatmul.f32.gmra.mxu0 %v5632
      %v5924 = vpop.f32.mrf.mxu0
      %v5925 = vadd.f32 0.0, %v5924
      %5926 = vmatmul.f32.gmra.mxu0 %v5635
      %v5927 = vpop.f32.mrf.mxu0
      %v5928 = vadd.f32 0.0, %v5927
      %5929 = vmatmul.f32.gmra.mxu0 %v5638
      %v5930 = vpop.f32.mrf.mxu0
      %v5931 = vadd.f32 0.0, %v5930
      %5932 = vmatmul.f32.gmra.mxu0 %v5641
      %v5933 = vpop.f32.mrf.mxu0
      %v5934 = vadd.f32 0.0, %v5933
      %5935 = vmatmul.f32.gmra.mxu0 %v5644
      %v5936 = vpop.f32.mrf.mxu0
      %v5937 = vadd.f32 0.0, %v5936
      %5938 = vmatmul.f32.gmra.mxu0 %v5647
      %v5939 = vpop.f32.mrf.mxu0
      %v5940 = vadd.f32 0.0, %v5939
      %5941 = vmatmul.f32.gmra.mxu0 %v5650
      %v5942 = vpop.f32.mrf.mxu0
      %v5943 = vadd.f32 0.0, %v5942
      %5944 = vmatmul.f32.gmra.mxu0 %v5653
      %v5945 = vpop.f32.mrf.mxu0
      %v5946 = vadd.f32 0.0, %v5945
      %5947 = vmatmul.f32.gmra.mxu0 %v5656
      %v5948 = vpop.f32.mrf.mxu0
      %v5949 = vadd.f32 0.0, %v5948
      %5950 = vmatmul.f32.gmra.mxu0 %v5659
      %v5951 = vpop.f32.mrf.mxu0
      %v5952 = vadd.f32 0.0, %v5951
      %5953 = vmatmul.f32.gmra.mxu0 %v5662
      %v5954 = vpop.f32.mrf.mxu0
      %v5955 = vadd.f32 0.0, %v5954
      %5956 = vmatmul.f32.gmra.mxu0 %v5665
      %v5957 = vpop.f32.mrf.mxu0
      %v5958 = vadd.f32 0.0, %v5957
      %5959 = vmatmul.f32.gmra.mxu0 %v5668
      %v5960 = vpop.f32.mrf.mxu0
      %v5961 = vadd.f32 0.0, %v5960
      %5962 = vmatmul.f32.gmra.mxu0 %v5671
      %v5963 = vpop.f32.mrf.mxu0
      %v5964 = vadd.f32 0.0, %v5963
      %5965 = vmatmul.f32.gmra.mxu0 %v5674
      %v5966 = vpop.f32.mrf.mxu0
      %v5967 = vadd.f32 0.0, %v5966
      %5968 = vmatmul.f32.gmra.mxu0 %v5677
      %v5969 = vpop.f32.mrf.mxu0
      %v5970 = vadd.f32 0.0, %v5969
      %5971 = vmatmul.f32.gmra.mxu0 %v5680
      %v5972 = vpop.f32.mrf.mxu0
      %v5973 = vadd.f32 0.0, %v5972
      %5974 = vmatmul.f32.gmra.mxu0 %v5683
      %v5975 = vpop.f32.mrf.mxu0
      %v5976 = vadd.f32 0.0, %v5975
      %5977 = vmatmul.f32.gmra.mxu0 %v5686
      %v5978 = vpop.f32.mrf.mxu0
      %v5979 = vadd.f32 0.0, %v5978
      %5980 = vmatmul.f32.gmra.mxu0 %v5689
      %v5981 = vpop.f32.mrf.mxu0
      %v5982 = vadd.f32 0.0, %v5981
      %5983 = vmatmul.f32.gmra.mxu0 %v5692
      %v5984 = vpop.f32.mrf.mxu0
      %v5985 = vadd.f32 0.0, %v5984
      %5986 = vmatmul.f32.gmra.mxu0 %v5695
      %v5987 = vpop.f32.mrf.mxu0
      %v5988 = vadd.f32 0.0, %v5987
      %5989 = vmatmul.f32.gmra.mxu0 %v5698
      %v5990 = vpop.f32.mrf.mxu0
      %v5991 = vadd.f32 0.0, %v5990
      %5992 = vmatmul.f32.gmra.mxu0 %v5701
      %v5993 = vpop.f32.mrf.mxu0
      %v5994 = vadd.f32 0.0, %v5993
      %5995 = vmatmul.f32.gmra.mxu0 %v5704
      %v5996 = vpop.f32.mrf.mxu0
      %v5997 = vadd.f32 0.0, %v5996
      %5998 = vmatmul.f32.gmra.mxu0 %v5707
      %v5999 = vpop.f32.mrf.mxu0
      %v6000 = vadd.f32 0.0, %v5999
      %6001 = vmatmul.f32.gmra.mxu0 %v5710
      %v6002 = vpop.f32.mrf.mxu0
      %v6003 = vadd.f32 0.0, %v6002
      %6004 = vmatmul.f32.gmra.mxu0 %v5713
      %v6005 = vpop.f32.mrf.mxu0
      %v6006 = vadd.f32 0.0, %v6005
      %6007 = vmatmul.f32.gmra.mxu0 %v5716
      %v6008 = vpop.f32.mrf.mxu0
      %v6009 = vadd.f32 0.0, %v6008
      %6010 = vmatmul.f32.gmra.mxu0 %v5719
      %v6011 = vpop.f32.mrf.mxu0
      %v6012 = vadd.f32 0.0, %v6011
      %6013 = vmatmul.f32.gmra.mxu0 %v5722
      %v6014 = vpop.f32.mrf.mxu0
      %v6015 = vadd.f32 0.0, %v6014
      %6016 = vmatmul.f32.gmra.mxu0 %v5725
      %v6017 = vpop.f32.mrf.mxu0
      %v6018 = vadd.f32 0.0, %v6017
      %6019 = vmatmul.f32.gmra.mxu0 %v5728
      %v6020 = vpop.f32.mrf.mxu0
      %v6021 = vadd.f32 0.0, %v6020
      %6022 = vmatmul.f32.gmra.mxu0 %v5731
      %v6023 = vpop.f32.mrf.mxu0
      %v6024 = vadd.f32 0.0, %v6023
      %6025 = vdwg.mxu0
      %v6026 = vmax.f32 %v5272, %v5751
      %v6027 = vmax.f32 %v5273, %v5754
      %v6028 = vmax.f32 %v5274, %v5757
      %v6029 = vmax.f32 %v5275, %v5760
      %v6030 = vmax.f32 %v5276, %v5763
      %v6031 = vmax.f32 %v5277, %v5766
      %v6032 = vmax.f32 %v5278, %v5769
      %v6033 = vmax.f32 %v5279, %v5772
      %v6034 = vmax.f32 %v5280, %v5775
      %v6035 = vmax.f32 %v5281, %v5778
      %v6036 = vmax.f32 %v5282, %v5781
      %v6037 = vmax.f32 %v5283, %v5784
      %v6038 = vmax.f32 %v5284, %v5787
      %v6039 = vmax.f32 %v5285, %v5790
      %v6040 = vmax.f32 %v5286, %v5793
      %v6041 = vmax.f32 %v5287, %v5796
      %v6042 = vmax.f32 %v5288, %v5799
      %v6043 = vmax.f32 %v5289, %v5802
      %v6044 = vmax.f32 %v5290, %v5805
      %v6045 = vmax.f32 %v5291, %v5808
      %v6046 = vmax.f32 %v5292, %v5811
      %v6047 = vmax.f32 %v5293, %v5814
      %v6048 = vmax.f32 %v5294, %v5817
      %v6049 = vmax.f32 %v5295, %v5820
      %v6050 = vmax.f32 %v5296, %v5823
      %v6051 = vmax.f32 %v5297, %v5826
      %v6052 = vmax.f32 %v5298, %v5829
      %v6053 = vmax.f32 %v5299, %v5832
      %v6054 = vmax.f32 %v5300, %v5835
      %v6055 = vmax.f32 %v5301, %v5838
      %v6056 = vmax.f32 %v5302, %v5841
      %v6057 = vmax.f32 %v5303, %v5844
      %v6058 = vmax.f32 %v5304, %v5847
      %v6059 = vmax.f32 %v5305, %v5850
      %v6060 = vmax.f32 %v5306, %v5853
      %v6061 = vmax.f32 %v5307, %v5856
      %v6062 = vmax.f32 %v5308, %v5859
      %v6063 = vmax.f32 %v5309, %v5862
      %v6064 = vmax.f32 %v5310, %v5865
      %v6065 = vmax.f32 %v5311, %v5868
      %v6066 = vmax.f32 %v5312, %v5871
      %v6067 = vmax.f32 %v5313, %v5874
      %v6068 = vmax.f32 %v5314, %v5877
      %v6069 = vmax.f32 %v5315, %v5880
      %v6070 = vmax.f32 %v5316, %v5883
      %v6071 = vmax.f32 %v5317, %v5886
      %v6072 = vmax.f32 %v5318, %v5889
      %v6073 = vmax.f32 %v5319, %v5892
      %v6074 = vmax.f32 %v5320, %v5895
      %v6075 = vmax.f32 %v5321, %v5898
      %v6076 = vmax.f32 %v5322, %v5901
      %v6077 = vmax.f32 %v5323, %v5904
      %v6078 = vmax.f32 %v5324, %v5907
      %v6079 = vmax.f32 %v5325, %v5910
      %v6080 = vmax.f32 %v5326, %v5913
      %v6081 = vmax.f32 %v5327, %v5916
      %v6082 = vmax.f32 %v5328, %v5919
      %v6083 = vmax.f32 %v5329, %v5922
      %v6084 = vmax.f32 %v5330, %v5925
      %v6085 = vmax.f32 %v5331, %v5928
      %v6086 = vmax.f32 %v5332, %v5931
      %v6087 = vmax.f32 %v5333, %v5934
      %v6088 = vmax.f32 %v5334, %v5937
      %v6089 = vmax.f32 %v5335, %v5940
      %v6090 = vmax.f32 %v5336, %v5943
      %v6091 = vmax.f32 %v5337, %v5946
      %v6092 = vmax.f32 %v5338, %v5949
      %v6093 = vmax.f32 %v5339, %v5952
      %v6094 = vmax.f32 %v5340, %v5955
      %v6095 = vmax.f32 %v5341, %v5958
      %v6096 = vmax.f32 %v5342, %v5961
      %v6097 = vmax.f32 %v5343, %v5964
      %v6098 = vmax.f32 %v5344, %v5967
      %v6099 = vmax.f32 %v5345, %v5970
      %v6100 = vmax.f32 %v5346, %v5973
      %v6101 = vmax.f32 %v5347, %v5976
      %v6102 = vmax.f32 %v5348, %v5979
      %v6103 = vmax.f32 %v5349, %v5982
      %v6104 = vmax.f32 %v5350, %v5985
      %v6105 = vmax.f32 %v5351, %v5988
      %v6106 = vmax.f32 %v5352, %v5991
      %v6107 = vmax.f32 %v5353, %v5994
      %v6108 = vmax.f32 %v5354, %v5997
      %v6109 = vmax.f32 %v5355, %v6000
      %v6110 = vmax.f32 %v5356, %v6003
      %v6111 = vmax.f32 %v5357, %v6006
      %v6112 = vmax.f32 %v5358, %v6009
      %v6113 = vmax.f32 %v5359, %v6012
      %v6114 = vmax.f32 %v5360, %v6015
      %v6115 = vmax.f32 %v5361, %v6018
      %v6116 = vmax.f32 %v5362, %v6021
      %v6117 = vmax.f32 %v5363, %v6024
      %s6118 = scalar_lea.vmem %s165, 5888
      %v6119 = vld [vmem:[%s6118] sm:$0xff]
      %v6120 = vld [vmem:[%s6118 + $0x8] sm:$0xff]
      %v6121 = vld [vmem:[%s6118 + $0x10] sm:$0xff]
      %v6122 = vld [vmem:[%s6118 + $0x18] sm:$0xff]
      %v6123 = vld [vmem:[%s6118 + $0x20] sm:$0xff]
      %v6124 = vld [vmem:[%s6118 + $0x28] sm:$0xff]
      %v6125 = vld [vmem:[%s6118 + $0x30] sm:$0xff]
      %v6126 = vld [vmem:[%s6118 + $0x38] sm:$0xff]
      %v6127 = vld [vmem:[%s6118 + $0x40] sm:$0xff]
      %v6128 = vld [vmem:[%s6118 + $0x48] sm:$0xff]
      %v6129 = vld [vmem:[%s6118 + $0x50] sm:$0xff]
      %v6130 = vld [vmem:[%s6118 + $0x58] sm:$0xff]
      %v6131 = vld [vmem:[%s6118 + $0x60] sm:$0xff]
      %v6132 = vld [vmem:[%s6118 + $0x68] sm:$0xff]
      %v6133 = vld [vmem:[%s6118 + $0x70] sm:$0xff]
      %v6134 = vld [vmem:[%s6118 + $0x78] sm:$0xff]
      %v6135 = vld [vmem:[%s6118 + $0x80] sm:$0xff]
      %v6136 = vld [vmem:[%s6118 + $0x88] sm:$0xff]
      %v6137 = vld [vmem:[%s6118 + $0x90] sm:$0xff]
      %v6138 = vld [vmem:[%s6118 + $0x98] sm:$0xff]
      %v6139 = vld [vmem:[%s6118 + $0xa0] sm:$0xff]
      %v6140 = vld [vmem:[%s6118 + $0xa8] sm:$0xff]
      %v6141 = vld [vmem:[%s6118 + $0xb0] sm:$0xff]
      %v6142 = vld [vmem:[%s6118 + $0xb8] sm:$0xff]
      %v6143 = vld [vmem:[%s6118 + $0xc0] sm:$0xff]
      %v6144 = vld [vmem:[%s6118 + $0xc8] sm:$0xff]
      %v6145 = vld [vmem:[%s6118 + $0xd0] sm:$0xff]
      %v6146 = vld [vmem:[%s6118 + $0xd8] sm:$0xff]
      %v6147 = vld [vmem:[%s6118 + $0xe0] sm:$0xff]
      %v6148 = vld [vmem:[%s6118 + $0xe8] sm:$0xff]
      %v6149 = vld [vmem:[%s6118 + $0xf0] sm:$0xff]
      %v6150 = vld [vmem:[%s6118 + $0xf8] sm:$0xff]
      %v6151 = vld [vmem:[%s6118 + $0x100] sm:$0xff]
      %v6152 = vld [vmem:[%s6118 + $0x108] sm:$0xff]
      %v6153 = vld [vmem:[%s6118 + $0x110] sm:$0xff]
      %v6154 = vld [vmem:[%s6118 + $0x118] sm:$0xff]
      %v6155 = vld [vmem:[%s6118 + $0x120] sm:$0xff]
      %v6156 = vld [vmem:[%s6118 + $0x128] sm:$0xff]
      %v6157 = vld [vmem:[%s6118 + $0x130] sm:$0xff]
      %v6158 = vld [vmem:[%s6118 + $0x138] sm:$0xff]
      %v6159 = vld [vmem:[%s6118 + $0x140] sm:$0xff]
      %v6160 = vld [vmem:[%s6118 + $0x148] sm:$0xff]
      %v6161 = vld [vmem:[%s6118 + $0x150] sm:$0xff]
      %v6162 = vld [vmem:[%s6118 + $0x158] sm:$0xff]
      %v6163 = vld [vmem:[%s6118 + $0x160] sm:$0xff]
      %v6164 = vld [vmem:[%s6118 + $0x168] sm:$0xff]
      %v6165 = vld [vmem:[%s6118 + $0x170] sm:$0xff]
      %v6166 = vld [vmem:[%s6118 + $0x178] sm:$0xff]
      %v6167 = vld [vmem:[%s6118 + $0x180] sm:$0xff]
      %v6168 = vld [vmem:[%s6118 + $0x188] sm:$0xff]
      %v6169 = vld [vmem:[%s6118 + $0x190] sm:$0xff]
      %v6170 = vld [vmem:[%s6118 + $0x198] sm:$0xff]
      %v6171 = vld [vmem:[%s6118 + $0x1a0] sm:$0xff]
      %v6172 = vld [vmem:[%s6118 + $0x1a8] sm:$0xff]
      %v6173 = vld [vmem:[%s6118 + $0x1b0] sm:$0xff]
      %v6174 = vld [vmem:[%s6118 + $0x1b8] sm:$0xff]
      %v6175 = vld [vmem:[%s6118 + $0x1c0] sm:$0xff]
      %v6176 = vld [vmem:[%s6118 + $0x1c8] sm:$0xff]
      %v6177 = vld [vmem:[%s6118 + $0x1d0] sm:$0xff]
      %v6178 = vld [vmem:[%s6118 + $0x1d8] sm:$0xff]
      %v6179 = vld [vmem:[%s6118 + $0x1e0] sm:$0xff]
      %v6180 = vld [vmem:[%s6118 + $0x1e8] sm:$0xff]
      %v6181 = vld [vmem:[%s6118 + $0x1f0] sm:$0xff]
      %v6182 = vld [vmem:[%s6118 + $0x1f8] sm:$0xff]
      %v6183 = vld [vmem:[%s6118 + $0x200] sm:$0xff]
      %v6184 = vld [vmem:[%s6118 + $0x208] sm:$0xff]
      %v6185 = vld [vmem:[%s6118 + $0x210] sm:$0xff]
      %v6186 = vld [vmem:[%s6118 + $0x218] sm:$0xff]
      %v6187 = vld [vmem:[%s6118 + $0x220] sm:$0xff]
      %v6188 = vld [vmem:[%s6118 + $0x228] sm:$0xff]
      %v6189 = vld [vmem:[%s6118 + $0x230] sm:$0xff]
      %v6190 = vld [vmem:[%s6118 + $0x238] sm:$0xff]
      %v6191 = vld [vmem:[%s6118 + $0x240] sm:$0xff]
      %v6192 = vld [vmem:[%s6118 + $0x248] sm:$0xff]
      %v6193 = vld [vmem:[%s6118 + $0x250] sm:$0xff]
      %v6194 = vld [vmem:[%s6118 + $0x258] sm:$0xff]
      %v6195 = vld [vmem:[%s6118 + $0x260] sm:$0xff]
      %v6196 = vld [vmem:[%s6118 + $0x268] sm:$0xff]
      %v6197 = vld [vmem:[%s6118 + $0x270] sm:$0xff]
      %v6198 = vld [vmem:[%s6118 + $0x278] sm:$0xff]
      %v6199 = vld [vmem:[%s6118 + $0x280] sm:$0xff]
      %v6200 = vld [vmem:[%s6118 + $0x288] sm:$0xff]
      %v6201 = vld [vmem:[%s6118 + $0x290] sm:$0xff]
      %v6202 = vld [vmem:[%s6118 + $0x298] sm:$0xff]
      %v6203 = vld [vmem:[%s6118 + $0x2a0] sm:$0xff]
      %v6204 = vld [vmem:[%s6118 + $0x2a8] sm:$0xff]
      %v6205 = vld [vmem:[%s6118 + $0x2b0] sm:$0xff]
      %v6206 = vld [vmem:[%s6118 + $0x2b8] sm:$0xff]
      %v6207 = vld [vmem:[%s6118 + $0x2c0] sm:$0xff]
      %v6208 = vld [vmem:[%s6118 + $0x2c8] sm:$0xff]
      %v6209 = vld [vmem:[%s6118 + $0x2d0] sm:$0xff]
      %v6210 = vld [vmem:[%s6118 + $0x2d8] sm:$0x1]
      %v6212 = vsel %vm266, %v6119, 0
      %v6215 = vsel %vm266, %v6120, 0
      %v6218 = vsel %vm266, %v6121, 0
      %v6221 = vsel %vm266, %v6122, 0
      %v6224 = vsel %vm266, %v6123, 0
      %v6227 = vsel %vm266, %v6124, 0
      %v6230 = vsel %vm266, %v6125, 0
      %v6233 = vsel %vm266, %v6126, 0
      %v6236 = vsel %vm266, %v6127, 0
      %v6239 = vsel %vm266, %v6128, 0
      %v6242 = vsel %vm266, %v6129, 0
      %v6245 = vsel %vm266, %v6130, 0
      %v6248 = vsel %vm266, %v6131, 0
      %v6251 = vsel %vm266, %v6132, 0
      %v6254 = vsel %vm266, %v6133, 0
      %v6257 = vsel %vm266, %v6134, 0
      %v6260 = vsel %vm266, %v6135, 0
      %v6263 = vsel %vm266, %v6136, 0
      %v6266 = vsel %vm266, %v6137, 0
      %v6269 = vsel %vm266, %v6138, 0
      %v6272 = vsel %vm266, %v6139, 0
      %v6275 = vsel %vm266, %v6140, 0
      %v6278 = vsel %vm266, %v6141, 0
      %v6281 = vsel %vm266, %v6142, 0
      %v6284 = vsel %vm266, %v6143, 0
      %v6287 = vsel %vm266, %v6144, 0
      %v6290 = vsel %vm266, %v6145, 0
      %v6293 = vsel %vm266, %v6146, 0
      %v6296 = vsel %vm266, %v6147, 0
      %v6299 = vsel %vm266, %v6148, 0
      %v6302 = vsel %vm266, %v6149, 0
      %v6305 = vsel %vm266, %v6150, 0
      %v6308 = vsel %vm266, %v6151, 0
      %v6311 = vsel %vm266, %v6152, 0
      %v6314 = vsel %vm266, %v6153, 0
      %v6317 = vsel %vm266, %v6154, 0
      %v6320 = vsel %vm266, %v6155, 0
      %v6323 = vsel %vm266, %v6156, 0
      %v6326 = vsel %vm266, %v6157, 0
      %v6329 = vsel %vm266, %v6158, 0
      %v6332 = vsel %vm266, %v6159, 0
      %v6335 = vsel %vm266, %v6160, 0
      %v6338 = vsel %vm266, %v6161, 0
      %v6341 = vsel %vm266, %v6162, 0
      %v6344 = vsel %vm266, %v6163, 0
      %v6347 = vsel %vm266, %v6164, 0
      %v6350 = vsel %vm266, %v6165, 0
      %v6353 = vsel %vm266, %v6166, 0
      %v6356 = vsel %vm266, %v6167, 0
      %v6359 = vsel %vm266, %v6168, 0
      %v6362 = vsel %vm266, %v6169, 0
      %v6365 = vsel %vm266, %v6170, 0
      %v6368 = vsel %vm266, %v6171, 0
      %v6371 = vsel %vm266, %v6172, 0
      %v6374 = vsel %vm266, %v6173, 0
      %v6377 = vsel %vm266, %v6174, 0
      %v6380 = vsel %vm266, %v6175, 0
      %v6383 = vsel %vm266, %v6176, 0
      %v6386 = vsel %vm266, %v6177, 0
      %v6389 = vsel %vm266, %v6178, 0
      %v6392 = vsel %vm266, %v6179, 0
      %v6395 = vsel %vm266, %v6180, 0
      %v6398 = vsel %vm266, %v6181, 0
      %v6401 = vsel %vm266, %v6182, 0
      %v6404 = vsel %vm266, %v6183, 0
      %v6407 = vsel %vm266, %v6184, 0
      %v6410 = vsel %vm266, %v6185, 0
      %v6413 = vsel %vm266, %v6186, 0
      %v6416 = vsel %vm266, %v6187, 0
      %v6419 = vsel %vm266, %v6188, 0
      %v6422 = vsel %vm266, %v6189, 0
      %v6425 = vsel %vm266, %v6190, 0
      %v6428 = vsel %vm266, %v6191, 0
      %v6431 = vsel %vm266, %v6192, 0
      %v6434 = vsel %vm266, %v6193, 0
      %v6437 = vsel %vm266, %v6194, 0
      %v6440 = vsel %vm266, %v6195, 0
      %v6443 = vsel %vm266, %v6196, 0
      %v6446 = vsel %vm266, %v6197, 0
      %v6449 = vsel %vm266, %v6198, 0
      %v6452 = vsel %vm266, %v6199, 0
      %v6455 = vsel %vm266, %v6200, 0
      %v6458 = vsel %vm266, %v6201, 0
      %v6461 = vsel %vm266, %v6202, 0
      %v6464 = vsel %vm266, %v6203, 0
      %v6467 = vsel %vm266, %v6204, 0
      %v6470 = vsel %vm266, %v6205, 0
      %v6473 = vsel %vm266, %v6206, 0
      %v6476 = vsel %vm266, %v6207, 0
      %v6479 = vsel %vm266, %v6208, 0
      %v6482 = vsel %vm266, %v6209, 0
      %v6485 = vsel %vm266, %v6210, 0
      %6487 = vmatpush.msra.mxu0 0.0
      %6488 = vmatpush.msra.mxu0 0.0
      %6489 = vmatpush.msra.mxu0 0.0
      %6490 = vmatpush.msra.mxu0 0.0
      %6491 = vmatpush.msra.mxu0 0.0
      %6492 = vmatpush.msra.mxu0 0.0
      %6493 = vmatpush.msra.mxu0 0.0
      %6494 = vmatpush.msra.mxu0 0.0
      %6495 = vmatpush.msra.mxu0 0.0
      %6496 = vmatpush.msra.mxu0 0.0
      %6497 = vmatpush.msra.mxu0 0.0
      %6498 = vmatpush.msra.mxu0 0.0
      %6499 = vmatpush.msra.mxu0 0.0
      %6500 = vmatpush.msra.mxu0 %v545
      %6501 = vmatpush.msra.mxu0 %v172
      %6502 = vmatpush.msra.mxu0 %v171
      %6503 = vmatmul.f32.gmra.mxu0 %v6212
      %v6504 = vpop.f32.mrf.mxu0
      %v6505 = vadd.f32 0.0, %v6504
      %6506 = vmatmul.f32.gmra.mxu0 %v6215
      %v6507 = vpop.f32.mrf.mxu0
      %v6508 = vadd.f32 0.0, %v6507
      %6509 = vmatmul.f32.gmra.mxu0 %v6218
      %v6510 = vpop.f32.mrf.mxu0
      %v6511 = vadd.f32 0.0, %v6510
      %6512 = vmatmul.f32.gmra.mxu0 %v6221
      %v6513 = vpop.f32.mrf.mxu0
      %v6514 = vadd.f32 0.0, %v6513
      %6515 = vmatmul.f32.gmra.mxu0 %v6224
      %v6516 = vpop.f32.mrf.mxu0
      %v6517 = vadd.f32 0.0, %v6516
      %6518 = vmatmul.f32.gmra.mxu0 %v6227
      %v6519 = vpop.f32.mrf.mxu0
      %v6520 = vadd.f32 0.0, %v6519
      %6521 = vmatmul.f32.gmra.mxu0 %v6230
      %v6522 = vpop.f32.mrf.mxu0
      %v6523 = vadd.f32 0.0, %v6522
      %6524 = vmatmul.f32.gmra.mxu0 %v6233
      %v6525 = vpop.f32.mrf.mxu0
      %v6526 = vadd.f32 0.0, %v6525
      %6527 = vmatmul.f32.gmra.mxu0 %v6236
      %v6528 = vpop.f32.mrf.mxu0
      %v6529 = vadd.f32 0.0, %v6528
      %6530 = vmatmul.f32.gmra.mxu0 %v6239
      %v6531 = vpop.f32.mrf.mxu0
      %v6532 = vadd.f32 0.0, %v6531
      %6533 = vmatmul.f32.gmra.mxu0 %v6242
      %v6534 = vpop.f32.mrf.mxu0
      %v6535 = vadd.f32 0.0, %v6534
      %6536 = vmatmul.f32.gmra.mxu0 %v6245
      %v6537 = vpop.f32.mrf.mxu0
      %v6538 = vadd.f32 0.0, %v6537
      %6539 = vmatmul.f32.gmra.mxu0 %v6248
      %v6540 = vpop.f32.mrf.mxu0
      %v6541 = vadd.f32 0.0, %v6540
      %6542 = vmatmul.f32.gmra.mxu0 %v6251
      %v6543 = vpop.f32.mrf.mxu0
      %v6544 = vadd.f32 0.0, %v6543
      %6545 = vmatmul.f32.gmra.mxu0 %v6254
      %v6546 = vpop.f32.mrf.mxu0
      %v6547 = vadd.f32 0.0, %v6546
      %6548 = vmatmul.f32.gmra.mxu0 %v6257
      %v6549 = vpop.f32.mrf.mxu0
      %v6550 = vadd.f32 0.0, %v6549
      %6551 = vmatmul.f32.gmra.mxu0 %v6260
      %v6552 = vpop.f32.mrf.mxu0
      %v6553 = vadd.f32 0.0, %v6552
      %6554 = vmatmul.f32.gmra.mxu0 %v6263
      %v6555 = vpop.f32.mrf.mxu0
      %v6556 = vadd.f32 0.0, %v6555
      %6557 = vmatmul.f32.gmra.mxu0 %v6266
      %v6558 = vpop.f32.mrf.mxu0
      %v6559 = vadd.f32 0.0, %v6558
      %6560 = vmatmul.f32.gmra.mxu0 %v6269
      %v6561 = vpop.f32.mrf.mxu0
      %v6562 = vadd.f32 0.0, %v6561
      %6563 = vmatmul.f32.gmra.mxu0 %v6272
      %v6564 = vpop.f32.mrf.mxu0
      %v6565 = vadd.f32 0.0, %v6564
      %6566 = vmatmul.f32.gmra.mxu0 %v6275
      %v6567 = vpop.f32.mrf.mxu0
      %v6568 = vadd.f32 0.0, %v6567
      %6569 = vmatmul.f32.gmra.mxu0 %v6278
      %v6570 = vpop.f32.mrf.mxu0
      %v6571 = vadd.f32 0.0, %v6570
      %6572 = vmatmul.f32.gmra.mxu0 %v6281
      %v6573 = vpop.f32.mrf.mxu0
      %v6574 = vadd.f32 0.0, %v6573
      %6575 = vmatmul.f32.gmra.mxu0 %v6284
      %v6576 = vpop.f32.mrf.mxu0
      %v6577 = vadd.f32 0.0, %v6576
      %6578 = vmatmul.f32.gmra.mxu0 %v6287
      %v6579 = vpop.f32.mrf.mxu0
      %v6580 = vadd.f32 0.0, %v6579
      %6581 = vmatmul.f32.gmra.mxu0 %v6290
      %v6582 = vpop.f32.mrf.mxu0
      %v6583 = vadd.f32 0.0, %v6582
      %6584 = vmatmul.f32.gmra.mxu0 %v6293
      %v6585 = vpop.f32.mrf.mxu0
      %v6586 = vadd.f32 0.0, %v6585
      %6587 = vmatmul.f32.gmra.mxu0 %v6296
      %v6588 = vpop.f32.mrf.mxu0
      %v6589 = vadd.f32 0.0, %v6588
      %6590 = vmatmul.f32.gmra.mxu0 %v6299
      %v6591 = vpop.f32.mrf.mxu0
      %v6592 = vadd.f32 0.0, %v6591
      %6593 = vmatmul.f32.gmra.mxu0 %v6302
      %v6594 = vpop.f32.mrf.mxu0
      %v6595 = vadd.f32 0.0, %v6594
      %6596 = vmatmul.f32.gmra.mxu0 %v6305
      %v6597 = vpop.f32.mrf.mxu0
      %v6598 = vadd.f32 0.0, %v6597
      %6599 = vmatmul.f32.gmra.mxu0 %v6308
      %v6600 = vpop.f32.mrf.mxu0
      %v6601 = vadd.f32 0.0, %v6600
      %6602 = vmatmul.f32.gmra.mxu0 %v6311
      %v6603 = vpop.f32.mrf.mxu0
      %v6604 = vadd.f32 0.0, %v6603
      %6605 = vmatmul.f32.gmra.mxu0 %v6314
      %v6606 = vpop.f32.mrf.mxu0
      %v6607 = vadd.f32 0.0, %v6606
      %6608 = vmatmul.f32.gmra.mxu0 %v6317
      %v6609 = vpop.f32.mrf.mxu0
      %v6610 = vadd.f32 0.0, %v6609
      %6611 = vmatmul.f32.gmra.mxu0 %v6320
      %v6612 = vpop.f32.mrf.mxu0
      %v6613 = vadd.f32 0.0, %v6612
      %6614 = vmatmul.f32.gmra.mxu0 %v6323
      %v6615 = vpop.f32.mrf.mxu0
      %v6616 = vadd.f32 0.0, %v6615
      %6617 = vmatmul.f32.gmra.mxu0 %v6326
      %v6618 = vpop.f32.mrf.mxu0
      %v6619 = vadd.f32 0.0, %v6618
      %6620 = vmatmul.f32.gmra.mxu0 %v6329
      %v6621 = vpop.f32.mrf.mxu0
      %v6622 = vadd.f32 0.0, %v6621
      %6623 = vmatmul.f32.gmra.mxu0 %v6332
      %v6624 = vpop.f32.mrf.mxu0
      %v6625 = vadd.f32 0.0, %v6624
      %6626 = vmatmul.f32.gmra.mxu0 %v6335
      %v6627 = vpop.f32.mrf.mxu0
      %v6628 = vadd.f32 0.0, %v6627
      %6629 = vmatmul.f32.gmra.mxu0 %v6338
      %v6630 = vpop.f32.mrf.mxu0
      %v6631 = vadd.f32 0.0, %v6630
      %6632 = vmatmul.f32.gmra.mxu0 %v6341
      %v6633 = vpop.f32.mrf.mxu0
      %v6634 = vadd.f32 0.0, %v6633
      %6635 = vmatmul.f32.gmra.mxu0 %v6344
      %v6636 = vpop.f32.mrf.mxu0
      %v6637 = vadd.f32 0.0, %v6636
      %6638 = vmatmul.f32.gmra.mxu0 %v6347
      %v6639 = vpop.f32.mrf.mxu0
      %v6640 = vadd.f32 0.0, %v6639
      %6641 = vmatmul.f32.gmra.mxu0 %v6350
      %v6642 = vpop.f32.mrf.mxu0
      %v6643 = vadd.f32 0.0, %v6642
      %6644 = vmatmul.f32.gmra.mxu0 %v6353
      %v6645 = vpop.f32.mrf.mxu0
      %v6646 = vadd.f32 0.0, %v6645
      %6647 = vmatmul.f32.gmra.mxu0 %v6356
      %v6648 = vpop.f32.mrf.mxu0
      %v6649 = vadd.f32 0.0, %v6648
      %6650 = vmatmul.f32.gmra.mxu0 %v6359
      %v6651 = vpop.f32.mrf.mxu0
      %v6652 = vadd.f32 0.0, %v6651
      %6653 = vmatmul.f32.gmra.mxu0 %v6362
      %v6654 = vpop.f32.mrf.mxu0
      %v6655 = vadd.f32 0.0, %v6654
      %6656 = vmatmul.f32.gmra.mxu0 %v6365
      %v6657 = vpop.f32.mrf.mxu0
      %v6658 = vadd.f32 0.0, %v6657
      %6659 = vmatmul.f32.gmra.mxu0 %v6368
      %v6660 = vpop.f32.mrf.mxu0
      %v6661 = vadd.f32 0.0, %v6660
      %6662 = vmatmul.f32.gmra.mxu0 %v6371
      %v6663 = vpop.f32.mrf.mxu0
      %v6664 = vadd.f32 0.0, %v6663
      %6665 = vmatmul.f32.gmra.mxu0 %v6374
      %v6666 = vpop.f32.mrf.mxu0
      %v6667 = vadd.f32 0.0, %v6666
      %6668 = vmatmul.f32.gmra.mxu0 %v6377
      %v6669 = vpop.f32.mrf.mxu0
      %v6670 = vadd.f32 0.0, %v6669
      %6671 = vmatmul.f32.gmra.mxu0 %v6380
      %v6672 = vpop.f32.mrf.mxu0
      %v6673 = vadd.f32 0.0, %v6672
      %6674 = vmatmul.f32.gmra.mxu0 %v6383
      %v6675 = vpop.f32.mrf.mxu0
      %v6676 = vadd.f32 0.0, %v6675
      %6677 = vmatmul.f32.gmra.mxu0 %v6386
      %v6678 = vpop.f32.mrf.mxu0
      %v6679 = vadd.f32 0.0, %v6678
      %6680 = vmatmul.f32.gmra.mxu0 %v6389
      %v6681 = vpop.f32.mrf.mxu0
      %v6682 = vadd.f32 0.0, %v6681
      %6683 = vmatmul.f32.gmra.mxu0 %v6392
      %v6684 = vpop.f32.mrf.mxu0
      %v6685 = vadd.f32 0.0, %v6684
      %6686 = vmatmul.f32.gmra.mxu0 %v6395
      %v6687 = vpop.f32.mrf.mxu0
      %v6688 = vadd.f32 0.0, %v6687
      %6689 = vmatmul.f32.gmra.mxu0 %v6398
      %v6690 = vpop.f32.mrf.mxu0
      %v6691 = vadd.f32 0.0, %v6690
      %6692 = vmatmul.f32.gmra.mxu0 %v6401
      %v6693 = vpop.f32.mrf.mxu0
      %v6694 = vadd.f32 0.0, %v6693
      %6695 = vmatmul.f32.gmra.mxu0 %v6404
      %v6696 = vpop.f32.mrf.mxu0
      %v6697 = vadd.f32 0.0, %v6696
      %6698 = vmatmul.f32.gmra.mxu0 %v6407
      %v6699 = vpop.f32.mrf.mxu0
      %v6700 = vadd.f32 0.0, %v6699
      %6701 = vmatmul.f32.gmra.mxu0 %v6410
      %v6702 = vpop.f32.mrf.mxu0
      %v6703 = vadd.f32 0.0, %v6702
      %6704 = vmatmul.f32.gmra.mxu0 %v6413
      %v6705 = vpop.f32.mrf.mxu0
      %v6706 = vadd.f32 0.0, %v6705
      %6707 = vmatmul.f32.gmra.mxu0 %v6416
      %v6708 = vpop.f32.mrf.mxu0
      %v6709 = vadd.f32 0.0, %v6708
      %6710 = vmatmul.f32.gmra.mxu0 %v6419
      %v6711 = vpop.f32.mrf.mxu0
      %v6712 = vadd.f32 0.0, %v6711
      %6713 = vmatmul.f32.gmra.mxu0 %v6422
      %v6714 = vpop.f32.mrf.mxu0
      %v6715 = vadd.f32 0.0, %v6714
      %6716 = vmatmul.f32.gmra.mxu0 %v6425
      %v6717 = vpop.f32.mrf.mxu0
      %v6718 = vadd.f32 0.0, %v6717
      %6719 = vmatmul.f32.gmra.mxu0 %v6428
      %v6720 = vpop.f32.mrf.mxu0
      %v6721 = vadd.f32 0.0, %v6720
      %6722 = vmatmul.f32.gmra.mxu0 %v6431
      %v6723 = vpop.f32.mrf.mxu0
      %v6724 = vadd.f32 0.0, %v6723
      %6725 = vmatmul.f32.gmra.mxu0 %v6434
      %v6726 = vpop.f32.mrf.mxu0
      %v6727 = vadd.f32 0.0, %v6726
      %6728 = vmatmul.f32.gmra.mxu0 %v6437
      %v6729 = vpop.f32.mrf.mxu0
      %v6730 = vadd.f32 0.0, %v6729
      %6731 = vmatmul.f32.gmra.mxu0 %v6440
      %v6732 = vpop.f32.mrf.mxu0
      %v6733 = vadd.f32 0.0, %v6732
      %6734 = vmatmul.f32.gmra.mxu0 %v6443
      %v6735 = vpop.f32.mrf.mxu0
      %v6736 = vadd.f32 0.0, %v6735
      %6737 = vmatmul.f32.gmra.mxu0 %v6446
      %v6738 = vpop.f32.mrf.mxu0
      %v6739 = vadd.f32 0.0, %v6738
      %6740 = vmatmul.f32.gmra.mxu0 %v6449
      %v6741 = vpop.f32.mrf.mxu0
      %v6742 = vadd.f32 0.0, %v6741
      %6743 = vmatmul.f32.gmra.mxu0 %v6452
      %v6744 = vpop.f32.mrf.mxu0
      %v6745 = vadd.f32 0.0, %v6744
      %6746 = vmatmul.f32.gmra.mxu0 %v6455
      %v6747 = vpop.f32.mrf.mxu0
      %v6748 = vadd.f32 0.0, %v6747
      %6749 = vmatmul.f32.gmra.mxu0 %v6458
      %v6750 = vpop.f32.mrf.mxu0
      %v6751 = vadd.f32 0.0, %v6750
      %6752 = vmatmul.f32.gmra.mxu0 %v6461
      %v6753 = vpop.f32.mrf.mxu0
      %v6754 = vadd.f32 0.0, %v6753
      %6755 = vmatmul.f32.gmra.mxu0 %v6464
      %v6756 = vpop.f32.mrf.mxu0
      %v6757 = vadd.f32 0.0, %v6756
      %6758 = vmatmul.f32.gmra.mxu0 %v6467
      %v6759 = vpop.f32.mrf.mxu0
      %v6760 = vadd.f32 0.0, %v6759
      %6761 = vmatmul.f32.gmra.mxu0 %v6470
      %v6762 = vpop.f32.mrf.mxu0
      %v6763 = vadd.f32 0.0, %v6762
      %6764 = vmatmul.f32.gmra.mxu0 %v6473
      %v6765 = vpop.f32.mrf.mxu0
      %v6766 = vadd.f32 0.0, %v6765
      %6767 = vmatmul.f32.gmra.mxu0 %v6476
      %v6768 = vpop.f32.mrf.mxu0
      %v6769 = vadd.f32 0.0, %v6768
      %6770 = vmatmul.f32.gmra.mxu0 %v6479
      %v6771 = vpop.f32.mrf.mxu0
      %v6772 = vadd.f32 0.0, %v6771
      %6773 = vmatmul.f32.gmra.mxu0 %v6482
      %v6774 = vpop.f32.mrf.mxu0
      %v6775 = vadd.f32 0.0, %v6774
      %6776 = vmatmul.f32.gmra.mxu0 %v6485
      %v6777 = vpop.f32.mrf.mxu0
      %v6778 = vadd.f32 0.0, %v6777
      %6779 = vdwg.mxu0
      %v6780 = vmax.f32 %v6026, %v6505
      %v6781 = vmax.f32 %v6027, %v6508
      %v6782 = vmax.f32 %v6028, %v6511
      %v6783 = vmax.f32 %v6029, %v6514
      %v6784 = vmax.f32 %v6030, %v6517
      %v6785 = vmax.f32 %v6031, %v6520
      %v6786 = vmax.f32 %v6032, %v6523
      %v6787 = vmax.f32 %v6033, %v6526
      %v6788 = vmax.f32 %v6034, %v6529
      %v6789 = vmax.f32 %v6035, %v6532
      %v6790 = vmax.f32 %v6036, %v6535
      %v6791 = vmax.f32 %v6037, %v6538
      %v6792 = vmax.f32 %v6038, %v6541
      %v6793 = vmax.f32 %v6039, %v6544
      %v6794 = vmax.f32 %v6040, %v6547
      %v6795 = vmax.f32 %v6041, %v6550
      %v6796 = vmax.f32 %v6042, %v6553
      %v6797 = vmax.f32 %v6043, %v6556
      %v6798 = vmax.f32 %v6044, %v6559
      %v6799 = vmax.f32 %v6045, %v6562
      %v6800 = vmax.f32 %v6046, %v6565
      %v6801 = vmax.f32 %v6047, %v6568
      %v6802 = vmax.f32 %v6048, %v6571
      %v6803 = vmax.f32 %v6049, %v6574
      %v6804 = vmax.f32 %v6050, %v6577
      %v6805 = vmax.f32 %v6051, %v6580
      %v6806 = vmax.f32 %v6052, %v6583
      %v6807 = vmax.f32 %v6053, %v6586
      %v6808 = vmax.f32 %v6054, %v6589
      %v6809 = vmax.f32 %v6055, %v6592
      %v6810 = vmax.f32 %v6056, %v6595
      %v6811 = vmax.f32 %v6057, %v6598
      %v6812 = vmax.f32 %v6058, %v6601
      %v6813 = vmax.f32 %v6059, %v6604
      %v6814 = vmax.f32 %v6060, %v6607
      %v6815 = vmax.f32 %v6061, %v6610
      %v6816 = vmax.f32 %v6062, %v6613
      %v6817 = vmax.f32 %v6063, %v6616
      %v6818 = vmax.f32 %v6064, %v6619
      %v6819 = vmax.f32 %v6065, %v6622
      %v6820 = vmax.f32 %v6066, %v6625
      %v6821 = vmax.f32 %v6067, %v6628
      %v6822 = vmax.f32 %v6068, %v6631
      %v6823 = vmax.f32 %v6069, %v6634
      %v6824 = vmax.f32 %v6070, %v6637
      %v6825 = vmax.f32 %v6071, %v6640
      %v6826 = vmax.f32 %v6072, %v6643
      %v6827 = vmax.f32 %v6073, %v6646
      %v6828 = vmax.f32 %v6074, %v6649
      %v6829 = vmax.f32 %v6075, %v6652
      %v6830 = vmax.f32 %v6076, %v6655
      %v6831 = vmax.f32 %v6077, %v6658
      %v6832 = vmax.f32 %v6078, %v6661
      %v6833 = vmax.f32 %v6079, %v6664
      %v6834 = vmax.f32 %v6080, %v6667
      %v6835 = vmax.f32 %v6081, %v6670
      %v6836 = vmax.f32 %v6082, %v6673
      %v6837 = vmax.f32 %v6083, %v6676
      %v6838 = vmax.f32 %v6084, %v6679
      %v6839 = vmax.f32 %v6085, %v6682
      %v6840 = vmax.f32 %v6086, %v6685
      %v6841 = vmax.f32 %v6087, %v6688
      %v6842 = vmax.f32 %v6088, %v6691
      %v6843 = vmax.f32 %v6089, %v6694
      %v6844 = vmax.f32 %v6090, %v6697
      %v6845 = vmax.f32 %v6091, %v6700
      %v6846 = vmax.f32 %v6092, %v6703
      %v6847 = vmax.f32 %v6093, %v6706
      %v6848 = vmax.f32 %v6094, %v6709
      %v6849 = vmax.f32 %v6095, %v6712
      %v6850 = vmax.f32 %v6096, %v6715
      %v6851 = vmax.f32 %v6097, %v6718
      %v6852 = vmax.f32 %v6098, %v6721
      %v6853 = vmax.f32 %v6099, %v6724
      %v6854 = vmax.f32 %v6100, %v6727
      %v6855 = vmax.f32 %v6101, %v6730
      %v6856 = vmax.f32 %v6102, %v6733
      %v6857 = vmax.f32 %v6103, %v6736
      %v6858 = vmax.f32 %v6104, %v6739
      %v6859 = vmax.f32 %v6105, %v6742
      %v6860 = vmax.f32 %v6106, %v6745
      %v6861 = vmax.f32 %v6107, %v6748
      %v6862 = vmax.f32 %v6108, %v6751
      %v6863 = vmax.f32 %v6109, %v6754
      %v6864 = vmax.f32 %v6110, %v6757
      %v6865 = vmax.f32 %v6111, %v6760
      %v6866 = vmax.f32 %v6112, %v6763
      %v6867 = vmax.f32 %v6113, %v6766
      %v6868 = vmax.f32 %v6114, %v6769
      %v6869 = vmax.f32 %v6115, %v6772
      %v6870 = vmax.f32 %v6116, %v6775
      %v6871 = vmax.f32 %v6117, %v6778
      %v6872 = vld [vmem:[%s2] sm:$0x1]
      %v6874 = vperm.slane %v6872, 0
      %v6876 = vadd.f32 %v6780, %v6874
      %v6877 = vadd.f32 %v6781, %v6874
      %v6878 = vadd.f32 %v6782, %v6874
      %v6879 = vadd.f32 %v6783, %v6874
      %v6880 = vadd.f32 %v6784, %v6874
      %v6881 = vadd.f32 %v6785, %v6874
      %v6882 = vadd.f32 %v6786, %v6874
      %v6883 = vadd.f32 %v6787, %v6874
      %v6884 = vadd.f32 %v6788, %v6874
      %v6885 = vadd.f32 %v6789, %v6874
      %v6886 = vadd.f32 %v6790, %v6874
      %v6887 = vadd.f32 %v6791, %v6874
      %v6888 = vadd.f32 %v6792, %v6874
      %v6889 = vadd.f32 %v6793, %v6874
      %v6890 = vadd.f32 %v6794, %v6874
      %v6891 = vadd.f32 %v6795, %v6874
      %v6892 = vadd.f32 %v6796, %v6874
      %v6893 = vadd.f32 %v6797, %v6874
      %v6894 = vadd.f32 %v6798, %v6874
      %v6895 = vadd.f32 %v6799, %v6874
      %v6896 = vadd.f32 %v6800, %v6874
      %v6897 = vadd.f32 %v6801, %v6874
      %v6898 = vadd.f32 %v6802, %v6874
      %v6899 = vadd.f32 %v6803, %v6874
      %v6900 = vadd.f32 %v6804, %v6874
      %v6901 = vadd.f32 %v6805, %v6874
      %v6902 = vadd.f32 %v6806, %v6874
      %v6903 = vadd.f32 %v6807, %v6874
      %v6904 = vadd.f32 %v6808, %v6874
      %v6905 = vadd.f32 %v6809, %v6874
      %v6906 = vadd.f32 %v6810, %v6874
      %v6907 = vadd.f32 %v6811, %v6874
      %v6908 = vadd.f32 %v6812, %v6874
      %v6909 = vadd.f32 %v6813, %v6874
      %v6910 = vadd.f32 %v6814, %v6874
      %v6911 = vadd.f32 %v6815, %v6874
      %v6912 = vadd.f32 %v6816, %v6874
      %v6913 = vadd.f32 %v6817, %v6874
      %v6914 = vadd.f32 %v6818, %v6874
      %v6915 = vadd.f32 %v6819, %v6874
      %v6916 = vadd.f32 %v6820, %v6874
      %v6917 = vadd.f32 %v6821, %v6874
      %v6918 = vadd.f32 %v6822, %v6874
      %v6919 = vadd.f32 %v6823, %v6874
      %v6920 = vadd.f32 %v6824, %v6874
      %v6921 = vadd.f32 %v6825, %v6874
      %v6922 = vadd.f32 %v6826, %v6874
      %v6923 = vadd.f32 %v6827, %v6874
      %v6924 = vadd.f32 %v6828, %v6874
      %v6925 = vadd.f32 %v6829, %v6874
      %v6926 = vadd.f32 %v6830, %v6874
      %v6927 = vadd.f32 %v6831, %v6874
      %v6928 = vadd.f32 %v6832, %v6874
      %v6929 = vadd.f32 %v6833, %v6874
      %v6930 = vadd.f32 %v6834, %v6874
      %v6931 = vadd.f32 %v6835, %v6874
      %v6932 = vadd.f32 %v6836, %v6874
      %v6933 = vadd.f32 %v6837, %v6874
      %v6934 = vadd.f32 %v6838, %v6874
      %v6935 = vadd.f32 %v6839, %v6874
      %v6936 = vadd.f32 %v6840, %v6874
      %v6937 = vadd.f32 %v6841, %v6874
      %v6938 = vadd.f32 %v6842, %v6874
      %v6939 = vadd.f32 %v6843, %v6874
      %v6940 = vadd.f32 %v6844, %v6874
      %v6941 = vadd.f32 %v6845, %v6874
      %v6942 = vadd.f32 %v6846, %v6874
      %v6943 = vadd.f32 %v6847, %v6874
      %v6944 = vadd.f32 %v6848, %v6874
      %v6945 = vadd.f32 %v6849, %v6874
      %v6946 = vadd.f32 %v6850, %v6874
      %v6947 = vadd.f32 %v6851, %v6874
      %v6948 = vadd.f32 %v6852, %v6874
      %v6949 = vadd.f32 %v6853, %v6874
      %v6950 = vadd.f32 %v6854, %v6874
      %v6951 = vadd.f32 %v6855, %v6874
      %v6952 = vadd.f32 %v6856, %v6874
      %v6953 = vadd.f32 %v6857, %v6874
      %v6954 = vadd.f32 %v6858, %v6874
      %v6955 = vadd.f32 %v6859, %v6874
      %v6956 = vadd.f32 %v6860, %v6874
      %v6957 = vadd.f32 %v6861, %v6874
      %v6958 = vadd.f32 %v6862, %v6874
      %v6959 = vadd.f32 %v6863, %v6874
      %v6960 = vadd.f32 %v6864, %v6874
      %v6961 = vadd.f32 %v6865, %v6874
      %v6962 = vadd.f32 %v6866, %v6874
      %v6963 = vadd.f32 %v6867, %v6874
      %v6964 = vadd.f32 %v6868, %v6874
      %v6965 = vadd.f32 %v6869, %v6874
      %v6966 = vadd.f32 %v6870, %v6874
      %v6967 = vadd.f32 %v6871, %v6874
      %vm6968 = vcmp.ge.f32.partialorder %v6876, 0.0
      %vm6969 = vcmp.ge.f32.partialorder %v6877, 0.0
      %vm6970 = vcmp.ge.f32.partialorder %v6878, 0.0
      %vm6971 = vcmp.ge.f32.partialorder %v6879, 0.0
      %vm6972 = vcmp.ge.f32.partialorder %v6880, 0.0
      %vm6973 = vcmp.ge.f32.partialorder %v6881, 0.0
      %vm6974 = vcmp.ge.f32.partialorder %v6882, 0.0
      %vm6975 = vcmp.ge.f32.partialorder %v6883, 0.0
      %vm6976 = vcmp.ge.f32.partialorder %v6884, 0.0
      %vm6977 = vcmp.ge.f32.partialorder %v6885, 0.0
      %vm6978 = vcmp.ge.f32.partialorder %v6886, 0.0
      %vm6979 = vcmp.ge.f32.partialorder %v6887, 0.0
      %vm6980 = vcmp.ge.f32.partialorder %v6888, 0.0
      %vm6981 = vcmp.ge.f32.partialorder %v6889, 0.0
      %vm6982 = vcmp.ge.f32.partialorder %v6890, 0.0
      %vm6983 = vcmp.ge.f32.partialorder %v6891, 0.0
      %vm6984 = vcmp.ge.f32.partialorder %v6892, 0.0
      %vm6985 = vcmp.ge.f32.partialorder %v6893, 0.0
      %vm6986 = vcmp.ge.f32.partialorder %v6894, 0.0
      %vm6987 = vcmp.ge.f32.partialorder %v6895, 0.0
      %vm6988 = vcmp.ge.f32.partialorder %v6896, 0.0
      %vm6989 = vcmp.ge.f32.partialorder %v6897, 0.0
      %vm6990 = vcmp.ge.f32.partialorder %v6898, 0.0
      %vm6991 = vcmp.ge.f32.partialorder %v6899, 0.0
      %vm6992 = vcmp.ge.f32.partialorder %v6900, 0.0
      %vm6993 = vcmp.ge.f32.partialorder %v6901, 0.0
      %vm6994 = vcmp.ge.f32.partialorder %v6902, 0.0
      %vm6995 = vcmp.ge.f32.partialorder %v6903, 0.0
      %vm6996 = vcmp.ge.f32.partialorder %v6904, 0.0
      %vm6997 = vcmp.ge.f32.partialorder %v6905, 0.0
      %vm6998 = vcmp.ge.f32.partialorder %v6906, 0.0
      %vm6999 = vcmp.ge.f32.partialorder %v6907, 0.0
      %vm7000 = vcmp.ge.f32.partialorder %v6908, 0.0
      %vm7001 = vcmp.ge.f32.partialorder %v6909, 0.0
      %vm7002 = vcmp.ge.f32.partialorder %v6910, 0.0
      %vm7003 = vcmp.ge.f32.partialorder %v6911, 0.0
      %vm7004 = vcmp.ge.f32.partialorder %v6912, 0.0
      %vm7005 = vcmp.ge.f32.partialorder %v6913, 0.0
      %vm7006 = vcmp.ge.f32.partialorder %v6914, 0.0
      %vm7007 = vcmp.ge.f32.partialorder %v6915, 0.0
      %vm7008 = vcmp.ge.f32.partialorder %v6916, 0.0
      %vm7009 = vcmp.ge.f32.partialorder %v6917, 0.0
      %vm7010 = vcmp.ge.f32.partialorder %v6918, 0.0
      %vm7011 = vcmp.ge.f32.partialorder %v6919, 0.0
      %vm7012 = vcmp.ge.f32.partialorder %v6920, 0.0
      %vm7013 = vcmp.ge.f32.partialorder %v6921, 0.0
      %vm7014 = vcmp.ge.f32.partialorder %v6922, 0.0
      %vm7015 = vcmp.ge.f32.partialorder %v6923, 0.0
      %vm7016 = vcmp.ge.f32.partialorder %v6924, 0.0
      %vm7017 = vcmp.ge.f32.partialorder %v6925, 0.0
      %vm7018 = vcmp.ge.f32.partialorder %v6926, 0.0
      %vm7019 = vcmp.ge.f32.partialorder %v6927, 0.0
      %vm7020 = vcmp.ge.f32.partialorder %v6928, 0.0
      %vm7021 = vcmp.ge.f32.partialorder %v6929, 0.0
      %vm7022 = vcmp.ge.f32.partialorder %v6930, 0.0
      %vm7023 = vcmp.ge.f32.partialorder %v6931, 0.0
      %vm7024 = vcmp.ge.f32.partialorder %v6932, 0.0
      %vm7025 = vcmp.ge.f32.partialorder %v6933, 0.0
      %vm7026 = vcmp.ge.f32.partialorder %v6934, 0.0
      %vm7027 = vcmp.ge.f32.partialorder %v6935, 0.0
      %vm7028 = vcmp.ge.f32.partialorder %v6936, 0.0
      %vm7029 = vcmp.ge.f32.partialorder %v6937, 0.0
      %vm7030 = vcmp.ge.f32.partialorder %v6938, 0.0
      %vm7031 = vcmp.ge.f32.partialorder %v6939, 0.0
      %vm7032 = vcmp.ge.f32.partialorder %v6940, 0.0
      %vm7033 = vcmp.ge.f32.partialorder %v6941, 0.0
      %vm7034 = vcmp.ge.f32.partialorder %v6942, 0.0
      %vm7035 = vcmp.ge.f32.partialorder %v6943, 0.0
      %vm7036 = vcmp.ge.f32.partialorder %v6944, 0.0
      %vm7037 = vcmp.ge.f32.partialorder %v6945, 0.0
      %vm7038 = vcmp.ge.f32.partialorder %v6946, 0.0
      %vm7039 = vcmp.ge.f32.partialorder %v6947, 0.0
      %vm7040 = vcmp.ge.f32.partialorder %v6948, 0.0
      %vm7041 = vcmp.ge.f32.partialorder %v6949, 0.0
      %vm7042 = vcmp.ge.f32.partialorder %v6950, 0.0
      %vm7043 = vcmp.ge.f32.partialorder %v6951, 0.0
      %vm7044 = vcmp.ge.f32.partialorder %v6952, 0.0
      %vm7045 = vcmp.ge.f32.partialorder %v6953, 0.0
      %vm7046 = vcmp.ge.f32.partialorder %v6954, 0.0
      %vm7047 = vcmp.ge.f32.partialorder %v6955, 0.0
      %vm7048 = vcmp.ge.f32.partialorder %v6956, 0.0
      %vm7049 = vcmp.ge.f32.partialorder %v6957, 0.0
      %vm7050 = vcmp.ge.f32.partialorder %v6958, 0.0
      %vm7051 = vcmp.ge.f32.partialorder %v6959, 0.0
      %vm7052 = vcmp.ge.f32.partialorder %v6960, 0.0
      %vm7053 = vcmp.ge.f32.partialorder %v6961, 0.0
      %vm7054 = vcmp.ge.f32.partialorder %v6962, 0.0
      %vm7055 = vcmp.ge.f32.partialorder %v6963, 0.0
      %vm7056 = vcmp.ge.f32.partialorder %v6964, 0.0
      %vm7057 = vcmp.ge.f32.partialorder %v6965, 0.0
      %vm7058 = vcmp.ge.f32.partialorder %v6966, 0.0
      %vm7059 = vcmp.ge.f32.partialorder %v6967, 0.0
      %v7060 = vmul.f32 %v6876, 0.01
      %v7061 = vmul.f32 %v6877, 0.01
      %v7062 = vmul.f32 %v6878, 0.01
      %v7063 = vmul.f32 %v6879, 0.01
      %v7064 = vmul.f32 %v6880, 0.01
      %v7065 = vmul.f32 %v6881, 0.01
      %v7066 = vmul.f32 %v6882, 0.01
      %v7067 = vmul.f32 %v6883, 0.01
      %v7068 = vmul.f32 %v6884, 0.01
      %v7069 = vmul.f32 %v6885, 0.01
      %v7070 = vmul.f32 %v6886, 0.01
      %v7071 = vmul.f32 %v6887, 0.01
      %v7072 = vmul.f32 %v6888, 0.01
      %v7073 = vmul.f32 %v6889, 0.01
      %v7074 = vmul.f32 %v6890, 0.01
      %v7075 = vmul.f32 %v6891, 0.01
      %v7076 = vmul.f32 %v6892, 0.01
      %v7077 = vmul.f32 %v6893, 0.01
      %v7078 = vmul.f32 %v6894, 0.01
      %v7079 = vmul.f32 %v6895, 0.01
      %v7080 = vmul.f32 %v6896, 0.01
      %v7081 = vmul.f32 %v6897, 0.01
      %v7082 = vmul.f32 %v6898, 0.01
      %v7083 = vmul.f32 %v6899, 0.01
      %v7084 = vmul.f32 %v6900, 0.01
      %v7085 = vmul.f32 %v6901, 0.01
      %v7086 = vmul.f32 %v6902, 0.01
      %v7087 = vmul.f32 %v6903, 0.01
      %v7088 = vmul.f32 %v6904, 0.01
      %v7089 = vmul.f32 %v6905, 0.01
      %v7090 = vmul.f32 %v6906, 0.01
      %v7091 = vmul.f32 %v6907, 0.01
      %v7092 = vmul.f32 %v6908, 0.01
      %v7093 = vmul.f32 %v6909, 0.01
      %v7094 = vmul.f32 %v6910, 0.01
      %v7095 = vmul.f32 %v6911, 0.01
      %v7096 = vmul.f32 %v6912, 0.01
      %v7097 = vmul.f32 %v6913, 0.01
      %v7098 = vmul.f32 %v6914, 0.01
      %v7099 = vmul.f32 %v6915, 0.01
      %v7100 = vmul.f32 %v6916, 0.01
      %v7101 = vmul.f32 %v6917, 0.01
      %v7102 = vmul.f32 %v6918, 0.01
      %v7103 = vmul.f32 %v6919, 0.01
      %v7104 = vmul.f32 %v6920, 0.01
      %v7105 = vmul.f32 %v6921, 0.01
      %v7106 = vmul.f32 %v6922, 0.01
      %v7107 = vmul.f32 %v6923, 0.01
      %v7108 = vmul.f32 %v6924, 0.01
      %v7109 = vmul.f32 %v6925, 0.01
      %v7110 = vmul.f32 %v6926, 0.01
      %v7111 = vmul.f32 %v6927, 0.01
      %v7112 = vmul.f32 %v6928, 0.01
      %v7113 = vmul.f32 %v6929, 0.01
      %v7114 = vmul.f32 %v6930, 0.01
      %v7115 = vmul.f32 %v6931, 0.01
      %v7116 = vmul.f32 %v6932, 0.01
      %v7117 = vmul.f32 %v6933, 0.01
      %v7118 = vmul.f32 %v6934, 0.01
      %v7119 = vmul.f32 %v6935, 0.01
      %v7120 = vmul.f32 %v6936, 0.01
      %v7121 = vmul.f32 %v6937, 0.01
      %v7122 = vmul.f32 %v6938, 0.01
      %v7123 = vmul.f32 %v6939, 0.01
      %v7124 = vmul.f32 %v6940, 0.01
      %v7125 = vmul.f32 %v6941, 0.01
      %v7126 = vmul.f32 %v6942, 0.01
      %v7127 = vmul.f32 %v6943, 0.01
      %v7128 = vmul.f32 %v6944, 0.01
      %v7129 = vmul.f32 %v6945, 0.01
      %v7130 = vmul.f32 %v6946, 0.01
      %v7131 = vmul.f32 %v6947, 0.01
      %v7132 = vmul.f32 %v6948, 0.01
      %v7133 = vmul.f32 %v6949, 0.01
      %v7134 = vmul.f32 %v6950, 0.01
      %v7135 = vmul.f32 %v6951, 0.01
      %v7136 = vmul.f32 %v6952, 0.01
      %v7137 = vmul.f32 %v6953, 0.01
      %v7138 = vmul.f32 %v6954, 0.01
      %v7139 = vmul.f32 %v6955, 0.01
      %v7140 = vmul.f32 %v6956, 0.01
      %v7141 = vmul.f32 %v6957, 0.01
      %v7142 = vmul.f32 %v6958, 0.01
      %v7143 = vmul.f32 %v6959, 0.01
      %v7144 = vmul.f32 %v6960, 0.01
      %v7145 = vmul.f32 %v6961, 0.01
      %v7146 = vmul.f32 %v6962, 0.01
      %v7147 = vmul.f32 %v6963, 0.01
      %v7148 = vmul.f32 %v6964, 0.01
      %v7149 = vmul.f32 %v6965, 0.01
      %v7150 = vmul.f32 %v6966, 0.01
      %v7151 = vmul.f32 %v6967, 0.01
      %v7152 = vsel %vm6968, %v6876, %v7060
      %v7153 = vsel %vm6969, %v6877, %v7061
      %v7154 = vsel %vm6970, %v6878, %v7062
      %v7155 = vsel %vm6971, %v6879, %v7063
      %v7156 = vsel %vm6972, %v6880, %v7064
      %v7157 = vsel %vm6973, %v6881, %v7065
      %v7158 = vsel %vm6974, %v6882, %v7066
      %v7159 = vsel %vm6975, %v6883, %v7067
      %v7160 = vsel %vm6976, %v6884, %v7068
      %v7161 = vsel %vm6977, %v6885, %v7069
      %v7162 = vsel %vm6978, %v6886, %v7070
      %v7163 = vsel %vm6979, %v6887, %v7071
      %v7164 = vsel %vm6980, %v6888, %v7072
      %v7165 = vsel %vm6981, %v6889, %v7073
      %v7166 = vsel %vm6982, %v6890, %v7074
      %v7167 = vsel %vm6983, %v6891, %v7075
      %v7168 = vsel %vm6984, %v6892, %v7076
      %v7169 = vsel %vm6985, %v6893, %v7077
      %v7170 = vsel %vm6986, %v6894, %v7078
      %v7171 = vsel %vm6987, %v6895, %v7079
      %v7172 = vsel %vm6988, %v6896, %v7080
      %v7173 = vsel %vm6989, %v6897, %v7081
      %v7174 = vsel %vm6990, %v6898, %v7082
      %v7175 = vsel %vm6991, %v6899, %v7083
      %v7176 = vsel %vm6992, %v6900, %v7084
      %v7177 = vsel %vm6993, %v6901, %v7085
      %v7178 = vsel %vm6994, %v6902, %v7086
      %v7179 = vsel %vm6995, %v6903, %v7087
      %v7180 = vsel %vm6996, %v6904, %v7088
      %v7181 = vsel %vm6997, %v6905, %v7089
      %v7182 = vsel %vm6998, %v6906, %v7090
      %v7183 = vsel %vm6999, %v6907, %v7091
      %v7184 = vsel %vm7000, %v6908, %v7092
      %v7185 = vsel %vm7001, %v6909, %v7093
      %v7186 = vsel %vm7002, %v6910, %v7094
      %v7187 = vsel %vm7003, %v6911, %v7095
      %v7188 = vsel %vm7004, %v6912, %v7096
      %v7189 = vsel %vm7005, %v6913, %v7097
      %v7190 = vsel %vm7006, %v6914, %v7098
      %v7191 = vsel %vm7007, %v6915, %v7099
      %v7192 = vsel %vm7008, %v6916, %v7100
      %v7193 = vsel %vm7009, %v6917, %v7101
      %v7194 = vsel %vm7010, %v6918, %v7102
      %v7195 = vsel %vm7011, %v6919, %v7103
      %v7196 = vsel %vm7012, %v6920, %v7104
      %v7197 = vsel %vm7013, %v6921, %v7105
      %v7198 = vsel %vm7014, %v6922, %v7106
      %v7199 = vsel %vm7015, %v6923, %v7107
      %v7200 = vsel %vm7016, %v6924, %v7108
      %v7201 = vsel %vm7017, %v6925, %v7109
      %v7202 = vsel %vm7018, %v6926, %v7110
      %v7203 = vsel %vm7019, %v6927, %v7111
      %v7204 = vsel %vm7020, %v6928, %v7112
      %v7205 = vsel %vm7021, %v6929, %v7113
      %v7206 = vsel %vm7022, %v6930, %v7114
      %v7207 = vsel %vm7023, %v6931, %v7115
      %v7208 = vsel %vm7024, %v6932, %v7116
      %v7209 = vsel %vm7025, %v6933, %v7117
      %v7210 = vsel %vm7026, %v6934, %v7118
      %v7211 = vsel %vm7027, %v6935, %v7119
      %v7212 = vsel %vm7028, %v6936, %v7120
      %v7213 = vsel %vm7029, %v6937, %v7121
      %v7214 = vsel %vm7030, %v6938, %v7122
      %v7215 = vsel %vm7031, %v6939, %v7123
      %v7216 = vsel %vm7032, %v6940, %v7124
      %v7217 = vsel %vm7033, %v6941, %v7125
      %v7218 = vsel %vm7034, %v6942, %v7126
      %v7219 = vsel %vm7035, %v6943, %v7127
      %v7220 = vsel %vm7036, %v6944, %v7128
      %v7221 = vsel %vm7037, %v6945, %v7129
      %v7222 = vsel %vm7038, %v6946, %v7130
      %v7223 = vsel %vm7039, %v6947, %v7131
      %v7224 = vsel %vm7040, %v6948, %v7132
      %v7225 = vsel %vm7041, %v6949, %v7133
      %v7226 = vsel %vm7042, %v6950, %v7134
      %v7227 = vsel %vm7043, %v6951, %v7135
      %v7228 = vsel %vm7044, %v6952, %v7136
      %v7229 = vsel %vm7045, %v6953, %v7137
      %v7230 = vsel %vm7046, %v6954, %v7138
      %v7231 = vsel %vm7047, %v6955, %v7139
      %v7232 = vsel %vm7048, %v6956, %v7140
      %v7233 = vsel %vm7049, %v6957, %v7141
      %v7234 = vsel %vm7050, %v6958, %v7142
      %v7235 = vsel %vm7051, %v6959, %v7143
      %v7236 = vsel %vm7052, %v6960, %v7144
      %v7237 = vsel %vm7053, %v6961, %v7145
      %v7238 = vsel %vm7054, %v6962, %v7146
      %v7239 = vsel %vm7055, %v6963, %v7147
      %v7240 = vsel %vm7056, %v6964, %v7148
      %v7241 = vsel %vm7057, %v6965, %v7149
      %v7242 = vsel %vm7058, %v6966, %v7150
      %v7243 = vsel %vm7059, %v6967, %v7151
      %vm7244 = vcmask 130048
      %7245 = vst.msk [vmem:[%s170] sm:$0xff] %vm7244, %v7152
      %7246 = vst.msk [vmem:[%s170 + $0x8] sm:$0xff] %vm7244, %v7153
      %7247 = vst.msk [vmem:[%s170 + $0x10] sm:$0xff] %vm7244, %v7154
      %7248 = vst.msk [vmem:[%s170 + $0x18] sm:$0xff] %vm7244, %v7155
      %7249 = vst.msk [vmem:[%s170 + $0x20] sm:$0xff] %vm7244, %v7156
      %7250 = vst.msk [vmem:[%s170 + $0x28] sm:$0xff] %vm7244, %v7157
      %7251 = vst.msk [vmem:[%s170 + $0x30] sm:$0xff] %vm7244, %v7158
      %7252 = vst.msk [vmem:[%s170 + $0x38] sm:$0xff] %vm7244, %v7159
      %7253 = vst.msk [vmem:[%s170 + $0x40] sm:$0xff] %vm7244, %v7160
      %7254 = vst.msk [vmem:[%s170 + $0x48] sm:$0xff] %vm7244, %v7161
      %7255 = vst.msk [vmem:[%s170 + $0x50] sm:$0xff] %vm7244, %v7162
      %7256 = vst.msk [vmem:[%s170 + $0x58] sm:$0xff] %vm7244, %v7163
      %7257 = vst.msk [vmem:[%s170 + $0x60] sm:$0xff] %vm7244, %v7164
      %7258 = vst.msk [vmem:[%s170 + $0x68] sm:$0xff] %vm7244, %v7165
      %7259 = vst.msk [vmem:[%s170 + $0x70] sm:$0xff] %vm7244, %v7166
      %7260 = vst.msk [vmem:[%s170 + $0x78] sm:$0xff] %vm7244, %v7167
      %7261 = vst.msk [vmem:[%s170 + $0x80] sm:$0xff] %vm7244, %v7168
      %7262 = vst.msk [vmem:[%s170 + $0x88] sm:$0xff] %vm7244, %v7169
      %7263 = vst.msk [vmem:[%s170 + $0x90] sm:$0xff] %vm7244, %v7170
      %7264 = vst.msk [vmem:[%s170 + $0x98] sm:$0xff] %vm7244, %v7171
      %7265 = vst.msk [vmem:[%s170 + $0xa0] sm:$0xff] %vm7244, %v7172
      %7266 = vst.msk [vmem:[%s170 + $0xa8] sm:$0xff] %vm7244, %v7173
      %7267 = vst.msk [vmem:[%s170 + $0xb0] sm:$0xff] %vm7244, %v7174
      %7268 = vst.msk [vmem:[%s170 + $0xb8] sm:$0xff] %vm7244, %v7175
      %7269 = vst.msk [vmem:[%s170 + $0xc0] sm:$0xff] %vm7244, %v7176
      %7270 = vst.msk [vmem:[%s170 + $0xc8] sm:$0xff] %vm7244, %v7177
      %7271 = vst.msk [vmem:[%s170 + $0xd0] sm:$0xff] %vm7244, %v7178
      %7272 = vst.msk [vmem:[%s170 + $0xd8] sm:$0xff] %vm7244, %v7179
      %7273 = vst.msk [vmem:[%s170 + $0xe0] sm:$0xff] %vm7244, %v7180
      %7274 = vst.msk [vmem:[%s170 + $0xe8] sm:$0xff] %vm7244, %v7181
      %7275 = vst.msk [vmem:[%s170 + $0xf0] sm:$0xff] %vm7244, %v7182
      %7276 = vst.msk [vmem:[%s170 + $0xf8] sm:$0xff] %vm7244, %v7183
      %7277 = vst.msk [vmem:[%s170 + $0x100] sm:$0xff] %vm7244, %v7184
      %7278 = vst.msk [vmem:[%s170 + $0x108] sm:$0xff] %vm7244, %v7185
      %7279 = vst.msk [vmem:[%s170 + $0x110] sm:$0xff] %vm7244, %v7186
      %7280 = vst.msk [vmem:[%s170 + $0x118] sm:$0xff] %vm7244, %v7187
      %7281 = vst.msk [vmem:[%s170 + $0x120] sm:$0xff] %vm7244, %v7188
      %7282 = vst.msk [vmem:[%s170 + $0x128] sm:$0xff] %vm7244, %v7189
      %7283 = vst.msk [vmem:[%s170 + $0x130] sm:$0xff] %vm7244, %v7190
      %7284 = vst.msk [vmem:[%s170 + $0x138] sm:$0xff] %vm7244, %v7191
      %7285 = vst.msk [vmem:[%s170 + $0x140] sm:$0xff] %vm7244, %v7192
      %7286 = vst.msk [vmem:[%s170 + $0x148] sm:$0xff] %vm7244, %v7193
      %7287 = vst.msk [vmem:[%s170 + $0x150] sm:$0xff] %vm7244, %v7194
      %7288 = vst.msk [vmem:[%s170 + $0x158] sm:$0xff] %vm7244, %v7195
      %7289 = vst.msk [vmem:[%s170 + $0x160] sm:$0xff] %vm7244, %v7196
      %7290 = vst.msk [vmem:[%s170 + $0x168] sm:$0xff] %vm7244, %v7197
      %7291 = vst.msk [vmem:[%s170 + $0x170] sm:$0xff] %vm7244, %v7198
      %7292 = vst.msk [vmem:[%s170 + $0x178] sm:$0xff] %vm7244, %v7199
      %7293 = vst.msk [vmem:[%s170 + $0x180] sm:$0xff] %vm7244, %v7200
      %7294 = vst.msk [vmem:[%s170 + $0x188] sm:$0xff] %vm7244, %v7201
      %7295 = vst.msk [vmem:[%s170 + $0x190] sm:$0xff] %vm7244, %v7202
      %7296 = vst.msk [vmem:[%s170 + $0x198] sm:$0xff] %vm7244, %v7203
      %7297 = vst.msk [vmem:[%s170 + $0x1a0] sm:$0xff] %vm7244, %v7204
      %7298 = vst.msk [vmem:[%s170 + $0x1a8] sm:$0xff] %vm7244, %v7205
      %7299 = vst.msk [vmem:[%s170 + $0x1b0] sm:$0xff] %vm7244, %v7206
      %7300 = vst.msk [vmem:[%s170 + $0x1b8] sm:$0xff] %vm7244, %v7207
      %7301 = vst.msk [vmem:[%s170 + $0x1c0] sm:$0xff] %vm7244, %v7208
      %7302 = vst.msk [vmem:[%s170 + $0x1c8] sm:$0xff] %vm7244, %v7209
      %7303 = vst.msk [vmem:[%s170 + $0x1d0] sm:$0xff] %vm7244, %v7210
      %7304 = vst.msk [vmem:[%s170 + $0x1d8] sm:$0xff] %vm7244, %v7211
      %7305 = vst.msk [vmem:[%s170 + $0x1e0] sm:$0xff] %vm7244, %v7212
      %7306 = vst.msk [vmem:[%s170 + $0x1e8] sm:$0xff] %vm7244, %v7213
      %7307 = vst.msk [vmem:[%s170 + $0x1f0] sm:$0xff] %vm7244, %v7214
      %7308 = vst.msk [vmem:[%s170 + $0x1f8] sm:$0xff] %vm7244, %v7215
      %7309 = vst.msk [vmem:[%s170 + $0x200] sm:$0xff] %vm7244, %v7216
      %7310 = vst.msk [vmem:[%s170 + $0x208] sm:$0xff] %vm7244, %v7217
      %7311 = vst.msk [vmem:[%s170 + $0x210] sm:$0xff] %vm7244, %v7218
      %7312 = vst.msk [vmem:[%s170 + $0x218] sm:$0xff] %vm7244, %v7219
      %7313 = vst.msk [vmem:[%s170 + $0x220] sm:$0xff] %vm7244, %v7220
      %7314 = vst.msk [vmem:[%s170 + $0x228] sm:$0xff] %vm7244, %v7221
      %7315 = vst.msk [vmem:[%s170 + $0x230] sm:$0xff] %vm7244, %v7222
      %7316 = vst.msk [vmem:[%s170 + $0x238] sm:$0xff] %vm7244, %v7223
      %7317 = vst.msk [vmem:[%s170 + $0x240] sm:$0xff] %vm7244, %v7224
      %7318 = vst.msk [vmem:[%s170 + $0x248] sm:$0xff] %vm7244, %v7225
      %7319 = vst.msk [vmem:[%s170 + $0x250] sm:$0xff] %vm7244, %v7226
      %7320 = vst.msk [vmem:[%s170 + $0x258] sm:$0xff] %vm7244, %v7227
      %7321 = vst.msk [vmem:[%s170 + $0x260] sm:$0xff] %vm7244, %v7228
      %7322 = vst.msk [vmem:[%s170 + $0x268] sm:$0xff] %vm7244, %v7229
      %7323 = vst.msk [vmem:[%s170 + $0x270] sm:$0xff] %vm7244, %v7230
      %7324 = vst.msk [vmem:[%s170 + $0x278] sm:$0xff] %vm7244, %v7231
      %7325 = vst.msk [vmem:[%s170 + $0x280] sm:$0xff] %vm7244, %v7232
      %7326 = vst.msk [vmem:[%s170 + $0x288] sm:$0xff] %vm7244, %v7233
      %7327 = vst.msk [vmem:[%s170 + $0x290] sm:$0xff] %vm7244, %v7234
      %7328 = vst.msk [vmem:[%s170 + $0x298] sm:$0xff] %vm7244, %v7235
      %7329 = vst.msk [vmem:[%s170 + $0x2a0] sm:$0xff] %vm7244, %v7236
      %7330 = vst.msk [vmem:[%s170 + $0x2a8] sm:$0xff] %vm7244, %v7237
      %7331 = vst.msk [vmem:[%s170 + $0x2b0] sm:$0xff] %vm7244, %v7238
      %7332 = vst.msk [vmem:[%s170 + $0x2b8] sm:$0xff] %vm7244, %v7239
      %7333 = vst.msk [vmem:[%s170 + $0x2c0] sm:$0xff] %vm7244, %v7240
      %7334 = vst.msk [vmem:[%s170 + $0x2c8] sm:$0xff] %vm7244, %v7241
      %7335 = vst.msk [vmem:[%s170 + $0x2d0] sm:$0xff] %vm7244, %v7242
      %vm7336 = vcmask 122880
      %7337 = vst.msk [vmem:[%s170 + $0x2d8] sm:$0x1] %vm7336, %v7243
      %p7338 = scmp.lt.s32.totalorder %s14, 1
      %s7339 = scalar_select %p7338, %s14, 1
      %s7340 = smul.addr %s7339, 92
      %s7341 = smul.addr %s7340, 8
      %s7342 = scalar_lea.vmem %s3, %s7341
      // Predicated region
      $region33: #{classifier_forward.5} parent=31 // pred_check
        %p7343 = pneg %p100
      $region34: #{classifier_forward.5} parent=31 // pred_check_branch
        %7345 = sbr.rel (%p7343) target = $region36
      $region35: #{classifier_forward.5} parent=31 // pred_region
        _
      $region36: #{classifier_forward.5} parent=31 // pred_fallthru
        _
    $region32: #{classifier_forward.5} parent=5 // pred_fallthru
      _
    %p7346 = scmp.le.s32.totalorder 2, %s9
    // Predicated region
    $region37: #{classifier_forward.5} parent=5 // pred_check
      %p7347 = pneg %p7346
    $region38: #{classifier_forward.5} parent=5 // pred_check_branch
      %7349 = sbr.rel (%p7347) target = $region40
    $region39: #{classifier_forward.5} parent=5 // pred_region
      %s7350 = ssub.s32 %s9, 2
      // Predicated region
      $region41: #{classifier_forward.5} parent=39 // pred_check
        %p7351 = pneg %p106
      $region42: #{classifier_forward.5} parent=39 // pred_check_branch
        %7353 = sbr.rel (%p7351) target = $region44
      $region43: #{classifier_forward.5} parent=39 // pred_region
        %p7354 = scmp.lt.s32.totalorder %s15, 1
        %s7355 = scalar_select %p7354, %s15, 1
        %s7356 = smul.addr %s7355, 92
        %s7357 = smul.addr %s7356, 8
        %s7358 = scalar_lea.vmem %s3, %s7357
      $region44: #{classifier_forward.5} parent=39 // pred_fallthru
        _
    $region40: #{classifier_forward.5} parent=5 // pred_fallthru
      _
  $region6: #{classifier_forward.5} parent=0 // loop_footer
    %s13 = sadd.s32 1, %s9
  $region7: #{classifier_forward.5} parent=0 // loop_footer_branch
    %8 = sbr.rel target = $region3
  $region8: #{classifier_forward.5} parent=0 // loop_exit
    _

// kernel: classifier_forward.6
$region0: #{classifier_forward.6}
  #allocation0 [shape = 'u32[]', space=smem, size = 0x4, offset = 0x4, fixed_abs, tag = 'smem constant byte address 0x4 - core index']
  #allocation1 [shape = 'u32[72,128]{1,0:T(1,128)}', space=vmem, size = 0x9000, scoped, tag = 'internal scratch']
  %s0 = inlined_call_operand.vmem [shape: f32[2,9,81,144], index: 0, kind: input, shape index: {}]
  %s1 = inlined_call_operand.vmem [shape: f32[144,32], index: 1, kind: input, shape index: {}]
  %s2 = inlined_call_operand.vmem [shape: f32[1,32], index: 2, kind: input, shape index: {}]
  %s3 = inlined_call_operand.vmem [shape: f32[2,81,32], index: 3, kind: output, shape index: {}]
  %s4 = sld [smem:[#allocation0]]
  $region45: #{classifier_forward.6} parent=0
    _
  %s6 = ssub.s32 1, %s4
  %s7 = scalar_select 0, %s6, %s4
  loop: start=0, step=1, limit=4
  $region2: #{classifier_forward.6} parent=0 // loop_pre_header
    _
  $region3: #{classifier_forward.6} parent=0 // loop_header
    %s9 = sphi 0, %s13
    %p10 = scmp.ge.s32.totalorder %s9, 4
    %s19 = sphi 0, %s21
    %s22 = sphi 0, %s19
    %s23 = sphi 0, %s22
    %s39 = sphi 0, %s23
    %s43 = sphi 0, %s43
    %s45 = sphi 0, %s43
    %s46 = sphi 0, %s45
    %s60 = sphi 0, %s46
    %s64 = sphi 0, %s64
    %s66 = sphi 0, %s64
    %s67 = sphi 0, %s66
    %s81 = sphi 0, %s67
    %s87 = sphi 0, %s89
    %s90 = sphi 0, %s87
    %s91 = sphi 0, %s90
    %s107 = sphi 0, %s91
  $region4: #{classifier_forward.6} parent=0 // loop_header_branch
    %12 = sbr.rel (%p10) target = $region8
  $region5: #{classifier_forward.6} parent=0 // loop_body
    %s14 = ssub.s32 %s9, 1
    %s15 = ssub.s32 %s9, 2
    %s16 = sadd.s32 %s9, 1
    %s17 = ssub.s32 %s9, %s16
    %p18 = scmp.eq.s32.totalorder %s17, 0
    %s20 = sadd.s32 %s19, 1
    %s21 = scalar_select %p18, %s19, %s20
    %p24 = pneg %p18
    %p25 = scmp.eq.s32.totalorder %s9, 1
    %p26 = por %p24, %p25
    %p27 = scmp.ne.s32.totalorder %s19, %s22
    %p28 = scmp.eq.s32.totalorder %s9, 0
    %p29 = por %p27, %p28
    %p30 = scmp.ne.s32.totalorder %s19, %s22
    %p31 = scmp.eq.s32.totalorder %s14, 1
    %p32 = por %p30, %p31
    %p33 = scmp.ne.s32.totalorder %s22, %s23
    %p34 = scmp.eq.s32.totalorder %s14, 0
    %p35 = por %p33, %p34
    %p36 = scmp.ne.s32.totalorder %s22, %s23
    %p37 = scmp.eq.s32.totalorder %s15, 1
    %p38 = por %p36, %p37
    %p40 = scmp.ne.s32.totalorder %s23, %s39
    %p41 = scmp.eq.s32.totalorder %s15, 0
    %p42 = por %p40, %p41
    %s44 = sadd.s32 %s43, 1
    %p47 = scmp.eq.s32.totalorder %s9, 1
    %p48 = scmp.ne.s32.totalorder %s43, %s45
    %p49 = scmp.eq.s32.totalorder %s9, 0
    %p50 = por %p48, %p49
    %p51 = scmp.ne.s32.totalorder %s43, %s45
    %p52 = scmp.eq.s32.totalorder %s14, 1
    %p53 = por %p51, %p52
    %p54 = scmp.ne.s32.totalorder %s45, %s46
    %p55 = scmp.eq.s32.totalorder %s14, 0
    %p56 = por %p54, %p55
    %p57 = scmp.ne.s32.totalorder %s45, %s46
    %p58 = scmp.eq.s32.totalorder %s15, 1
    %p59 = por %p57, %p58
    %p61 = scmp.ne.s32.totalorder %s46, %s60
    %p62 = scmp.eq.s32.totalorder %s15, 0
    %p63 = por %p61, %p62
    %s65 = sadd.s32 %s64, 1
    %p68 = scmp.eq.s32.totalorder %s9, 1
    %p69 = scmp.ne.s32.totalorder %s64, %s66
    %p70 = scmp.eq.s32.totalorder %s9, 0
    %p71 = por %p69, %p70
    %p72 = scmp.ne.s32.totalorder %s64, %s66
    %p73 = scmp.eq.s32.totalorder %s14, 1
    %p74 = por %p72, %p73
    %p75 = scmp.ne.s32.totalorder %s66, %s67
    %p76 = scmp.eq.s32.totalorder %s14, 0
    %p77 = por %p75, %p76
    %p78 = scmp.ne.s32.totalorder %s66, %s67
    %p79 = scmp.eq.s32.totalorder %s15, 1
    %p80 = por %p78, %p79
    %p82 = scmp.ne.s32.totalorder %s67, %s81
    %p83 = scmp.eq.s32.totalorder %s15, 0
    %p84 = por %p82, %p83
    %s85 = ssub.s32 %s9, %s16
    %p86 = scmp.eq.s32.totalorder %s85, 0
    %s88 = sadd.s32 %s87, 1
    %s89 = scalar_select %p86, %s87, %s88
    %p92 = pneg %p86
    %p93 = scmp.eq.s32.totalorder %s9, 1
    %p94 = por %p92, %p93
    %p95 = scmp.ne.s32.totalorder %s87, %s90
    %p96 = scmp.eq.s32.totalorder %s9, 0
    %p97 = por %p95, %p96
    %p98 = scmp.ne.s32.totalorder %s87, %s90
    %p99 = scmp.eq.s32.totalorder %s14, 1
    %p100 = por %p98, %p99
    %p101 = scmp.ne.s32.totalorder %s90, %s91
    %p102 = scmp.eq.s32.totalorder %s14, 0
    %p103 = por %p101, %p102
    %p104 = scmp.ne.s32.totalorder %s90, %s91
    %p105 = scmp.eq.s32.totalorder %s15, 1
    %p106 = por %p104, %p105
    %p108 = scmp.ne.s32.totalorder %s91, %s107
    %p109 = scmp.eq.s32.totalorder %s15, 0
    %p110 = por %p108, %p109
    %p111 = scmp.le.s32.totalorder 1, %s9
    %p112 = scmp.lt.s32.totalorder %s9, 3
    %p113 = pnand %p111, %p112
    %p114 = pneg %p113
    // Predicated region
    $region9: #{classifier_forward.6} parent=5 // pred_check
      _
    $region10: #{classifier_forward.6} parent=5 // pred_check_branch
      %116 = sbr.rel (%p113) target = $region12
    $region11: #{classifier_forward.6} parent=5 // pred_region
      %s117 = ssub.s32 %s9, 1
      // Predicated region
      $region13: #{classifier_forward.6} parent=11 // pred_check
        %p118 = pneg %p56
      $region14: #{classifier_forward.6} parent=11 // pred_check_branch
        %120 = sbr.rel (%p118) target = $region16
      $region15: #{classifier_forward.6} parent=11 // pred_region
        _
      $region16: #{classifier_forward.6} parent=11 // pred_fallthru
        _
      // Predicated region
      $region17: #{classifier_forward.6} parent=11 // pred_check
        %p121 = pneg %p77
      $region18: #{classifier_forward.6} parent=11 // pred_check_branch
        %123 = sbr.rel (%p121) target = $region20
      $region19: #{classifier_forward.6} parent=11 // pred_region
        _
      $region20: #{classifier_forward.6} parent=11 // pred_fallthru
        _
    $region12: #{classifier_forward.6} parent=5 // pred_fallthru
      _
    %p124 = scmp.lt.s32.totalorder %s9, 2
    // Predicated region
    $region21: #{classifier_forward.6} parent=5 // pred_check
      %p125 = pneg %p124
    $region22: #{classifier_forward.6} parent=5 // pred_check_branch
      %127 = sbr.rel (%p125) target = $region24
    $region23: #{classifier_forward.6} parent=5 // pred_region
      // Predicated region
      $region25: #{classifier_forward.6} parent=23 // pred_check
        %p128 = pneg %p29
      $region26: #{classifier_forward.6} parent=23 // pred_check_branch
        %130 = sbr.rel (%p128) target = $region28
      $region27: #{classifier_forward.6} parent=23 // pred_region
        %p131 = scmp.lt.s32.totalorder %s9, 1
        %s132 = scalar_select %p131, %s9, 1
        %s133 = smul.addr %s132, 198
        %s134 = smul.addr %s133, 8
        %s135 = scalar_lea.vmem %s0, %s134
      $region28: #{classifier_forward.6} parent=23 // pred_fallthru
        _
    $region24: #{classifier_forward.6} parent=5 // pred_fallthru
      _
    %p136 = scmp.le.s32.totalorder 1, %s9
    %p137 = scmp.lt.s32.totalorder %s9, 3
    %p138 = pnand %p136, %p137
    %p139 = pneg %p138
    // Predicated region
    $region29: #{classifier_forward.6} parent=5 // pred_check
      _
    $region30: #{classifier_forward.6} parent=5 // pred_check_branch
      %141 = sbr.rel (%p138) target = $region32
    $region31: #{classifier_forward.6} parent=5 // pred_region
      %s142 = ssub.s32 %s9, 1
      %p143 = scmp.lt.s32.totalorder %s14, 1
      %s144 = scalar_select %p143, %s14, 1
      %s145 = smul.addr %s144, 198
      %s146 = smul.addr %s145, 8
      %s147 = scalar_lea.vmem %s0, %s146
      %p148 = pneg %p35
      %p149 = pneg %p32
      %p150 = pneg %p56
      %p151 = pneg %p53
      %p152 = pneg %p77
      %p153 = pneg %p74
      %p154 = pneg %p103
      %p155 = pneg %p100
      %p156 = scmp.lt.s32.totalorder %s14, 1
      %s157 = scalar_select %p156, %s14, 1
      %s158 = smul.addr %s157, 11
      %s159 = smul.addr %s158, 8
      %s160 = scalar_lea.vmem %s3, %s159
      %p161 = scmp.lt.s32.totalorder %s14, 1
      %s162 = scalar_select %p161, %s14, 1
      %s163 = smul.addr %s162, 198
      %s164 = smul.addr %s163, 8
      %s165 = scalar_lea.vmem %s0, %s164
      %p166 = scmp.lt.s32.totalorder %s14, 1
      %s167 = scalar_select %p166, %s14, 1
      %s168 = smul.addr %s167, 11
      %s169 = smul.addr %s168, 8
      %s170 = scalar_lea.vmem %s3, %s169
      %v171 = vld [vmem:[%s1] sm:$0xff]
      %v172 = vld [vmem:[%s1 + $0x8] sm:$0xff]
      %v173 = vld [vmem:[%s1 + $0x10] sm:$0xff]
      %v174 = vld [vmem:[%s1 + $0x18] sm:$0xff]
      %v175 = vld [vmem:[%s1 + $0x20] sm:$0xff]
      %v176 = vld [vmem:[%s1 + $0x28] sm:$0xff]
      %v177 = vld [vmem:[%s1 + $0x30] sm:$0xff]
      %v178 = vld [vmem:[%s1 + $0x38] sm:$0xff]
      %v179 = vld [vmem:[%s1 + $0x40] sm:$0xff]
      %v180 = vld [vmem:[%s1 + $0x48] sm:$0xff]
      %v181 = vld [vmem:[%s1 + $0x50] sm:$0xff]
      %v182 = vld [vmem:[%s1 + $0x58] sm:$0xff]
      %v183 = vld [vmem:[%s1 + $0x60] sm:$0xff]
      %v184 = vld [vmem:[%s1 + $0x68] sm:$0xff]
      %v185 = vld [vmem:[%s1 + $0x70] sm:$0xff]
      %v186 = vld [vmem:[%s1 + $0x78] sm:$0xff]
      %v187 = vld [vmem:[%s1 + $0x80] sm:$0xff]
      %v188 = vld [vmem:[%s1 + $0x88] sm:$0xff]
      %v189 = vld [vmem:[%s165] sm:$0xff]
      %v190 = vld [vmem:[%s165 + $0x8] sm:$0xff]
      %v191 = vld [vmem:[%s165 + $0x10] sm:$0xff]
      %v192 = vld [vmem:[%s165 + $0x18] sm:$0xff]
      %v193 = vld [vmem:[%s165 + $0x20] sm:$0xff]
      %v194 = vld [vmem:[%s165 + $0x28] sm:$0xff]
      %v195 = vld [vmem:[%s165 + $0x30] sm:$0xff]
      %v196 = vld [vmem:[%s165 + $0x38] sm:$0xff]
      %v197 = vld [vmem:[%s165 + $0x40] sm:$0xff]
      %v198 = vld [vmem:[%s165 + $0x48] sm:$0xff]
      %v199 = vld [vmem:[%s165 + $0x50] sm:$0xff]
      %v200 = vld [vmem:[%s165 + $0x58] sm:$0xff]
      %v201 = vld [vmem:[%s165 + $0x60] sm:$0xff]
      %v202 = vld [vmem:[%s165 + $0x68] sm:$0xff]
      %v203 = vld [vmem:[%s165 + $0x70] sm:$0xff]
      %v204 = vld [vmem:[%s165 + $0x78] sm:$0xff]
      %v205 = vld [vmem:[%s165 + $0x80] sm:$0xff]
      %v206 = vld [vmem:[%s165 + $0x88] sm:$0xff]
      %v207 = vld [vmem:[%s165 + $0x90] sm:$0xff]
      %v208 = vld [vmem:[%s165 + $0x98] sm:$0xff]
      %v209 = vld [vmem:[%s165 + $0xa0] sm:$0x1]
      %v210 = vld [vmem:[%s165 + $0xa8] sm:$0x1]
      %vm211 = vcmask 130048
      %v213 = vsel %vm211, %v190, 0
      %v216 = vsel %vm211, %v192, 0
      %v219 = vsel %vm211, %v194, 0
      %v222 = vsel %vm211, %v196, 0
      %v225 = vsel %vm211, %v198, 0
      %v228 = vsel %vm211, %v200, 0
      %v231 = vsel %vm211, %v202, 0
      %v234 = vsel %vm211, %v204, 0
      %v237 = vsel %vm211, %v206, 0
      %v240 = vsel %vm211, %v208, 0
      %v243 = vsel %vm211, %v210, 0
      %245 = vmatpush.msra.mxu0 %v186
      %246 = vmatpush.msra.mxu0 %v185
      %247 = vmatpush.msra.mxu0 %v184
      %248 = vmatpush.msra.mxu0 %v183
      %249 = vmatpush.msra.mxu0 %v182
      %250 = vmatpush.msra.mxu0 %v181
      %251 = vmatpush.msra.mxu0 %v180
      %252 = vmatpush.msra.mxu0 %v179
      %253 = vmatpush.msra.mxu0 %v178
      %254 = vmatpush.msra.mxu0 %v177
      %255 = vmatpush.msra.mxu0 %v176
      %256 = vmatpush.msra.mxu0 %v175
      %257 = vmatpush.msra.mxu0 %v174
      %258 = vmatpush.msra.mxu0 %v173
      %259 = vmatpush.msra.mxu0 %v172
      %260 = vmatpush.msra.mxu0 %v171
      %261 = vmatmul.f32.gmra.mxu0 %v189
      %v262 = vpop.f32.mrf.mxu0
      %v263 = vadd.f32 0.0, %v262
      %264 = vmatmul.f32.gmra.mxu0 %v191
      %v265 = vpop.f32.mrf.mxu0
      %v266 = vadd.f32 0.0, %v265
      %267 = vmatmul.f32.gmra.mxu0 %v193
      %v268 = vpop.f32.mrf.mxu0
      %v269 = vadd.f32 0.0, %v268
      %270 = vmatmul.f32.gmra.mxu0 %v195
      %v271 = vpop.f32.mrf.mxu0
      %v272 = vadd.f32 0.0, %v271
      %273 = vmatmul.f32.gmra.mxu0 %v197
      %v274 = vpop.f32.mrf.mxu0
      %v275 = vadd.f32 0.0, %v274
      %276 = vmatmul.f32.gmra.mxu0 %v199
      %v277 = vpop.f32.mrf.mxu0
      %v278 = vadd.f32 0.0, %v277
      %279 = vmatmul.f32.gmra.mxu0 %v201
      %v280 = vpop.f32.mrf.mxu0
      %v281 = vadd.f32 0.0, %v280
      %282 = vmatmul.f32.gmra.mxu0 %v203
      %v283 = vpop.f32.mrf.mxu0
      %v284 = vadd.f32 0.0, %v283
      %285 = vmatmul.f32.gmra.mxu0 %v205
      %v286 = vpop.f32.mrf.mxu0
      %v287 = vadd.f32 0.0, %v286
      %288 = vmatmul.f32.gmra.mxu0 %v207
      %v289 = vpop.f32.mrf.mxu0
      %v290 = vadd.f32 0.0, %v289
      %291 = vmatmul.f32.gmra.mxu0 %v209
      %v292 = vpop.f32.mrf.mxu0
      %v293 = vadd.f32 0.0, %v292
      %294 = vdwg.mxu0
      %295 = vmatpush.msra.mxu0 0.0
      %296 = vmatpush.msra.mxu0 0.0
      %297 = vmatpush.msra.mxu0 0.0
      %298 = vmatpush.msra.mxu0 0.0
      %299 = vmatpush.msra.mxu0 0.0
      %300 = vmatpush.msra.mxu0 0.0
      %301 = vmatpush.msra.mxu0 0.0
      %302 = vmatpush.msra.mxu0 0.0
      %303 = vmatpush.msra.mxu0 0.0
      %304 = vmatpush.msra.mxu0 0.0
      %305 = vmatpush.msra.mxu0 0.0
      %306 = vmatpush.msra.mxu0 0.0
      %307 = vmatpush.msra.mxu0 0.0
      %308 = vmatpush.msra.mxu0 0.0
      %309 = vmatpush.msra.mxu0 %v188
      %310 = vmatpush.msra.mxu0 %v187
      %311 = vmatmul.f32.gmra.mxu0 %v213
      %v312 = vpop.f32.mrf.mxu0
      %v313 = vadd.f32 %v263, %v312
      %314 = vmatmul.f32.gmra.mxu0 %v216
      %v315 = vpop.f32.mrf.mxu0
      %v316 = vadd.f32 %v266, %v315
      %317 = vmatmul.f32.gmra.mxu0 %v219
      %v318 = vpop.f32.mrf.mxu0
      %v319 = vadd.f32 %v269, %v318
      %320 = vmatmul.f32.gmra.mxu0 %v222
      %v321 = vpop.f32.mrf.mxu0
      %v322 = vadd.f32 %v272, %v321
      %323 = vmatmul.f32.gmra.mxu0 %v225
      %v324 = vpop.f32.mrf.mxu0
      %v325 = vadd.f32 %v275, %v324
      %326 = vmatmul.f32.gmra.mxu0 %v228
      %v327 = vpop.f32.mrf.mxu0
      %v328 = vadd.f32 %v278, %v327
      %329 = vmatmul.f32.gmra.mxu0 %v231
      %v330 = vpop.f32.mrf.mxu0
      %v331 = vadd.f32 %v281, %v330
      %332 = vmatmul.f32.gmra.mxu0 %v234
      %v333 = vpop.f32.mrf.mxu0
      %v334 = vadd.f32 %v284, %v333
      %335 = vmatmul.f32.gmra.mxu0 %v237
      %v336 = vpop.f32.mrf.mxu0
      %v337 = vadd.f32 %v287, %v336
      %338 = vmatmul.f32.gmra.mxu0 %v240
      %v339 = vpop.f32.mrf.mxu0
      %v340 = vadd.f32 %v290, %v339
      %341 = vmatmul.f32.gmra.mxu0 %v243
      %v342 = vpop.f32.mrf.mxu0
      %v343 = vadd.f32 %v293, %v342
      %344 = vdwg.mxu0
      %s345 = scalar_lea.vmem %s165, 176
      %v346 = vld [vmem:[%s345] sm:$0xff]
      %v347 = vld [vmem:[%s345 + $0x8] sm:$0xff]
      %v348 = vld [vmem:[%s345 + $0x10] sm:$0xff]
      %v349 = vld [vmem:[%s345 + $0x18] sm:$0xff]
      %v350 = vld [vmem:[%s345 + $0x20] sm:$0xff]
      %v351 = vld [vmem:[%s345 + $0x28] sm:$0xff]
      %v352 = vld [vmem:[%s345 + $0x30] sm:$0xff]
      %v353 = vld [vmem:[%s345 + $0x38] sm:$0xff]
      %v354 = vld [vmem:[%s345 + $0x40] sm:$0xff]
      %v355 = vld [vmem:[%s345 + $0x48] sm:$0xff]
      %v356 = vld [vmem:[%s345 + $0x50] sm:$0xff]
      %v357 = vld [vmem:[%s345 + $0x58] sm:$0xff]
      %v358 = vld [vmem:[%s345 + $0x60] sm:$0xff]
      %v359 = vld [vmem:[%s345 + $0x68] sm:$0xff]
      %v360 = vld [vmem:[%s345 + $0x70] sm:$0xff]
      %v361 = vld [vmem:[%s345 + $0x78] sm:$0xff]
      %v362 = vld [vmem:[%s345 + $0x80] sm:$0xff]
      %v363 = vld [vmem:[%s345 + $0x88] sm:$0xff]
      %v364 = vld [vmem:[%s345 + $0x90] sm:$0xff]
      %v365 = vld [vmem:[%s345 + $0x98] sm:$0xff]
      %v366 = vld [vmem:[%s345 + $0xa0] sm:$0x1]
      %v367 = vld [vmem:[%s345 + $0xa8] sm:$0x1]
      %v369 = vsel %vm211, %v347, 0
      %v372 = vsel %vm211, %v349, 0
      %v375 = vsel %vm211, %v351, 0
      %v378 = vsel %vm211, %v353, 0
      %v381 = vsel %vm211, %v355, 0
      %v384 = vsel %vm211, %v357, 0
      %v387 = vsel %vm211, %v359, 0
      %v390 = vsel %vm211, %v361, 0
      %v393 = vsel %vm211, %v363, 0
      %v396 = vsel %vm211, %v365, 0
      %v399 = vsel %vm211, %v367, 0
      %401 = vmatpush.msra.mxu0 %v186
      %402 = vmatpush.msra.mxu0 %v185
      %403 = vmatpush.msra.mxu0 %v184
      %404 = vmatpush.msra.mxu0 %v183
      %405 = vmatpush.msra.mxu0 %v182
      %406 = vmatpush.msra.mxu0 %v181
      %407 = vmatpush.msra.mxu0 %v180
      %408 = vmatpush.msra.mxu0 %v179
      %409 = vmatpush.msra.mxu0 %v178
      %410 = vmatpush.msra.mxu0 %v177
      %411 = vmatpush.msra.mxu0 %v176
      %412 = vmatpush.msra.mxu0 %v175
      %413 = vmatpush.msra.mxu0 %v174
      %414 = vmatpush.msra.mxu0 %v173
      %415 = vmatpush.msra.mxu0 %v172
      %416 = vmatpush.msra.mxu0 %v171
      %417 = vmatmul.f32.gmra.mxu0 %v346
      %v418 = vpop.f32.mrf.mxu0
      %v419 = vadd.f32 0.0, %v418
      %420 = vmatmul.f32.gmra.mxu0 %v348
      %v421 = vpop.f32.mrf.mxu0
      %v422 = vadd.f32 0.0, %v421
      %423 = vmatmul.f32.gmra.mxu0 %v350
      %v424 = vpop.f32.mrf.mxu0
      %v425 = vadd.f32 0.0, %v424
      %426 = vmatmul.f32.gmra.mxu0 %v352
      %v427 = vpop.f32.mrf.mxu0
      %v428 = vadd.f32 0.0, %v427
      %429 = vmatmul.f32.gmra.mxu0 %v354
      %v430 = vpop.f32.mrf.mxu0
      %v431 = vadd.f32 0.0, %v430
      %432 = vmatmul.f32.gmra.mxu0 %v356
      %v433 = vpop.f32.mrf.mxu0
      %v434 = vadd.f32 0.0, %v433
      %435 = vmatmul.f32.gmra.mxu0 %v358
      %v436 = vpop.f32.mrf.mxu0
      %v437 = vadd.f32 0.0, %v436
      %438 = vmatmul.f32.gmra.mxu0 %v360
      %v439 = vpop.f32.mrf.mxu0
      %v440 = vadd.f32 0.0, %v439
      %441 = vmatmul.f32.gmra.mxu0 %v362
      %v442 = vpop.f32.mrf.mxu0
      %v443 = vadd.f32 0.0, %v442
      %444 = vmatmul.f32.gmra.mxu0 %v364
      %v445 = vpop.f32.mrf.mxu0
      %v446 = vadd.f32 0.0, %v445
      %447 = vmatmul.f32.gmra.mxu0 %v366
      %v448 = vpop.f32.mrf.mxu0
      %v449 = vadd.f32 0.0, %v448
      %450 = vdwg.mxu0
      %451 = vmatpush.msra.mxu0 0.0
      %452 = vmatpush.msra.mxu0 0.0
      %453 = vmatpush.msra.mxu0 0.0
      %454 = vmatpush.msra.mxu0 0.0
      %455 = vmatpush.msra.mxu0 0.0
      %456 = vmatpush.msra.mxu0 0.0
      %457 = vmatpush.msra.mxu0 0.0
      %458 = vmatpush.msra.mxu0 0.0
      %459 = vmatpush.msra.mxu0 0.0
      %460 = vmatpush.msra.mxu0 0.0
      %461 = vmatpush.msra.mxu0 0.0
      %462 = vmatpush.msra.mxu0 0.0
      %463 = vmatpush.msra.mxu0 0.0
      %464 = vmatpush.msra.mxu0 0.0
      %465 = vmatpush.msra.mxu0 %v188
      %466 = vmatpush.msra.mxu0 %v187
      %467 = vmatmul.f32.gmra.mxu0 %v369
      %v468 = vpop.f32.mrf.mxu0
      %v469 = vadd.f32 %v419, %v468
      %470 = vmatmul.f32.gmra.mxu0 %v372
      %v471 = vpop.f32.mrf.mxu0
      %v472 = vadd.f32 %v422, %v471
      %473 = vmatmul.f32.gmra.mxu0 %v375
      %v474 = vpop.f32.mrf.mxu0
      %v475 = vadd.f32 %v425, %v474
      %476 = vmatmul.f32.gmra.mxu0 %v378
      %v477 = vpop.f32.mrf.mxu0
      %v478 = vadd.f32 %v428, %v477
      %479 = vmatmul.f32.gmra.mxu0 %v381
      %v480 = vpop.f32.mrf.mxu0
      %v481 = vadd.f32 %v431, %v480
      %482 = vmatmul.f32.gmra.mxu0 %v384
      %v483 = vpop.f32.mrf.mxu0
      %v484 = vadd.f32 %v434, %v483
      %485 = vmatmul.f32.gmra.mxu0 %v387
      %v486 = vpop.f32.mrf.mxu0
      %v487 = vadd.f32 %v437, %v486
      %488 = vmatmul.f32.gmra.mxu0 %v390
      %v489 = vpop.f32.mrf.mxu0
      %v490 = vadd.f32 %v440, %v489
      %491 = vmatmul.f32.gmra.mxu0 %v393
      %v492 = vpop.f32.mrf.mxu0
      %v493 = vadd.f32 %v443, %v492
      %494 = vmatmul.f32.gmra.mxu0 %v396
      %v495 = vpop.f32.mrf.mxu0
      %v496 = vadd.f32 %v446, %v495
      %497 = vmatmul.f32.gmra.mxu0 %v399
      %v498 = vpop.f32.mrf.mxu0
      %v499 = vadd.f32 %v449, %v498
      %500 = vdwg.mxu0
      %v501 = vmax.f32 %v313, %v469
      %v502 = vmax.f32 %v316, %v472
      %v503 = vmax.f32 %v319, %v475
      %v504 = vmax.f32 %v322, %v478
      %v505 = vmax.f32 %v325, %v481
      %v506 = vmax.f32 %v328, %v484
      %v507 = vmax.f32 %v331, %v487
      %v508 = vmax.f32 %v334, %v490
      %v509 = vmax.f32 %v337, %v493
      %v510 = vmax.f32 %v340, %v496
      %v511 = vmax.f32 %v343, %v499
      %s512 = scalar_lea.vmem %s165, 352
      %v513 = vld [vmem:[%s512] sm:$0xff]
      %v514 = vld [vmem:[%s512 + $0x8] sm:$0xff]
      %v515 = vld [vmem:[%s512 + $0x10] sm:$0xff]
      %v516 = vld [vmem:[%s512 + $0x18] sm:$0xff]
      %v517 = vld [vmem:[%s512 + $0x20] sm:$0xff]
      %v518 = vld [vmem:[%s512 + $0x28] sm:$0xff]
      %v519 = vld [vmem:[%s512 + $0x30] sm:$0xff]
      %v520 = vld [vmem:[%s512 + $0x38] sm:$0xff]
      %v521 = vld [vmem:[%s512 + $0x40] sm:$0xff]
      %v522 = vld [vmem:[%s512 + $0x48] sm:$0xff]
      %v523 = vld [vmem:[%s512 + $0x50] sm:$0xff]
      %v524 = vld [vmem:[%s512 + $0x58] sm:$0xff]
      %v525 = vld [vmem:[%s512 + $0x60] sm:$0xff]
      %v526 = vld [vmem:[%s512 + $0x68] sm:$0xff]
      %v527 = vld [vmem:[%s512 + $0x70] sm:$0xff]
      %v528 = vld [vmem:[%s512 + $0x78] sm:$0xff]
      %v529 = vld [vmem:[%s512 + $0x80] sm:$0xff]
      %v530 = vld [vmem:[%s512 + $0x88] sm:$0xff]
      %v531 = vld [vmem:[%s512 + $0x90] sm:$0xff]
      %v532 = vld [vmem:[%s512 + $0x98] sm:$0xff]
      %v533 = vld [vmem:[%s512 + $0xa0] sm:$0x1]
      %v534 = vld [vmem:[%s512 + $0xa8] sm:$0x1]
      %v536 = vsel %vm211, %v514, 0
      %v539 = vsel %vm211, %v516, 0
      %v542 = vsel %vm211, %v518, 0
      %v545 = vsel %vm211, %v520, 0
      %v548 = vsel %vm211, %v522, 0
      %v551 = vsel %vm211, %v524, 0
      %v554 = vsel %vm211, %v526, 0
      %v557 = vsel %vm211, %v528, 0
      %v560 = vsel %vm211, %v530, 0
      %v563 = vsel %vm211, %v532, 0
      %v566 = vsel %vm211, %v534, 0
      %568 = vmatpush.msra.mxu0 %v186
      %569 = vmatpush.msra.mxu0 %v185
      %570 = vmatpush.msra.mxu0 %v184
      %571 = vmatpush.msra.mxu0 %v183
      %572 = vmatpush.msra.mxu0 %v182
      %573 = vmatpush.msra.mxu0 %v181
      %574 = vmatpush.msra.mxu0 %v180
      %575 = vmatpush.msra.mxu0 %v179
      %576 = vmatpush.msra.mxu0 %v178
      %577 = vmatpush.msra.mxu0 %v177
      %578 = vmatpush.msra.mxu0 %v176
      %579 = vmatpush.msra.mxu0 %v175
      %580 = vmatpush.msra.mxu0 %v174
      %581 = vmatpush.msra.mxu0 %v173
      %582 = vmatpush.msra.mxu0 %v172
      %583 = vmatpush.msra.mxu0 %v171
      %584 = vmatmul.f32.gmra.mxu0 %v513
      %v585 = vpop.f32.mrf.mxu0
      %v586 = vadd.f32 0.0, %v585
      %587 = vmatmul.f32.gmra.mxu0 %v515
      %v588 = vpop.f32.mrf.mxu0
      %v589 = vadd.f32 0.0, %v588
      %590 = vmatmul.f32.gmra.mxu0 %v517
      %v591 = vpop.f32.mrf.mxu0
      %v592 = vadd.f32 0.0, %v591
      %593 = vmatmul.f32.gmra.mxu0 %v519
      %v594 = vpop.f32.mrf.mxu0
      %v595 = vadd.f32 0.0, %v594
      %596 = vmatmul.f32.gmra.mxu0 %v521
      %v597 = vpop.f32.mrf.mxu0
      %v598 = vadd.f32 0.0, %v597
      %599 = vmatmul.f32.gmra.mxu0 %v523
      %v600 = vpop.f32.mrf.mxu0
      %v601 = vadd.f32 0.0, %v600
      %602 = vmatmul.f32.gmra.mxu0 %v525
      %v603 = vpop.f32.mrf.mxu0
      %v604 = vadd.f32 0.0, %v603
      %605 = vmatmul.f32.gmra.mxu0 %v527
      %v606 = vpop.f32.mrf.mxu0
      %v607 = vadd.f32 0.0, %v606
      %608 = vmatmul.f32.gmra.mxu0 %v529
      %v609 = vpop.f32.mrf.mxu0
      %v610 = vadd.f32 0.0, %v609
      %611 = vmatmul.f32.gmra.mxu0 %v531
      %v612 = vpop.f32.mrf.mxu0
      %v613 = vadd.f32 0.0, %v612
      %614 = vmatmul.f32.gmra.mxu0 %v533
      %v615 = vpop.f32.mrf.mxu0
      %v616 = vadd.f32 0.0, %v615
      %617 = vdwg.mxu0
      %618 = vmatpush.msra.mxu0 0.0
      %619 = vmatpush.msra.mxu0 0.0
      %620 = vmatpush.msra.mxu0 0.0
      %621 = vmatpush.msra.mxu0 0.0
      %622 = vmatpush.msra.mxu0 0.0
      %623 = vmatpush.msra.mxu0 0.0
      %624 = vmatpush.msra.mxu0 0.0
      %625 = vmatpush.msra.mxu0 0.0
      %626 = vmatpush.msra.mxu0 0.0
      %627 = vmatpush.msra.mxu0 0.0
      %628 = vmatpush.msra.mxu0 0.0
      %629 = vmatpush.msra.mxu0 0.0
      %630 = vmatpush.msra.mxu0 0.0
      %631 = vmatpush.msra.mxu0 0.0
      %632 = vmatpush.msra.mxu0 %v188
      %633 = vmatpush.msra.mxu0 %v187
      %634 = vmatmul.f32.gmra.mxu0 %v536
      %v635 = vpop.f32.mrf.mxu0
      %v636 = vadd.f32 %v586, %v635
      %637 = vmatmul.f32.gmra.mxu0 %v539
      %v638 = vpop.f32.mrf.mxu0
      %v639 = vadd.f32 %v589, %v638
      %640 = vmatmul.f32.gmra.mxu0 %v542
      %v641 = vpop.f32.mrf.mxu0
      %v642 = vadd.f32 %v592, %v641
      %643 = vmatmul.f32.gmra.mxu0 %v545
      %v644 = vpop.f32.mrf.mxu0
      %v645 = vadd.f32 %v595, %v644
      %646 = vmatmul.f32.gmra.mxu0 %v548
      %v647 = vpop.f32.mrf.mxu0
      %v648 = vadd.f32 %v598, %v647
      %649 = vmatmul.f32.gmra.mxu0 %v551
      %v650 = vpop.f32.mrf.mxu0
      %v651 = vadd.f32 %v601, %v650
      %652 = vmatmul.f32.gmra.mxu0 %v554
      %v653 = vpop.f32.mrf.mxu0
      %v654 = vadd.f32 %v604, %v653
      %655 = vmatmul.f32.gmra.mxu0 %v557
      %v656 = vpop.f32.mrf.mxu0
      %v657 = vadd.f32 %v607, %v656
      %658 = vmatmul.f32.gmra.mxu0 %v560
      %v659 = vpop.f32.mrf.mxu0
      %v660 = vadd.f32 %v610, %v659
      %661 = vmatmul.f32.gmra.mxu0 %v563
      %v662 = vpop.f32.mrf.mxu0
      %v663 = vadd.f32 %v613, %v662
      %664 = vmatmul.f32.gmra.mxu0 %v566
      %v665 = vpop.f32.mrf.mxu0
      %v666 = vadd.f32 %v616, %v665
      %667 = vdwg.mxu0
      %v668 = vmax.f32 %v501, %v636
      %v669 = vmax.f32 %v502, %v639
      %v670 = vmax.f32 %v503, %v642
      %v671 = vmax.f32 %v504, %v645
      %v672 = vmax.f32 %v505, %v648
      %v673 = vmax.f32 %v506, %v651
      %v674 = vmax.f32 %v507, %v654
      %v675 = vmax.f32 %v508, %v657
      %v676 = vmax.f32 %v509, %v660
      %v677 = vmax.f32 %v510, %v663
      %v678 = vmax.f32 %v511, %v666
      %s679 = scalar_lea.vmem %s165, 528
      %v680 = vld [vmem:[%s679] sm:$0xff]
      %v681 = vld [vmem:[%s679 + $0x8] sm:$0xff]
      %v682 = vld [vmem:[%s679 + $0x10] sm:$0xff]
      %v683 = vld [vmem:[%s679 + $0x18] sm:$0xff]
      %v684 = vld [vmem:[%s679 + $0x20] sm:$0xff]
      %v685 = vld [vmem:[%s679 + $0x28] sm:$0xff]
      %v686 = vld [vmem:[%s679 + $0x30] sm:$0xff]
      %v687 = vld [vmem:[%s679 + $0x38] sm:$0xff]
      %v688 = vld [vmem:[%s679 + $0x40] sm:$0xff]
      %v689 = vld [vmem:[%s679 + $0x48] sm:$0xff]
      %v690 = vld [vmem:[%s679 + $0x50] sm:$0xff]
      %v691 = vld [vmem:[%s679 + $0x58] sm:$0xff]
      %v692 = vld [vmem:[%s679 + $0x60] sm:$0xff]
      %v693 = vld [vmem:[%s679 + $0x68] sm:$0xff]
      %v694 = vld [vmem:[%s679 + $0x70] sm:$0xff]
      %v695 = vld [vmem:[%s679 + $0x78] sm:$0xff]
      %v696 = vld [vmem:[%s679 + $0x80] sm:$0xff]
      %v697 = vld [vmem:[%s679 + $0x88] sm:$0xff]
      %v698 = vld [vmem:[%s679 + $0x90] sm:$0xff]
      %v699 = vld [vmem:[%s679 + $0x98] sm:$0xff]
      %v700 = vld [vmem:[%s679 + $0xa0] sm:$0x1]
      %v701 = vld [vmem:[%s679 + $0xa8] sm:$0x1]
      %v703 = vsel %vm211, %v681, 0
      %v706 = vsel %vm211, %v683, 0
      %v709 = vsel %vm211, %v685, 0
      %v712 = vsel %vm211, %v687, 0
      %v715 = vsel %vm211, %v689, 0
      %v718 = vsel %vm211, %v691, 0
      %v721 = vsel %vm211, %v693, 0
      %v724 = vsel %vm211, %v695, 0
      %v727 = vsel %vm211, %v697, 0
      %v730 = vsel %vm211, %v699, 0
      %v733 = vsel %vm211, %v701, 0
      %735 = vmatpush.msra.mxu0 %v186
      %736 = vmatpush.msra.mxu0 %v185
      %737 = vmatpush.msra.mxu0 %v184
      %738 = vmatpush.msra.mxu0 %v183
      %739 = vmatpush.msra.mxu0 %v182
      %740 = vmatpush.msra.mxu0 %v181
      %741 = vmatpush.msra.mxu0 %v180
      %742 = vmatpush.msra.mxu0 %v179
      %743 = vmatpush.msra.mxu0 %v178
      %744 = vmatpush.msra.mxu0 %v177
      %745 = vmatpush.msra.mxu0 %v176
      %746 = vmatpush.msra.mxu0 %v175
      %747 = vmatpush.msra.mxu0 %v174
      %748 = vmatpush.msra.mxu0 %v173
      %749 = vmatpush.msra.mxu0 %v172
      %750 = vmatpush.msra.mxu0 %v171
      %751 = vmatmul.f32.gmra.mxu0 %v680
      %v752 = vpop.f32.mrf.mxu0
      %v753 = vadd.f32 0.0, %v752
      %754 = vmatmul.f32.gmra.mxu0 %v682
      %v755 = vpop.f32.mrf.mxu0
      %v756 = vadd.f32 0.0, %v755
      %757 = vmatmul.f32.gmra.mxu0 %v684
      %v758 = vpop.f32.mrf.mxu0
      %v759 = vadd.f32 0.0, %v758
      %760 = vmatmul.f32.gmra.mxu0 %v686
      %v761 = vpop.f32.mrf.mxu0
      %v762 = vadd.f32 0.0, %v761
      %763 = vmatmul.f32.gmra.mxu0 %v688
      %v764 = vpop.f32.mrf.mxu0
      %v765 = vadd.f32 0.0, %v764
      %766 = vmatmul.f32.gmra.mxu0 %v690
      %v767 = vpop.f32.mrf.mxu0
      %v768 = vadd.f32 0.0, %v767
      %769 = vmatmul.f32.gmra.mxu0 %v692
      %v770 = vpop.f32.mrf.mxu0
      %v771 = vadd.f32 0.0, %v770
      %772 = vmatmul.f32.gmra.mxu0 %v694
      %v773 = vpop.f32.mrf.mxu0
      %v774 = vadd.f32 0.0, %v773
      %775 = vmatmul.f32.gmra.mxu0 %v696
      %v776 = vpop.f32.mrf.mxu0
      %v777 = vadd.f32 0.0, %v776
      %778 = vmatmul.f32.gmra.mxu0 %v698
      %v779 = vpop.f32.mrf.mxu0
      %v780 = vadd.f32 0.0, %v779
      %781 = vmatmul.f32.gmra.mxu0 %v700
      %v782 = vpop.f32.mrf.mxu0
      %v783 = vadd.f32 0.0, %v782
      %784 = vdwg.mxu0
      %785 = vmatpush.msra.mxu0 0.0
      %786 = vmatpush.msra.mxu0 0.0
      %787 = vmatpush.msra.mxu0 0.0
      %788 = vmatpush.msra.mxu0 0.0
      %789 = vmatpush.msra.mxu0 0.0
      %790 = vmatpush.msra.mxu0 0.0
      %791 = vmatpush.msra.mxu0 0.0
      %792 = vmatpush.msra.mxu0 0.0
      %793 = vmatpush.msra.mxu0 0.0
      %794 = vmatpush.msra.mxu0 0.0
      %795 = vmatpush.msra.mxu0 0.0
      %796 = vmatpush.msra.mxu0 0.0
      %797 = vmatpush.msra.mxu0 0.0
      %798 = vmatpush.msra.mxu0 0.0
      %799 = vmatpush.msra.mxu0 %v188
      %800 = vmatpush.msra.mxu0 %v187
      %801 = vmatmul.f32.gmra.mxu0 %v703
      %v802 = vpop.f32.mrf.mxu0
      %v803 = vadd.f32 %v753, %v802
      %804 = vmatmul.f32.gmra.mxu0 %v706
      %v805 = vpop.f32.mrf.mxu0
      %v806 = vadd.f32 %v756, %v805
      %807 = vmatmul.f32.gmra.mxu0 %v709
      %v808 = vpop.f32.mrf.mxu0
      %v809 = vadd.f32 %v759, %v808
      %810 = vmatmul.f32.gmra.mxu0 %v712
      %v811 = vpop.f32.mrf.mxu0
      %v812 = vadd.f32 %v762, %v811
      %813 = vmatmul.f32.gmra.mxu0 %v715
      %v814 = vpop.f32.mrf.mxu0
      %v815 = vadd.f32 %v765, %v814
      %816 = vmatmul.f32.gmra.mxu0 %v718
      %v817 = vpop.f32.mrf.mxu0
      %v818 = vadd.f32 %v768, %v817
      %819 = vmatmul.f32.gmra.mxu0 %v721
      %v820 = vpop.f32.mrf.mxu0
      %v821 = vadd.f32 %v771, %v820
      %822 = vmatmul.f32.gmra.mxu0 %v724
      %v823 = vpop.f32.mrf.mxu0
      %v824 = vadd.f32 %v774, %v823
      %825 = vmatmul.f32.gmra.mxu0 %v727
      %v826 = vpop.f32.mrf.mxu0
      %v827 = vadd.f32 %v777, %v826
      %828 = vmatmul.f32.gmra.mxu0 %v730
      %v829 = vpop.f32.mrf.mxu0
      %v830 = vadd.f32 %v780, %v829
      %831 = vmatmul.f32.gmra.mxu0 %v733
      %v832 = vpop.f32.mrf.mxu0
      %v833 = vadd.f32 %v783, %v832
      %834 = vdwg.mxu0
      %v835 = vmax.f32 %v668, %v803
      %v836 = vmax.f32 %v669, %v806
      %v837 = vmax.f32 %v670, %v809
      %v838 = vmax.f32 %v671, %v812
      %v839 = vmax.f32 %v672, %v815
      %v840 = vmax.f32 %v673, %v818
      %v841 = vmax.f32 %v674, %v821
      %v842 = vmax.f32 %v675, %v824
      %v843 = vmax.f32 %v676, %v827
      %v844 = vmax.f32 %v677, %v830
      %v845 = vmax.f32 %v678, %v833
      %s846 = scalar_lea.vmem %s165, 704
      %v847 = vld [vmem:[%s846] sm:$0xff]
      %v848 = vld [vmem:[%s846 + $0x8] sm:$0xff]
      %v849 = vld [vmem:[%s846 + $0x10] sm:$0xff]
      %v850 = vld [vmem:[%s846 + $0x18] sm:$0xff]
      %v851 = vld [vmem:[%s846 + $0x20] sm:$0xff]
      %v852 = vld [vmem:[%s846 + $0x28] sm:$0xff]
      %v853 = vld [vmem:[%s846 + $0x30] sm:$0xff]
      %v854 = vld [vmem:[%s846 + $0x38] sm:$0xff]
      %v855 = vld [vmem:[%s846 + $0x40] sm:$0xff]
      %v856 = vld [vmem:[%s846 + $0x48] sm:$0xff]
      %v857 = vld [vmem:[%s846 + $0x50] sm:$0xff]
      %v858 = vld [vmem:[%s846 + $0x58] sm:$0xff]
      %v859 = vld [vmem:[%s846 + $0x60] sm:$0xff]
      %v860 = vld [vmem:[%s846 + $0x68] sm:$0xff]
      %v861 = vld [vmem:[%s846 + $0x70] sm:$0xff]
      %v862 = vld [vmem:[%s846 + $0x78] sm:$0xff]
      %v863 = vld [vmem:[%s846 + $0x80] sm:$0xff]
      %v864 = vld [vmem:[%s846 + $0x88] sm:$0xff]
      %v865 = vld [vmem:[%s846 + $0x90] sm:$0xff]
      %v866 = vld [vmem:[%s846 + $0x98] sm:$0xff]
      %v867 = vld [vmem:[%s846 + $0xa0] sm:$0x1]
      %v868 = vld [vmem:[%s846 + $0xa8] sm:$0x1]
      %v870 = vsel %vm211, %v848, 0
      %v873 = vsel %vm211, %v850, 0
      %v876 = vsel %vm211, %v852, 0
      %v879 = vsel %vm211, %v854, 0
      %v882 = vsel %vm211, %v856, 0
      %v885 = vsel %vm211, %v858, 0
      %v888 = vsel %vm211, %v860, 0
      %v891 = vsel %vm211, %v862, 0
      %v894 = vsel %vm211, %v864, 0
      %v897 = vsel %vm211, %v866, 0
      %v900 = vsel %vm211, %v868, 0
      %902 = vmatpush.msra.mxu0 %v186
      %903 = vmatpush.msra.mxu0 %v185
      %904 = vmatpush.msra.mxu0 %v184
      %905 = vmatpush.msra.mxu0 %v183
      %906 = vmatpush.msra.mxu0 %v182
      %907 = vmatpush.msra.mxu0 %v181
      %908 = vmatpush.msra.mxu0 %v180
      %909 = vmatpush.msra.mxu0 %v179
      %910 = vmatpush.msra.mxu0 %v178
      %911 = vmatpush.msra.mxu0 %v177
      %912 = vmatpush.msra.mxu0 %v176
      %913 = vmatpush.msra.mxu0 %v175
      %914 = vmatpush.msra.mxu0 %v174
      %915 = vmatpush.msra.mxu0 %v173
      %916 = vmatpush.msra.mxu0 %v172
      %917 = vmatpush.msra.mxu0 %v171
      %918 = vmatmul.f32.gmra.mxu0 %v847
      %v919 = vpop.f32.mrf.mxu0
      %v920 = vadd.f32 0.0, %v919
      %921 = vmatmul.f32.gmra.mxu0 %v849
      %v922 = vpop.f32.mrf.mxu0
      %v923 = vadd.f32 0.0, %v922
      %924 = vmatmul.f32.gmra.mxu0 %v851
      %v925 = vpop.f32.mrf.mxu0
      %v926 = vadd.f32 0.0, %v925
      %927 = vmatmul.f32.gmra.mxu0 %v853
      %v928 = vpop.f32.mrf.mxu0
      %v929 = vadd.f32 0.0, %v928
      %930 = vmatmul.f32.gmra.mxu0 %v855
      %v931 = vpop.f32.mrf.mxu0
      %v932 = vadd.f32 0.0, %v931
      %933 = vmatmul.f32.gmra.mxu0 %v857
      %v934 = vpop.f32.mrf.mxu0
      %v935 = vadd.f32 0.0, %v934
      %936 = vmatmul.f32.gmra.mxu0 %v859
      %v937 = vpop.f32.mrf.mxu0
      %v938 = vadd.f32 0.0, %v937
      %939 = vmatmul.f32.gmra.mxu0 %v861
      %v940 = vpop.f32.mrf.mxu0
      %v941 = vadd.f32 0.0, %v940
      %942 = vmatmul.f32.gmra.mxu0 %v863
      %v943 = vpop.f32.mrf.mxu0
      %v944 = vadd.f32 0.0, %v943
      %945 = vmatmul.f32.gmra.mxu0 %v865
      %v946 = vpop.f32.mrf.mxu0
      %v947 = vadd.f32 0.0, %v946
      %948 = vmatmul.f32.gmra.mxu0 %v867
      %v949 = vpop.f32.mrf.mxu0
      %v950 = vadd.f32 0.0, %v949
      %951 = vdwg.mxu0
      %952 = vmatpush.msra.mxu0 0.0
      %953 = vmatpush.msra.mxu0 0.0
      %954 = vmatpush.msra.mxu0 0.0
      %955 = vmatpush.msra.mxu0 0.0
      %956 = vmatpush.msra.mxu0 0.0
      %957 = vmatpush.msra.mxu0 0.0
      %958 = vmatpush.msra.mxu0 0.0
      %959 = vmatpush.msra.mxu0 0.0
      %960 = vmatpush.msra.mxu0 0.0
      %961 = vmatpush.msra.mxu0 0.0
      %962 = vmatpush.msra.mxu0 0.0
      %963 = vmatpush.msra.mxu0 0.0
      %964 = vmatpush.msra.mxu0 0.0
      %965 = vmatpush.msra.mxu0 0.0
      %966 = vmatpush.msra.mxu0 %v188
      %967 = vmatpush.msra.mxu0 %v187
      %968 = vmatmul.f32.gmra.mxu0 %v870
      %v969 = vpop.f32.mrf.mxu0
      %v970 = vadd.f32 %v920, %v969
      %971 = vmatmul.f32.gmra.mxu0 %v873
      %v972 = vpop.f32.mrf.mxu0
      %v973 = vadd.f32 %v923, %v972
      %974 = vmatmul.f32.gmra.mxu0 %v876
      %v975 = vpop.f32.mrf.mxu0
      %v976 = vadd.f32 %v926, %v975
      %977 = vmatmul.f32.gmra.mxu0 %v879
      %v978 = vpop.f32.mrf.mxu0
      %v979 = vadd.f32 %v929, %v978
      %980 = vmatmul.f32.gmra.mxu0 %v882
      %v981 = vpop.f32.mrf.mxu0
      %v982 = vadd.f32 %v932, %v981
      %983 = vmatmul.f32.gmra.mxu0 %v885
      %v984 = vpop.f32.mrf.mxu0
      %v985 = vadd.f32 %v935, %v984
      %986 = vmatmul.f32.gmra.mxu0 %v888
      %v987 = vpop.f32.mrf.mxu0
      %v988 = vadd.f32 %v938, %v987
      %989 = vmatmul.f32.gmra.mxu0 %v891
      %v990 = vpop.f32.mrf.mxu0
      %v991 = vadd.f32 %v941, %v990
      %992 = vmatmul.f32.gmra.mxu0 %v894
      %v993 = vpop.f32.mrf.mxu0
      %v994 = vadd.f32 %v944, %v993
      %995 = vmatmul.f32.gmra.mxu0 %v897
      %v996 = vpop.f32.mrf.mxu0
      %v997 = vadd.f32 %v947, %v996
      %998 = vmatmul.f32.gmra.mxu0 %v900
      %v999 = vpop.f32.mrf.mxu0
      %v1000 = vadd.f32 %v950, %v999
      %1001 = vdwg.mxu0
      %v1002 = vmax.f32 %v835, %v970
      %v1003 = vmax.f32 %v836, %v973
      %v1004 = vmax.f32 %v837, %v976
      %v1005 = vmax.f32 %v838, %v979
      %v1006 = vmax.f32 %v839, %v982
      %v1007 = vmax.f32 %v840, %v985
      %v1008 = vmax.f32 %v841, %v988
      %v1009 = vmax.f32 %v842, %v991
      %v1010 = vmax.f32 %v843, %v994
      %v1011 = vmax.f32 %v844, %v997
      %v1012 = vmax.f32 %v845, %v1000
      %s1013 = scalar_lea.vmem %s165, 880
      %v1014 = vld [vmem:[%s1013] sm:$0xff]
      %v1015 = vld [vmem:[%s1013 + $0x8] sm:$0xff]
      %v1016 = vld [vmem:[%s1013 + $0x10] sm:$0xff]
      %v1017 = vld [vmem:[%s1013 + $0x18] sm:$0xff]
      %v1018 = vld [vmem:[%s1013 + $0x20] sm:$0xff]
      %v1019 = vld [vmem:[%s1013 + $0x28] sm:$0xff]
      %v1020 = vld [vmem:[%s1013 + $0x30] sm:$0xff]
      %v1021 = vld [vmem:[%s1013 + $0x38] sm:$0xff]
      %v1022 = vld [vmem:[%s1013 + $0x40] sm:$0xff]
      %v1023 = vld [vmem:[%s1013 + $0x48] sm:$0xff]
      %v1024 = vld [vmem:[%s1013 + $0x50] sm:$0xff]
      %v1025 = vld [vmem:[%s1013 + $0x58] sm:$0xff]
      %v1026 = vld [vmem:[%s1013 + $0x60] sm:$0xff]
      %v1027 = vld [vmem:[%s1013 + $0x68] sm:$0xff]
      %v1028 = vld [vmem:[%s1013 + $0x70] sm:$0xff]
      %v1029 = vld [vmem:[%s1013 + $0x78] sm:$0xff]
      %v1030 = vld [vmem:[%s1013 + $0x80] sm:$0xff]
      %v1031 = vld [vmem:[%s1013 + $0x88] sm:$0xff]
      %v1032 = vld [vmem:[%s1013 + $0x90] sm:$0xff]
      %v1033 = vld [vmem:[%s1013 + $0x98] sm:$0xff]
      %v1034 = vld [vmem:[%s1013 + $0xa0] sm:$0x1]
      %v1035 = vld [vmem:[%s1013 + $0xa8] sm:$0x1]
      %v1037 = vsel %vm211, %v1015, 0
      %v1040 = vsel %vm211, %v1017, 0
      %v1043 = vsel %vm211, %v1019, 0
      %v1046 = vsel %vm211, %v1021, 0
      %v1049 = vsel %vm211, %v1023, 0
      %v1052 = vsel %vm211, %v1025, 0
      %v1055 = vsel %vm211, %v1027, 0
      %v1058 = vsel %vm211, %v1029, 0
      %v1061 = vsel %vm211, %v1031, 0
      %v1064 = vsel %vm211, %v1033, 0
      %v1067 = vsel %vm211, %v1035, 0
      %1069 = vmatpush.msra.mxu0 %v186
      %1070 = vmatpush.msra.mxu0 %v185
      %1071 = vmatpush.msra.mxu0 %v184
      %1072 = vmatpush.msra.mxu0 %v183
      %1073 = vmatpush.msra.mxu0 %v182
      %1074 = vmatpush.msra.mxu0 %v181
      %1075 = vmatpush.msra.mxu0 %v180
      %1076 = vmatpush.msra.mxu0 %v179
      %1077 = vmatpush.msra.mxu0 %v178
      %1078 = vmatpush.msra.mxu0 %v177
      %1079 = vmatpush.msra.mxu0 %v176
      %1080 = vmatpush.msra.mxu0 %v175
      %1081 = vmatpush.msra.mxu0 %v174
      %1082 = vmatpush.msra.mxu0 %v173
      %1083 = vmatpush.msra.mxu0 %v172
      %1084 = vmatpush.msra.mxu0 %v171
      %1085 = vmatmul.f32.gmra.mxu0 %v1014
      %v1086 = vpop.f32.mrf.mxu0
      %v1087 = vadd.f32 0.0, %v1086
      %1088 = vmatmul.f32.gmra.mxu0 %v1016
      %v1089 = vpop.f32.mrf.mxu0
      %v1090 = vadd.f32 0.0, %v1089
      %1091 = vmatmul.f32.gmra.mxu0 %v1018
      %v1092 = vpop.f32.mrf.mxu0
      %v1093 = vadd.f32 0.0, %v1092
      %1094 = vmatmul.f32.gmra.mxu0 %v1020
      %v1095 = vpop.f32.mrf.mxu0
      %v1096 = vadd.f32 0.0, %v1095
      %1097 = vmatmul.f32.gmra.mxu0 %v1022
      %v1098 = vpop.f32.mrf.mxu0
      %v1099 = vadd.f32 0.0, %v1098
      %1100 = vmatmul.f32.gmra.mxu0 %v1024
      %v1101 = vpop.f32.mrf.mxu0
      %v1102 = vadd.f32 0.0, %v1101
      %1103 = vmatmul.f32.gmra.mxu0 %v1026
      %v1104 = vpop.f32.mrf.mxu0
      %v1105 = vadd.f32 0.0, %v1104
      %1106 = vmatmul.f32.gmra.mxu0 %v1028
      %v1107 = vpop.f32.mrf.mxu0
      %v1108 = vadd.f32 0.0, %v1107
      %1109 = vmatmul.f32.gmra.mxu0 %v1030
      %v1110 = vpop.f32.mrf.mxu0
      %v1111 = vadd.f32 0.0, %v1110
      %1112 = vmatmul.f32.gmra.mxu0 %v1032
      %v1113 = vpop.f32.mrf.mxu0
      %v1114 = vadd.f32 0.0, %v1113
      %1115 = vmatmul.f32.gmra.mxu0 %v1034
      %v1116 = vpop.f32.mrf.mxu0
      %v1117 = vadd.f32 0.0, %v1116
      %1118 = vdwg.mxu0
      %1119 = vmatpush.msra.mxu0 0.0
      %1120 = vmatpush.msra.mxu0 0.0
      %1121 = vmatpush.msra.mxu0 0.0
      %1122 = vmatpush.msra.mxu0 0.0
      %1123 = vmatpush.msra.mxu0 0.0
      %1124 = vmatpush.msra.mxu0 0.0
      %1125 = vmatpush.msra.mxu0 0.0
      %1126 = vmatpush.msra.mxu0 0.0
      %1127 = vmatpush.msra.mxu0 0.0
      %1128 = vmatpush.msra.mxu0 0.0
      %1129 = vmatpush.msra.mxu0 0.0
      %1130 = vmatpush.msra.mxu0 0.0
      %1131 = vmatpush.msra.mxu0 0.0
      %1132 = vmatpush.msra.mxu0 0.0
      %1133 = vmatpush.msra.mxu0 %v188
      %1134 = vmatpush.msra.mxu0 %v187
      %1135 = vmatmul.f32.gmra.mxu0 %v1037
      %v1136 = vpop.f32.mrf.mxu0
      %v1137 = vadd.f32 %v1087, %v1136
      %1138 = vmatmul.f32.gmra.mxu0 %v1040
      %v1139 = vpop.f32.mrf.mxu0
      %v1140 = vadd.f32 %v1090, %v1139
      %1141 = vmatmul.f32.gmra.mxu0 %v1043
      %v1142 = vpop.f32.mrf.mxu0
      %v1143 = vadd.f32 %v1093, %v1142
      %1144 = vmatmul.f32.gmra.mxu0 %v1046
      %v1145 = vpop.f32.mrf.mxu0
      %v1146 = vadd.f32 %v1096, %v1145
      %1147 = vmatmul.f32.gmra.mxu0 %v1049
      %v1148 = vpop.f32.mrf.mxu0
      %v1149 = vadd.f32 %v1099, %v1148
      %1150 = vmatmul.f32.gmra.mxu0 %v1052
      %v1151 = vpop.f32.mrf.mxu0
      %v1152 = vadd.f32 %v1102, %v1151
      %1153 = vmatmul.f32.gmra.mxu0 %v1055
      %v1154 = vpop.f32.mrf.mxu0
      %v1155 = vadd.f32 %v1105, %v1154
      %1156 = vmatmul.f32.gmra.mxu0 %v1058
      %v1157 = vpop.f32.mrf.mxu0
      %v1158 = vadd.f32 %v1108, %v1157
      %1159 = vmatmul.f32.gmra.mxu0 %v1061
      %v1160 = vpop.f32.mrf.mxu0
      %v1161 = vadd.f32 %v1111, %v1160
      %1162 = vmatmul.f32.gmra.mxu0 %v1064
      %v1163 = vpop.f32.mrf.mxu0
      %v1164 = vadd.f32 %v1114, %v1163
      %1165 = vmatmul.f32.gmra.mxu0 %v1067
      %v1166 = vpop.f32.mrf.mxu0
      %v1167 = vadd.f32 %v1117, %v1166
      %1168 = vdwg.mxu0
      %v1169 = vmax.f32 %v1002, %v1137
      %v1170 = vmax.f32 %v1003, %v1140
      %v1171 = vmax.f32 %v1004, %v1143
      %v1172 = vmax.f32 %v1005, %v1146
      %v1173 = vmax.f32 %v1006, %v1149
      %v1174 = vmax.f32 %v1007, %v1152
      %v1175 = vmax.f32 %v1008, %v1155
      %v1176 = vmax.f32 %v1009, %v1158
      %v1177 = vmax.f32 %v1010, %v1161
      %v1178 = vmax.f32 %v1011, %v1164
      %v1179 = vmax.f32 %v1012, %v1167
      %s1180 = scalar_lea.vmem %s165, 1056
      %v1181 = vld [vmem:[%s1180] sm:$0xff]
      %v1182 = vld [vmem:[%s1180 + $0x8] sm:$0xff]
      %v1183 = vld [vmem:[%s1180 + $0x10] sm:$0xff]
      %v1184 = vld [vmem:[%s1180 + $0x18] sm:$0xff]
      %v1185 = vld [vmem:[%s1180 + $0x20] sm:$0xff]
      %v1186 = vld [vmem:[%s1180 + $0x28] sm:$0xff]
      %v1187 = vld [vmem:[%s1180 + $0x30] sm:$0xff]
      %v1188 = vld [vmem:[%s1180 + $0x38] sm:$0xff]
      %v1189 = vld [vmem:[%s1180 + $0x40] sm:$0xff]
      %v1190 = vld [vmem:[%s1180 + $0x48] sm:$0xff]
      %v1191 = vld [vmem:[%s1180 + $0x50] sm:$0xff]
      %v1192 = vld [vmem:[%s1180 + $0x58] sm:$0xff]
      %v1193 = vld [vmem:[%s1180 + $0x60] sm:$0xff]
      %v1194 = vld [vmem:[%s1180 + $0x68] sm:$0xff]
      %v1195 = vld [vmem:[%s1180 + $0x70] sm:$0xff]
      %v1196 = vld [vmem:[%s1180 + $0x78] sm:$0xff]
      %v1197 = vld [vmem:[%s1180 + $0x80] sm:$0xff]
      %v1198 = vld [vmem:[%s1180 + $0x88] sm:$0xff]
      %v1199 = vld [vmem:[%s1180 + $0x90] sm:$0xff]
      %v1200 = vld [vmem:[%s1180 + $0x98] sm:$0xff]
      %v1201 = vld [vmem:[%s1180 + $0xa0] sm:$0x1]
      %v1202 = vld [vmem:[%s1180 + $0xa8] sm:$0x1]
      %v1204 = vsel %vm211, %v1182, 0
      %v1207 = vsel %vm211, %v1184, 0
      %v1210 = vsel %vm211, %v1186, 0
      %v1213 = vsel %vm211, %v1188, 0
      %v1216 = vsel %vm211, %v1190, 0
      %v1219 = vsel %vm211, %v1192, 0
      %v1222 = vsel %vm211, %v1194, 0
      %v1225 = vsel %vm211, %v1196, 0
      %v1228 = vsel %vm211, %v1198, 0
      %v1231 = vsel %vm211, %v1200, 0
      %v1234 = vsel %vm211, %v1202, 0
      %1236 = vmatpush.msra.mxu0 %v186
      %1237 = vmatpush.msra.mxu0 %v185
      %1238 = vmatpush.msra.mxu0 %v184
      %1239 = vmatpush.msra.mxu0 %v183
      %1240 = vmatpush.msra.mxu0 %v182
      %1241 = vmatpush.msra.mxu0 %v181
      %1242 = vmatpush.msra.mxu0 %v180
      %1243 = vmatpush.msra.mxu0 %v179
      %1244 = vmatpush.msra.mxu0 %v178
      %1245 = vmatpush.msra.mxu0 %v177
      %1246 = vmatpush.msra.mxu0 %v176
      %1247 = vmatpush.msra.mxu0 %v175
      %1248 = vmatpush.msra.mxu0 %v174
      %1249 = vmatpush.msra.mxu0 %v173
      %1250 = vmatpush.msra.mxu0 %v172
      %1251 = vmatpush.msra.mxu0 %v171
      %1252 = vmatmul.f32.gmra.mxu0 %v1181
      %v1253 = vpop.f32.mrf.mxu0
      %v1254 = vadd.f32 0.0, %v1253
      %1255 = vmatmul.f32.gmra.mxu0 %v1183
      %v1256 = vpop.f32.mrf.mxu0
      %v1257 = vadd.f32 0.0, %v1256
      %1258 = vmatmul.f32.gmra.mxu0 %v1185
      %v1259 = vpop.f32.mrf.mxu0
      %v1260 = vadd.f32 0.0, %v1259
      %1261 = vmatmul.f32.gmra.mxu0 %v1187
      %v1262 = vpop.f32.mrf.mxu0
      %v1263 = vadd.f32 0.0, %v1262
      %1264 = vmatmul.f32.gmra.mxu0 %v1189
      %v1265 = vpop.f32.mrf.mxu0
      %v1266 = vadd.f32 0.0, %v1265
      %1267 = vmatmul.f32.gmra.mxu0 %v1191
      %v1268 = vpop.f32.mrf.mxu0
      %v1269 = vadd.f32 0.0, %v1268
      %1270 = vmatmul.f32.gmra.mxu0 %v1193
      %v1271 = vpop.f32.mrf.mxu0
      %v1272 = vadd.f32 0.0, %v1271
      %1273 = vmatmul.f32.gmra.mxu0 %v1195
      %v1274 = vpop.f32.mrf.mxu0
      %v1275 = vadd.f32 0.0, %v1274
      %1276 = vmatmul.f32.gmra.mxu0 %v1197
      %v1277 = vpop.f32.mrf.mxu0
      %v1278 = vadd.f32 0.0, %v1277
      %1279 = vmatmul.f32.gmra.mxu0 %v1199
      %v1280 = vpop.f32.mrf.mxu0
      %v1281 = vadd.f32 0.0, %v1280
      %1282 = vmatmul.f32.gmra.mxu0 %v1201
      %v1283 = vpop.f32.mrf.mxu0
      %v1284 = vadd.f32 0.0, %v1283
      %1285 = vdwg.mxu0
      %1286 = vmatpush.msra.mxu0 0.0
      %1287 = vmatpush.msra.mxu0 0.0
      %1288 = vmatpush.msra.mxu0 0.0
      %1289 = vmatpush.msra.mxu0 0.0
      %1290 = vmatpush.msra.mxu0 0.0
      %1291 = vmatpush.msra.mxu0 0.0
      %1292 = vmatpush.msra.mxu0 0.0
      %1293 = vmatpush.msra.mxu0 0.0
      %1294 = vmatpush.msra.mxu0 0.0
      %1295 = vmatpush.msra.mxu0 0.0
      %1296 = vmatpush.msra.mxu0 0.0
      %1297 = vmatpush.msra.mxu0 0.0
      %1298 = vmatpush.msra.mxu0 0.0
      %1299 = vmatpush.msra.mxu0 0.0
      %1300 = vmatpush.msra.mxu0 %v188
      %1301 = vmatpush.msra.mxu0 %v187
      %1302 = vmatmul.f32.gmra.mxu0 %v1204
      %v1303 = vpop.f32.mrf.mxu0
      %v1304 = vadd.f32 %v1254, %v1303
      %1305 = vmatmul.f32.gmra.mxu0 %v1207
      %v1306 = vpop.f32.mrf.mxu0
      %v1307 = vadd.f32 %v1257, %v1306
      %1308 = vmatmul.f32.gmra.mxu0 %v1210
      %v1309 = vpop.f32.mrf.mxu0
      %v1310 = vadd.f32 %v1260, %v1309
      %1311 = vmatmul.f32.gmra.mxu0 %v1213
      %v1312 = vpop.f32.mrf.mxu0
      %v1313 = vadd.f32 %v1263, %v1312
      %1314 = vmatmul.f32.gmra.mxu0 %v1216
      %v1315 = vpop.f32.mrf.mxu0
      %v1316 = vadd.f32 %v1266, %v1315
      %1317 = vmatmul.f32.gmra.mxu0 %v1219
      %v1318 = vpop.f32.mrf.mxu0
      %v1319 = vadd.f32 %v1269, %v1318
      %1320 = vmatmul.f32.gmra.mxu0 %v1222
      %v1321 = vpop.f32.mrf.mxu0
      %v1322 = vadd.f32 %v1272, %v1321
      %1323 = vmatmul.f32.gmra.mxu0 %v1225
      %v1324 = vpop.f32.mrf.mxu0
      %v1325 = vadd.f32 %v1275, %v1324
      %1326 = vmatmul.f32.gmra.mxu0 %v1228
      %v1327 = vpop.f32.mrf.mxu0
      %v1328 = vadd.f32 %v1278, %v1327
      %1329 = vmatmul.f32.gmra.mxu0 %v1231
      %v1330 = vpop.f32.mrf.mxu0
      %v1331 = vadd.f32 %v1281, %v1330
      %1332 = vmatmul.f32.gmra.mxu0 %v1234
      %v1333 = vpop.f32.mrf.mxu0
      %v1334 = vadd.f32 %v1284, %v1333
      %1335 = vdwg.mxu0
      %v1336 = vmax.f32 %v1169, %v1304
      %v1337 = vmax.f32 %v1170, %v1307
      %v1338 = vmax.f32 %v1171, %v1310
      %v1339 = vmax.f32 %v1172, %v1313
      %v1340 = vmax.f32 %v1173, %v1316
      %v1341 = vmax.f32 %v1174, %v1319
      %v1342 = vmax.f32 %v1175, %v1322
      %v1343 = vmax.f32 %v1176, %v1325
      %v1344 = vmax.f32 %v1177, %v1328
      %v1345 = vmax.f32 %v1178, %v1331
      %v1346 = vmax.f32 %v1179, %v1334
      %s1347 = scalar_lea.vmem %s165, 1232
      %v1348 = vld [vmem:[%s1347] sm:$0xff]
      %v1349 = vld [vmem:[%s1347 + $0x8] sm:$0xff]
      %v1350 = vld [vmem:[%s1347 + $0x10] sm:$0xff]
      %v1351 = vld [vmem:[%s1347 + $0x18] sm:$0xff]
      %v1352 = vld [vmem:[%s1347 + $0x20] sm:$0xff]
      %v1353 = vld [vmem:[%s1347 + $0x28] sm:$0xff]
      %v1354 = vld [vmem:[%s1347 + $0x30] sm:$0xff]
      %v1355 = vld [vmem:[%s1347 + $0x38] sm:$0xff]
      %v1356 = vld [vmem:[%s1347 + $0x40] sm:$0xff]
      %v1357 = vld [vmem:[%s1347 + $0x48] sm:$0xff]
      %v1358 = vld [vmem:[%s1347 + $0x50] sm:$0xff]
      %v1359 = vld [vmem:[%s1347 + $0x58] sm:$0xff]
      %v1360 = vld [vmem:[%s1347 + $0x60] sm:$0xff]
      %v1361 = vld [vmem:[%s1347 + $0x68] sm:$0xff]
      %v1362 = vld [vmem:[%s1347 + $0x70] sm:$0xff]
      %v1363 = vld [vmem:[%s1347 + $0x78] sm:$0xff]
      %v1364 = vld [vmem:[%s1347 + $0x80] sm:$0xff]
      %v1365 = vld [vmem:[%s1347 + $0x88] sm:$0xff]
      %v1366 = vld [vmem:[%s1347 + $0x90] sm:$0xff]
      %v1367 = vld [vmem:[%s1347 + $0x98] sm:$0xff]
      %v1368 = vld [vmem:[%s1347 + $0xa0] sm:$0x1]
      %v1369 = vld [vmem:[%s1347 + $0xa8] sm:$0x1]
      %v1371 = vsel %vm211, %v1349, 0
      %v1374 = vsel %vm211, %v1351, 0
      %v1377 = vsel %vm211, %v1353, 0
      %v1380 = vsel %vm211, %v1355, 0
      %v1383 = vsel %vm211, %v1357, 0
      %v1386 = vsel %vm211, %v1359, 0
      %v1389 = vsel %vm211, %v1361, 0
      %v1392 = vsel %vm211, %v1363, 0
      %v1395 = vsel %vm211, %v1365, 0
      %v1398 = vsel %vm211, %v1367, 0
      %v1401 = vsel %vm211, %v1369, 0
      %1403 = vmatpush.msra.mxu0 %v186
      %1404 = vmatpush.msra.mxu0 %v185
      %1405 = vmatpush.msra.mxu0 %v184
      %1406 = vmatpush.msra.mxu0 %v183
      %1407 = vmatpush.msra.mxu0 %v182
      %1408 = vmatpush.msra.mxu0 %v181
      %1409 = vmatpush.msra.mxu0 %v180
      %1410 = vmatpush.msra.mxu0 %v179
      %1411 = vmatpush.msra.mxu0 %v178
      %1412 = vmatpush.msra.mxu0 %v177
      %1413 = vmatpush.msra.mxu0 %v176
      %1414 = vmatpush.msra.mxu0 %v175
      %1415 = vmatpush.msra.mxu0 %v174
      %1416 = vmatpush.msra.mxu0 %v173
      %1417 = vmatpush.msra.mxu0 %v172
      %1418 = vmatpush.msra.mxu0 %v171
      %1419 = vmatmul.f32.gmra.mxu0 %v1348
      %v1420 = vpop.f32.mrf.mxu0
      %v1421 = vadd.f32 0.0, %v1420
      %1422 = vmatmul.f32.gmra.mxu0 %v1350
      %v1423 = vpop.f32.mrf.mxu0
      %v1424 = vadd.f32 0.0, %v1423
      %1425 = vmatmul.f32.gmra.mxu0 %v1352
      %v1426 = vpop.f32.mrf.mxu0
      %v1427 = vadd.f32 0.0, %v1426
      %1428 = vmatmul.f32.gmra.mxu0 %v1354
      %v1429 = vpop.f32.mrf.mxu0
      %v1430 = vadd.f32 0.0, %v1429
      %1431 = vmatmul.f32.gmra.mxu0 %v1356
      %v1432 = vpop.f32.mrf.mxu0
      %v1433 = vadd.f32 0.0, %v1432
      %1434 = vmatmul.f32.gmra.mxu0 %v1358
      %v1435 = vpop.f32.mrf.mxu0
      %v1436 = vadd.f32 0.0, %v1435
      %1437 = vmatmul.f32.gmra.mxu0 %v1360
      %v1438 = vpop.f32.mrf.mxu0
      %v1439 = vadd.f32 0.0, %v1438
      %1440 = vmatmul.f32.gmra.mxu0 %v1362
      %v1441 = vpop.f32.mrf.mxu0
      %v1442 = vadd.f32 0.0, %v1441
      %1443 = vmatmul.f32.gmra.mxu0 %v1364
      %v1444 = vpop.f32.mrf.mxu0
      %v1445 = vadd.f32 0.0, %v1444
      %1446 = vmatmul.f32.gmra.mxu0 %v1366
      %v1447 = vpop.f32.mrf.mxu0
      %v1448 = vadd.f32 0.0, %v1447
      %1449 = vmatmul.f32.gmra.mxu0 %v1368
      %v1450 = vpop.f32.mrf.mxu0
      %v1451 = vadd.f32 0.0, %v1450
      %1452 = vdwg.mxu0
      %1453 = vmatpush.msra.mxu0 0.0
      %1454 = vmatpush.msra.mxu0 0.0
      %1455 = vmatpush.msra.mxu0 0.0
      %1456 = vmatpush.msra.mxu0 0.0
      %1457 = vmatpush.msra.mxu0 0.0
      %1458 = vmatpush.msra.mxu0 0.0
      %1459 = vmatpush.msra.mxu0 0.0
      %1460 = vmatpush.msra.mxu0 0.0
      %1461 = vmatpush.msra.mxu0 0.0
      %1462 = vmatpush.msra.mxu0 0.0
      %1463 = vmatpush.msra.mxu0 0.0
      %1464 = vmatpush.msra.mxu0 0.0
      %1465 = vmatpush.msra.mxu0 0.0
      %1466 = vmatpush.msra.mxu0 0.0
      %1467 = vmatpush.msra.mxu0 %v188
      %1468 = vmatpush.msra.mxu0 %v187
      %1469 = vmatmul.f32.gmra.mxu0 %v1371
      %v1470 = vpop.f32.mrf.mxu0
      %v1471 = vadd.f32 %v1421, %v1470
      %1472 = vmatmul.f32.gmra.mxu0 %v1374
      %v1473 = vpop.f32.mrf.mxu0
      %v1474 = vadd.f32 %v1424, %v1473
      %1475 = vmatmul.f32.gmra.mxu0 %v1377
      %v1476 = vpop.f32.mrf.mxu0
      %v1477 = vadd.f32 %v1427, %v1476
      %1478 = vmatmul.f32.gmra.mxu0 %v1380
      %v1479 = vpop.f32.mrf.mxu0
      %v1480 = vadd.f32 %v1430, %v1479
      %1481 = vmatmul.f32.gmra.mxu0 %v1383
      %v1482 = vpop.f32.mrf.mxu0
      %v1483 = vadd.f32 %v1433, %v1482
      %1484 = vmatmul.f32.gmra.mxu0 %v1386
      %v1485 = vpop.f32.mrf.mxu0
      %v1486 = vadd.f32 %v1436, %v1485
      %1487 = vmatmul.f32.gmra.mxu0 %v1389
      %v1488 = vpop.f32.mrf.mxu0
      %v1489 = vadd.f32 %v1439, %v1488
      %1490 = vmatmul.f32.gmra.mxu0 %v1392
      %v1491 = vpop.f32.mrf.mxu0
      %v1492 = vadd.f32 %v1442, %v1491
      %1493 = vmatmul.f32.gmra.mxu0 %v1395
      %v1494 = vpop.f32.mrf.mxu0
      %v1495 = vadd.f32 %v1445, %v1494
      %1496 = vmatmul.f32.gmra.mxu0 %v1398
      %v1497 = vpop.f32.mrf.mxu0
      %v1498 = vadd.f32 %v1448, %v1497
      %1499 = vmatmul.f32.gmra.mxu0 %v1401
      %v1500 = vpop.f32.mrf.mxu0
      %v1501 = vadd.f32 %v1451, %v1500
      %1502 = vdwg.mxu0
      %v1503 = vmax.f32 %v1336, %v1471
      %v1504 = vmax.f32 %v1337, %v1474
      %v1505 = vmax.f32 %v1338, %v1477
      %v1506 = vmax.f32 %v1339, %v1480
      %v1507 = vmax.f32 %v1340, %v1483
      %v1508 = vmax.f32 %v1341, %v1486
      %v1509 = vmax.f32 %v1342, %v1489
      %v1510 = vmax.f32 %v1343, %v1492
      %v1511 = vmax.f32 %v1344, %v1495
      %v1512 = vmax.f32 %v1345, %v1498
      %v1513 = vmax.f32 %v1346, %v1501
      %s1514 = scalar_lea.vmem %s165, 1408
      %v1515 = vld [vmem:[%s1514] sm:$0xff]
      %v1516 = vld [vmem:[%s1514 + $0x8] sm:$0xff]
      %v1517 = vld [vmem:[%s1514 + $0x10] sm:$0xff]
      %v1518 = vld [vmem:[%s1514 + $0x18] sm:$0xff]
      %v1519 = vld [vmem:[%s1514 + $0x20] sm:$0xff]
      %v1520 = vld [vmem:[%s1514 + $0x28] sm:$0xff]
      %v1521 = vld [vmem:[%s1514 + $0x30] sm:$0xff]
      %v1522 = vld [vmem:[%s1514 + $0x38] sm:$0xff]
      %v1523 = vld [vmem:[%s1514 + $0x40] sm:$0xff]
      %v1524 = vld [vmem:[%s1514 + $0x48] sm:$0xff]
      %v1525 = vld [vmem:[%s1514 + $0x50] sm:$0xff]
      %v1526 = vld [vmem:[%s1514 + $0x58] sm:$0xff]
      %v1527 = vld [vmem:[%s1514 + $0x60] sm:$0xff]
      %v1528 = vld [vmem:[%s1514 + $0x68] sm:$0xff]
      %v1529 = vld [vmem:[%s1514 + $0x70] sm:$0xff]
      %v1530 = vld [vmem:[%s1514 + $0x78] sm:$0xff]
      %v1531 = vld [vmem:[%s1514 + $0x80] sm:$0xff]
      %v1532 = vld [vmem:[%s1514 + $0x88] sm:$0xff]
      %v1533 = vld [vmem:[%s1514 + $0x90] sm:$0xff]
      %v1534 = vld [vmem:[%s1514 + $0x98] sm:$0xff]
      %v1535 = vld [vmem:[%s1514 + $0xa0] sm:$0x1]
      %v1536 = vld [vmem:[%s1514 + $0xa8] sm:$0x1]
      %v1538 = vsel %vm211, %v1516, 0
      %v1541 = vsel %vm211, %v1518, 0
      %v1544 = vsel %vm211, %v1520, 0
      %v1547 = vsel %vm211, %v1522, 0
      %v1550 = vsel %vm211, %v1524, 0
      %v1553 = vsel %vm211, %v1526, 0
      %v1556 = vsel %vm211, %v1528, 0
      %v1559 = vsel %vm211, %v1530, 0
      %v1562 = vsel %vm211, %v1532, 0
      %v1565 = vsel %vm211, %v1534, 0
      %v1568 = vsel %vm211, %v1536, 0
      %1570 = vmatpush.msra.mxu0 %v186
      %1571 = vmatpush.msra.mxu0 %v185
      %1572 = vmatpush.msra.mxu0 %v184
      %1573 = vmatpush.msra.mxu0 %v183
      %1574 = vmatpush.msra.mxu0 %v182
      %1575 = vmatpush.msra.mxu0 %v181
      %1576 = vmatpush.msra.mxu0 %v180
      %1577 = vmatpush.msra.mxu0 %v179
      %1578 = vmatpush.msra.mxu0 %v178
      %1579 = vmatpush.msra.mxu0 %v177
      %1580 = vmatpush.msra.mxu0 %v176
      %1581 = vmatpush.msra.mxu0 %v175
      %1582 = vmatpush.msra.mxu0 %v174
      %1583 = vmatpush.msra.mxu0 %v173
      %1584 = vmatpush.msra.mxu0 %v172
      %1585 = vmatpush.msra.mxu0 %v171
      %1586 = vmatmul.f32.gmra.mxu0 %v1515
      %v1587 = vpop.f32.mrf.mxu0
      %v1588 = vadd.f32 0.0, %v1587
      %1589 = vmatmul.f32.gmra.mxu0 %v1517
      %v1590 = vpop.f32.mrf.mxu0
      %v1591 = vadd.f32 0.0, %v1590
      %1592 = vmatmul.f32.gmra.mxu0 %v1519
      %v1593 = vpop.f32.mrf.mxu0
      %v1594 = vadd.f32 0.0, %v1593
      %1595 = vmatmul.f32.gmra.mxu0 %v1521
      %v1596 = vpop.f32.mrf.mxu0
      %v1597 = vadd.f32 0.0, %v1596
      %1598 = vmatmul.f32.gmra.mxu0 %v1523
      %v1599 = vpop.f32.mrf.mxu0
      %v1600 = vadd.f32 0.0, %v1599
      %1601 = vmatmul.f32.gmra.mxu0 %v1525
      %v1602 = vpop.f32.mrf.mxu0
      %v1603 = vadd.f32 0.0, %v1602
      %1604 = vmatmul.f32.gmra.mxu0 %v1527
      %v1605 = vpop.f32.mrf.mxu0
      %v1606 = vadd.f32 0.0, %v1605
      %1607 = vmatmul.f32.gmra.mxu0 %v1529
      %v1608 = vpop.f32.mrf.mxu0
      %v1609 = vadd.f32 0.0, %v1608
      %1610 = vmatmul.f32.gmra.mxu0 %v1531
      %v1611 = vpop.f32.mrf.mxu0
      %v1612 = vadd.f32 0.0, %v1611
      %1613 = vmatmul.f32.gmra.mxu0 %v1533
      %v1614 = vpop.f32.mrf.mxu0
      %v1615 = vadd.f32 0.0, %v1614
      %1616 = vmatmul.f32.gmra.mxu0 %v1535
      %v1617 = vpop.f32.mrf.mxu0
      %v1618 = vadd.f32 0.0, %v1617
      %1619 = vdwg.mxu0
      %1620 = vmatpush.msra.mxu0 0.0
      %1621 = vmatpush.msra.mxu0 0.0
      %1622 = vmatpush.msra.mxu0 0.0
      %1623 = vmatpush.msra.mxu0 0.0
      %1624 = vmatpush.msra.mxu0 0.0
      %1625 = vmatpush.msra.mxu0 0.0
      %1626 = vmatpush.msra.mxu0 0.0
      %1627 = vmatpush.msra.mxu0 0.0
      %1628 = vmatpush.msra.mxu0 0.0
      %1629 = vmatpush.msra.mxu0 0.0
      %1630 = vmatpush.msra.mxu0 0.0
      %1631 = vmatpush.msra.mxu0 0.0
      %1632 = vmatpush.msra.mxu0 0.0
      %1633 = vmatpush.msra.mxu0 0.0
      %1634 = vmatpush.msra.mxu0 %v188
      %1635 = vmatpush.msra.mxu0 %v187
      %1636 = vmatmul.f32.gmra.mxu0 %v1538
      %v1637 = vpop.f32.mrf.mxu0
      %v1638 = vadd.f32 %v1588, %v1637
      %1639 = vmatmul.f32.gmra.mxu0 %v1541
      %v1640 = vpop.f32.mrf.mxu0
      %v1641 = vadd.f32 %v1591, %v1640
      %1642 = vmatmul.f32.gmra.mxu0 %v1544
      %v1643 = vpop.f32.mrf.mxu0
      %v1644 = vadd.f32 %v1594, %v1643
      %1645 = vmatmul.f32.gmra.mxu0 %v1547
      %v1646 = vpop.f32.mrf.mxu0
      %v1647 = vadd.f32 %v1597, %v1646
      %1648 = vmatmul.f32.gmra.mxu0 %v1550
      %v1649 = vpop.f32.mrf.mxu0
      %v1650 = vadd.f32 %v1600, %v1649
      %1651 = vmatmul.f32.gmra.mxu0 %v1553
      %v1652 = vpop.f32.mrf.mxu0
      %v1653 = vadd.f32 %v1603, %v1652
      %1654 = vmatmul.f32.gmra.mxu0 %v1556
      %v1655 = vpop.f32.mrf.mxu0
      %v1656 = vadd.f32 %v1606, %v1655
      %1657 = vmatmul.f32.gmra.mxu0 %v1559
      %v1658 = vpop.f32.mrf.mxu0
      %v1659 = vadd.f32 %v1609, %v1658
      %1660 = vmatmul.f32.gmra.mxu0 %v1562
      %v1661 = vpop.f32.mrf.mxu0
      %v1662 = vadd.f32 %v1612, %v1661
      %1663 = vmatmul.f32.gmra.mxu0 %v1565
      %v1664 = vpop.f32.mrf.mxu0
      %v1665 = vadd.f32 %v1615, %v1664
      %1666 = vmatmul.f32.gmra.mxu0 %v1568
      %v1667 = vpop.f32.mrf.mxu0
      %v1668 = vadd.f32 %v1618, %v1667
      %1669 = vdwg.mxu0
      %v1670 = vmax.f32 %v1503, %v1638
      %v1671 = vmax.f32 %v1504, %v1641
      %v1672 = vmax.f32 %v1505, %v1644
      %v1673 = vmax.f32 %v1506, %v1647
      %v1674 = vmax.f32 %v1507, %v1650
      %v1675 = vmax.f32 %v1508, %v1653
      %v1676 = vmax.f32 %v1509, %v1656
      %v1677 = vmax.f32 %v1510, %v1659
      %v1678 = vmax.f32 %v1511, %v1662
      %v1679 = vmax.f32 %v1512, %v1665
      %v1680 = vmax.f32 %v1513, %v1668
      %v1681 = vld [vmem:[%s2] sm:$0x1]
      %v1683 = vperm.slane %v1681, 0
      %v1685 = vadd.f32 %v1670, %v1683
      %v1686 = vadd.f32 %v1671, %v1683
      %v1687 = vadd.f32 %v1672, %v1683
      %v1688 = vadd.f32 %v1673, %v1683
      %v1689 = vadd.f32 %v1674, %v1683
      %v1690 = vadd.f32 %v1675, %v1683
      %v1691 = vadd.f32 %v1676, %v1683
      %v1692 = vadd.f32 %v1677, %v1683
      %v1693 = vadd.f32 %v1678, %v1683
      %v1694 = vadd.f32 %v1679, %v1683
      %v1695 = vadd.f32 %v1680, %v1683
      %vm1696 = vcmp.ge.f32.partialorder %v1685, 0.0
      %vm1697 = vcmp.ge.f32.partialorder %v1686, 0.0
      %vm1698 = vcmp.ge.f32.partialorder %v1687, 0.0
      %vm1699 = vcmp.ge.f32.partialorder %v1688, 0.0
      %vm1700 = vcmp.ge.f32.partialorder %v1689, 0.0
      %vm1701 = vcmp.ge.f32.partialorder %v1690, 0.0
      %vm1702 = vcmp.ge.f32.partialorder %v1691, 0.0
      %vm1703 = vcmp.ge.f32.partialorder %v1692, 0.0
      %vm1704 = vcmp.ge.f32.partialorder %v1693, 0.0
      %vm1705 = vcmp.ge.f32.partialorder %v1694, 0.0
      %vm1706 = vcmp.ge.f32.partialorder %v1695, 0.0
      %v1707 = vmul.f32 %v1685, 0.01
      %v1708 = vmul.f32 %v1686, 0.01
      %v1709 = vmul.f32 %v1687, 0.01
      %v1710 = vmul.f32 %v1688, 0.01
      %v1711 = vmul.f32 %v1689, 0.01
      %v1712 = vmul.f32 %v1690, 0.01
      %v1713 = vmul.f32 %v1691, 0.01
      %v1714 = vmul.f32 %v1692, 0.01
      %v1715 = vmul.f32 %v1693, 0.01
      %v1716 = vmul.f32 %v1694, 0.01
      %v1717 = vmul.f32 %v1695, 0.01
      %v1718 = vsel %vm1696, %v1685, %v1707
      %v1719 = vsel %vm1697, %v1686, %v1708
      %v1720 = vsel %vm1698, %v1687, %v1709
      %v1721 = vsel %vm1699, %v1688, %v1710
      %v1722 = vsel %vm1700, %v1689, %v1711
      %v1723 = vsel %vm1701, %v1690, %v1712
      %v1724 = vsel %vm1702, %v1691, %v1713
      %v1725 = vsel %vm1703, %v1692, %v1714
      %v1726 = vsel %vm1704, %v1693, %v1715
      %v1727 = vsel %vm1705, %v1694, %v1716
      %v1728 = vsel %vm1706, %v1695, %v1717
      %vm1729 = vcmask 261120
      %1730 = vst.msk [vmem:[%s170] sm:$0xff] %vm1729, %v1718
      %1731 = vst.msk [vmem:[%s170 + $0x8] sm:$0xff] %vm1729, %v1719
      %1732 = vst.msk [vmem:[%s170 + $0x10] sm:$0xff] %vm1729, %v1720
      %1733 = vst.msk [vmem:[%s170 + $0x18] sm:$0xff] %vm1729, %v1721
      %1734 = vst.msk [vmem:[%s170 + $0x20] sm:$0xff] %vm1729, %v1722
      %1735 = vst.msk [vmem:[%s170 + $0x28] sm:$0xff] %vm1729, %v1723
      %1736 = vst.msk [vmem:[%s170 + $0x30] sm:$0xff] %vm1729, %v1724
      %1737 = vst.msk [vmem:[%s170 + $0x38] sm:$0xff] %vm1729, %v1725
      %1738 = vst.msk [vmem:[%s170 + $0x40] sm:$0xff] %vm1729, %v1726
      %1739 = vst.msk [vmem:[%s170 + $0x48] sm:$0xff] %vm1729, %v1727
      %vm1740 = vcmask 253952
      %1741 = vst.msk [vmem:[%s170 + $0x50] sm:$0x1] %vm1740, %v1728
      %p1742 = scmp.lt.s32.totalorder %s14, 1
      %s1743 = scalar_select %p1742, %s14, 1
      %s1744 = smul.addr %s1743, 11
      %s1745 = smul.addr %s1744, 8
      %s1746 = scalar_lea.vmem %s3, %s1745
      // Predicated region
      $region33: #{classifier_forward.6} parent=31 // pred_check
        %p1747 = pneg %p100
      $region34: #{classifier_forward.6} parent=31 // pred_check_branch
        %1749 = sbr.rel (%p1747) target = $region36
      $region35: #{classifier_forward.6} parent=31 // pred_region
        _
      $region36: #{classifier_forward.6} parent=31 // pred_fallthru
        _
    $region32: #{classifier_forward.6} parent=5 // pred_fallthru
      _
    %p1750 = scmp.le.s32.totalorder 2, %s9
    // Predicated region
    $region37: #{classifier_forward.6} parent=5 // pred_check
      %p1751 = pneg %p1750
    $region38: #{classifier_forward.6} parent=5 // pred_check_branch
      %1753 = sbr.rel (%p1751) target = $region40
    $region39: #{classifier_forward.6} parent=5 // pred_region
      %s1754 = ssub.s32 %s9, 2
      // Predicated region
      $region41: #{classifier_forward.6} parent=39 // pred_check
        %p1755 = pneg %p106
      $region42: #{classifier_forward.6} parent=39 // pred_check_branch
        %1757 = sbr.rel (%p1755) target = $region44
      $region43: #{classifier_forward.6} parent=39 // pred_region
        %p1758 = scmp.lt.s32.totalorder %s15, 1
        %s1759 = scalar_select %p1758, %s15, 1
        %s1760 = smul.addr %s1759, 11
        %s1761 = smul.addr %s1760, 8
        %s1762 = scalar_lea.vmem %s3, %s1761
      $region44: #{classifier_forward.6} parent=39 // pred_fallthru
        _
    $region40: #{classifier_forward.6} parent=5 // pred_fallthru
      _
  $region6: #{classifier_forward.6} parent=0 // loop_footer
    %s13 = sadd.s32 1, %s9
  $region7: #{classifier_forward.6} parent=0 // loop_footer_branch
    %8 = sbr.rel target = $region3
  $region8: #{classifier_forward.6} parent=0 // loop_exit
    _

// kernel: classifier_forward.7
$region0: #{classifier_forward.7}
  #allocation0 [shape = 'u32[]', space=smem, size = 0x4, offset = 0x4, fixed_abs, tag = 'smem constant byte address 0x4 - core index']
  #allocation1 [shape = 'u32[72,128]{1,0:T(1,128)}', space=vmem, size = 0x9000, scoped, tag = 'internal scratch']
  %s0 = inlined_call_operand.vmem [shape: f32[2,9,9,288], index: 0, kind: input, shape index: {}]
  %s1 = inlined_call_operand.vmem [shape: f32[288,64], index: 1, kind: input, shape index: {}]
  %s2 = inlined_call_operand.vmem [shape: f32[1,64], index: 2, kind: input, shape index: {}]
  %s3 = inlined_call_operand.vmem [shape: f32[2,9,64], index: 3, kind: output, shape index: {}]
  %s4 = sld [smem:[#allocation0]]
  $region45: #{classifier_forward.7} parent=0
    _
  %s6 = ssub.s32 1, %s4
  %s7 = scalar_select 0, %s6, %s4
  loop: start=0, step=1, limit=4
  $region2: #{classifier_forward.7} parent=0 // loop_pre_header
    _
  $region3: #{classifier_forward.7} parent=0 // loop_header
    %s9 = sphi 0, %s13
    %p10 = scmp.ge.s32.totalorder %s9, 4
    %s19 = sphi 0, %s21
    %s22 = sphi 0, %s19
    %s23 = sphi 0, %s22
    %s39 = sphi 0, %s23
    %s43 = sphi 0, %s43
    %s45 = sphi 0, %s43
    %s46 = sphi 0, %s45
    %s60 = sphi 0, %s46
    %s64 = sphi 0, %s64
    %s66 = sphi 0, %s64
    %s67 = sphi 0, %s66
    %s81 = sphi 0, %s67
    %s87 = sphi 0, %s89
    %s90 = sphi 0, %s87
    %s91 = sphi 0, %s90
    %s107 = sphi 0, %s91
  $region4: #{classifier_forward.7} parent=0 // loop_header_branch
    %12 = sbr.rel (%p10) target = $region8
  $region5: #{classifier_forward.7} parent=0 // loop_body
    %s14 = ssub.s32 %s9, 1
    %s15 = ssub.s32 %s9, 2
    %s16 = sadd.s32 %s9, 1
    %s17 = ssub.s32 %s9, %s16
    %p18 = scmp.eq.s32.totalorder %s17, 0
    %s20 = sadd.s32 %s19, 1
    %s21 = scalar_select %p18, %s19, %s20
    %p24 = pneg %p18
    %p25 = scmp.eq.s32.totalorder %s9, 1
    %p26 = por %p24, %p25
    %p27 = scmp.ne.s32.totalorder %s19, %s22
    %p28 = scmp.eq.s32.totalorder %s9, 0
    %p29 = por %p27, %p28
    %p30 = scmp.ne.s32.totalorder %s19, %s22
    %p31 = scmp.eq.s32.totalorder %s14, 1
    %p32 = por %p30, %p31
    %p33 = scmp.ne.s32.totalorder %s22, %s23
    %p34 = scmp.eq.s32.totalorder %s14, 0
    %p35 = por %p33, %p34
    %p36 = scmp.ne.s32.totalorder %s22, %s23
    %p37 = scmp.eq.s32.totalorder %s15, 1
    %p38 = por %p36, %p37
    %p40 = scmp.ne.s32.totalorder %s23, %s39
    %p41 = scmp.eq.s32.totalorder %s15, 0
    %p42 = por %p40, %p41
    %s44 = sadd.s32 %s43, 1
    %p47 = scmp.eq.s32.totalorder %s9, 1
    %p48 = scmp.ne.s32.totalorder %s43, %s45
    %p49 = scmp.eq.s32.totalorder %s9, 0
    %p50 = por %p48, %p49
    %p51 = scmp.ne.s32.totalorder %s43, %s45
    %p52 = scmp.eq.s32.totalorder %s14, 1
    %p53 = por %p51, %p52
    %p54 = scmp.ne.s32.totalorder %s45, %s46
    %p55 = scmp.eq.s32.totalorder %s14, 0
    %p56 = por %p54, %p55
    %p57 = scmp.ne.s32.totalorder %s45, %s46
    %p58 = scmp.eq.s32.totalorder %s15, 1
    %p59 = por %p57, %p58
    %p61 = scmp.ne.s32.totalorder %s46, %s60
    %p62 = scmp.eq.s32.totalorder %s15, 0
    %p63 = por %p61, %p62
    %s65 = sadd.s32 %s64, 1
    %p68 = scmp.eq.s32.totalorder %s9, 1
    %p69 = scmp.ne.s32.totalorder %s64, %s66
    %p70 = scmp.eq.s32.totalorder %s9, 0
    %p71 = por %p69, %p70
    %p72 = scmp.ne.s32.totalorder %s64, %s66
    %p73 = scmp.eq.s32.totalorder %s14, 1
    %p74 = por %p72, %p73
    %p75 = scmp.ne.s32.totalorder %s66, %s67
    %p76 = scmp.eq.s32.totalorder %s14, 0
    %p77 = por %p75, %p76
    %p78 = scmp.ne.s32.totalorder %s66, %s67
    %p79 = scmp.eq.s32.totalorder %s15, 1
    %p80 = por %p78, %p79
    %p82 = scmp.ne.s32.totalorder %s67, %s81
    %p83 = scmp.eq.s32.totalorder %s15, 0
    %p84 = por %p82, %p83
    %s85 = ssub.s32 %s9, %s16
    %p86 = scmp.eq.s32.totalorder %s85, 0
    %s88 = sadd.s32 %s87, 1
    %s89 = scalar_select %p86, %s87, %s88
    %p92 = pneg %p86
    %p93 = scmp.eq.s32.totalorder %s9, 1
    %p94 = por %p92, %p93
    %p95 = scmp.ne.s32.totalorder %s87, %s90
    %p96 = scmp.eq.s32.totalorder %s9, 0
    %p97 = por %p95, %p96
    %p98 = scmp.ne.s32.totalorder %s87, %s90
    %p99 = scmp.eq.s32.totalorder %s14, 1
    %p100 = por %p98, %p99
    %p101 = scmp.ne.s32.totalorder %s90, %s91
    %p102 = scmp.eq.s32.totalorder %s14, 0
    %p103 = por %p101, %p102
    %p104 = scmp.ne.s32.totalorder %s90, %s91
    %p105 = scmp.eq.s32.totalorder %s15, 1
    %p106 = por %p104, %p105
    %p108 = scmp.ne.s32.totalorder %s91, %s107
    %p109 = scmp.eq.s32.totalorder %s15, 0
    %p110 = por %p108, %p109
    %p111 = scmp.le.s32.totalorder 1, %s9
    %p112 = scmp.lt.s32.totalorder %s9, 3
    %p113 = pnand %p111, %p112
    %p114 = pneg %p113
    // Predicated region
    $region9: #{classifier_forward.7} parent=5 // pred_check
      _
    $region10: #{classifier_forward.7} parent=5 // pred_check_branch
      %116 = sbr.rel (%p113) target = $region12
    $region11: #{classifier_forward.7} parent=5 // pred_region
      %s117 = ssub.s32 %s9, 1
      // Predicated region
      $region13: #{classifier_forward.7} parent=11 // pred_check
        %p118 = pneg %p56
      $region14: #{classifier_forward.7} parent=11 // pred_check_branch
        %120 = sbr.rel (%p118) target = $region16
      $region15: #{classifier_forward.7} parent=11 // pred_region
        _
      $region16: #{classifier_forward.7} parent=11 // pred_fallthru
        _
      // Predicated region
      $region17: #{classifier_forward.7} parent=11 // pred_check
        %p121 = pneg %p77
      $region18: #{classifier_forward.7} parent=11 // pred_check_branch
        %123 = sbr.rel (%p121) target = $region20
      $region19: #{classifier_forward.7} parent=11 // pred_region
        _
      $region20: #{classifier_forward.7} parent=11 // pred_fallthru
        _
    $region12: #{classifier_forward.7} parent=5 // pred_fallthru
      _
    %p124 = scmp.lt.s32.totalorder %s9, 2
    // Predicated region
    $region21: #{classifier_forward.7} parent=5 // pred_check
      %p125 = pneg %p124
    $region22: #{classifier_forward.7} parent=5 // pred_check_branch
      %127 = sbr.rel (%p125) target = $region24
    $region23: #{classifier_forward.7} parent=5 // pred_region
      // Predicated region
      $region25: #{classifier_forward.7} parent=23 // pred_check
        %p128 = pneg %p29
      $region26: #{classifier_forward.7} parent=23 // pred_check_branch
        %130 = sbr.rel (%p128) target = $region28
      $region27: #{classifier_forward.7} parent=23 // pred_region
        %p131 = scmp.lt.s32.totalorder %s9, 1
        %s132 = scalar_select %p131, %s9, 1
        %s133 = smul.addr %s132, 54
        %s134 = smul.addr %s133, 8
        %s135 = scalar_lea.vmem %s0, %s134
      $region28: #{classifier_forward.7} parent=23 // pred_fallthru
        _
    $region24: #{classifier_forward.7} parent=5 // pred_fallthru
      _
    %p136 = scmp.le.s32.totalorder 1, %s9
    %p137 = scmp.lt.s32.totalorder %s9, 3
    %p138 = pnand %p136, %p137
    %p139 = pneg %p138
    // Predicated region
    $region29: #{classifier_forward.7} parent=5 // pred_check
      _
    $region30: #{classifier_forward.7} parent=5 // pred_check_branch
      %141 = sbr.rel (%p138) target = $region32
    $region31: #{classifier_forward.7} parent=5 // pred_region
      %s142 = ssub.s32 %s9, 1
      %p143 = scmp.lt.s32.totalorder %s14, 1
      %s144 = scalar_select %p143, %s14, 1
      %s145 = smul.addr %s144, 54
      %s146 = smul.addr %s145, 8
      %s147 = scalar_lea.vmem %s0, %s146
      %p148 = pneg %p35
      %p149 = pneg %p32
      %p150 = pneg %p56
      %p151 = pneg %p53
      %p152 = pneg %p77
      %p153 = pneg %p74
      %p154 = pneg %p103
      %p155 = pneg %p100
      %p156 = scmp.lt.s32.totalorder %s14, 1
      %s157 = scalar_select %p156, %s14, 1
      %s158 = smul.addr %s157, 2
      %s159 = smul.addr %s158, 8
      %s160 = scalar_lea.vmem %s3, %s159
      %p161 = scmp.lt.s32.totalorder %s14, 1
      %s162 = scalar_select %p161, %s14, 1
      %s163 = smul.addr %s162, 54
      %s164 = smul.addr %s163, 8
      %s165 = scalar_lea.vmem %s0, %s164
      %p166 = scmp.lt.s32.totalorder %s14, 1
      %s167 = scalar_select %p166, %s14, 1
      %s168 = smul.addr %s167, 2
      %s169 = smul.addr %s168, 8
      %s170 = scalar_lea.vmem %s3, %s169
      %v171 = vld [vmem:[%s1] sm:$0xff]
      %v172 = vld [vmem:[%s1 + $0x8] sm:$0xff]
      %v173 = vld [vmem:[%s1 + $0x10] sm:$0xff]
      %v174 = vld [vmem:[%s1 + $0x18] sm:$0xff]
      %v175 = vld [vmem:[%s1 + $0x20] sm:$0xff]
      %v176 = vld [vmem:[%s1 + $0x28] sm:$0xff]
      %v177 = vld [vmem:[%s1 + $0x30] sm:$0xff]
      %v178 = vld [vmem:[%s1 + $0x38] sm:$0xff]
      %v179 = vld [vmem:[%s1 + $0x40] sm:$0xff]
      %v180 = vld [vmem:[%s1 + $0x48] sm:$0xff]
      %v181 = vld [vmem:[%s1 + $0x50] sm:$0xff]
      %v182 = vld [vmem:[%s1 + $0x58] sm:$0xff]
      %v183 = vld [vmem:[%s1 + $0x60] sm:$0xff]
      %v184 = vld [vmem:[%s1 + $0x68] sm:$0xff]
      %v185 = vld [vmem:[%s1 + $0x70] sm:$0xff]
      %v186 = vld [vmem:[%s1 + $0x78] sm:$0xff]
      %v187 = vld [vmem:[%s1 + $0x80] sm:$0xff]
      %v188 = vld [vmem:[%s1 + $0x88] sm:$0xff]
      %v189 = vld [vmem:[%s1 + $0x90] sm:$0xff]
      %v190 = vld [vmem:[%s1 + $0x98] sm:$0xff]
      %v191 = vld [vmem:[%s1 + $0xa0] sm:$0xff]
      %v192 = vld [vmem:[%s1 + $0xa8] sm:$0xff]
      %v193 = vld [vmem:[%s1 + $0xb0] sm:$0xff]
      %v194 = vld [vmem:[%s1 + $0xb8] sm:$0xff]
      %v195 = vld [vmem:[%s1 + $0xc0] sm:$0xff]
      %v196 = vld [vmem:[%s1 + $0xc8] sm:$0xff]
      %v197 = vld [vmem:[%s1 + $0xd0] sm:$0xff]
      %v198 = vld [vmem:[%s1 + $0xd8] sm:$0xff]
      %v199 = vld [vmem:[%s1 + $0xe0] sm:$0xff]
      %v200 = vld [vmem:[%s1 + $0xe8] sm:$0xff]
      %v201 = vld [vmem:[%s1 + $0xf0] sm:$0xff]
      %v202 = vld [vmem:[%s1 + $0xf8] sm:$0xff]
      %v203 = vld [vmem:[%s1 + $0x100] sm:$0xff]
      %v204 = vld [vmem:[%s1 + $0x108] sm:$0xff]
      %v205 = vld [vmem:[%s1 + $0x110] sm:$0xff]
      %v206 = vld [vmem:[%s1 + $0x118] sm:$0xff]
      %v207 = vld [vmem:[%s165] sm:$0xff]
      %v208 = vld [vmem:[%s165 + $0x8] sm:$0xff]
      %v209 = vld [vmem:[%s165 + $0x10] sm:$0xff]
      %v210 = vld [vmem:[%s165 + $0x18] sm:$0x1]
      %v211 = vld [vmem:[%s165 + $0x20] sm:$0x1]
      %v212 = vld [vmem:[%s165 + $0x28] sm:$0x1]
      %vm213 = vcmask 261120
      %v215 = vsel %vm213, %v209, 0
      %v218 = vsel %vm213, %v212, 0
      %220 = vmatpush.msra.mxu0 %v186
      %221 = vmatpush.msra.mxu0 %v185
      %222 = vmatpush.msra.mxu0 %v184
      %223 = vmatpush.msra.mxu0 %v183
      %224 = vmatpush.msra.mxu0 %v182
      %225 = vmatpush.msra.mxu0 %v181
      %226 = vmatpush.msra.mxu0 %v180
      %227 = vmatpush.msra.mxu0 %v179
      %228 = vmatpush.msra.mxu0 %v178
      %229 = vmatpush.msra.mxu0 %v177
      %230 = vmatpush.msra.mxu0 %v176
      %231 = vmatpush.msra.mxu0 %v175
      %232 = vmatpush.msra.mxu0 %v174
      %233 = vmatpush.msra.mxu0 %v173
      %234 = vmatpush.msra.mxu0 %v172
      %235 = vmatpush.msra.mxu0 %v171
      %236 = vmatmul.f32.gmra.mxu0 %v207
      %v237 = vpop.f32.mrf.mxu0
      %v238 = vadd.f32 0.0, %v237
      %239 = vmatmul.f32.gmra.mxu0 %v210
      %v240 = vpop.f32.mrf.mxu0
      %v241 = vadd.f32 0.0, %v240
      %242 = vdwg.mxu0
      %243 = vmatpush.msra.mxu0 %v202
      %244 = vmatpush.msra.mxu0 %v201
      %245 = vmatpush.msra.mxu0 %v200
      %246 = vmatpush.msra.mxu0 %v199
      %247 = vmatpush.msra.mxu0 %v198
      %248 = vmatpush.msra.mxu0 %v197
      %249 = vmatpush.msra.mxu0 %v196
      %250 = vmatpush.msra.mxu0 %v195
      %251 = vmatpush.msra.mxu0 %v194
      %252 = vmatpush.msra.mxu0 %v193
      %253 = vmatpush.msra.mxu0 %v192
      %254 = vmatpush.msra.mxu0 %v191
      %255 = vmatpush.msra.mxu0 %v190
      %256 = vmatpush.msra.mxu0 %v189
      %257 = vmatpush.msra.mxu0 %v188
      %258 = vmatpush.msra.mxu0 %v187
      %259 = vmatmul.f32.gmra.mxu0 %v208
      %v260 = vpop.f32.mrf.mxu0
      %v261 = vadd.f32 %v238, %v260
      %262 = vmatmul.f32.gmra.mxu0 %v211
      %v263 = vpop.f32.mrf.mxu0
      %v264 = vadd.f32 %v241, %v263
      %265 = vdwg.mxu0
      %266 = vmatpush.msra.mxu0 0.0
      %267 = vmatpush.msra.mxu0 0.0
      %268 = vmatpush.msra.mxu0 0.0
      %269 = vmatpush.msra.mxu0 0.0
      %270 = vmatpush.msra.mxu0 0.0
      %271 = vmatpush.msra.mxu0 0.0
      %272 = vmatpush.msra.mxu0 0.0
      %273 = vmatpush.msra.mxu0 0.0
      %274 = vmatpush.msra.mxu0 0.0
      %275 = vmatpush.msra.mxu0 0.0
      %276 = vmatpush.msra.mxu0 0.0
      %277 = vmatpush.msra.mxu0 0.0
      %278 = vmatpush.msra.mxu0 %v206
      %279 = vmatpush.msra.mxu0 %v205
      %280 = vmatpush.msra.mxu0 %v204
      %281 = vmatpush.msra.mxu0 %v203
      %282 = vmatmul.f32.gmra.mxu0 %v215
      %v283 = vpop.f32.mrf.mxu0
      %v284 = vadd.f32 %v261, %v283
      %285 = vmatmul.f32.gmra.mxu0 %v218
      %v286 = vpop.f32.mrf.mxu0
      %v287 = vadd.f32 %v264, %v286
      %288 = vdwg.mxu0
      %s289 = scalar_lea.vmem %s165, 48
      %v290 = vld [vmem:[%s289] sm:$0xff]
      %v291 = vld [vmem:[%s289 + $0x8] sm:$0xff]
      %v292 = vld [vmem:[%s289 + $0x10] sm:$0xff]
      %v293 = vld [vmem:[%s289 + $0x18] sm:$0x1]
      %v294 = vld [vmem:[%s289 + $0x20] sm:$0x1]
      %v295 = vld [vmem:[%s289 + $0x28] sm:$0x1]
      %v297 = vsel %vm213, %v292, 0
      %v300 = vsel %vm213, %v295, 0
      %302 = vmatpush.msra.mxu0 %v186
      %303 = vmatpush.msra.mxu0 %v185
      %304 = vmatpush.msra.mxu0 %v184
      %305 = vmatpush.msra.mxu0 %v183
      %306 = vmatpush.msra.mxu0 %v182
      %307 = vmatpush.msra.mxu0 %v181
      %308 = vmatpush.msra.mxu0 %v180
      %309 = vmatpush.msra.mxu0 %v179
      %310 = vmatpush.msra.mxu0 %v178
      %311 = vmatpush.msra.mxu0 %v177
      %312 = vmatpush.msra.mxu0 %v176
      %313 = vmatpush.msra.mxu0 %v175
      %314 = vmatpush.msra.mxu0 %v174
      %315 = vmatpush.msra.mxu0 %v173
      %316 = vmatpush.msra.mxu0 %v172
      %317 = vmatpush.msra.mxu0 %v171
      %318 = vmatmul.f32.gmra.mxu0 %v290
      %v319 = vpop.f32.mrf.mxu0
      %v320 = vadd.f32 0.0, %v319
      %321 = vmatmul.f32.gmra.mxu0 %v293
      %v322 = vpop.f32.mrf.mxu0
      %v323 = vadd.f32 0.0, %v322
      %324 = vdwg.mxu0
      %325 = vmatpush.msra.mxu0 %v202
      %326 = vmatpush.msra.mxu0 %v201
      %327 = vmatpush.msra.mxu0 %v200
      %328 = vmatpush.msra.mxu0 %v199
      %329 = vmatpush.msra.mxu0 %v198
      %330 = vmatpush.msra.mxu0 %v197
      %331 = vmatpush.msra.mxu0 %v196
      %332 = vmatpush.msra.mxu0 %v195
      %333 = vmatpush.msra.mxu0 %v194
      %334 = vmatpush.msra.mxu0 %v193
      %335 = vmatpush.msra.mxu0 %v192
      %336 = vmatpush.msra.mxu0 %v191
      %337 = vmatpush.msra.mxu0 %v190
      %338 = vmatpush.msra.mxu0 %v189
      %339 = vmatpush.msra.mxu0 %v188
      %340 = vmatpush.msra.mxu0 %v187
      %341 = vmatmul.f32.gmra.mxu0 %v291
      %v342 = vpop.f32.mrf.mxu0
      %v343 = vadd.f32 %v320, %v342
      %344 = vmatmul.f32.gmra.mxu0 %v294
      %v345 = vpop.f32.mrf.mxu0
      %v346 = vadd.f32 %v323, %v345
      %347 = vdwg.mxu0
      %348 = vmatpush.msra.mxu0 0.0
      %349 = vmatpush.msra.mxu0 0.0
      %350 = vmatpush.msra.mxu0 0.0
      %351 = vmatpush.msra.mxu0 0.0
      %352 = vmatpush.msra.mxu0 0.0
      %353 = vmatpush.msra.mxu0 0.0
      %354 = vmatpush.msra.mxu0 0.0
      %355 = vmatpush.msra.mxu0 0.0
      %356 = vmatpush.msra.mxu0 0.0
      %357 = vmatpush.msra.mxu0 0.0
      %358 = vmatpush.msra.mxu0 0.0
      %359 = vmatpush.msra.mxu0 0.0
      %360 = vmatpush.msra.mxu0 %v206
      %361 = vmatpush.msra.mxu0 %v205
      %362 = vmatpush.msra.mxu0 %v204
      %363 = vmatpush.msra.mxu0 %v203
      %364 = vmatmul.f32.gmra.mxu0 %v297
      %v365 = vpop.f32.mrf.mxu0
      %v366 = vadd.f32 %v343, %v365
      %367 = vmatmul.f32.gmra.mxu0 %v300
      %v368 = vpop.f32.mrf.mxu0
      %v369 = vadd.f32 %v346, %v368
      %370 = vdwg.mxu0
      %v371 = vmax.f32 %v284, %v366
      %v372 = vmax.f32 %v287, %v369
      %s373 = scalar_lea.vmem %s165, 96
      %v374 = vld [vmem:[%s373] sm:$0xff]
      %v375 = vld [vmem:[%s373 + $0x8] sm:$0xff]
      %v376 = vld [vmem:[%s373 + $0x10] sm:$0xff]
      %v377 = vld [vmem:[%s373 + $0x18] sm:$0x1]
      %v378 = vld [vmem:[%s373 + $0x20] sm:$0x1]
      %v379 = vld [vmem:[%s373 + $0x28] sm:$0x1]
      %v381 = vsel %vm213, %v376, 0
      %v384 = vsel %vm213, %v379, 0
      %386 = vmatpush.msra.mxu0 %v186
      %387 = vmatpush.msra.mxu0 %v185
      %388 = vmatpush.msra.mxu0 %v184
      %389 = vmatpush.msra.mxu0 %v183
      %390 = vmatpush.msra.mxu0 %v182
      %391 = vmatpush.msra.mxu0 %v181
      %392 = vmatpush.msra.mxu0 %v180
      %393 = vmatpush.msra.mxu0 %v179
      %394 = vmatpush.msra.mxu0 %v178
      %395 = vmatpush.msra.mxu0 %v177
      %396 = vmatpush.msra.mxu0 %v176
      %397 = vmatpush.msra.mxu0 %v175
      %398 = vmatpush.msra.mxu0 %v174
      %399 = vmatpush.msra.mxu0 %v173
      %400 = vmatpush.msra.mxu0 %v172
      %401 = vmatpush.msra.mxu0 %v171
      %402 = vmatmul.f32.gmra.mxu0 %v374
      %v403 = vpop.f32.mrf.mxu0
      %v404 = vadd.f32 0.0, %v403
      %405 = vmatmul.f32.gmra.mxu0 %v377
      %v406 = vpop.f32.mrf.mxu0
      %v407 = vadd.f32 0.0, %v406
      %408 = vdwg.mxu0
      %409 = vmatpush.msra.mxu0 %v202
      %410 = vmatpush.msra.mxu0 %v201
      %411 = vmatpush.msra.mxu0 %v200
      %412 = vmatpush.msra.mxu0 %v199
      %413 = vmatpush.msra.mxu0 %v198
      %414 = vmatpush.msra.mxu0 %v197
      %415 = vmatpush.msra.mxu0 %v196
      %416 = vmatpush.msra.mxu0 %v195
      %417 = vmatpush.msra.mxu0 %v194
      %418 = vmatpush.msra.mxu0 %v193
      %419 = vmatpush.msra.mxu0 %v192
      %420 = vmatpush.msra.mxu0 %v191
      %421 = vmatpush.msra.mxu0 %v190
      %422 = vmatpush.msra.mxu0 %v189
      %423 = vmatpush.msra.mxu0 %v188
      %424 = vmatpush.msra.mxu0 %v187
      %425 = vmatmul.f32.gmra.mxu0 %v375
      %v426 = vpop.f32.mrf.mxu0
      %v427 = vadd.f32 %v404, %v426
      %428 = vmatmul.f32.gmra.mxu0 %v378
      %v429 = vpop.f32.mrf.mxu0
      %v430 = vadd.f32 %v407, %v429
      %431 = vdwg.mxu0
      %432 = vmatpush.msra.mxu0 0.0
      %433 = vmatpush.msra.mxu0 0.0
      %434 = vmatpush.msra.mxu0 0.0
      %435 = vmatpush.msra.mxu0 0.0
      %436 = vmatpush.msra.mxu0 0.0
      %437 = vmatpush.msra.mxu0 0.0
      %438 = vmatpush.msra.mxu0 0.0
      %439 = vmatpush.msra.mxu0 0.0
      %440 = vmatpush.msra.mxu0 0.0
      %441 = vmatpush.msra.mxu0 0.0
      %442 = vmatpush.msra.mxu0 0.0
      %443 = vmatpush.msra.mxu0 0.0
      %444 = vmatpush.msra.mxu0 %v206
      %445 = vmatpush.msra.mxu0 %v205
      %446 = vmatpush.msra.mxu0 %v204
      %447 = vmatpush.msra.mxu0 %v203
      %448 = vmatmul.f32.gmra.mxu0 %v381
      %v449 = vpop.f32.mrf.mxu0
      %v450 = vadd.f32 %v427, %v449
      %451 = vmatmul.f32.gmra.mxu0 %v384
      %v452 = vpop.f32.mrf.mxu0
      %v453 = vadd.f32 %v430, %v452
      %454 = vdwg.mxu0
      %v455 = vmax.f32 %v371, %v450
      %v456 = vmax.f32 %v372, %v453
      %s457 = scalar_lea.vmem %s165, 144
      %v458 = vld [vmem:[%s457] sm:$0xff]
      %v459 = vld [vmem:[%s457 + $0x8] sm:$0xff]
      %v460 = vld [vmem:[%s457 + $0x10] sm:$0xff]
      %v461 = vld [vmem:[%s457 + $0x18] sm:$0x1]
      %v462 = vld [vmem:[%s457 + $0x20] sm:$0x1]
      %v463 = vld [vmem:[%s457 + $0x28] sm:$0x1]
      %v465 = vsel %vm213, %v460, 0
      %v468 = vsel %vm213, %v463, 0
      %470 = vmatpush.msra.mxu0 %v186
      %471 = vmatpush.msra.mxu0 %v185
      %472 = vmatpush.msra.mxu0 %v184
      %473 = vmatpush.msra.mxu0 %v183
      %474 = vmatpush.msra.mxu0 %v182
      %475 = vmatpush.msra.mxu0 %v181
      %476 = vmatpush.msra.mxu0 %v180
      %477 = vmatpush.msra.mxu0 %v179
      %478 = vmatpush.msra.mxu0 %v178
      %479 = vmatpush.msra.mxu0 %v177
      %480 = vmatpush.msra.mxu0 %v176
      %481 = vmatpush.msra.mxu0 %v175
      %482 = vmatpush.msra.mxu0 %v174
      %483 = vmatpush.msra.mxu0 %v173
      %484 = vmatpush.msra.mxu0 %v172
      %485 = vmatpush.msra.mxu0 %v171
      %486 = vmatmul.f32.gmra.mxu0 %v458
      %v487 = vpop.f32.mrf.mxu0
      %v488 = vadd.f32 0.0, %v487
      %489 = vmatmul.f32.gmra.mxu0 %v461
      %v490 = vpop.f32.mrf.mxu0
      %v491 = vadd.f32 0.0, %v490
      %492 = vdwg.mxu0
      %493 = vmatpush.msra.mxu0 %v202
      %494 = vmatpush.msra.mxu0 %v201
      %495 = vmatpush.msra.mxu0 %v200
      %496 = vmatpush.msra.mxu0 %v199
      %497 = vmatpush.msra.mxu0 %v198
      %498 = vmatpush.msra.mxu0 %v197
      %499 = vmatpush.msra.mxu0 %v196
      %500 = vmatpush.msra.mxu0 %v195
      %501 = vmatpush.msra.mxu0 %v194
      %502 = vmatpush.msra.mxu0 %v193
      %503 = vmatpush.msra.mxu0 %v192
      %504 = vmatpush.msra.mxu0 %v191
      %505 = vmatpush.msra.mxu0 %v190
      %506 = vmatpush.msra.mxu0 %v189
      %507 = vmatpush.msra.mxu0 %v188
      %508 = vmatpush.msra.mxu0 %v187
      %509 = vmatmul.f32.gmra.mxu0 %v459
      %v510 = vpop.f32.mrf.mxu0
      %v511 = vadd.f32 %v488, %v510
      %512 = vmatmul.f32.gmra.mxu0 %v462
      %v513 = vpop.f32.mrf.mxu0
      %v514 = vadd.f32 %v491, %v513
      %515 = vdwg.mxu0
      %516 = vmatpush.msra.mxu0 0.0
      %517 = vmatpush.msra.mxu0 0.0
      %518 = vmatpush.msra.mxu0 0.0
      %519 = vmatpush.msra.mxu0 0.0
      %520 = vmatpush.msra.mxu0 0.0
      %521 = vmatpush.msra.mxu0 0.0
      %522 = vmatpush.msra.mxu0 0.0
      %523 = vmatpush.msra.mxu0 0.0
      %524 = vmatpush.msra.mxu0 0.0
      %525 = vmatpush.msra.mxu0 0.0
      %526 = vmatpush.msra.mxu0 0.0
      %527 = vmatpush.msra.mxu0 0.0
      %528 = vmatpush.msra.mxu0 %v206
      %529 = vmatpush.msra.mxu0 %v205
      %530 = vmatpush.msra.mxu0 %v204
      %531 = vmatpush.msra.mxu0 %v203
      %532 = vmatmul.f32.gmra.mxu0 %v465
      %v533 = vpop.f32.mrf.mxu0
      %v534 = vadd.f32 %v511, %v533
      %535 = vmatmul.f32.gmra.mxu0 %v468
      %v536 = vpop.f32.mrf.mxu0
      %v537 = vadd.f32 %v514, %v536
      %538 = vdwg.mxu0
      %v539 = vmax.f32 %v455, %v534
      %v540 = vmax.f32 %v456, %v537
      %s541 = scalar_lea.vmem %s165, 192
      %v542 = vld [vmem:[%s541] sm:$0xff]
      %v543 = vld [vmem:[%s541 + $0x8] sm:$0xff]
      %v544 = vld [vmem:[%s541 + $0x10] sm:$0xff]
      %v545 = vld [vmem:[%s541 + $0x18] sm:$0x1]
      %v546 = vld [vmem:[%s541 + $0x20] sm:$0x1]
      %v547 = vld [vmem:[%s541 + $0x28] sm:$0x1]
      %v549 = vsel %vm213, %v544, 0
      %v552 = vsel %vm213, %v547, 0
      %554 = vmatpush.msra.mxu0 %v186
      %555 = vmatpush.msra.mxu0 %v185
      %556 = vmatpush.msra.mxu0 %v184
      %557 = vmatpush.msra.mxu0 %v183
      %558 = vmatpush.msra.mxu0 %v182
      %559 = vmatpush.msra.mxu0 %v181
      %560 = vmatpush.msra.mxu0 %v180
      %561 = vmatpush.msra.mxu0 %v179
      %562 = vmatpush.msra.mxu0 %v178
      %563 = vmatpush.msra.mxu0 %v177
      %564 = vmatpush.msra.mxu0 %v176
      %565 = vmatpush.msra.mxu0 %v175
      %566 = vmatpush.msra.mxu0 %v174
      %567 = vmatpush.msra.mxu0 %v173
      %568 = vmatpush.msra.mxu0 %v172
      %569 = vmatpush.msra.mxu0 %v171
      %570 = vmatmul.f32.gmra.mxu0 %v542
      %v571 = vpop.f32.mrf.mxu0
      %v572 = vadd.f32 0.0, %v571
      %573 = vmatmul.f32.gmra.mxu0 %v545
      %v574 = vpop.f32.mrf.mxu0
      %v575 = vadd.f32 0.0, %v574
      %576 = vdwg.mxu0
      %577 = vmatpush.msra.mxu0 %v202
      %578 = vmatpush.msra.mxu0 %v201
      %579 = vmatpush.msra.mxu0 %v200
      %580 = vmatpush.msra.mxu0 %v199
      %581 = vmatpush.msra.mxu0 %v198
      %582 = vmatpush.msra.mxu0 %v197
      %583 = vmatpush.msra.mxu0 %v196
      %584 = vmatpush.msra.mxu0 %v195
      %585 = vmatpush.msra.mxu0 %v194
      %586 = vmatpush.msra.mxu0 %v193
      %587 = vmatpush.msra.mxu0 %v192
      %588 = vmatpush.msra.mxu0 %v191
      %589 = vmatpush.msra.mxu0 %v190
      %590 = vmatpush.msra.mxu0 %v189
      %591 = vmatpush.msra.mxu0 %v188
      %592 = vmatpush.msra.mxu0 %v187
      %593 = vmatmul.f32.gmra.mxu0 %v543
      %v594 = vpop.f32.mrf.mxu0
      %v595 = vadd.f32 %v572, %v594
      %596 = vmatmul.f32.gmra.mxu0 %v546
      %v597 = vpop.f32.mrf.mxu0
      %v598 = vadd.f32 %v575, %v597
      %599 = vdwg.mxu0
      %600 = vmatpush.msra.mxu0 0.0
      %601 = vmatpush.msra.mxu0 0.0
      %602 = vmatpush.msra.mxu0 0.0
      %603 = vmatpush.msra.mxu0 0.0
      %604 = vmatpush.msra.mxu0 0.0
      %605 = vmatpush.msra.mxu0 0.0
      %606 = vmatpush.msra.mxu0 0.0
      %607 = vmatpush.msra.mxu0 0.0
      %608 = vmatpush.msra.mxu0 0.0
      %609 = vmatpush.msra.mxu0 0.0
      %610 = vmatpush.msra.mxu0 0.0
      %611 = vmatpush.msra.mxu0 0.0
      %612 = vmatpush.msra.mxu0 %v206
      %613 = vmatpush.msra.mxu0 %v205
      %614 = vmatpush.msra.mxu0 %v204
      %615 = vmatpush.msra.mxu0 %v203
      %616 = vmatmul.f32.gmra.mxu0 %v549
      %v617 = vpop.f32.mrf.mxu0
      %v618 = vadd.f32 %v595, %v617
      %619 = vmatmul.f32.gmra.mxu0 %v552
      %v620 = vpop.f32.mrf.mxu0
      %v621 = vadd.f32 %v598, %v620
      %622 = vdwg.mxu0
      %v623 = vmax.f32 %v539, %v618
      %v624 = vmax.f32 %v540, %v621
      %s625 = scalar_lea.vmem %s165, 240
      %v626 = vld [vmem:[%s625] sm:$0xff]
      %v627 = vld [vmem:[%s625 + $0x8] sm:$0xff]
      %v628 = vld [vmem:[%s625 + $0x10] sm:$0xff]
      %v629 = vld [vmem:[%s625 + $0x18] sm:$0x1]
      %v630 = vld [vmem:[%s625 + $0x20] sm:$0x1]
      %v631 = vld [vmem:[%s625 + $0x28] sm:$0x1]
      %v633 = vsel %vm213, %v628, 0
      %v636 = vsel %vm213, %v631, 0
      %638 = vmatpush.msra.mxu0 %v186
      %639 = vmatpush.msra.mxu0 %v185
      %640 = vmatpush.msra.mxu0 %v184
      %641 = vmatpush.msra.mxu0 %v183
      %642 = vmatpush.msra.mxu0 %v182
      %643 = vmatpush.msra.mxu0 %v181
      %644 = vmatpush.msra.mxu0 %v180
      %645 = vmatpush.msra.mxu0 %v179
      %646 = vmatpush.msra.mxu0 %v178
      %647 = vmatpush.msra.mxu0 %v177
      %648 = vmatpush.msra.mxu0 %v176
      %649 = vmatpush.msra.mxu0 %v175
      %650 = vmatpush.msra.mxu0 %v174
      %651 = vmatpush.msra.mxu0 %v173
      %652 = vmatpush.msra.mxu0 %v172
      %653 = vmatpush.msra.mxu0 %v171
      %654 = vmatmul.f32.gmra.mxu0 %v626
      %v655 = vpop.f32.mrf.mxu0
      %v656 = vadd.f32 0.0, %v655
      %657 = vmatmul.f32.gmra.mxu0 %v629
      %v658 = vpop.f32.mrf.mxu0
      %v659 = vadd.f32 0.0, %v658
      %660 = vdwg.mxu0
      %661 = vmatpush.msra.mxu0 %v202
      %662 = vmatpush.msra.mxu0 %v201
      %663 = vmatpush.msra.mxu0 %v200
      %664 = vmatpush.msra.mxu0 %v199
      %665 = vmatpush.msra.mxu0 %v198
      %666 = vmatpush.msra.mxu0 %v197
      %667 = vmatpush.msra.mxu0 %v196
      %668 = vmatpush.msra.mxu0 %v195
      %669 = vmatpush.msra.mxu0 %v194
      %670 = vmatpush.msra.mxu0 %v193
      %671 = vmatpush.msra.mxu0 %v192
      %672 = vmatpush.msra.mxu0 %v191
      %673 = vmatpush.msra.mxu0 %v190
      %674 = vmatpush.msra.mxu0 %v189
      %675 = vmatpush.msra.mxu0 %v188
      %676 = vmatpush.msra.mxu0 %v187
      %677 = vmatmul.f32.gmra.mxu0 %v627
      %v678 = vpop.f32.mrf.mxu0
      %v679 = vadd.f32 %v656, %v678
      %680 = vmatmul.f32.gmra.mxu0 %v630
      %v681 = vpop.f32.mrf.mxu0
      %v682 = vadd.f32 %v659, %v681
      %683 = vdwg.mxu0
      %684 = vmatpush.msra.mxu0 0.0
      %685 = vmatpush.msra.mxu0 0.0
      %686 = vmatpush.msra.mxu0 0.0
      %687 = vmatpush.msra.mxu0 0.0
      %688 = vmatpush.msra.mxu0 0.0
      %689 = vmatpush.msra.mxu0 0.0
      %690 = vmatpush.msra.mxu0 0.0
      %691 = vmatpush.msra.mxu0 0.0
      %692 = vmatpush.msra.mxu0 0.0
      %693 = vmatpush.msra.mxu0 0.0
      %694 = vmatpush.msra.mxu0 0.0
      %695 = vmatpush.msra.mxu0 0.0
      %696 = vmatpush.msra.mxu0 %v206
      %697 = vmatpush.msra.mxu0 %v205
      %698 = vmatpush.msra.mxu0 %v204
      %699 = vmatpush.msra.mxu0 %v203
      %700 = vmatmul.f32.gmra.mxu0 %v633
      %v701 = vpop.f32.mrf.mxu0
      %v702 = vadd.f32 %v679, %v701
      %703 = vmatmul.f32.gmra.mxu0 %v636
      %v704 = vpop.f32.mrf.mxu0
      %v705 = vadd.f32 %v682, %v704
      %706 = vdwg.mxu0
      %v707 = vmax.f32 %v623, %v702
      %v708 = vmax.f32 %v624, %v705
      %s709 = scalar_lea.vmem %s165, 288
      %v710 = vld [vmem:[%s709] sm:$0xff]
      %v711 = vld [vmem:[%s709 + $0x8] sm:$0xff]
      %v712 = vld [vmem:[%s709 + $0x10] sm:$0xff]
      %v713 = vld [vmem:[%s709 + $0x18] sm:$0x1]
      %v714 = vld [vmem:[%s709 + $0x20] sm:$0x1]
      %v715 = vld [vmem:[%s709 + $0x28] sm:$0x1]
      %v717 = vsel %vm213, %v712, 0
      %v720 = vsel %vm213, %v715, 0
      %722 = vmatpush.msra.mxu0 %v186
      %723 = vmatpush.msra.mxu0 %v185
      %724 = vmatpush.msra.mxu0 %v184
      %725 = vmatpush.msra.mxu0 %v183
      %726 = vmatpush.msra.mxu0 %v182
      %727 = vmatpush.msra.mxu0 %v181
      %728 = vmatpush.msra.mxu0 %v180
      %729 = vmatpush.msra.mxu0 %v179
      %730 = vmatpush.msra.mxu0 %v178
      %731 = vmatpush.msra.mxu0 %v177
      %732 = vmatpush.msra.mxu0 %v176
      %733 = vmatpush.msra.mxu0 %v175
      %734 = vmatpush.msra.mxu0 %v174
      %735 = vmatpush.msra.mxu0 %v173
      %736 = vmatpush.msra.mxu0 %v172
      %737 = vmatpush.msra.mxu0 %v171
      %738 = vmatmul.f32.gmra.mxu0 %v710
      %v739 = vpop.f32.mrf.mxu0
      %v740 = vadd.f32 0.0, %v739
      %741 = vmatmul.f32.gmra.mxu0 %v713
      %v742 = vpop.f32.mrf.mxu0
      %v743 = vadd.f32 0.0, %v742
      %744 = vdwg.mxu0
      %745 = vmatpush.msra.mxu0 %v202
      %746 = vmatpush.msra.mxu0 %v201
      %747 = vmatpush.msra.mxu0 %v200
      %748 = vmatpush.msra.mxu0 %v199
      %749 = vmatpush.msra.mxu0 %v198
      %750 = vmatpush.msra.mxu0 %v197
      %751 = vmatpush.msra.mxu0 %v196
      %752 = vmatpush.msra.mxu0 %v195
      %753 = vmatpush.msra.mxu0 %v194
      %754 = vmatpush.msra.mxu0 %v193
      %755 = vmatpush.msra.mxu0 %v192
      %756 = vmatpush.msra.mxu0 %v191
      %757 = vmatpush.msra.mxu0 %v190
      %758 = vmatpush.msra.mxu0 %v189
      %759 = vmatpush.msra.mxu0 %v188
      %760 = vmatpush.msra.mxu0 %v187
      %761 = vmatmul.f32.gmra.mxu0 %v711
      %v762 = vpop.f32.mrf.mxu0
      %v763 = vadd.f32 %v740, %v762
      %764 = vmatmul.f32.gmra.mxu0 %v714
      %v765 = vpop.f32.mrf.mxu0
      %v766 = vadd.f32 %v743, %v765
      %767 = vdwg.mxu0
      %768 = vmatpush.msra.mxu0 0.0
      %769 = vmatpush.msra.mxu0 0.0
      %770 = vmatpush.msra.mxu0 0.0
      %771 = vmatpush.msra.mxu0 0.0
      %772 = vmatpush.msra.mxu0 0.0
      %773 = vmatpush.msra.mxu0 0.0
      %774 = vmatpush.msra.mxu0 0.0
      %775 = vmatpush.msra.mxu0 0.0
      %776 = vmatpush.msra.mxu0 0.0
      %777 = vmatpush.msra.mxu0 0.0
      %778 = vmatpush.msra.mxu0 0.0
      %779 = vmatpush.msra.mxu0 0.0
      %780 = vmatpush.msra.mxu0 %v206
      %781 = vmatpush.msra.mxu0 %v205
      %782 = vmatpush.msra.mxu0 %v204
      %783 = vmatpush.msra.mxu0 %v203
      %784 = vmatmul.f32.gmra.mxu0 %v717
      %v785 = vpop.f32.mrf.mxu0
      %v786 = vadd.f32 %v763, %v785
      %787 = vmatmul.f32.gmra.mxu0 %v720
      %v788 = vpop.f32.mrf.mxu0
      %v789 = vadd.f32 %v766, %v788
      %790 = vdwg.mxu0
      %v791 = vmax.f32 %v707, %v786
      %v792 = vmax.f32 %v708, %v789
      %s793 = scalar_lea.vmem %s165, 336
      %v794 = vld [vmem:[%s793] sm:$0xff]
      %v795 = vld [vmem:[%s793 + $0x8] sm:$0xff]
      %v796 = vld [vmem:[%s793 + $0x10] sm:$0xff]
      %v797 = vld [vmem:[%s793 + $0x18] sm:$0x1]
      %v798 = vld [vmem:[%s793 + $0x20] sm:$0x1]
      %v799 = vld [vmem:[%s793 + $0x28] sm:$0x1]
      %v801 = vsel %vm213, %v796, 0
      %v804 = vsel %vm213, %v799, 0
      %806 = vmatpush.msra.mxu0 %v186
      %807 = vmatpush.msra.mxu0 %v185
      %808 = vmatpush.msra.mxu0 %v184
      %809 = vmatpush.msra.mxu0 %v183
      %810 = vmatpush.msra.mxu0 %v182
      %811 = vmatpush.msra.mxu0 %v181
      %812 = vmatpush.msra.mxu0 %v180
      %813 = vmatpush.msra.mxu0 %v179
      %814 = vmatpush.msra.mxu0 %v178
      %815 = vmatpush.msra.mxu0 %v177
      %816 = vmatpush.msra.mxu0 %v176
      %817 = vmatpush.msra.mxu0 %v175
      %818 = vmatpush.msra.mxu0 %v174
      %819 = vmatpush.msra.mxu0 %v173
      %820 = vmatpush.msra.mxu0 %v172
      %821 = vmatpush.msra.mxu0 %v171
      %822 = vmatmul.f32.gmra.mxu0 %v794
      %v823 = vpop.f32.mrf.mxu0
      %v824 = vadd.f32 0.0, %v823
      %825 = vmatmul.f32.gmra.mxu0 %v797
      %v826 = vpop.f32.mrf.mxu0
      %v827 = vadd.f32 0.0, %v826
      %828 = vdwg.mxu0
      %829 = vmatpush.msra.mxu0 %v202
      %830 = vmatpush.msra.mxu0 %v201
      %831 = vmatpush.msra.mxu0 %v200
      %832 = vmatpush.msra.mxu0 %v199
      %833 = vmatpush.msra.mxu0 %v198
      %834 = vmatpush.msra.mxu0 %v197
      %835 = vmatpush.msra.mxu0 %v196
      %836 = vmatpush.msra.mxu0 %v195
      %837 = vmatpush.msra.mxu0 %v194
      %838 = vmatpush.msra.mxu0 %v193
      %839 = vmatpush.msra.mxu0 %v192
      %840 = vmatpush.msra.mxu0 %v191
      %841 = vmatpush.msra.mxu0 %v190
      %842 = vmatpush.msra.mxu0 %v189
      %843 = vmatpush.msra.mxu0 %v188
      %844 = vmatpush.msra.mxu0 %v187
      %845 = vmatmul.f32.gmra.mxu0 %v795
      %v846 = vpop.f32.mrf.mxu0
      %v847 = vadd.f32 %v824, %v846
      %848 = vmatmul.f32.gmra.mxu0 %v798
      %v849 = vpop.f32.mrf.mxu0
      %v850 = vadd.f32 %v827, %v849
      %851 = vdwg.mxu0
      %852 = vmatpush.msra.mxu0 0.0
      %853 = vmatpush.msra.mxu0 0.0
      %854 = vmatpush.msra.mxu0 0.0
      %855 = vmatpush.msra.mxu0 0.0
      %856 = vmatpush.msra.mxu0 0.0
      %857 = vmatpush.msra.mxu0 0.0
      %858 = vmatpush.msra.mxu0 0.0
      %859 = vmatpush.msra.mxu0 0.0
      %860 = vmatpush.msra.mxu0 0.0
      %861 = vmatpush.msra.mxu0 0.0
      %862 = vmatpush.msra.mxu0 0.0
      %863 = vmatpush.msra.mxu0 0.0
      %864 = vmatpush.msra.mxu0 %v206
      %865 = vmatpush.msra.mxu0 %v205
      %866 = vmatpush.msra.mxu0 %v204
      %867 = vmatpush.msra.mxu0 %v203
      %868 = vmatmul.f32.gmra.mxu0 %v801
      %v869 = vpop.f32.mrf.mxu0
      %v870 = vadd.f32 %v847, %v869
      %871 = vmatmul.f32.gmra.mxu0 %v804
      %v872 = vpop.f32.mrf.mxu0
      %v873 = vadd.f32 %v850, %v872
      %874 = vdwg.mxu0
      %v875 = vmax.f32 %v791, %v870
      %v876 = vmax.f32 %v792, %v873
      %s877 = scalar_lea.vmem %s165, 384
      %v878 = vld [vmem:[%s877] sm:$0xff]
      %v879 = vld [vmem:[%s877 + $0x8] sm:$0xff]
      %v880 = vld [vmem:[%s877 + $0x10] sm:$0xff]
      %v881 = vld [vmem:[%s877 + $0x18] sm:$0x1]
      %v882 = vld [vmem:[%s877 + $0x20] sm:$0x1]
      %v883 = vld [vmem:[%s877 + $0x28] sm:$0x1]
      %v885 = vsel %vm213, %v880, 0
      %v888 = vsel %vm213, %v883, 0
      %890 = vmatpush.msra.mxu0 %v186
      %891 = vmatpush.msra.mxu0 %v185
      %892 = vmatpush.msra.mxu0 %v184
      %893 = vmatpush.msra.mxu0 %v183
      %894 = vmatpush.msra.mxu0 %v182
      %895 = vmatpush.msra.mxu0 %v181
      %896 = vmatpush.msra.mxu0 %v180
      %897 = vmatpush.msra.mxu0 %v179
      %898 = vmatpush.msra.mxu0 %v178
      %899 = vmatpush.msra.mxu0 %v177
      %900 = vmatpush.msra.mxu0 %v176
      %901 = vmatpush.msra.mxu0 %v175
      %902 = vmatpush.msra.mxu0 %v174
      %903 = vmatpush.msra.mxu0 %v173
      %904 = vmatpush.msra.mxu0 %v172
      %905 = vmatpush.msra.mxu0 %v171
      %906 = vmatmul.f32.gmra.mxu0 %v878
      %v907 = vpop.f32.mrf.mxu0
      %v908 = vadd.f32 0.0, %v907
      %909 = vmatmul.f32.gmra.mxu0 %v881
      %v910 = vpop.f32.mrf.mxu0
      %v911 = vadd.f32 0.0, %v910
      %912 = vdwg.mxu0
      %913 = vmatpush.msra.mxu0 %v202
      %914 = vmatpush.msra.mxu0 %v201
      %915 = vmatpush.msra.mxu0 %v200
      %916 = vmatpush.msra.mxu0 %v199
      %917 = vmatpush.msra.mxu0 %v198
      %918 = vmatpush.msra.mxu0 %v197
      %919 = vmatpush.msra.mxu0 %v196
      %920 = vmatpush.msra.mxu0 %v195
      %921 = vmatpush.msra.mxu0 %v194
      %922 = vmatpush.msra.mxu0 %v193
      %923 = vmatpush.msra.mxu0 %v192
      %924 = vmatpush.msra.mxu0 %v191
      %925 = vmatpush.msra.mxu0 %v190
      %926 = vmatpush.msra.mxu0 %v189
      %927 = vmatpush.msra.mxu0 %v188
      %928 = vmatpush.msra.mxu0 %v187
      %929 = vmatmul.f32.gmra.mxu0 %v879
      %v930 = vpop.f32.mrf.mxu0
      %v931 = vadd.f32 %v908, %v930
      %932 = vmatmul.f32.gmra.mxu0 %v882
      %v933 = vpop.f32.mrf.mxu0
      %v934 = vadd.f32 %v911, %v933
      %935 = vdwg.mxu0
      %936 = vmatpush.msra.mxu0 0.0
      %937 = vmatpush.msra.mxu0 0.0
      %938 = vmatpush.msra.mxu0 0.0
      %939 = vmatpush.msra.mxu0 0.0
      %940 = vmatpush.msra.mxu0 0.0
      %941 = vmatpush.msra.mxu0 0.0
      %942 = vmatpush.msra.mxu0 0.0
      %943 = vmatpush.msra.mxu0 0.0
      %944 = vmatpush.msra.mxu0 0.0
      %945 = vmatpush.msra.mxu0 0.0
      %946 = vmatpush.msra.mxu0 0.0
      %947 = vmatpush.msra.mxu0 0.0
      %948 = vmatpush.msra.mxu0 %v206
      %949 = vmatpush.msra.mxu0 %v205
      %950 = vmatpush.msra.mxu0 %v204
      %951 = vmatpush.msra.mxu0 %v203
      %952 = vmatmul.f32.gmra.mxu0 %v885
      %v953 = vpop.f32.mrf.mxu0
      %v954 = vadd.f32 %v931, %v953
      %955 = vmatmul.f32.gmra.mxu0 %v888
      %v956 = vpop.f32.mrf.mxu0
      %v957 = vadd.f32 %v934, %v956
      %958 = vdwg.mxu0
      %v959 = vmax.f32 %v875, %v954
      %v960 = vmax.f32 %v876, %v957
      %v961 = vld [vmem:[%s2] sm:$0x1]
      %v963 = vperm.slane %v961, 0
      %v965 = vadd.f32 %v959, %v963
      %v966 = vadd.f32 %v960, %v963
      %vm967 = vcmp.ge.f32.partialorder %v965, 0.0
      %vm968 = vcmp.ge.f32.partialorder %v966, 0.0
      %v969 = vmul.f32 %v965, 0.01
      %v970 = vmul.f32 %v966, 0.01
      %v971 = vsel %vm967, %v965, %v969
      %v972 = vsel %vm968, %v966, %v970
      %vm973 = vcmask 523264
      %974 = vst.msk [vmem:[%s170] sm:$0xff] %vm973, %v971
      %vm975 = vcmask 516096
      %976 = vst.msk [vmem:[%s170 + $0x8] sm:$0x1] %vm975, %v972
      %p977 = scmp.lt.s32.totalorder %s14, 1
      %s978 = scalar_select %p977, %s14, 1
      %s979 = smul.addr %s978, 2
      %s980 = smul.addr %s979, 8
      %s981 = scalar_lea.vmem %s3, %s980
      // Predicated region
      $region33: #{classifier_forward.7} parent=31 // pred_check
        %p982 = pneg %p100
      $region34: #{classifier_forward.7} parent=31 // pred_check_branch
        %984 = sbr.rel (%p982) target = $region36
      $region35: #{classifier_forward.7} parent=31 // pred_region
        _
      $region36: #{classifier_forward.7} parent=31 // pred_fallthru
        _
    $region32: #{classifier_forward.7} parent=5 // pred_fallthru
      _
    %p985 = scmp.le.s32.totalorder 2, %s9
    // Predicated region
    $region37: #{classifier_forward.7} parent=5 // pred_check
      %p986 = pneg %p985
    $region38: #{classifier_forward.7} parent=5 // pred_check_branch
      %988 = sbr.rel (%p986) target = $region40
    $region39: #{classifier_forward.7} parent=5 // pred_region
      %s989 = ssub.s32 %s9, 2
      // Predicated region
      $region41: #{classifier_forward.7} parent=39 // pred_check
        %p990 = pneg %p106
      $region42: #{classifier_forward.7} parent=39 // pred_check_branch
        %992 = sbr.rel (%p990) target = $region44
      $region43: #{classifier_forward.7} parent=39 // pred_region
        %p993 = scmp.lt.s32.totalorder %s15, 1
        %s994 = scalar_select %p993, %s15, 1
        %s995 = smul.addr %s994, 2
        %s996 = smul.addr %s995, 8
        %s997 = scalar_lea.vmem %s3, %s996
      $region44: #{classifier_forward.7} parent=39 // pred_fallthru
        _
    $region40: #{classifier_forward.7} parent=5 // pred_fallthru
      _
  $region6: #{classifier_forward.7} parent=0 // loop_footer
    %s13 = sadd.s32 1, %s9
  $region7: #{classifier_forward.7} parent=0 // loop_footer_branch
    %8 = sbr.rel target = $region3
  $region8: #{classifier_forward.7} parent=0 // loop_exit
    _

// kernel: classifier_forward.9
$region0: #{classifier_forward.9}
  #allocation0 [shape = 'u32[]', space=smem, size = 0x4, offset = 0x4, fixed_abs, tag = 'smem constant byte address 0x4 - core index']
  #allocation1 [shape = 'u32[72,128]{1,0:T(1,128)}', space=vmem, size = 0x9000, scoped, tag = 'internal scratch']
  %s0 = inlined_call_operand.vmem [shape: f32[2,1,1,128], index: 0, kind: input, shape index: {}]
  %s1 = inlined_call_operand.vmem [shape: f32[128,64], index: 1, kind: input, shape index: {}]
  %s2 = inlined_call_operand.vmem [shape: f32[1,64], index: 2, kind: input, shape index: {}]
  %s3 = inlined_call_operand.vmem [shape: f32[64,16], index: 3, kind: input, shape index: {}]
  %s4 = inlined_call_operand.vmem [shape: f32[1,16], index: 4, kind: input, shape index: {}]
  %s5 = inlined_call_operand.vmem [shape: f32[16,2], index: 5, kind: input, shape index: {}]
  %s6 = inlined_call_operand.vmem [shape: f32[1,2], index: 6, kind: input, shape index: {}]
  %s7 = inlined_call_operand.hbm [shape: f32[2,2], index: 7, kind: output, shape index: {}]
  %s8 = sld [smem:[#allocation0]]
  $region38: #{classifier_forward.9} parent=0
    _
  %s10 = ssub.s32 1, %s8
  %s11 = scalar_select 0, %s10, %s8
  $region1: #{classifier_forward.9} parent=0
    #allocation2 [shape = 'u8[1024]{0}', space=vmem, size = 0x400, scoped, tag = 'output window, operand 0, single buffered']
    #allocation3 [shape = 's32[1]{0}', space=sflag, size = 0x4, scoped, tag = 'scoped memory for classifier_forward.9']
    %12 = vsyncpa [#allocation3], 0
    // Predicated region
    $region2: #{classifier_forward.9} parent=1 // pred_check
      _
    $region3: #{classifier_forward.9} parent=1 // pred_check_branch
      %14 = sbr.rel (0) target = $region5
    $region4: #{classifier_forward.9} parent=1 // pred_region
      _
    $region5: #{classifier_forward.9} parent=1 // pred_fallthru
      _
    // Predicated region
    $region6: #{classifier_forward.9} parent=1 // pred_check
      _
    $region7: #{classifier_forward.9} parent=1 // pred_check_branch
      %16 = sbr.rel (0) target = $region9
    $region8: #{classifier_forward.9} parent=1 // pred_region
      _
    $region9: #{classifier_forward.9} parent=1 // pred_fallthru
      _
    // Predicated region
    $region10: #{classifier_forward.9} parent=1 // pred_check
      _
    $region11: #{classifier_forward.9} parent=1 // pred_check_branch
      %18 = sbr.rel (0) target = $region13
    $region12: #{classifier_forward.9} parent=1 // pred_region
      _
    $region13: #{classifier_forward.9} parent=1 // pred_fallthru
      _
    // Predicated region
    $region14: #{classifier_forward.9} parent=1 // pred_check
      _
    $region15: #{classifier_forward.9} parent=1 // pred_check_branch
      %20 = sbr.rel (0) target = $region17
    $region16: #{classifier_forward.9} parent=1 // pred_region
      _
    $region17: #{classifier_forward.9} parent=1 // pred_fallthru
      _
    // Predicated region
    $region18: #{classifier_forward.9} parent=1 // pred_check
      _
    $region19: #{classifier_forward.9} parent=1 // pred_check_branch
      %22 = sbr.rel (0) target = $region21
    $region20: #{classifier_forward.9} parent=1 // pred_region
      _
    $region21: #{classifier_forward.9} parent=1 // pred_fallthru
      _
    // Predicated region
    $region22: #{classifier_forward.9} parent=1 // pred_check
      _
    $region23: #{classifier_forward.9} parent=1 // pred_check_branch
      %24 = sbr.rel (0) target = $region25
    $region24: #{classifier_forward.9} parent=1 // pred_region
      _
    $region25: #{classifier_forward.9} parent=1 // pred_fallthru
      _
    // Predicated region
    $region26: #{classifier_forward.9} parent=1 // pred_check
      _
    $region27: #{classifier_forward.9} parent=1 // pred_check_branch
      %26 = sbr.rel (0) target = $region29
    $region28: #{classifier_forward.9} parent=1 // pred_region
      _
    $region29: #{classifier_forward.9} parent=1 // pred_fallthru
      _
    %v27 = vld [vmem:[%s0] sm:$0x1]
    %v28 = vld [vmem:[%s0 + $0x1] sm:$0x1]
    %v29 = vadd.f32 %v27, 0.0
    %v30 = vadd.f32 %v28, 0.0
    %v31 = vadd.f32 %v29, 0.0
    %v32 = vadd.f32 %v30, 0.0
    %v33 = vld [vmem:[%s1] sm:$0xff]
    %v34 = vld [vmem:[%s1 + $0x8] sm:$0xff]
    %v35 = vld [vmem:[%s1 + $0x10] sm:$0xff]
    %v36 = vld [vmem:[%s1 + $0x18] sm:$0xff]
    %v37 = vld [vmem:[%s1 + $0x20] sm:$0xff]
    %v38 = vld [vmem:[%s1 + $0x28] sm:$0xff]
    %v39 = vld [vmem:[%s1 + $0x30] sm:$0xff]
    %v40 = vld [vmem:[%s1 + $0x38] sm:$0xff]
    %v41 = vld [vmem:[%s1 + $0x40] sm:$0xff]
    %v42 = vld [vmem:[%s1 + $0x48] sm:$0xff]
    %v43 = vld [vmem:[%s1 + $0x50] sm:$0xff]
    %v44 = vld [vmem:[%s1 + $0x58] sm:$0xff]
    %v45 = vld [vmem:[%s1 + $0x60] sm:$0xff]
    %v46 = vld [vmem:[%s1 + $0x68] sm:$0xff]
    %v47 = vld [vmem:[%s1 + $0x70] sm:$0xff]
    %v48 = vld [vmem:[%s1 + $0x78] sm:$0xff]
    %v49 = vld [vmem:[%s2] sm:$0x1]
    %v51 = vperm.slane %v49, 0
    %55 = vst [vmem:[#allocation1] ss:$9 sm:$0xff] %v31
    %s56 = scalar_lea.vmem [#allocation1], 1
    %57 = vst [vmem:[%s56] ss:$9 sm:$0xff] %v32
    %v58 = vld [vmem:[#allocation1] sm:$0xff]
    %60 = vmatpush.msra.mxu0 %v48
    %61 = vmatpush.msra.mxu0 %v47
    %62 = vmatpush.msra.mxu0 %v46
    %63 = vmatpush.msra.mxu0 %v45
    %64 = vmatpush.msra.mxu0 %v44
    %65 = vmatpush.msra.mxu0 %v43
    %66 = vmatpush.msra.mxu0 %v42
    %67 = vmatpush.msra.mxu0 %v41
    %68 = vmatpush.msra.mxu0 %v40
    %69 = vmatpush.msra.mxu0 %v39
    %70 = vmatpush.msra.mxu0 %v38
    %71 = vmatpush.msra.mxu0 %v37
    %72 = vmatpush.msra.mxu0 %v36
    %73 = vmatpush.msra.mxu0 %v35
    %74 = vmatpush.msra.mxu0 %v34
    %75 = vmatpush.msra.mxu0 %v33
    %76 = vmatmul.f32.gmra.mxu0 %v58
    %v77 = vpop.f32.mrf.mxu0
    %v78 = vadd.f32 %v51, %v77
    %79 = vdwg.mxu0
    %vm80 = vcmp.ge.f32.partialorder %v78, 0.0
    %v81 = vmul.f32 %v78, 0.01
    %v82 = vsel %vm80, %v78, %v81
    %v83 = vld [vmem:[%s3] sm:$0xff]
    %v84 = vld [vmem:[%s3 + $0x8] sm:$0xff]
    %v85 = vld [vmem:[%s3 + $0x10] sm:$0xff]
    %v86 = vld [vmem:[%s3 + $0x18] sm:$0xff]
    %v87 = vld [vmem:[%s3 + $0x20] sm:$0xff]
    %v88 = vld [vmem:[%s3 + $0x28] sm:$0xff]
    %v89 = vld [vmem:[%s3 + $0x30] sm:$0xff]
    %v90 = vld [vmem:[%s3 + $0x38] sm:$0xff]
    %v91 = vld [vmem:[%s4] sm:$0x1]
    %v93 = vperm.slane %v91, 0
    %vm95 = vcmask 523264
    %v97 = vsel %vm95, %v82, 0
    %99 = vmatpush.msra.mxu0 0.0
    %100 = vmatpush.msra.mxu0 0.0
    %101 = vmatpush.msra.mxu0 0.0
    %102 = vmatpush.msra.mxu0 0.0
    %103 = vmatpush.msra.mxu0 0.0
    %104 = vmatpush.msra.mxu0 0.0
    %105 = vmatpush.msra.mxu0 0.0
    %106 = vmatpush.msra.mxu0 0.0
    %107 = vmatpush.msra.mxu0 %v90
    %108 = vmatpush.msra.mxu0 %v89
    %109 = vmatpush.msra.mxu0 %v88
    %110 = vmatpush.msra.mxu0 %v87
    %111 = vmatpush.msra.mxu0 %v86
    %112 = vmatpush.msra.mxu0 %v85
    %113 = vmatpush.msra.mxu0 %v84
    %114 = vmatpush.msra.mxu0 %v83
    %115 = vmatmul.f32.gmra.mxu0 %v97
    %v116 = vpop.f32.mrf.mxu0
    %v117 = vadd.f32 %v93, %v116
    %118 = vdwg.mxu0
    %vm119 = vcmp.ge.f32.partialorder %v117, 0.0
    %v120 = vmul.f32 %v117, 0.01
    %v121 = vsel %vm119, %v117, %v120
    %v122 = vld [vmem:[%s5] sm:$0xff]
    %v123 = vld [vmem:[%s5 + $0x8] sm:$0xff]
    %v124 = vld [vmem:[%s6] sm:$0x1]
    %v126 = vperm.slane %v124, 0
    %vm128 = vcmask 130048
    %v130 = vsel %vm128, %v121, 0
    %132 = vmatpush.msra.mxu0 0.0
    %133 = vmatpush.msra.mxu0 0.0
    %134 = vmatpush.msra.mxu0 0.0
    %135 = vmatpush.msra.mxu0 0.0
    %136 = vmatpush.msra.mxu0 0.0
    %137 = vmatpush.msra.mxu0 0.0
    %138 = vmatpush.msra.mxu0 0.0
    %139 = vmatpush.msra.mxu0 0.0
    %140 = vmatpush.msra.mxu0 0.0
    %141 = vmatpush.msra.mxu0 0.0
    %142 = vmatpush.msra.mxu0 0.0
    %143 = vmatpush.msra.mxu0 0.0
    %144 = vmatpush.msra.mxu0 0.0
    %145 = vmatpush.msra.mxu0 0.0
    %146 = vmatpush.msra.mxu0 %v123
    %147 = vmatpush.msra.mxu0 %v122
    %148 = vmatmul.f32.gmra.mxu0 %v130
    %v149 = vpop.f32.mrf.mxu0
    %v150 = vadd.f32 %v126, %v149
    %151 = vdwg.mxu0
    %vm152 = vcmask 9216
    %153 = vst.msk [vmem:[#allocation2] sm:$0x3] %vm152, %v150
    // Predicated region
    $region30: #{classifier_forward.9} parent=1 // pred_check
      _
    $region31: #{classifier_forward.9} parent=1 // pred_check_branch
      %155 = sbr.rel (0) target = $region33
    $region32: #{classifier_forward.9} parent=1 // pred_region
      %157 = vsyncadd [#allocation3], 0
      %s159 = sshll.u32 [#allocation2], 4
      %s160 = int_to_ptr.vmem [resolvable:$true] %s159
      %s161 = sshll.u32 %s7, 4
      %s162 = int_to_ptr.hbm [resolvable:$true] %s161
      %164 = dma.vmem_to_hbm [thread:$0]  %s160, 32, %s162, [#allocation3]
    $region33: #{classifier_forward.9} parent=1 // pred_fallthru
      _
    // Predicated region
    $region34: #{classifier_forward.9} parent=1 // pred_check
      _
    $region35: #{classifier_forward.9} parent=1 // pred_check_branch
      %166 = sbr.rel (0) target = $region37
    $region36: #{classifier_forward.9} parent=1 // pred_region
      %168 = dma.done [#allocation3], 32
    $region37: #{classifier_forward.9} parent=1 // pred_fallthru
      _
    %169 = vsyncpa [#allocation3], 1

// kernel: classifier_forward.8
$region0: #{classifier_forward.8}
  #allocation0 [shape = 'u32[]', space=smem, size = 0x4, offset = 0x4, fixed_abs, tag = 'smem constant byte address 0x4 - core index']
  #allocation1 [shape = 'u32[72,128]{1,0:T(1,128)}', space=vmem, size = 0x9000, scoped, tag = 'internal scratch']
  %s0 = inlined_call_operand.vmem [shape: f32[2,9,1,576], index: 0, kind: input, shape index: {}]
  %s1 = inlined_call_operand.vmem [shape: f32[576,128], index: 1, kind: input, shape index: {}]
  %s2 = inlined_call_operand.vmem [shape: f32[1,128], index: 2, kind: input, shape index: {}]
  %s3 = inlined_call_operand.vmem [shape: f32[2,1,128], index: 3, kind: output, shape index: {}]
  %s4 = sld [smem:[#allocation0]]
  $region45: #{classifier_forward.8} parent=0
    _
  %s6 = ssub.s32 1, %s4
  %s7 = scalar_select 0, %s6, %s4
  loop: start=0, step=1, limit=4
  $region2: #{classifier_forward.8} parent=0 // loop_pre_header
    _
  $region3: #{classifier_forward.8} parent=0 // loop_header
    %s9 = sphi 0, %s13
    %p10 = scmp.ge.s32.totalorder %s9, 4
    %s19 = sphi 0, %s21
    %s22 = sphi 0, %s19
    %s23 = sphi 0, %s22
    %s39 = sphi 0, %s23
    %s43 = sphi 0, %s43
    %s45 = sphi 0, %s43
    %s46 = sphi 0, %s45
    %s60 = sphi 0, %s46
    %s64 = sphi 0, %s64
    %s66 = sphi 0, %s64
    %s67 = sphi 0, %s66
    %s81 = sphi 0, %s67
    %s87 = sphi 0, %s89
    %s90 = sphi 0, %s87
    %s91 = sphi 0, %s90
    %s107 = sphi 0, %s91
  $region4: #{classifier_forward.8} parent=0 // loop_header_branch
    %12 = sbr.rel (%p10) target = $region8
  $region5: #{classifier_forward.8} parent=0 // loop_body
    %s14 = ssub.s32 %s9, 1
    %s15 = ssub.s32 %s9, 2
    %s16 = sadd.s32 %s9, 1
    %s17 = ssub.s32 %s9, %s16
    %p18 = scmp.eq.s32.totalorder %s17, 0
    %s20 = sadd.s32 %s19, 1
    %s21 = scalar_select %p18, %s19, %s20
    %p24 = pneg %p18
    %p25 = scmp.eq.s32.totalorder %s9, 1
    %p26 = por %p24, %p25
    %p27 = scmp.ne.s32.totalorder %s19, %s22
    %p28 = scmp.eq.s32.totalorder %s9, 0
    %p29 = por %p27, %p28
    %p30 = scmp.ne.s32.totalorder %s19, %s22
    %p31 = scmp.eq.s32.totalorder %s14, 1
    %p32 = por %p30, %p31
    %p33 = scmp.ne.s32.totalorder %s22, %s23
    %p34 = scmp.eq.s32.totalorder %s14, 0
    %p35 = por %p33, %p34
    %p36 = scmp.ne.s32.totalorder %s22, %s23
    %p37 = scmp.eq.s32.totalorder %s15, 1
    %p38 = por %p36, %p37
    %p40 = scmp.ne.s32.totalorder %s23, %s39
    %p41 = scmp.eq.s32.totalorder %s15, 0
    %p42 = por %p40, %p41
    %s44 = sadd.s32 %s43, 1
    %p47 = scmp.eq.s32.totalorder %s9, 1
    %p48 = scmp.ne.s32.totalorder %s43, %s45
    %p49 = scmp.eq.s32.totalorder %s9, 0
    %p50 = por %p48, %p49
    %p51 = scmp.ne.s32.totalorder %s43, %s45
    %p52 = scmp.eq.s32.totalorder %s14, 1
    %p53 = por %p51, %p52
    %p54 = scmp.ne.s32.totalorder %s45, %s46
    %p55 = scmp.eq.s32.totalorder %s14, 0
    %p56 = por %p54, %p55
    %p57 = scmp.ne.s32.totalorder %s45, %s46
    %p58 = scmp.eq.s32.totalorder %s15, 1
    %p59 = por %p57, %p58
    %p61 = scmp.ne.s32.totalorder %s46, %s60
    %p62 = scmp.eq.s32.totalorder %s15, 0
    %p63 = por %p61, %p62
    %s65 = sadd.s32 %s64, 1
    %p68 = scmp.eq.s32.totalorder %s9, 1
    %p69 = scmp.ne.s32.totalorder %s64, %s66
    %p70 = scmp.eq.s32.totalorder %s9, 0
    %p71 = por %p69, %p70
    %p72 = scmp.ne.s32.totalorder %s64, %s66
    %p73 = scmp.eq.s32.totalorder %s14, 1
    %p74 = por %p72, %p73
    %p75 = scmp.ne.s32.totalorder %s66, %s67
    %p76 = scmp.eq.s32.totalorder %s14, 0
    %p77 = por %p75, %p76
    %p78 = scmp.ne.s32.totalorder %s66, %s67
    %p79 = scmp.eq.s32.totalorder %s15, 1
    %p80 = por %p78, %p79
    %p82 = scmp.ne.s32.totalorder %s67, %s81
    %p83 = scmp.eq.s32.totalorder %s15, 0
    %p84 = por %p82, %p83
    %s85 = ssub.s32 %s9, %s16
    %p86 = scmp.eq.s32.totalorder %s85, 0
    %s88 = sadd.s32 %s87, 1
    %s89 = scalar_select %p86, %s87, %s88
    %p92 = pneg %p86
    %p93 = scmp.eq.s32.totalorder %s9, 1
    %p94 = por %p92, %p93
    %p95 = scmp.ne.s32.totalorder %s87, %s90
    %p96 = scmp.eq.s32.totalorder %s9, 0
    %p97 = por %p95, %p96
    %p98 = scmp.ne.s32.totalorder %s87, %s90
    %p99 = scmp.eq.s32.totalorder %s14, 1
    %p100 = por %p98, %p99
    %p101 = scmp.ne.s32.totalorder %s90, %s91
    %p102 = scmp.eq.s32.totalorder %s14, 0
    %p103 = por %p101, %p102
    %p104 = scmp.ne.s32.totalorder %s90, %s91
    %p105 = scmp.eq.s32.totalorder %s15, 1
    %p106 = por %p104, %p105
    %p108 = scmp.ne.s32.totalorder %s91, %s107
    %p109 = scmp.eq.s32.totalorder %s15, 0
    %p110 = por %p108, %p109
    %p111 = scmp.le.s32.totalorder 1, %s9
    %p112 = scmp.lt.s32.totalorder %s9, 3
    %p113 = pnand %p111, %p112
    %p114 = pneg %p113
    // Predicated region
    $region9: #{classifier_forward.8} parent=5 // pred_check
      _
    $region10: #{classifier_forward.8} parent=5 // pred_check_branch
      %116 = sbr.rel (%p113) target = $region12
    $region11: #{classifier_forward.8} parent=5 // pred_region
      %s117 = ssub.s32 %s9, 1
      // Predicated region
      $region13: #{classifier_forward.8} parent=11 // pred_check
        %p118 = pneg %p56
      $region14: #{classifier_forward.8} parent=11 // pred_check_branch
        %120 = sbr.rel (%p118) target = $region16
      $region15: #{classifier_forward.8} parent=11 // pred_region
        _
      $region16: #{classifier_forward.8} parent=11 // pred_fallthru
        _
      // Predicated region
      $region17: #{classifier_forward.8} parent=11 // pred_check
        %p121 = pneg %p77
      $region18: #{classifier_forward.8} parent=11 // pred_check_branch
        %123 = sbr.rel (%p121) target = $region20
      $region19: #{classifier_forward.8} parent=11 // pred_region
        _
      $region20: #{classifier_forward.8} parent=11 // pred_fallthru
        _
    $region12: #{classifier_forward.8} parent=5 // pred_fallthru
      _
    %p124 = scmp.lt.s32.totalorder %s9, 2
    // Predicated region
    $region21: #{classifier_forward.8} parent=5 // pred_check
      %p125 = pneg %p124
    $region22: #{classifier_forward.8} parent=5 // pred_check_branch
      %127 = sbr.rel (%p125) target = $region24
    $region23: #{classifier_forward.8} parent=5 // pred_region
      // Predicated region
      $region25: #{classifier_forward.8} parent=23 // pred_check
        %p128 = pneg %p29
      $region26: #{classifier_forward.8} parent=23 // pred_check_branch
        %130 = sbr.rel (%p128) target = $region28
      $region27: #{classifier_forward.8} parent=23 // pred_region
        %p131 = scmp.lt.s32.totalorder %s9, 1
        %s132 = scalar_select %p131, %s9, 1
        %s133 = smul.addr %s132, 45
        %s134 = scalar_lea.vmem %s0, %s133
      $region28: #{classifier_forward.8} parent=23 // pred_fallthru
        _
    $region24: #{classifier_forward.8} parent=5 // pred_fallthru
      _
    %p135 = scmp.le.s32.totalorder 1, %s9
    %p136 = scmp.lt.s32.totalorder %s9, 3
    %p137 = pnand %p135, %p136
    %p138 = pneg %p137
    // Predicated region
    $region29: #{classifier_forward.8} parent=5 // pred_check
      _
    $region30: #{classifier_forward.8} parent=5 // pred_check_branch
      %140 = sbr.rel (%p137) target = $region32
    $region31: #{classifier_forward.8} parent=5 // pred_region
      %s141 = ssub.s32 %s9, 1
      %p142 = scmp.lt.s32.totalorder %s14, 1
      %s143 = scalar_select %p142, %s14, 1
      %s144 = smul.addr %s143, 45
      %s145 = scalar_lea.vmem %s0, %s144
      %p146 = pneg %p35
      %p147 = pneg %p32
      %p148 = pneg %p56
      %p149 = pneg %p53
      %p150 = pneg %p77
      %p151 = pneg %p74
      %p152 = pneg %p103
      %p153 = pneg %p100
      %p154 = scmp.lt.s32.totalorder %s14, 1
      %s155 = scalar_select %p154, %s14, 1
      %s156 = scalar_lea.vmem %s3, %s155
      %p157 = scmp.lt.s32.totalorder %s14, 1
      %s158 = scalar_select %p157, %s14, 1
      %s159 = smul.addr %s158, 45
      %s160 = scalar_lea.vmem %s0, %s159
      %p161 = scmp.lt.s32.totalorder %s14, 1
      %s162 = scalar_select %p161, %s14, 1
      %s163 = scalar_lea.vmem %s3, %s162
      %v164 = vld [vmem:[%s1] sm:$0xff]
      %v165 = vld [vmem:[%s1 + $0x8] sm:$0xff]
      %v166 = vld [vmem:[%s1 + $0x10] sm:$0xff]
      %v167 = vld [vmem:[%s1 + $0x18] sm:$0xff]
      %v168 = vld [vmem:[%s1 + $0x20] sm:$0xff]
      %v169 = vld [vmem:[%s1 + $0x28] sm:$0xff]
      %v170 = vld [vmem:[%s1 + $0x30] sm:$0xff]
      %v171 = vld [vmem:[%s1 + $0x38] sm:$0xff]
      %v172 = vld [vmem:[%s1 + $0x40] sm:$0xff]
      %v173 = vld [vmem:[%s1 + $0x48] sm:$0xff]
      %v174 = vld [vmem:[%s1 + $0x50] sm:$0xff]
      %v175 = vld [vmem:[%s1 + $0x58] sm:$0xff]
      %v176 = vld [vmem:[%s1 + $0x60] sm:$0xff]
      %v177 = vld [vmem:[%s1 + $0x68] sm:$0xff]
      %v178 = vld [vmem:[%s1 + $0x70] sm:$0xff]
      %v179 = vld [vmem:[%s1 + $0x78] sm:$0xff]
      %v180 = vld [vmem:[%s1 + $0x80] sm:$0xff]
      %v181 = vld [vmem:[%s1 + $0x88] sm:$0xff]
      %v182 = vld [vmem:[%s1 + $0x90] sm:$0xff]
      %v183 = vld [vmem:[%s1 + $0x98] sm:$0xff]
      %v184 = vld [vmem:[%s1 + $0xa0] sm:$0xff]
      %v185 = vld [vmem:[%s1 + $0xa8] sm:$0xff]
      %v186 = vld [vmem:[%s1 + $0xb0] sm:$0xff]
      %v187 = vld [vmem:[%s1 + $0xb8] sm:$0xff]
      %v188 = vld [vmem:[%s1 + $0xc0] sm:$0xff]
      %v189 = vld [vmem:[%s1 + $0xc8] sm:$0xff]
      %v190 = vld [vmem:[%s1 + $0xd0] sm:$0xff]
      %v191 = vld [vmem:[%s1 + $0xd8] sm:$0xff]
      %v192 = vld [vmem:[%s1 + $0xe0] sm:$0xff]
      %v193 = vld [vmem:[%s1 + $0xe8] sm:$0xff]
      %v194 = vld [vmem:[%s1 + $0xf0] sm:$0xff]
      %v195 = vld [vmem:[%s1 + $0xf8] sm:$0xff]
      %v196 = vld [vmem:[%s1 + $0x100] sm:$0xff]
      %v197 = vld [vmem:[%s1 + $0x108] sm:$0xff]
      %v198 = vld [vmem:[%s1 + $0x110] sm:$0xff]
      %v199 = vld [vmem:[%s1 + $0x118] sm:$0xff]
      %v200 = vld [vmem:[%s1 + $0x120] sm:$0xff]
      %v201 = vld [vmem:[%s1 + $0x128] sm:$0xff]
      %v202 = vld [vmem:[%s1 + $0x130] sm:$0xff]
      %v203 = vld [vmem:[%s1 + $0x138] sm:$0xff]
      %v204 = vld [vmem:[%s1 + $0x140] sm:$0xff]
      %v205 = vld [vmem:[%s1 + $0x148] sm:$0xff]
      %v206 = vld [vmem:[%s1 + $0x150] sm:$0xff]
      %v207 = vld [vmem:[%s1 + $0x158] sm:$0xff]
      %v208 = vld [vmem:[%s1 + $0x160] sm:$0xff]
      %v209 = vld [vmem:[%s1 + $0x168] sm:$0xff]
      %v210 = vld [vmem:[%s1 + $0x170] sm:$0xff]
      %v211 = vld [vmem:[%s1 + $0x178] sm:$0xff]
      %v212 = vld [vmem:[%s1 + $0x180] sm:$0xff]
      %v213 = vld [vmem:[%s1 + $0x188] sm:$0xff]
      %v214 = vld [vmem:[%s1 + $0x190] sm:$0xff]
      %v215 = vld [vmem:[%s1 + $0x198] sm:$0xff]
      %v216 = vld [vmem:[%s1 + $0x1a0] sm:$0xff]
      %v217 = vld [vmem:[%s1 + $0x1a8] sm:$0xff]
      %v218 = vld [vmem:[%s1 + $0x1b0] sm:$0xff]
      %v219 = vld [vmem:[%s1 + $0x1b8] sm:$0xff]
      %v220 = vld [vmem:[%s1 + $0x1c0] sm:$0xff]
      %v221 = vld [vmem:[%s1 + $0x1c8] sm:$0xff]
      %v222 = vld [vmem:[%s1 + $0x1d0] sm:$0xff]
      %v223 = vld [vmem:[%s1 + $0x1d8] sm:$0xff]
      %v224 = vld [vmem:[%s1 + $0x1e0] sm:$0xff]
      %v225 = vld [vmem:[%s1 + $0x1e8] sm:$0xff]
      %v226 = vld [vmem:[%s1 + $0x1f0] sm:$0xff]
      %v227 = vld [vmem:[%s1 + $0x1f8] sm:$0xff]
      %v228 = vld [vmem:[%s1 + $0x200] sm:$0xff]
      %v229 = vld [vmem:[%s1 + $0x208] sm:$0xff]
      %v230 = vld [vmem:[%s1 + $0x210] sm:$0xff]
      %v231 = vld [vmem:[%s1 + $0x218] sm:$0xff]
      %v232 = vld [vmem:[%s1 + $0x220] sm:$0xff]
      %v233 = vld [vmem:[%s1 + $0x228] sm:$0xff]
      %v234 = vld [vmem:[%s1 + $0x230] sm:$0xff]
      %v235 = vld [vmem:[%s1 + $0x238] sm:$0xff]
      %v236 = vld [vmem:[%s160] sm:$0x1f]
      %v238 = vperm.slane %v236, 0
      %v239 = vperm.slane %v236, 1
      %v240 = vperm.slane %v236, 2
      %v241 = vperm.slane %v236, 3
      %v242 = vperm.slane %v236, 4
      %vm247 = vcmask 523264
      %v248 = vsel %vm247, %v242, 0
      %250 = vmatpush.msra.mxu0 %v179
      %251 = vmatpush.msra.mxu0 %v178
      %252 = vmatpush.msra.mxu0 %v177
      %253 = vmatpush.msra.mxu0 %v176
      %254 = vmatpush.msra.mxu0 %v175
      %255 = vmatpush.msra.mxu0 %v174
      %256 = vmatpush.msra.mxu0 %v173
      %257 = vmatpush.msra.mxu0 %v172
      %258 = vmatpush.msra.mxu0 %v171
      %259 = vmatpush.msra.mxu0 %v170
      %260 = vmatpush.msra.mxu0 %v169
      %261 = vmatpush.msra.mxu0 %v168
      %262 = vmatpush.msra.mxu0 %v167
      %263 = vmatpush.msra.mxu0 %v166
      %264 = vmatpush.msra.mxu0 %v165
      %265 = vmatpush.msra.mxu0 %v164
      %266 = vmatmul.f32.gmra.mxu0 %v238
      %v267 = vpop.f32.mrf.mxu0
      %v268 = vadd.f32 0.0, %v267
      %269 = vdwg.mxu0
      %270 = vmatpush.msra.mxu0 %v195
      %271 = vmatpush.msra.mxu0 %v194
      %272 = vmatpush.msra.mxu0 %v193
      %273 = vmatpush.msra.mxu0 %v192
      %274 = vmatpush.msra.mxu0 %v191
      %275 = vmatpush.msra.mxu0 %v190
      %276 = vmatpush.msra.mxu0 %v189
      %277 = vmatpush.msra.mxu0 %v188
      %278 = vmatpush.msra.mxu0 %v187
      %279 = vmatpush.msra.mxu0 %v186
      %280 = vmatpush.msra.mxu0 %v185
      %281 = vmatpush.msra.mxu0 %v184
      %282 = vmatpush.msra.mxu0 %v183
      %283 = vmatpush.msra.mxu0 %v182
      %284 = vmatpush.msra.mxu0 %v181
      %285 = vmatpush.msra.mxu0 %v180
      %286 = vmatmul.f32.gmra.mxu0 %v239
      %v287 = vpop.f32.mrf.mxu0
      %v288 = vadd.f32 %v268, %v287
      %289 = vdwg.mxu0
      %290 = vmatpush.msra.mxu0 %v211
      %291 = vmatpush.msra.mxu0 %v210
      %292 = vmatpush.msra.mxu0 %v209
      %293 = vmatpush.msra.mxu0 %v208
      %294 = vmatpush.msra.mxu0 %v207
      %295 = vmatpush.msra.mxu0 %v206
      %296 = vmatpush.msra.mxu0 %v205
      %297 = vmatpush.msra.mxu0 %v204
      %298 = vmatpush.msra.mxu0 %v203
      %299 = vmatpush.msra.mxu0 %v202
      %300 = vmatpush.msra.mxu0 %v201
      %301 = vmatpush.msra.mxu0 %v200
      %302 = vmatpush.msra.mxu0 %v199
      %303 = vmatpush.msra.mxu0 %v198
      %304 = vmatpush.msra.mxu0 %v197
      %305 = vmatpush.msra.mxu0 %v196
      %306 = vmatmul.f32.gmra.mxu0 %v240
      %v307 = vpop.f32.mrf.mxu0
      %v308 = vadd.f32 %v288, %v307
      %309 = vdwg.mxu0
      %310 = vmatpush.msra.mxu0 %v227
      %311 = vmatpush.msra.mxu0 %v226
      %312 = vmatpush.msra.mxu0 %v225
      %313 = vmatpush.msra.mxu0 %v224
      %314 = vmatpush.msra.mxu0 %v223
      %315 = vmatpush.msra.mxu0 %v222
      %316 = vmatpush.msra.mxu0 %v221
      %317 = vmatpush.msra.mxu0 %v220
      %318 = vmatpush.msra.mxu0 %v219
      %319 = vmatpush.msra.mxu0 %v218
      %320 = vmatpush.msra.mxu0 %v217
      %321 = vmatpush.msra.mxu0 %v216
      %322 = vmatpush.msra.mxu0 %v215
      %323 = vmatpush.msra.mxu0 %v214
      %324 = vmatpush.msra.mxu0 %v213
      %325 = vmatpush.msra.mxu0 %v212
      %326 = vmatmul.f32.gmra.mxu0 %v241
      %v327 = vpop.f32.mrf.mxu0
      %v328 = vadd.f32 %v308, %v327
      %329 = vdwg.mxu0
      %330 = vmatpush.msra.mxu0 0.0
      %331 = vmatpush.msra.mxu0 0.0
      %332 = vmatpush.msra.mxu0 0.0
      %333 = vmatpush.msra.mxu0 0.0
      %334 = vmatpush.msra.mxu0 0.0
      %335 = vmatpush.msra.mxu0 0.0
      %336 = vmatpush.msra.mxu0 0.0
      %337 = vmatpush.msra.mxu0 0.0
      %338 = vmatpush.msra.mxu0 %v235
      %339 = vmatpush.msra.mxu0 %v234
      %340 = vmatpush.msra.mxu0 %v233
      %341 = vmatpush.msra.mxu0 %v232
      %342 = vmatpush.msra.mxu0 %v231
      %343 = vmatpush.msra.mxu0 %v230
      %344 = vmatpush.msra.mxu0 %v229
      %345 = vmatpush.msra.mxu0 %v228
      %346 = vmatmul.f32.gmra.mxu0 %v248
      %v347 = vpop.f32.mrf.mxu0
      %v348 = vadd.f32 %v328, %v347
      %349 = vdwg.mxu0
      %s350 = scalar_lea.vmem %s160, 5
      %v351 = vld [vmem:[%s350] sm:$0x1f]
      %v353 = vperm.slane %v351, 0
      %v354 = vperm.slane %v351, 1
      %v355 = vperm.slane %v351, 2
      %v356 = vperm.slane %v351, 3
      %v357 = vperm.slane %v351, 4
      %v362 = vsel %vm247, %v357, 0
      %364 = vmatpush.msra.mxu0 %v179
      %365 = vmatpush.msra.mxu0 %v178
      %366 = vmatpush.msra.mxu0 %v177
      %367 = vmatpush.msra.mxu0 %v176
      %368 = vmatpush.msra.mxu0 %v175
      %369 = vmatpush.msra.mxu0 %v174
      %370 = vmatpush.msra.mxu0 %v173
      %371 = vmatpush.msra.mxu0 %v172
      %372 = vmatpush.msra.mxu0 %v171
      %373 = vmatpush.msra.mxu0 %v170
      %374 = vmatpush.msra.mxu0 %v169
      %375 = vmatpush.msra.mxu0 %v168
      %376 = vmatpush.msra.mxu0 %v167
      %377 = vmatpush.msra.mxu0 %v166
      %378 = vmatpush.msra.mxu0 %v165
      %379 = vmatpush.msra.mxu0 %v164
      %380 = vmatmul.f32.gmra.mxu0 %v353
      %v381 = vpop.f32.mrf.mxu0
      %v382 = vadd.f32 0.0, %v381
      %383 = vdwg.mxu0
      %384 = vmatpush.msra.mxu0 %v195
      %385 = vmatpush.msra.mxu0 %v194
      %386 = vmatpush.msra.mxu0 %v193
      %387 = vmatpush.msra.mxu0 %v192
      %388 = vmatpush.msra.mxu0 %v191
      %389 = vmatpush.msra.mxu0 %v190
      %390 = vmatpush.msra.mxu0 %v189
      %391 = vmatpush.msra.mxu0 %v188
      %392 = vmatpush.msra.mxu0 %v187
      %393 = vmatpush.msra.mxu0 %v186
      %394 = vmatpush.msra.mxu0 %v185
      %395 = vmatpush.msra.mxu0 %v184
      %396 = vmatpush.msra.mxu0 %v183
      %397 = vmatpush.msra.mxu0 %v182
      %398 = vmatpush.msra.mxu0 %v181
      %399 = vmatpush.msra.mxu0 %v180
      %400 = vmatmul.f32.gmra.mxu0 %v354
      %v401 = vpop.f32.mrf.mxu0
      %v402 = vadd.f32 %v382, %v401
      %403 = vdwg.mxu0
      %404 = vmatpush.msra.mxu0 %v211
      %405 = vmatpush.msra.mxu0 %v210
      %406 = vmatpush.msra.mxu0 %v209
      %407 = vmatpush.msra.mxu0 %v208
      %408 = vmatpush.msra.mxu0 %v207
      %409 = vmatpush.msra.mxu0 %v206
      %410 = vmatpush.msra.mxu0 %v205
      %411 = vmatpush.msra.mxu0 %v204
      %412 = vmatpush.msra.mxu0 %v203
      %413 = vmatpush.msra.mxu0 %v202
      %414 = vmatpush.msra.mxu0 %v201
      %415 = vmatpush.msra.mxu0 %v200
      %416 = vmatpush.msra.mxu0 %v199
      %417 = vmatpush.msra.mxu0 %v198
      %418 = vmatpush.msra.mxu0 %v197
      %419 = vmatpush.msra.mxu0 %v196
      %420 = vmatmul.f32.gmra.mxu0 %v355
      %v421 = vpop.f32.mrf.mxu0
      %v422 = vadd.f32 %v402, %v421
      %423 = vdwg.mxu0
      %424 = vmatpush.msra.mxu0 %v227
      %425 = vmatpush.msra.mxu0 %v226
      %426 = vmatpush.msra.mxu0 %v225
      %427 = vmatpush.msra.mxu0 %v224
      %428 = vmatpush.msra.mxu0 %v223
      %429 = vmatpush.msra.mxu0 %v222
      %430 = vmatpush.msra.mxu0 %v221
      %431 = vmatpush.msra.mxu0 %v220
      %432 = vmatpush.msra.mxu0 %v219
      %433 = vmatpush.msra.mxu0 %v218
      %434 = vmatpush.msra.mxu0 %v217
      %435 = vmatpush.msra.mxu0 %v216
      %436 = vmatpush.msra.mxu0 %v215
      %437 = vmatpush.msra.mxu0 %v214
      %438 = vmatpush.msra.mxu0 %v213
      %439 = vmatpush.msra.mxu0 %v212
      %440 = vmatmul.f32.gmra.mxu0 %v356
      %v441 = vpop.f32.mrf.mxu0
      %v442 = vadd.f32 %v422, %v441
      %443 = vdwg.mxu0
      %444 = vmatpush.msra.mxu0 0.0
      %445 = vmatpush.msra.mxu0 0.0
      %446 = vmatpush.msra.mxu0 0.0
      %447 = vmatpush.msra.mxu0 0.0
      %448 = vmatpush.msra.mxu0 0.0
      %449 = vmatpush.msra.mxu0 0.0
      %450 = vmatpush.msra.mxu0 0.0
      %451 = vmatpush.msra.mxu0 0.0
      %452 = vmatpush.msra.mxu0 %v235
      %453 = vmatpush.msra.mxu0 %v234
      %454 = vmatpush.msra.mxu0 %v233
      %455 = vmatpush.msra.mxu0 %v232
      %456 = vmatpush.msra.mxu0 %v231
      %457 = vmatpush.msra.mxu0 %v230
      %458 = vmatpush.msra.mxu0 %v229
      %459 = vmatpush.msra.mxu0 %v228
      %460 = vmatmul.f32.gmra.mxu0 %v362
      %v461 = vpop.f32.mrf.mxu0
      %v462 = vadd.f32 %v442, %v461
      %463 = vdwg.mxu0
      %v464 = vmax.f32 %v348, %v462
      %s465 = scalar_lea.vmem %s160, 10
      %v466 = vld [vmem:[%s465] sm:$0x1f]
      %v468 = vperm.slane %v466, 0
      %v469 = vperm.slane %v466, 1
      %v470 = vperm.slane %v466, 2
      %v471 = vperm.slane %v466, 3
      %v472 = vperm.slane %v466, 4
      %v477 = vsel %vm247, %v472, 0
      %479 = vmatpush.msra.mxu0 %v179
      %480 = vmatpush.msra.mxu0 %v178
      %481 = vmatpush.msra.mxu0 %v177
      %482 = vmatpush.msra.mxu0 %v176
      %483 = vmatpush.msra.mxu0 %v175
      %484 = vmatpush.msra.mxu0 %v174
      %485 = vmatpush.msra.mxu0 %v173
      %486 = vmatpush.msra.mxu0 %v172
      %487 = vmatpush.msra.mxu0 %v171
      %488 = vmatpush.msra.mxu0 %v170
      %489 = vmatpush.msra.mxu0 %v169
      %490 = vmatpush.msra.mxu0 %v168
      %491 = vmatpush.msra.mxu0 %v167
      %492 = vmatpush.msra.mxu0 %v166
      %493 = vmatpush.msra.mxu0 %v165
      %494 = vmatpush.msra.mxu0 %v164
      %495 = vmatmul.f32.gmra.mxu0 %v468
      %v496 = vpop.f32.mrf.mxu0
      %v497 = vadd.f32 0.0, %v496
      %498 = vdwg.mxu0
      %499 = vmatpush.msra.mxu0 %v195
      %500 = vmatpush.msra.mxu0 %v194
      %501 = vmatpush.msra.mxu0 %v193
      %502 = vmatpush.msra.mxu0 %v192
      %503 = vmatpush.msra.mxu0 %v191
      %504 = vmatpush.msra.mxu0 %v190
      %505 = vmatpush.msra.mxu0 %v189
      %506 = vmatpush.msra.mxu0 %v188
      %507 = vmatpush.msra.mxu0 %v187
      %508 = vmatpush.msra.mxu0 %v186
      %509 = vmatpush.msra.mxu0 %v185
      %510 = vmatpush.msra.mxu0 %v184
      %511 = vmatpush.msra.mxu0 %v183
      %512 = vmatpush.msra.mxu0 %v182
      %513 = vmatpush.msra.mxu0 %v181
      %514 = vmatpush.msra.mxu0 %v180
      %515 = vmatmul.f32.gmra.mxu0 %v469
      %v516 = vpop.f32.mrf.mxu0
      %v517 = vadd.f32 %v497, %v516
      %518 = vdwg.mxu0
      %519 = vmatpush.msra.mxu0 %v211
      %520 = vmatpush.msra.mxu0 %v210
      %521 = vmatpush.msra.mxu0 %v209
      %522 = vmatpush.msra.mxu0 %v208
      %523 = vmatpush.msra.mxu0 %v207
      %524 = vmatpush.msra.mxu0 %v206
      %525 = vmatpush.msra.mxu0 %v205
      %526 = vmatpush.msra.mxu0 %v204
      %527 = vmatpush.msra.mxu0 %v203
      %528 = vmatpush.msra.mxu0 %v202
      %529 = vmatpush.msra.mxu0 %v201
      %530 = vmatpush.msra.mxu0 %v200
      %531 = vmatpush.msra.mxu0 %v199
      %532 = vmatpush.msra.mxu0 %v198
      %533 = vmatpush.msra.mxu0 %v197
      %534 = vmatpush.msra.mxu0 %v196
      %535 = vmatmul.f32.gmra.mxu0 %v470
      %v536 = vpop.f32.mrf.mxu0
      %v537 = vadd.f32 %v517, %v536
      %538 = vdwg.mxu0
      %539 = vmatpush.msra.mxu0 %v227
      %540 = vmatpush.msra.mxu0 %v226
      %541 = vmatpush.msra.mxu0 %v225
      %542 = vmatpush.msra.mxu0 %v224
      %543 = vmatpush.msra.mxu0 %v223
      %544 = vmatpush.msra.mxu0 %v222
      %545 = vmatpush.msra.mxu0 %v221
      %546 = vmatpush.msra.mxu0 %v220
      %547 = vmatpush.msra.mxu0 %v219
      %548 = vmatpush.msra.mxu0 %v218
      %549 = vmatpush.msra.mxu0 %v217
      %550 = vmatpush.msra.mxu0 %v216
      %551 = vmatpush.msra.mxu0 %v215
      %552 = vmatpush.msra.mxu0 %v214
      %553 = vmatpush.msra.mxu0 %v213
      %554 = vmatpush.msra.mxu0 %v212
      %555 = vmatmul.f32.gmra.mxu0 %v471
      %v556 = vpop.f32.mrf.mxu0
      %v557 = vadd.f32 %v537, %v556
      %558 = vdwg.mxu0
      %559 = vmatpush.msra.mxu0 0.0
      %560 = vmatpush.msra.mxu0 0.0
      %561 = vmatpush.msra.mxu0 0.0
      %562 = vmatpush.msra.mxu0 0.0
      %563 = vmatpush.msra.mxu0 0.0
      %564 = vmatpush.msra.mxu0 0.0
      %565 = vmatpush.msra.mxu0 0.0
      %566 = vmatpush.msra.mxu0 0.0
      %567 = vmatpush.msra.mxu0 %v235
      %568 = vmatpush.msra.mxu0 %v234
      %569 = vmatpush.msra.mxu0 %v233
      %570 = vmatpush.msra.mxu0 %v232
      %571 = vmatpush.msra.mxu0 %v231
      %572 = vmatpush.msra.mxu0 %v230
      %573 = vmatpush.msra.mxu0 %v229
      %574 = vmatpush.msra.mxu0 %v228
      %575 = vmatmul.f32.gmra.mxu0 %v477
      %v576 = vpop.f32.mrf.mxu0
      %v577 = vadd.f32 %v557, %v576
      %578 = vdwg.mxu0
      %v579 = vmax.f32 %v464, %v577
      %s580 = scalar_lea.vmem %s160, 15
      %v581 = vld [vmem:[%s580] sm:$0x1f]
      %v583 = vperm.slane %v581, 0
      %v584 = vperm.slane %v581, 1
      %v585 = vperm.slane %v581, 2
      %v586 = vperm.slane %v581, 3
      %v587 = vperm.slane %v581, 4
      %v592 = vsel %vm247, %v587, 0
      %594 = vmatpush.msra.mxu0 %v179
      %595 = vmatpush.msra.mxu0 %v178
      %596 = vmatpush.msra.mxu0 %v177
      %597 = vmatpush.msra.mxu0 %v176
      %598 = vmatpush.msra.mxu0 %v175
      %599 = vmatpush.msra.mxu0 %v174
      %600 = vmatpush.msra.mxu0 %v173
      %601 = vmatpush.msra.mxu0 %v172
      %602 = vmatpush.msra.mxu0 %v171
      %603 = vmatpush.msra.mxu0 %v170
      %604 = vmatpush.msra.mxu0 %v169
      %605 = vmatpush.msra.mxu0 %v168
      %606 = vmatpush.msra.mxu0 %v167
      %607 = vmatpush.msra.mxu0 %v166
      %608 = vmatpush.msra.mxu0 %v165
      %609 = vmatpush.msra.mxu0 %v164
      %610 = vmatmul.f32.gmra.mxu0 %v583
      %v611 = vpop.f32.mrf.mxu0
      %v612 = vadd.f32 0.0, %v611
      %613 = vdwg.mxu0
      %614 = vmatpush.msra.mxu0 %v195
      %615 = vmatpush.msra.mxu0 %v194
      %616 = vmatpush.msra.mxu0 %v193
      %617 = vmatpush.msra.mxu0 %v192
      %618 = vmatpush.msra.mxu0 %v191
      %619 = vmatpush.msra.mxu0 %v190
      %620 = vmatpush.msra.mxu0 %v189
      %621 = vmatpush.msra.mxu0 %v188
      %622 = vmatpush.msra.mxu0 %v187
      %623 = vmatpush.msra.mxu0 %v186
      %624 = vmatpush.msra.mxu0 %v185
      %625 = vmatpush.msra.mxu0 %v184
      %626 = vmatpush.msra.mxu0 %v183
      %627 = vmatpush.msra.mxu0 %v182
      %628 = vmatpush.msra.mxu0 %v181
      %629 = vmatpush.msra.mxu0 %v180
      %630 = vmatmul.f32.gmra.mxu0 %v584
      %v631 = vpop.f32.mrf.mxu0
      %v632 = vadd.f32 %v612, %v631
      %633 = vdwg.mxu0
      %634 = vmatpush.msra.mxu0 %v211
      %635 = vmatpush.msra.mxu0 %v210
      %636 = vmatpush.msra.mxu0 %v209
      %637 = vmatpush.msra.mxu0 %v208
      %638 = vmatpush.msra.mxu0 %v207
      %639 = vmatpush.msra.mxu0 %v206
      %640 = vmatpush.msra.mxu0 %v205
      %641 = vmatpush.msra.mxu0 %v204
      %642 = vmatpush.msra.mxu0 %v203
      %643 = vmatpush.msra.mxu0 %v202
      %644 = vmatpush.msra.mxu0 %v201
      %645 = vmatpush.msra.mxu0 %v200
      %646 = vmatpush.msra.mxu0 %v199
      %647 = vmatpush.msra.mxu0 %v198
      %648 = vmatpush.msra.mxu0 %v197
      %649 = vmatpush.msra.mxu0 %v196
      %650 = vmatmul.f32.gmra.mxu0 %v585
      %v651 = vpop.f32.mrf.mxu0
      %v652 = vadd.f32 %v632, %v651
      %653 = vdwg.mxu0
      %654 = vmatpush.msra.mxu0 %v227
      %655 = vmatpush.msra.mxu0 %v226
      %656 = vmatpush.msra.mxu0 %v225
      %657 = vmatpush.msra.mxu0 %v224
      %658 = vmatpush.msra.mxu0 %v223
      %659 = vmatpush.msra.mxu0 %v222
      %660 = vmatpush.msra.mxu0 %v221
      %661 = vmatpush.msra.mxu0 %v220
      %662 = vmatpush.msra.mxu0 %v219
      %663 = vmatpush.msra.mxu0 %v218
      %664 = vmatpush.msra.mxu0 %v217
      %665 = vmatpush.msra.mxu0 %v216
      %666 = vmatpush.msra.mxu0 %v215
      %667 = vmatpush.msra.mxu0 %v214
      %668 = vmatpush.msra.mxu0 %v213
      %669 = vmatpush.msra.mxu0 %v212
      %670 = vmatmul.f32.gmra.mxu0 %v586
      %v671 = vpop.f32.mrf.mxu0
      %v672 = vadd.f32 %v652, %v671
      %673 = vdwg.mxu0
      %674 = vmatpush.msra.mxu0 0.0
      %675 = vmatpush.msra.mxu0 0.0
      %676 = vmatpush.msra.mxu0 0.0
      %677 = vmatpush.msra.mxu0 0.0
      %678 = vmatpush.msra.mxu0 0.0
      %679 = vmatpush.msra.mxu0 0.0
      %680 = vmatpush.msra.mxu0 0.0
      %681 = vmatpush.msra.mxu0 0.0
      %682 = vmatpush.msra.mxu0 %v235
      %683 = vmatpush.msra.mxu0 %v234
      %684 = vmatpush.msra.mxu0 %v233
      %685 = vmatpush.msra.mxu0 %v232
      %686 = vmatpush.msra.mxu0 %v231
      %687 = vmatpush.msra.mxu0 %v230
      %688 = vmatpush.msra.mxu0 %v229
      %689 = vmatpush.msra.mxu0 %v228
      %690 = vmatmul.f32.gmra.mxu0 %v592
      %v691 = vpop.f32.mrf.mxu0
      %v692 = vadd.f32 %v672, %v691
      %693 = vdwg.mxu0
      %v694 = vmax.f32 %v579, %v692
      %s695 = scalar_lea.vmem %s160, 20
      %v696 = vld [vmem:[%s695] sm:$0x1f]
      %v698 = vperm.slane %v696, 0
      %v699 = vperm.slane %v696, 1
      %v700 = vperm.slane %v696, 2
      %v701 = vperm.slane %v696, 3
      %v702 = vperm.slane %v696, 4
      %v707 = vsel %vm247, %v702, 0
      %709 = vmatpush.msra.mxu0 %v179
      %710 = vmatpush.msra.mxu0 %v178
      %711 = vmatpush.msra.mxu0 %v177
      %712 = vmatpush.msra.mxu0 %v176
      %713 = vmatpush.msra.mxu0 %v175
      %714 = vmatpush.msra.mxu0 %v174
      %715 = vmatpush.msra.mxu0 %v173
      %716 = vmatpush.msra.mxu0 %v172
      %717 = vmatpush.msra.mxu0 %v171
      %718 = vmatpush.msra.mxu0 %v170
      %719 = vmatpush.msra.mxu0 %v169
      %720 = vmatpush.msra.mxu0 %v168
      %721 = vmatpush.msra.mxu0 %v167
      %722 = vmatpush.msra.mxu0 %v166
      %723 = vmatpush.msra.mxu0 %v165
      %724 = vmatpush.msra.mxu0 %v164
      %725 = vmatmul.f32.gmra.mxu0 %v698
      %v726 = vpop.f32.mrf.mxu0
      %v727 = vadd.f32 0.0, %v726
      %728 = vdwg.mxu0
      %729 = vmatpush.msra.mxu0 %v195
      %730 = vmatpush.msra.mxu0 %v194
      %731 = vmatpush.msra.mxu0 %v193
      %732 = vmatpush.msra.mxu0 %v192
      %733 = vmatpush.msra.mxu0 %v191
      %734 = vmatpush.msra.mxu0 %v190
      %735 = vmatpush.msra.mxu0 %v189
      %736 = vmatpush.msra.mxu0 %v188
      %737 = vmatpush.msra.mxu0 %v187
      %738 = vmatpush.msra.mxu0 %v186
      %739 = vmatpush.msra.mxu0 %v185
      %740 = vmatpush.msra.mxu0 %v184
      %741 = vmatpush.msra.mxu0 %v183
      %742 = vmatpush.msra.mxu0 %v182
      %743 = vmatpush.msra.mxu0 %v181
      %744 = vmatpush.msra.mxu0 %v180
      %745 = vmatmul.f32.gmra.mxu0 %v699
      %v746 = vpop.f32.mrf.mxu0
      %v747 = vadd.f32 %v727, %v746
      %748 = vdwg.mxu0
      %749 = vmatpush.msra.mxu0 %v211
      %750 = vmatpush.msra.mxu0 %v210
      %751 = vmatpush.msra.mxu0 %v209
      %752 = vmatpush.msra.mxu0 %v208
      %753 = vmatpush.msra.mxu0 %v207
      %754 = vmatpush.msra.mxu0 %v206
      %755 = vmatpush.msra.mxu0 %v205
      %756 = vmatpush.msra.mxu0 %v204
      %757 = vmatpush.msra.mxu0 %v203
      %758 = vmatpush.msra.mxu0 %v202
      %759 = vmatpush.msra.mxu0 %v201
      %760 = vmatpush.msra.mxu0 %v200
      %761 = vmatpush.msra.mxu0 %v199
      %762 = vmatpush.msra.mxu0 %v198
      %763 = vmatpush.msra.mxu0 %v197
      %764 = vmatpush.msra.mxu0 %v196
      %765 = vmatmul.f32.gmra.mxu0 %v700
      %v766 = vpop.f32.mrf.mxu0
      %v767 = vadd.f32 %v747, %v766
      %768 = vdwg.mxu0
      %769 = vmatpush.msra.mxu0 %v227
      %770 = vmatpush.msra.mxu0 %v226
      %771 = vmatpush.msra.mxu0 %v225
      %772 = vmatpush.msra.mxu0 %v224
      %773 = vmatpush.msra.mxu0 %v223
      %774 = vmatpush.msra.mxu0 %v222
      %775 = vmatpush.msra.mxu0 %v221
      %776 = vmatpush.msra.mxu0 %v220
      %777 = vmatpush.msra.mxu0 %v219
      %778 = vmatpush.msra.mxu0 %v218
      %779 = vmatpush.msra.mxu0 %v217
      %780 = vmatpush.msra.mxu0 %v216
      %781 = vmatpush.msra.mxu0 %v215
      %782 = vmatpush.msra.mxu0 %v214
      %783 = vmatpush.msra.mxu0 %v213
      %784 = vmatpush.msra.mxu0 %v212
      %785 = vmatmul.f32.gmra.mxu0 %v701
      %v786 = vpop.f32.mrf.mxu0
      %v787 = vadd.f32 %v767, %v786
      %788 = vdwg.mxu0
      %789 = vmatpush.msra.mxu0 0.0
      %790 = vmatpush.msra.mxu0 0.0
      %791 = vmatpush.msra.mxu0 0.0
      %792 = vmatpush.msra.mxu0 0.0
      %793 = vmatpush.msra.mxu0 0.0
      %794 = vmatpush.msra.mxu0 0.0
      %795 = vmatpush.msra.mxu0 0.0
      %796 = vmatpush.msra.mxu0 0.0
      %797 = vmatpush.msra.mxu0 %v235
      %798 = vmatpush.msra.mxu0 %v234
      %799 = vmatpush.msra.mxu0 %v233
      %800 = vmatpush.msra.mxu0 %v232
      %801 = vmatpush.msra.mxu0 %v231
      %802 = vmatpush.msra.mxu0 %v230
      %803 = vmatpush.msra.mxu0 %v229
      %804 = vmatpush.msra.mxu0 %v228
      %805 = vmatmul.f32.gmra.mxu0 %v707
      %v806 = vpop.f32.mrf.mxu0
      %v807 = vadd.f32 %v787, %v806
      %808 = vdwg.mxu0
      %v809 = vmax.f32 %v694, %v807
      %s810 = scalar_lea.vmem %s160, 25
      %v811 = vld [vmem:[%s810] sm:$0x1f]
      %v813 = vperm.slane %v811, 0
      %v814 = vperm.slane %v811, 1
      %v815 = vperm.slane %v811, 2
      %v816 = vperm.slane %v811, 3
      %v817 = vperm.slane %v811, 4
      %v822 = vsel %vm247, %v817, 0
      %824 = vmatpush.msra.mxu0 %v179
      %825 = vmatpush.msra.mxu0 %v178
      %826 = vmatpush.msra.mxu0 %v177
      %827 = vmatpush.msra.mxu0 %v176
      %828 = vmatpush.msra.mxu0 %v175
      %829 = vmatpush.msra.mxu0 %v174
      %830 = vmatpush.msra.mxu0 %v173
      %831 = vmatpush.msra.mxu0 %v172
      %832 = vmatpush.msra.mxu0 %v171
      %833 = vmatpush.msra.mxu0 %v170
      %834 = vmatpush.msra.mxu0 %v169
      %835 = vmatpush.msra.mxu0 %v168
      %836 = vmatpush.msra.mxu0 %v167
      %837 = vmatpush.msra.mxu0 %v166
      %838 = vmatpush.msra.mxu0 %v165
      %839 = vmatpush.msra.mxu0 %v164
      %840 = vmatmul.f32.gmra.mxu0 %v813
      %v841 = vpop.f32.mrf.mxu0
      %v842 = vadd.f32 0.0, %v841
      %843 = vdwg.mxu0
      %844 = vmatpush.msra.mxu0 %v195
      %845 = vmatpush.msra.mxu0 %v194
      %846 = vmatpush.msra.mxu0 %v193
      %847 = vmatpush.msra.mxu0 %v192
      %848 = vmatpush.msra.mxu0 %v191
      %849 = vmatpush.msra.mxu0 %v190
      %850 = vmatpush.msra.mxu0 %v189
      %851 = vmatpush.msra.mxu0 %v188
      %852 = vmatpush.msra.mxu0 %v187
      %853 = vmatpush.msra.mxu0 %v186
      %854 = vmatpush.msra.mxu0 %v185
      %855 = vmatpush.msra.mxu0 %v184
      %856 = vmatpush.msra.mxu0 %v183
      %857 = vmatpush.msra.mxu0 %v182
      %858 = vmatpush.msra.mxu0 %v181
      %859 = vmatpush.msra.mxu0 %v180
      %860 = vmatmul.f32.gmra.mxu0 %v814
      %v861 = vpop.f32.mrf.mxu0
      %v862 = vadd.f32 %v842, %v861
      %863 = vdwg.mxu0
      %864 = vmatpush.msra.mxu0 %v211
      %865 = vmatpush.msra.mxu0 %v210
      %866 = vmatpush.msra.mxu0 %v209
      %867 = vmatpush.msra.mxu0 %v208
      %868 = vmatpush.msra.mxu0 %v207
      %869 = vmatpush.msra.mxu0 %v206
      %870 = vmatpush.msra.mxu0 %v205
      %871 = vmatpush.msra.mxu0 %v204
      %872 = vmatpush.msra.mxu0 %v203
      %873 = vmatpush.msra.mxu0 %v202
      %874 = vmatpush.msra.mxu0 %v201
      %875 = vmatpush.msra.mxu0 %v200
      %876 = vmatpush.msra.mxu0 %v199
      %877 = vmatpush.msra.mxu0 %v198
      %878 = vmatpush.msra.mxu0 %v197
      %879 = vmatpush.msra.mxu0 %v196
      %880 = vmatmul.f32.gmra.mxu0 %v815
      %v881 = vpop.f32.mrf.mxu0
      %v882 = vadd.f32 %v862, %v881
      %883 = vdwg.mxu0
      %884 = vmatpush.msra.mxu0 %v227
      %885 = vmatpush.msra.mxu0 %v226
      %886 = vmatpush.msra.mxu0 %v225
      %887 = vmatpush.msra.mxu0 %v224
      %888 = vmatpush.msra.mxu0 %v223
      %889 = vmatpush.msra.mxu0 %v222
      %890 = vmatpush.msra.mxu0 %v221
      %891 = vmatpush.msra.mxu0 %v220
      %892 = vmatpush.msra.mxu0 %v219
      %893 = vmatpush.msra.mxu0 %v218
      %894 = vmatpush.msra.mxu0 %v217
      %895 = vmatpush.msra.mxu0 %v216
      %896 = vmatpush.msra.mxu0 %v215
      %897 = vmatpush.msra.mxu0 %v214
      %898 = vmatpush.msra.mxu0 %v213
      %899 = vmatpush.msra.mxu0 %v212
      %900 = vmatmul.f32.gmra.mxu0 %v816
      %v901 = vpop.f32.mrf.mxu0
      %v902 = vadd.f32 %v882, %v901
      %903 = vdwg.mxu0
      %904 = vmatpush.msra.mxu0 0.0
      %905 = vmatpush.msra.mxu0 0.0
      %906 = vmatpush.msra.mxu0 0.0
      %907 = vmatpush.msra.mxu0 0.0
      %908 = vmatpush.msra.mxu0 0.0
      %909 = vmatpush.msra.mxu0 0.0
      %910 = vmatpush.msra.mxu0 0.0
      %911 = vmatpush.msra.mxu0 0.0
      %912 = vmatpush.msra.mxu0 %v235
      %913 = vmatpush.msra.mxu0 %v234
      %914 = vmatpush.msra.mxu0 %v233
      %915 = vmatpush.msra.mxu0 %v232
      %916 = vmatpush.msra.mxu0 %v231
      %917 = vmatpush.msra.mxu0 %v230
      %918 = vmatpush.msra.mxu0 %v229
      %919 = vmatpush.msra.mxu0 %v228
      %920 = vmatmul.f32.gmra.mxu0 %v822
      %v921 = vpop.f32.mrf.mxu0
      %v922 = vadd.f32 %v902, %v921
      %923 = vdwg.mxu0
      %v924 = vmax.f32 %v809, %v922
      %s925 = scalar_lea.vmem %s160, 30
      %v926 = vld [vmem:[%s925] sm:$0x1f]
      %v928 = vperm.slane %v926, 0
      %v929 = vperm.slane %v926, 1
      %v930 = vperm.slane %v926, 2
      %v931 = vperm.slane %v926, 3
      %v932 = vperm.slane %v926, 4
      %v937 = vsel %vm247, %v932, 0
      %939 = vmatpush.msra.mxu0 %v179
      %940 = vmatpush.msra.mxu0 %v178
      %941 = vmatpush.msra.mxu0 %v177
      %942 = vmatpush.msra.mxu0 %v176
      %943 = vmatpush.msra.mxu0 %v175
      %944 = vmatpush.msra.mxu0 %v174
      %945 = vmatpush.msra.mxu0 %v173
      %946 = vmatpush.msra.mxu0 %v172
      %947 = vmatpush.msra.mxu0 %v171
      %948 = vmatpush.msra.mxu0 %v170
      %949 = vmatpush.msra.mxu0 %v169
      %950 = vmatpush.msra.mxu0 %v168
      %951 = vmatpush.msra.mxu0 %v167
      %952 = vmatpush.msra.mxu0 %v166
      %953 = vmatpush.msra.mxu0 %v165
      %954 = vmatpush.msra.mxu0 %v164
      %955 = vmatmul.f32.gmra.mxu0 %v928
      %v956 = vpop.f32.mrf.mxu0
      %v957 = vadd.f32 0.0, %v956
      %958 = vdwg.mxu0
      %959 = vmatpush.msra.mxu0 %v195
      %960 = vmatpush.msra.mxu0 %v194
      %961 = vmatpush.msra.mxu0 %v193
      %962 = vmatpush.msra.mxu0 %v192
      %963 = vmatpush.msra.mxu0 %v191
      %964 = vmatpush.msra.mxu0 %v190
      %965 = vmatpush.msra.mxu0 %v189
      %966 = vmatpush.msra.mxu0 %v188
      %967 = vmatpush.msra.mxu0 %v187
      %968 = vmatpush.msra.mxu0 %v186
      %969 = vmatpush.msra.mxu0 %v185
      %970 = vmatpush.msra.mxu0 %v184
      %971 = vmatpush.msra.mxu0 %v183
      %972 = vmatpush.msra.mxu0 %v182
      %973 = vmatpush.msra.mxu0 %v181
      %974 = vmatpush.msra.mxu0 %v180
      %975 = vmatmul.f32.gmra.mxu0 %v929
      %v976 = vpop.f32.mrf.mxu0
      %v977 = vadd.f32 %v957, %v976
      %978 = vdwg.mxu0
      %979 = vmatpush.msra.mxu0 %v211
      %980 = vmatpush.msra.mxu0 %v210
      %981 = vmatpush.msra.mxu0 %v209
      %982 = vmatpush.msra.mxu0 %v208
      %983 = vmatpush.msra.mxu0 %v207
      %984 = vmatpush.msra.mxu0 %v206
      %985 = vmatpush.msra.mxu0 %v205
      %986 = vmatpush.msra.mxu0 %v204
      %987 = vmatpush.msra.mxu0 %v203
      %988 = vmatpush.msra.mxu0 %v202
      %989 = vmatpush.msra.mxu0 %v201
      %990 = vmatpush.msra.mxu0 %v200
      %991 = vmatpush.msra.mxu0 %v199
      %992 = vmatpush.msra.mxu0 %v198
      %993 = vmatpush.msra.mxu0 %v197
      %994 = vmatpush.msra.mxu0 %v196
      %995 = vmatmul.f32.gmra.mxu0 %v930
      %v996 = vpop.f32.mrf.mxu0
      %v997 = vadd.f32 %v977, %v996
      %998 = vdwg.mxu0
      %999 = vmatpush.msra.mxu0 %v227
      %1000 = vmatpush.msra.mxu0 %v226
      %1001 = vmatpush.msra.mxu0 %v225
      %1002 = vmatpush.msra.mxu0 %v224
      %1003 = vmatpush.msra.mxu0 %v223
      %1004 = vmatpush.msra.mxu0 %v222
      %1005 = vmatpush.msra.mxu0 %v221
      %1006 = vmatpush.msra.mxu0 %v220
      %1007 = vmatpush.msra.mxu0 %v219
      %1008 = vmatpush.msra.mxu0 %v218
      %1009 = vmatpush.msra.mxu0 %v217
      %1010 = vmatpush.msra.mxu0 %v216
      %1011 = vmatpush.msra.mxu0 %v215
      %1012 = vmatpush.msra.mxu0 %v214
      %1013 = vmatpush.msra.mxu0 %v213
      %1014 = vmatpush.msra.mxu0 %v212
      %1015 = vmatmul.f32.gmra.mxu0 %v931
      %v1016 = vpop.f32.mrf.mxu0
      %v1017 = vadd.f32 %v997, %v1016
      %1018 = vdwg.mxu0
      %1019 = vmatpush.msra.mxu0 0.0
      %1020 = vmatpush.msra.mxu0 0.0
      %1021 = vmatpush.msra.mxu0 0.0
      %1022 = vmatpush.msra.mxu0 0.0
      %1023 = vmatpush.msra.mxu0 0.0
      %1024 = vmatpush.msra.mxu0 0.0
      %1025 = vmatpush.msra.mxu0 0.0
      %1026 = vmatpush.msra.mxu0 0.0
      %1027 = vmatpush.msra.mxu0 %v235
      %1028 = vmatpush.msra.mxu0 %v234
      %1029 = vmatpush.msra.mxu0 %v233
      %1030 = vmatpush.msra.mxu0 %v232
      %1031 = vmatpush.msra.mxu0 %v231
      %1032 = vmatpush.msra.mxu0 %v230
      %1033 = vmatpush.msra.mxu0 %v229
      %1034 = vmatpush.msra.mxu0 %v228
      %1035 = vmatmul.f32.gmra.mxu0 %v937
      %v1036 = vpop.f32.mrf.mxu0
      %v1037 = vadd.f32 %v1017, %v1036
      %1038 = vdwg.mxu0
      %v1039 = vmax.f32 %v924, %v1037
      %s1040 = scalar_lea.vmem %s160, 35
      %v1041 = vld [vmem:[%s1040] sm:$0x1f]
      %v1043 = vperm.slane %v1041, 0
      %v1044 = vperm.slane %v1041, 1
      %v1045 = vperm.slane %v1041, 2
      %v1046 = vperm.slane %v1041, 3
      %v1047 = vperm.slane %v1041, 4
      %v1052 = vsel %vm247, %v1047, 0
      %1054 = vmatpush.msra.mxu0 %v179
      %1055 = vmatpush.msra.mxu0 %v178
      %1056 = vmatpush.msra.mxu0 %v177
      %1057 = vmatpush.msra.mxu0 %v176
      %1058 = vmatpush.msra.mxu0 %v175
      %1059 = vmatpush.msra.mxu0 %v174
      %1060 = vmatpush.msra.mxu0 %v173
      %1061 = vmatpush.msra.mxu0 %v172
      %1062 = vmatpush.msra.mxu0 %v171
      %1063 = vmatpush.msra.mxu0 %v170
      %1064 = vmatpush.msra.mxu0 %v169
      %1065 = vmatpush.msra.mxu0 %v168
      %1066 = vmatpush.msra.mxu0 %v167
      %1067 = vmatpush.msra.mxu0 %v166
      %1068 = vmatpush.msra.mxu0 %v165
      %1069 = vmatpush.msra.mxu0 %v164
      %1070 = vmatmul.f32.gmra.mxu0 %v1043
      %v1071 = vpop.f32.mrf.mxu0
      %v1072 = vadd.f32 0.0, %v1071
      %1073 = vdwg.mxu0
      %1074 = vmatpush.msra.mxu0 %v195
      %1075 = vmatpush.msra.mxu0 %v194
      %1076 = vmatpush.msra.mxu0 %v193
      %1077 = vmatpush.msra.mxu0 %v192
      %1078 = vmatpush.msra.mxu0 %v191
      %1079 = vmatpush.msra.mxu0 %v190
      %1080 = vmatpush.msra.mxu0 %v189
      %1081 = vmatpush.msra.mxu0 %v188
      %1082 = vmatpush.msra.mxu0 %v187
      %1083 = vmatpush.msra.mxu0 %v186
      %1084 = vmatpush.msra.mxu0 %v185
      %1085 = vmatpush.msra.mxu0 %v184
      %1086 = vmatpush.msra.mxu0 %v183
      %1087 = vmatpush.msra.mxu0 %v182
      %1088 = vmatpush.msra.mxu0 %v181
      %1089 = vmatpush.msra.mxu0 %v180
      %1090 = vmatmul.f32.gmra.mxu0 %v1044
      %v1091 = vpop.f32.mrf.mxu0
      %v1092 = vadd.f32 %v1072, %v1091
      %1093 = vdwg.mxu0
      %1094 = vmatpush.msra.mxu0 %v211
      %1095 = vmatpush.msra.mxu0 %v210
      %1096 = vmatpush.msra.mxu0 %v209
      %1097 = vmatpush.msra.mxu0 %v208
      %1098 = vmatpush.msra.mxu0 %v207
      %1099 = vmatpush.msra.mxu0 %v206
      %1100 = vmatpush.msra.mxu0 %v205
      %1101 = vmatpush.msra.mxu0 %v204
      %1102 = vmatpush.msra.mxu0 %v203
      %1103 = vmatpush.msra.mxu0 %v202
      %1104 = vmatpush.msra.mxu0 %v201
      %1105 = vmatpush.msra.mxu0 %v200
      %1106 = vmatpush.msra.mxu0 %v199
      %1107 = vmatpush.msra.mxu0 %v198
      %1108 = vmatpush.msra.mxu0 %v197
      %1109 = vmatpush.msra.mxu0 %v196
      %1110 = vmatmul.f32.gmra.mxu0 %v1045
      %v1111 = vpop.f32.mrf.mxu0
      %v1112 = vadd.f32 %v1092, %v1111
      %1113 = vdwg.mxu0
      %1114 = vmatpush.msra.mxu0 %v227
      %1115 = vmatpush.msra.mxu0 %v226
      %1116 = vmatpush.msra.mxu0 %v225
      %1117 = vmatpush.msra.mxu0 %v224
      %1118 = vmatpush.msra.mxu0 %v223
      %1119 = vmatpush.msra.mxu0 %v222
      %1120 = vmatpush.msra.mxu0 %v221
      %1121 = vmatpush.msra.mxu0 %v220
      %1122 = vmatpush.msra.mxu0 %v219
      %1123 = vmatpush.msra.mxu0 %v218
      %1124 = vmatpush.msra.mxu0 %v217
      %1125 = vmatpush.msra.mxu0 %v216
      %1126 = vmatpush.msra.mxu0 %v215
      %1127 = vmatpush.msra.mxu0 %v214
      %1128 = vmatpush.msra.mxu0 %v213
      %1129 = vmatpush.msra.mxu0 %v212
      %1130 = vmatmul.f32.gmra.mxu0 %v1046
      %v1131 = vpop.f32.mrf.mxu0
      %v1132 = vadd.f32 %v1112, %v1131
      %1133 = vdwg.mxu0
      %1134 = vmatpush.msra.mxu0 0.0
      %1135 = vmatpush.msra.mxu0 0.0
      %1136 = vmatpush.msra.mxu0 0.0
      %1137 = vmatpush.msra.mxu0 0.0
      %1138 = vmatpush.msra.mxu0 0.0
      %1139 = vmatpush.msra.mxu0 0.0
      %1140 = vmatpush.msra.mxu0 0.0
      %1141 = vmatpush.msra.mxu0 0.0
      %1142 = vmatpush.msra.mxu0 %v235
      %1143 = vmatpush.msra.mxu0 %v234
      %1144 = vmatpush.msra.mxu0 %v233
      %1145 = vmatpush.msra.mxu0 %v232
      %1146 = vmatpush.msra.mxu0 %v231
      %1147 = vmatpush.msra.mxu0 %v230
      %1148 = vmatpush.msra.mxu0 %v229
      %1149 = vmatpush.msra.mxu0 %v228
      %1150 = vmatmul.f32.gmra.mxu0 %v1052
      %v1151 = vpop.f32.mrf.mxu0
      %v1152 = vadd.f32 %v1132, %v1151
      %1153 = vdwg.mxu0
      %v1154 = vmax.f32 %v1039, %v1152
      %s1155 = scalar_lea.vmem %s160, 40
      %v1156 = vld [vmem:[%s1155] sm:$0x1f]
      %v1158 = vperm.slane %v1156, 0
      %v1159 = vperm.slane %v1156, 1
      %v1160 = vperm.slane %v1156, 2
      %v1161 = vperm.slane %v1156, 3
      %v1162 = vperm.slane %v1156, 4
      %v1167 = vsel %vm247, %v1162, 0
      %1169 = vmatpush.msra.mxu0 %v179
      %1170 = vmatpush.msra.mxu0 %v178
      %1171 = vmatpush.msra.mxu0 %v177
      %1172 = vmatpush.msra.mxu0 %v176
      %1173 = vmatpush.msra.mxu0 %v175
      %1174 = vmatpush.msra.mxu0 %v174
      %1175 = vmatpush.msra.mxu0 %v173
      %1176 = vmatpush.msra.mxu0 %v172
      %1177 = vmatpush.msra.mxu0 %v171
      %1178 = vmatpush.msra.mxu0 %v170
      %1179 = vmatpush.msra.mxu0 %v169
      %1180 = vmatpush.msra.mxu0 %v168
      %1181 = vmatpush.msra.mxu0 %v167
      %1182 = vmatpush.msra.mxu0 %v166
      %1183 = vmatpush.msra.mxu0 %v165
      %1184 = vmatpush.msra.mxu0 %v164
      %1185 = vmatmul.f32.gmra.mxu0 %v1158
      %v1186 = vpop.f32.mrf.mxu0
      %v1187 = vadd.f32 0.0, %v1186
      %1188 = vdwg.mxu0
      %1189 = vmatpush.msra.mxu0 %v195
      %1190 = vmatpush.msra.mxu0 %v194
      %1191 = vmatpush.msra.mxu0 %v193
      %1192 = vmatpush.msra.mxu0 %v192
      %1193 = vmatpush.msra.mxu0 %v191
      %1194 = vmatpush.msra.mxu0 %v190
      %1195 = vmatpush.msra.mxu0 %v189
      %1196 = vmatpush.msra.mxu0 %v188
      %1197 = vmatpush.msra.mxu0 %v187
      %1198 = vmatpush.msra.mxu0 %v186
      %1199 = vmatpush.msra.mxu0 %v185
      %1200 = vmatpush.msra.mxu0 %v184
      %1201 = vmatpush.msra.mxu0 %v183
      %1202 = vmatpush.msra.mxu0 %v182
      %1203 = vmatpush.msra.mxu0 %v181
      %1204 = vmatpush.msra.mxu0 %v180
      %1205 = vmatmul.f32.gmra.mxu0 %v1159
      %v1206 = vpop.f32.mrf.mxu0
      %v1207 = vadd.f32 %v1187, %v1206
      %1208 = vdwg.mxu0
      %1209 = vmatpush.msra.mxu0 %v211
      %1210 = vmatpush.msra.mxu0 %v210
      %1211 = vmatpush.msra.mxu0 %v209
      %1212 = vmatpush.msra.mxu0 %v208
      %1213 = vmatpush.msra.mxu0 %v207
      %1214 = vmatpush.msra.mxu0 %v206
      %1215 = vmatpush.msra.mxu0 %v205
      %1216 = vmatpush.msra.mxu0 %v204
      %1217 = vmatpush.msra.mxu0 %v203
      %1218 = vmatpush.msra.mxu0 %v202
      %1219 = vmatpush.msra.mxu0 %v201
      %1220 = vmatpush.msra.mxu0 %v200
      %1221 = vmatpush.msra.mxu0 %v199
      %1222 = vmatpush.msra.mxu0 %v198
      %1223 = vmatpush.msra.mxu0 %v197
      %1224 = vmatpush.msra.mxu0 %v196
      %1225 = vmatmul.f32.gmra.mxu0 %v1160
      %v1226 = vpop.f32.mrf.mxu0
      %v1227 = vadd.f32 %v1207, %v1226
      %1228 = vdwg.mxu0
      %1229 = vmatpush.msra.mxu0 %v227
      %1230 = vmatpush.msra.mxu0 %v226
      %1231 = vmatpush.msra.mxu0 %v225
      %1232 = vmatpush.msra.mxu0 %v224
      %1233 = vmatpush.msra.mxu0 %v223
      %1234 = vmatpush.msra.mxu0 %v222
      %1235 = vmatpush.msra.mxu0 %v221
      %1236 = vmatpush.msra.mxu0 %v220
      %1237 = vmatpush.msra.mxu0 %v219
      %1238 = vmatpush.msra.mxu0 %v218
      %1239 = vmatpush.msra.mxu0 %v217
      %1240 = vmatpush.msra.mxu0 %v216
      %1241 = vmatpush.msra.mxu0 %v215
      %1242 = vmatpush.msra.mxu0 %v214
      %1243 = vmatpush.msra.mxu0 %v213
      %1244 = vmatpush.msra.mxu0 %v212
      %1245 = vmatmul.f32.gmra.mxu0 %v1161
      %v1246 = vpop.f32.mrf.mxu0
      %v1247 = vadd.f32 %v1227, %v1246
      %1248 = vdwg.mxu0
      %1249 = vmatpush.msra.mxu0 0.0
      %1250 = vmatpush.msra.mxu0 0.0
      %1251 = vmatpush.msra.mxu0 0.0
      %1252 = vmatpush.msra.mxu0 0.0
      %1253 = vmatpush.msra.mxu0 0.0
      %1254 = vmatpush.msra.mxu0 0.0
      %1255 = vmatpush.msra.mxu0 0.0
      %1256 = vmatpush.msra.mxu0 0.0
      %1257 = vmatpush.msra.mxu0 %v235
      %1258 = vmatpush.msra.mxu0 %v234
      %1259 = vmatpush.msra.mxu0 %v233
      %1260 = vmatpush.msra.mxu0 %v232
      %1261 = vmatpush.msra.mxu0 %v231
      %1262 = vmatpush.msra.mxu0 %v230
      %1263 = vmatpush.msra.mxu0 %v229
      %1264 = vmatpush.msra.mxu0 %v228
      %1265 = vmatmul.f32.gmra.mxu0 %v1167
      %v1266 = vpop.f32.mrf.mxu0
      %v1267 = vadd.f32 %v1247, %v1266
      %1268 = vdwg.mxu0
      %v1269 = vmax.f32 %v1154, %v1267
      %v1270 = vld [vmem:[%s2] sm:$0x1]
      %v1271 = vadd.f32 %v1269, %v1270
      %vm1272 = vcmp.ge.f32.partialorder %v1271, 0.0
      %v1273 = vmul.f32 %v1271, 0.01
      %v1274 = vsel %vm1272, %v1271, %v1273
      %1275 = vst [vmem:[%s163] sm:$0x1] %v1274
      %p1276 = scmp.lt.s32.totalorder %s14, 1
      %s1277 = scalar_select %p1276, %s14, 1
      %s1278 = scalar_lea.vmem %s3, %s1277
      // Predicated region
      $region33: #{classifier_forward.8} parent=31 // pred_check
        %p1279 = pneg %p100
      $region34: #{classifier_forward.8} parent=31 // pred_check_branch
        %1281 = sbr.rel (%p1279) target = $region36
      $region35: #{classifier_forward.8} parent=31 // pred_region
        _
      $region36: #{classifier_forward.8} parent=31 // pred_fallthru
        _
    $region32: #{classifier_forward.8} parent=5 // pred_fallthru
      _
    %p1282 = scmp.le.s32.totalorder 2, %s9
    // Predicated region
    $region37: #{classifier_forward.8} parent=5 // pred_check
      %p1283 = pneg %p1282
    $region38: #{classifier_forward.8} parent=5 // pred_check_branch
      %1285 = sbr.rel (%p1283) target = $region40
    $region39: #{classifier_forward.8} parent=5 // pred_region
      %s1286 = ssub.s32 %s9, 2
      // Predicated region
      $region41: #{classifier_forward.8} parent=39 // pred_check
        %p1287 = pneg %p106
      $region42: #{classifier_forward.8} parent=39 // pred_check_branch
        %1289 = sbr.rel (%p1287) target = $region44
      $region43: #{classifier_forward.8} parent=39 // pred_region
        %p1290 = scmp.lt.s32.totalorder %s15, 1
        %s1291 = scalar_select %p1290, %s15, 1
        %s1292 = scalar_lea.vmem %s3, %s1291
      $region44: #{classifier_forward.8} parent=39 // pred_fallthru
        _
    $region40: #{classifier_forward.8} parent=5 // pred_fallthru
      _
  $region6: #{classifier_forward.8} parent=0 // loop_footer
    %s13 = sadd.s32 1, %s9
  $region7: #{classifier_forward.8} parent=0 // loop_footer_branch
    %8 = sbr.rel target = $region3
  $region8: #{classifier_forward.8} parent=0 // loop_exit
    _

</llo_original>
